<compile_context>
chip_gen: v7x
topology: tpu7x:2x2x1
jax: 0.10.0
libtpu: 0.0.40
codegen_flags: <defaults>
</compile_context>

<pallas_src>
import jax
import jax.numpy as jnp
from jax.experimental import pallas as pl
from jax.experimental.pallas import tpu as pltpu

LAYER_DIMS = (1024, 1024, 512, 256, 128, 1000)   # output widths of the 6 Linear layers


def _round_up(x, m):
    return (x + m - 1) // m * m


def _probe_weight_buffered():
    """Grid-invariant weights only need one pipeline buffer.  Probe once whether
    this JAX accepts `pipeline_mode=` on BlockSpec (constructor-level check)."""
    try:
        pl.BlockSpec((8, 128), lambda i: (0, 0), pipeline_mode=pl.Buffered(1))
        return {"pipeline_mode": pl.Buffered(1)}
    except (AttributeError, TypeError):
        return {}


_WEIGHT_BUFFERED_KW = _probe_weight_buffered()


# ----------------------------------------------------------------------------- kernel
def _mlp_kernel(x_ref,
                w1, b1, w2, b2, w3, b3, w4, b4, w5, b5, w6, b6,
                o_ref):
    """Fused 6-layer MLP: (Linear -> ReLU) x 6 on one batch tile.

    Activations are bf16 going into every MXU matmul and bf16 coming out of
    every ReLU (so inter-layer VMEM traffic is bf16); accumulation and the
    bias-add/ReLU are fp32.
    """
    def layer(h, w_ref, b_ref):
        y = jnp.dot(h, w_ref[...], preferred_element_type=jnp.float32)  # bf16 x bf16 -> f32 MXU
        y = y + b_ref[...]                                              # (1, out) fp32, broadcasts
        return jnp.maximum(y, 0.0).astype(jnp.bfloat16)                 # ReLU, store bf16

    h = x_ref[...]            # already bf16 from the wrapper
    h = layer(h, w1, b1)
    h = layer(h, w2, b2)
    h = layer(h, w3, b3)
    h = layer(h, w4, b4)
    h = layer(h, w5, b5)
    h = layer(h, w6, b6)
    o_ref[...] = h.astype(o_ref.dtype)   # bf16 output, lane-dense (1024-wide padded)


# ----------------------------------------------------------------------------- wrapper
def prepare_params(params, d_in):
    """One-time (hot-path-hoisted) weight preparation.

    params: list of (W [in, out] f32, b [1, out] or [out] f32) == PyTorch weight.T, bias.
    Returns (prepped, meta) with bf16 weights, fp32 [1, out] biases, first-layer
    rows padded to a multiple of 128 and last-layer columns padded to 1024.
    """
    n_layers = len(params)
    out_dim = int(params[-1][0].shape[1])
    d_in_pad = _round_up(d_in, 128)
    out_pad = _round_up(out_dim, 128)

    prepped = []
    for li, (w, b) in enumerate(params):
        w = jnp.asarray(w, jnp.float32)
        b = jnp.asarray(b, jnp.float32).reshape(1, -1)
        if li == 0 and d_in_pad != d_in:
            w = jnp.pad(w, ((0, d_in_pad - d_in), (0, 0)))
        if li == n_layers - 1 and out_pad != out_dim:
            w = jnp.pad(w, ((0, 0), (0, out_pad - out_dim)))
            b = jnp.pad(b, ((0, 0), (0, out_pad - out_dim)))
        prepped.append((w.astype(jnp.bfloat16), b))

    meta = {"d_in": d_in, "d_in_pad": d_in_pad, "out_dim": out_dim, "out_pad": out_pad}
    return prepped, meta


def mlps_forward(x, prepped, meta, *, block_rows=None):
    """x: [B, H] float.  prepped/meta: from prepare_params.  Returns [B, 1000] f32."""
    B, d_in = x.shape
    assert d_in == meta["d_in"], "input width does not match prepared params"
    d_in_pad, out_dim, out_pad = meta["d_in_pad"], meta["out_dim"], meta["out_pad"]

    # Batch tiling (multiple of 16 for bf16 sublane packing).  Default 512 rows;
    # if the whole batch fits one >256-row step, split it so the grid has >=2
    # "parallel" steps (keeps both v7x TensorCores busy).
    if block_rows is None:
        block_rows = 512
    B16 = _round_up(B, 16)
    block_rows = max(16, min(block_rows, B16))
    if block_rows == B16 and block_rows > 256:
        block_rows = _round_up((B16 + 1) // 2, 16)
    B_pad = _round_up(B, block_rows)

    # Pad the activations only (weights are already prepared); pass bf16 to the kernel.
    x_pad = x.astype(jnp.bfloat16)
    if (B_pad, d_in_pad) != (B, d_in):
        x_pad = jnp.pad(x_pad, ((0, B_pad - B), (0, d_in_pad - d_in)))

    flops = 2 * B_pad * sum(int(w.shape[0]) * int(w.shape[1]) for w, _ in prepped)
    bytes_accessed = (B_pad * d_in_pad * 2
                      + sum(int(w.size) * 2 + int(b.size) * 4 for w, b in prepped)
                      + B_pad * out_pad * 2)

    grid = (B_pad // block_rows,)

    def build(weight_kw):
        in_specs = [pl.BlockSpec((block_rows, d_in_pad), lambda i: (i, 0))]
        for w, b in prepped:
            # Whole weight/bias every step; constant block index -> fetched once,
            # stays VMEM-resident across the batch grid.
            in_specs.append(pl.BlockSpec(w.shape, lambda i: (0, 0), **weight_kw))
            in_specs.append(pl.BlockSpec(b.shape, lambda i: (0, 0), **weight_kw))
        out_spec = pl.BlockSpec((block_rows, out_pad), lambda i: (i, 0))
        return pl.pallas_call(
            _mlp_kernel,
            out_shape=jax.ShapeDtypeStruct((B_pad, out_pad), jnp.bfloat16),
            grid_spec=pltpu.PrefetchScalarGridSpec(
                num_scalar_prefetch=0,
                grid=grid,
                in_specs=in_specs,
                out_specs=out_spec,
            ),
            compiler_params=pltpu.CompilerParams(
                dimension_semantics=("parallel",),
                vmem_limit_bytes=48 << 20,
            ),
            cost_estimate=pl.CostEstimate(
                flops=flops, transcendentals=0, bytes_accessed=bytes_accessed),
        )

    flat = [p for wb in prepped for p in wb]
    if _WEIGHT_BUFFERED_KW:
        try:
            out = build(_WEIGHT_BUFFERED_KW)(x_pad, *flat)
        except (pltpu.LoweringException, NotImplementedError, ValueError):
            # Narrow fallback: only if the lowering rejects pipeline_mode on these
            # specs.  Double-buffered bf16 weights are still only ~8 MiB.
            out = build({})(x_pad, *flat)
    else:
        out = build({})(x_pad, *flat)

    # Slice off padded batch rows / padded output columns; give the caller f32
    # (matches the PyTorch module's output dtype).
    return out[:B, :out_dim].astype(jnp.float32)


# ----------------------------------------------------------------------------- init / reference
def init_params(key, H):
    """Deterministic init matching nn.Linear shapes of MLPS_for_reprogram.__init__."""
    dims = (H,) + LAYER_DIMS
    params = []
    for li in range(len(dims) - 1):
        fan_in, fan_out = dims[li], dims[li + 1]
        key, k_w, k_b = jax.random.split(key, 3)
        bound = 1.0 / (fan_in ** 0.5)
        w = jax.random.uniform(k_w, (fan_in, fan_out), jnp.float32, -bound, bound)
        b = jax.random.uniform(k_b, (1, fan_out), jnp.float32, -bound, bound)
        params.append((w, b))
    return params


def mlps_reference(x, params):
    """Pure-JAX reference using the same bf16-weight / fp32-accumulation math."""
    h = x.astype(jnp.float32)
    for w, b in params:
        y = jnp.dot(h.astype(jnp.bfloat16), w.astype(jnp.bfloat16),
                    preferred_element_type=jnp.float32) + b
        h = jnp.maximum(y, 0.0)
    return h


if __name__ == "__main__":
    H = 64      # input feature width of MLPS_for_reprogram (self.H)
    B = 8       # small batch

    key = jax.random.PRNGKey(0)
    key, kx = jax.random.split(key)
    x = jax.random.normal(kx, (B, H), jnp.float32)
    params = init_params(key, H)

    # One-time weight preparation (hoisted out of the per-call hot path).
    prepped, meta = prepare_params(params, H)

    out = mlps_forward(x, prepped, meta)
    out = jax.block_until_ready(out)

    ref = mlps_reference(x, params)
    assert out.shape == (B, LAYER_DIMS[-1])
    assert jnp.allclose(out, ref, atol=3e-2, rtol=3e-2), (
        "mismatch vs reference: max abs err "
        f"{float(jnp.max(jnp.abs(out - ref)))}")

    print("KERNEL_OK")
</pallas_src>

<mosaic_0001>
module attributes {stable_mosaic.version = 11 : i64} {
  func.func @_mlp_kernel(%arg0: i32, %arg1: memref<16x128xbf16, #tpu.memory_space<vmem>>, %arg2: memref<128x1024xbf16, #tpu.memory_space<vmem>>, %arg3: memref<1x1024xf32, #tpu.memory_space<vmem>>, %arg4: memref<1024x1024xbf16, #tpu.memory_space<vmem>>, %arg5: memref<1x1024xf32, #tpu.memory_space<vmem>>, %arg6: memref<1024x512xbf16, #tpu.memory_space<vmem>>, %arg7: memref<1x512xf32, #tpu.memory_space<vmem>>, %arg8: memref<512x256xbf16, #tpu.memory_space<vmem>>, %arg9: memref<1x256xf32, #tpu.memory_space<vmem>>, %arg10: memref<256x128xbf16, #tpu.memory_space<vmem>>, %arg11: memref<1x128xf32, #tpu.memory_space<vmem>>, %arg12: memref<128x1024xbf16, #tpu.memory_space<vmem>>, %arg13: memref<1x1024xf32, #tpu.memory_space<vmem>>, %arg14: memref<16x1024xbf16, #tpu.memory_space<vmem>>) attributes {dimension_semantics = [#tpu.dimension_semantics<parallel>], iteration_bounds = array<i64: 1>, scalar_prefetch = 0 : i64, scratch_operands = 0 : i64, tpu.core_type = #tpu.core_type<tc>, window_params = [{transform_indices = @transform_0, window_bounds = array<i64: 16, 128>}, {pipeline_mode = #tpu.pipeline_mode<synchronous>, transform_indices = @transform_1, window_bounds = array<i64: 128, 1024>}, {pipeline_mode = #tpu.pipeline_mode<synchronous>, transform_indices = @transform_2, window_bounds = array<i64: 1, 1024>}, {pipeline_mode = #tpu.pipeline_mode<synchronous>, transform_indices = @transform_3, window_bounds = array<i64: 1024, 1024>}, {pipeline_mode = #tpu.pipeline_mode<synchronous>, transform_indices = @transform_4, window_bounds = array<i64: 1, 1024>}, {pipeline_mode = #tpu.pipeline_mode<synchronous>, transform_indices = @transform_5, window_bounds = array<i64: 1024, 512>}, {pipeline_mode = #tpu.pipeline_mode<synchronous>, transform_indices = @transform_6, window_bounds = array<i64: 1, 512>}, {pipeline_mode = #tpu.pipeline_mode<synchronous>, transform_indices = @transform_7, window_bounds = array<i64: 512, 256>}, {pipeline_mode = #tpu.pipeline_mode<synchronous>, transform_indices = @transform_8, window_bounds = array<i64: 1, 256>}, {pipeline_mode = #tpu.pipeline_mode<synchronous>, transform_indices = @transform_9, window_bounds = array<i64: 256, 128>}, {pipeline_mode = #tpu.pipeline_mode<synchronous>, transform_indices = @transform_10, window_bounds = array<i64: 1, 128>}, {pipeline_mode = #tpu.pipeline_mode<synchronous>, transform_indices = @transform_11, window_bounds = array<i64: 128, 1024>}, {pipeline_mode = #tpu.pipeline_mode<synchronous>, transform_indices = @transform_12, window_bounds = array<i64: 1, 1024>}, {transform_indices = @transform_13, window_bounds = array<i64: 16, 1024>}]} {
    %c0 = arith.constant 0 : index
    %c0_0 = arith.constant 0 : index
    %0 = vector.load %arg1[%c0, %c0_0] : memref<16x128xbf16, #tpu.memory_space<vmem>>, vector<16x128xbf16>
    %c0_1 = arith.constant 0 : index
    %c0_2 = arith.constant 0 : index
    %1 = vector.load %arg2[%c0_1, %c0_2] : memref<128x1024xbf16, #tpu.memory_space<vmem>>, vector<128x1024xbf16>
    %cst = arith.constant dense<0.000000e+00> : vector<16x1024xf32>
    %2 = tpu.matmul %0, %1, %cst {dimension_numbers = #tpu.dot_dimension_numbers<[1], [0], [0], [1], [0, 0, 1, 1], [], []>} : vector<16x128xbf16>, vector<128x1024xbf16>, vector<16x1024xf32> -> vector<16x1024xf32>
    %c0_3 = arith.constant 0 : index
    %c0_4 = arith.constant 0 : index
    %3 = vector.load %arg3[%c0_3, %c0_4] : memref<1x1024xf32, #tpu.memory_space<vmem>>, vector<1x1024xf32>
    %4 = vector.broadcast %3 : vector<1x1024xf32> to vector<16x1024xf32>
    %5 = arith.addf %2, %4 : vector<16x1024xf32>
    %cst_5 = arith.constant 0.000000e+00 : f32
    %6 = vector.broadcast %cst_5 : f32 to vector<16x1024xf32>
    %7 = arith.maximumf %5, %6 : vector<16x1024xf32>
    %8 = arith.truncf %7 : vector<16x1024xf32> to vector<16x1024xbf16>
    %c0_6 = arith.constant 0 : index
    %c0_7 = arith.constant 0 : index
    %9 = vector.load %arg4[%c0_6, %c0_7] : memref<1024x1024xbf16, #tpu.memory_space<vmem>>, vector<1024x1024xbf16>
    %cst_8 = arith.constant dense<0.000000e+00> : vector<16x1024xf32>
    %10 = tpu.matmul %8, %9, %cst_8 {dimension_numbers = #tpu.dot_dimension_numbers<[1], [0], [0], [1], [0, 0, 1, 1], [], []>} : vector<16x1024xbf16>, vector<1024x1024xbf16>, vector<16x1024xf32> -> vector<16x1024xf32>
    %c0_9 = arith.constant 0 : index
    %c0_10 = arith.constant 0 : index
    %11 = vector.load %arg5[%c0_9, %c0_10] : memref<1x1024xf32, #tpu.memory_space<vmem>>, vector<1x1024xf32>
    %12 = vector.broadcast %11 : vector<1x1024xf32> to vector<16x1024xf32>
    %13 = arith.addf %10, %12 : vector<16x1024xf32>
    %cst_11 = arith.constant 0.000000e+00 : f32
    %14 = vector.broadcast %cst_11 : f32 to vector<16x1024xf32>
    %15 = arith.maximumf %13, %14 : vector<16x1024xf32>
    %16 = arith.truncf %15 : vector<16x1024xf32> to vector<16x1024xbf16>
    %c0_12 = arith.constant 0 : index
    %c0_13 = arith.constant 0 : index
    %17 = vector.load %arg6[%c0_12, %c0_13] : memref<1024x512xbf16, #tpu.memory_space<vmem>>, vector<1024x512xbf16>
    %cst_14 = arith.constant dense<0.000000e+00> : vector<16x512xf32>
    %18 = tpu.matmul %16, %17, %cst_14 {dimension_numbers = #tpu.dot_dimension_numbers<[1], [0], [0], [1], [0, 0, 1, 1], [], []>} : vector<16x1024xbf16>, vector<1024x512xbf16>, vector<16x512xf32> -> vector<16x512xf32>
    %c0_15 = arith.constant 0 : index
    %c0_16 = arith.constant 0 : index
    %19 = vector.load %arg7[%c0_15, %c0_16] : memref<1x512xf32, #tpu.memory_space<vmem>>, vector<1x512xf32>
    %20 = vector.broadcast %19 : vector<1x512xf32> to vector<16x512xf32>
    %21 = arith.addf %18, %20 : vector<16x512xf32>
    %cst_17 = arith.constant 0.000000e+00 : f32
    %22 = vector.broadcast %cst_17 : f32 to vector<16x512xf32>
    %23 = arith.maximumf %21, %22 : vector<16x512xf32>
    %24 = arith.truncf %23 : vector<16x512xf32> to vector<16x512xbf16>
    %c0_18 = arith.constant 0 : index
    %c0_19 = arith.constant 0 : index
    %25 = vector.load %arg8[%c0_18, %c0_19] : memref<512x256xbf16, #tpu.memory_space<vmem>>, vector<512x256xbf16>
    %cst_20 = arith.constant dense<0.000000e+00> : vector<16x256xf32>
    %26 = tpu.matmul %24, %25, %cst_20 {dimension_numbers = #tpu.dot_dimension_numbers<[1], [0], [0], [1], [0, 0, 1, 1], [], []>} : vector<16x512xbf16>, vector<512x256xbf16>, vector<16x256xf32> -> vector<16x256xf32>
    %c0_21 = arith.constant 0 : index
    %c0_22 = arith.constant 0 : index
    %27 = vector.load %arg9[%c0_21, %c0_22] : memref<1x256xf32, #tpu.memory_space<vmem>>, vector<1x256xf32>
    %28 = vector.broadcast %27 : vector<1x256xf32> to vector<16x256xf32>
    %29 = arith.addf %26, %28 : vector<16x256xf32>
    %cst_23 = arith.constant 0.000000e+00 : f32
    %30 = vector.broadcast %cst_23 : f32 to vector<16x256xf32>
    %31 = arith.maximumf %29, %30 : vector<16x256xf32>
    %32 = arith.truncf %31 : vector<16x256xf32> to vector<16x256xbf16>
    %c0_24 = arith.constant 0 : index
    %c0_25 = arith.constant 0 : index
    %33 = vector.load %arg10[%c0_24, %c0_25] : memref<256x128xbf16, #tpu.memory_space<vmem>>, vector<256x128xbf16>
    %cst_26 = arith.constant dense<0.000000e+00> : vector<16x128xf32>
    %34 = tpu.matmul %32, %33, %cst_26 {dimension_numbers = #tpu.dot_dimension_numbers<[1], [0], [0], [1], [0, 0, 1, 1], [], []>} : vector<16x256xbf16>, vector<256x128xbf16>, vector<16x128xf32> -> vector<16x128xf32>
    %c0_27 = arith.constant 0 : index
    %c0_28 = arith.constant 0 : index
    %35 = vector.load %arg11[%c0_27, %c0_28] : memref<1x128xf32, #tpu.memory_space<vmem>>, vector<1x128xf32>
    %36 = vector.broadcast %35 : vector<1x128xf32> to vector<16x128xf32>
    %37 = arith.addf %34, %36 : vector<16x128xf32>
    %cst_29 = arith.constant 0.000000e+00 : f32
    %38 = vector.broadcast %cst_29 : f32 to vector<16x128xf32>
    %39 = arith.maximumf %37, %38 : vector<16x128xf32>
    %40 = arith.truncf %39 : vector<16x128xf32> to vector<16x128xbf16>
    %c0_30 = arith.constant 0 : index
    %c0_31 = arith.constant 0 : index
    %41 = vector.load %arg12[%c0_30, %c0_31] : memref<128x1024xbf16, #tpu.memory_space<vmem>>, vector<128x1024xbf16>
    %cst_32 = arith.constant dense<0.000000e+00> : vector<16x1024xf32>
    %42 = tpu.matmul %40, %41, %cst_32 {dimension_numbers = #tpu.dot_dimension_numbers<[1], [0], [0], [1], [0, 0, 1, 1], [], []>} : vector<16x128xbf16>, vector<128x1024xbf16>, vector<16x1024xf32> -> vector<16x1024xf32>
    %c0_33 = arith.constant 0 : index
    %c0_34 = arith.constant 0 : index
    %43 = vector.load %arg13[%c0_33, %c0_34] : memref<1x1024xf32, #tpu.memory_space<vmem>>, vector<1x1024xf32>
    %44 = vector.broadcast %43 : vector<1x1024xf32> to vector<16x1024xf32>
    %45 = arith.addf %42, %44 : vector<16x1024xf32>
    %cst_35 = arith.constant 0.000000e+00 : f32
    %46 = vector.broadcast %cst_35 : f32 to vector<16x1024xf32>
    %47 = arith.maximumf %45, %46 : vector<16x1024xf32>
    %48 = arith.truncf %47 : vector<16x1024xf32> to vector<16x1024xbf16>
    %c0_36 = arith.constant 0 : index
    %c0_37 = arith.constant 0 : index
    %49 = vector.load %arg14[%c0_36, %c0_37] : memref<16x1024xbf16, #tpu.memory_space<vmem>>, vector<16x1024xbf16>
    tpu.vector_store %arg14[%c0_36, %c0_37], %48 {strides = array<i32>} : memref<16x1024xbf16, #tpu.memory_space<vmem>>, vector<16x1024xbf16>,
    return
  }
  func.func @transform_0(%arg0: i32) -> (i32, i32) {
    %c0_i32 = arith.constant 0 : i32
    %c0_i32_0 = arith.constant 0 : i32
    return %arg0, %c0_i32 : i32, i32
  }
  func.func @transform_1(%arg0: i32) -> (i32, i32) {
    %c0_i32 = arith.constant 0 : i32
    %c0_i32_0 = arith.constant 0 : i32
    %c0_i32_1 = arith.constant 0 : i32
    return %c0_i32, %c0_i32_0 : i32, i32
  }
  func.func @transform_2(%arg0: i32) -> (i32, i32) {
    %c0_i32 = arith.constant 0 : i32
    %c0_i32_0 = arith.constant 0 : i32
    %c0_i32_1 = arith.constant 0 : i32
    return %c0_i32, %c0_i32_0 : i32, i32
  }
  func.func @transform_3(%arg0: i32) -> (i32, i32) {
    %c0_i32 = arith.constant 0 : i32
    %c0_i32_0 = arith.constant 0 : i32
    %c0_i32_1 = arith.constant 0 : i32
    return %c0_i32, %c0_i32_0 : i32, i32
  }
  func.func @transform_4(%arg0: i32) -> (i32, i32) {
    %c0_i32 = arith.constant 0 : i32
    %c0_i32_0 = arith.constant 0 : i32
    %c0_i32_1 = arith.constant 0 : i32
    return %c0_i32, %c0_i32_0 : i32, i32
  }
  func.func @transform_5(%arg0: i32) -> (i32, i32) {
    %c0_i32 = arith.constant 0 : i32
    %c0_i32_0 = arith.constant 0 : i32
    %c0_i32_1 = arith.constant 0 : i32
    return %c0_i32, %c0_i32_0 : i32, i32
  }
  func.func @transform_6(%arg0: i32) -> (i32, i32) {
    %c0_i32 = arith.constant 0 : i32
    %c0_i32_0 = arith.constant 0 : i32
    %c0_i32_1 = arith.constant 0 : i32
    return %c0_i32, %c0_i32_0 : i32, i32
  }
  func.func @transform_7(%arg0: i32) -> (i32, i32) {
    %c0_i32 = arith.constant 0 : i32
    %c0_i32_0 = arith.constant 0 : i32
    %c0_i32_1 = arith.constant 0 : i32
    return %c0_i32, %c0_i32_0 : i32, i32
  }
  func.func @transform_8(%arg0: i32) -> (i32, i32) {
    %c0_i32 = arith.constant 0 : i32
    %c0_i32_0 = arith.constant 0 : i32
    %c0_i32_1 = arith.constant 0 : i32
    return %c0_i32, %c0_i32_0 : i32, i32
  }
  func.func @transform_9(%arg0: i32) -> (i32, i32) {
    %c0_i32 = arith.constant 0 : i32
    %c0_i32_0 = arith.constant 0 : i32
    %c0_i32_1 = arith.constant 0 : i32
    return %c0_i32, %c0_i32_0 : i32, i32
  }
  func.func @transform_10(%arg0: i32) -> (i32, i32) {
    %c0_i32 = arith.constant 0 : i32
    %c0_i32_0 = arith.constant 0 : i32
    %c0_i32_1 = arith.constant 0 : i32
    return %c0_i32, %c0_i32_0 : i32, i32
  }
  func.func @transform_11(%arg0: i32) -> (i32, i32) {
    %c0_i32 = arith.constant 0 : i32
    %c0_i32_0 = arith.constant 0 : i32
    %c0_i32_1 = arith.constant 0 : i32
    return %c0_i32, %c0_i32_0 : i32, i32
  }
  func.func @transform_12(%arg0: i32) -> (i32, i32) {
    %c0_i32 = arith.constant 0 : i32
    %c0_i32_0 = arith.constant 0 : i32
    %c0_i32_1 = arith.constant 0 : i32
    return %c0_i32, %c0_i32_0 : i32, i32
  }
  func.func @transform_13(%arg0: i32) -> (i32, i32) {
    %c0_i32 = arith.constant 0 : i32
    %c0_i32_0 = arith.constant 0 : i32
    return %arg0, %c0_i32 : i32, i32
  }
}

</mosaic_0001>

<llo_original>
// kernel: tpu_custom_call.1
$region0: #{tpu_custom_call.1}
  #allocation0 [shape = 'u32[]', space=smem, size = 0x4, offset = 0x4, fixed_abs, tag = 'smem constant byte address 0x4 - core index']
  #allocation1 [shape = 'u32[144,128]{1,0:T(1,128)}', space=vmem, size = 0x12000, scoped, tag = 'internal scratch']
  %s0 = inlined_call_operand.hbm [shape: bf16[16,128], index: 0, kind: input, shape index: {}]
  %s1 = inlined_call_operand.hbm [shape: bf16[128,1024], index: 1, kind: input, shape index: {}]
  %s2 = inlined_call_operand.hbm [shape: f32[1,1024], index: 2, kind: input, shape index: {}]
  %s3 = inlined_call_operand.hbm [shape: bf16[1024,1024], index: 3, kind: input, shape index: {}]
  %s4 = inlined_call_operand.hbm [shape: f32[1,1024], index: 4, kind: input, shape index: {}]
  %s5 = inlined_call_operand.hbm [shape: bf16[1024,512], index: 5, kind: input, shape index: {}]
  %s6 = inlined_call_operand.hbm [shape: f32[1,512], index: 6, kind: input, shape index: {}]
  %s7 = inlined_call_operand.hbm [shape: bf16[512,256], index: 7, kind: input, shape index: {}]
  %s8 = inlined_call_operand.hbm [shape: f32[1,256], index: 8, kind: input, shape index: {}]
  %s9 = inlined_call_operand.hbm [shape: bf16[256,128], index: 9, kind: input, shape index: {}]
  %s10 = inlined_call_operand.hbm [shape: f32[1,128], index: 10, kind: input, shape index: {}]
  %s11 = inlined_call_operand.hbm [shape: bf16[128,1024], index: 11, kind: input, shape index: {}]
  %s12 = inlined_call_operand.hbm [shape: f32[1,1024], index: 12, kind: input, shape index: {}]
  %s13 = inlined_call_operand.hbm [shape: bf16[16,1024], index: 13, kind: output, shape index: {}]
  %s14 = sld [smem:[#allocation0]]
  $region114: #{tpu_custom_call.1} parent=0
    _
  %s16 = ssub.s32 1, %s14
  %s17 = scalar_select 0, %s16, %s14
  $region1: #{tpu_custom_call.1} parent=0
    #allocation2 [shape = 'u8[4096]{0}', space=vmem, size = 0x1000, scoped, tag = 'input window, operand 0, single buffered']
    #allocation3 [shape = 's32[1]{0}', space=sflag, size = 0x4, scoped, tag = 'scoped memory for tpu_custom_call.1']
    #allocation4 [shape = 's32[1]{0}', space=sflag, size = 0x4, scoped, tag = 'scoped memory for tpu_custom_call.1']
    #allocation5 [shape = 'u8[262144]{0}', space=vmem, size = 0x40000, scoped, tag = 'input window, operand 1, single buffered']
    #allocation6 [shape = 's32[1]{0}', space=sflag, size = 0x4, scoped, tag = 'scoped memory for tpu_custom_call.1']
    #allocation7 [shape = 'u8[4096]{0}', space=vmem, size = 0x1000, scoped, tag = 'input window, operand 2, single buffered']
    #allocation8 [shape = 'u8[2097152]{0}', space=vmem, size = 0x200000, scoped, tag = 'input window, operand 3, single buffered']
    #allocation9 [shape = 's32[1]{0}', space=sflag, size = 0x4, scoped, tag = 'scoped memory for tpu_custom_call.1']
    #allocation10 [shape = 'u8[4096]{0}', space=vmem, size = 0x1000, scoped, tag = 'input window, operand 4, single buffered']
    #allocation11 [shape = 'u8[1048576]{0}', space=vmem, size = 0x100000, scoped, tag = 'input window, operand 5, single buffered']
    #allocation12 [shape = 's32[1]{0}', space=sflag, size = 0x4, scoped, tag = 'scoped memory for tpu_custom_call.1']
    #allocation13 [shape = 'u8[2048]{0}', space=vmem, size = 0x800, scoped, tag = 'input window, operand 6, single buffered']
    #allocation14 [shape = 'u8[262144]{0}', space=vmem, size = 0x40000, scoped, tag = 'input window, operand 7, single buffered']
    #allocation15 [shape = 's32[1]{0}', space=sflag, size = 0x4, scoped, tag = 'scoped memory for tpu_custom_call.1']
    #allocation16 [shape = 'u8[1024]{0}', space=vmem, size = 0x400, scoped, tag = 'input window, operand 8, single buffered']
    #allocation17 [shape = 'u8[65536]{0}', space=vmem, size = 0x10000, scoped, tag = 'input window, operand 9, single buffered']
    #allocation18 [shape = 's32[1]{0}', space=sflag, size = 0x4, scoped, tag = 'scoped memory for tpu_custom_call.1']
    #allocation19 [shape = 'u8[512]{0}', space=vmem, size = 0x400, scoped, tag = 'input window, operand 10, single buffered']
    #allocation20 [shape = 'u8[262144]{0}', space=vmem, size = 0x40000, scoped, tag = 'input window, operand 11, single buffered']
    #allocation21 [shape = 's32[1]{0}', space=sflag, size = 0x4, scoped, tag = 'scoped memory for tpu_custom_call.1']
    #allocation22 [shape = 'u8[4096]{0}', space=vmem, size = 0x1000, scoped, tag = 'input window, operand 12, single buffered']
    #allocation23 [shape = 'u8[32768]{0}', space=vmem, size = 0x8000, scoped, tag = 'output window, operand 0, single buffered']
    %18 = vsyncpa [#allocation3], 0
    %19 = vsyncpa [#allocation6], 0
    %20 = vsyncpa [#allocation9], 0
    %21 = vsyncpa [#allocation12], 0
    %22 = vsyncpa [#allocation15], 0
    %23 = vsyncpa [#allocation18], 0
    %24 = vsyncpa [#allocation21], 0
    %25 = vsyncpa [#allocation4], 0
    // Predicated region
    $region2: #{tpu_custom_call.1} parent=1 // pred_check
      _
    $region3: #{tpu_custom_call.1} parent=1 // pred_check_branch
      %27 = sbr.rel (0) target = $region5
    $region4: #{tpu_custom_call.1} parent=1 // pred_region
      %s29 = ssub.s32 128, 128
      %30 = vsyncadd [#allocation3], %s29
      %s31 = sshll.u32 [#allocation2], 4
      %s32 = int_to_ptr.vmem [resolvable:$true] %s31
      %37 = dma.hbm_to_vmem [thread:$0]  %s0, 128, %s32, [#allocation3], 64, 64, 4
    $region5: #{tpu_custom_call.1} parent=1 // pred_fallthru
      _
    // Predicated region
    $region6: #{tpu_custom_call.1} parent=1 // pred_check
      _
    $region7: #{tpu_custom_call.1} parent=1 // pred_check_branch
      %39 = sbr.rel (0) target = $region9
    $region8: #{tpu_custom_call.1} parent=1 // pred_region
      %s41 = ssub.s32 8192, 8192
      %42 = vsyncadd [#allocation6], %s41
      %s43 = sshll.u32 [#allocation5], 4
      %s44 = int_to_ptr.vmem [resolvable:$true] %s43
      %49 = dma.hbm_to_vmem [thread:$0]  %s1, 8192, %s44, [#allocation6], 512, 512, 32
    $region9: #{tpu_custom_call.1} parent=1 // pred_fallthru
      _
    // Predicated region
    $region10: #{tpu_custom_call.1} parent=1 // pred_check
      _
    $region11: #{tpu_custom_call.1} parent=1 // pred_check_branch
      %51 = sbr.rel (0) target = $region13
    $region12: #{tpu_custom_call.1} parent=1 // pred_region
      %s53 = ssub.s32 128, 128
      %54 = vsyncadd [#allocation6], %s53
      %s56 = sshll.u32 [#allocation7], 4
      %s57 = int_to_ptr.vmem [resolvable:$true] %s56
      %59 = dma.hbm_to_vmem [thread:$0]  %s2, 128, %s57, [#allocation6]
    $region13: #{tpu_custom_call.1} parent=1 // pred_fallthru
      _
    // Predicated region
    $region14: #{tpu_custom_call.1} parent=1 // pred_check
      _
    $region15: #{tpu_custom_call.1} parent=1 // pred_check_branch
      %61 = sbr.rel (0) target = $region17
    $region16: #{tpu_custom_call.1} parent=1 // pred_region
      %s63 = ssub.s32 65536, 65536
      %64 = vsyncadd [#allocation9], %s63
      %s65 = sshll.u32 [#allocation8], 4
      %s66 = int_to_ptr.vmem [resolvable:$true] %s65
      %71 = dma.hbm_to_vmem [thread:$0]  %s3, 65536, %s66, [#allocation9], 512, 512, 32
    $region17: #{tpu_custom_call.1} parent=1 // pred_fallthru
      _
    // Predicated region
    $region18: #{tpu_custom_call.1} parent=1 // pred_check
      _
    $region19: #{tpu_custom_call.1} parent=1 // pred_check_branch
      %73 = sbr.rel (0) target = $region21
    $region20: #{tpu_custom_call.1} parent=1 // pred_region
      %s75 = ssub.s32 128, 128
      %76 = vsyncadd [#allocation9], %s75
      %s78 = sshll.u32 [#allocation10], 4
      %s79 = int_to_ptr.vmem [resolvable:$true] %s78
      %81 = dma.hbm_to_vmem [thread:$0]  %s4, 128, %s79, [#allocation9]
    $region21: #{tpu_custom_call.1} parent=1 // pred_fallthru
      _
    // Predicated region
    $region22: #{tpu_custom_call.1} parent=1 // pred_check
      _
    $region23: #{tpu_custom_call.1} parent=1 // pred_check_branch
      %83 = sbr.rel (0) target = $region25
    $region24: #{tpu_custom_call.1} parent=1 // pred_region
      %s85 = ssub.s32 32768, 32768
      %86 = vsyncadd [#allocation12], %s85
      %s87 = sshll.u32 [#allocation11], 4
      %s88 = int_to_ptr.vmem [resolvable:$true] %s87
      %93 = dma.hbm_to_vmem [thread:$0]  %s5, 32768, %s88, [#allocation12], 256, 256, 16
    $region25: #{tpu_custom_call.1} parent=1 // pred_fallthru
      _
    // Predicated region
    $region26: #{tpu_custom_call.1} parent=1 // pred_check
      _
    $region27: #{tpu_custom_call.1} parent=1 // pred_check_branch
      %95 = sbr.rel (0) target = $region29
    $region28: #{tpu_custom_call.1} parent=1 // pred_region
      %s97 = ssub.s32 64, 64
      %98 = vsyncadd [#allocation12], %s97
      %s100 = sshll.u32 [#allocation13], 4
      %s101 = int_to_ptr.vmem [resolvable:$true] %s100
      %103 = dma.hbm_to_vmem [thread:$0]  %s6, 64, %s101, [#allocation12]
    $region29: #{tpu_custom_call.1} parent=1 // pred_fallthru
      _
    // Predicated region
    $region30: #{tpu_custom_call.1} parent=1 // pred_check
      _
    $region31: #{tpu_custom_call.1} parent=1 // pred_check_branch
      %105 = sbr.rel (0) target = $region33
    $region32: #{tpu_custom_call.1} parent=1 // pred_region
      %s107 = ssub.s32 8192, 8192
      %108 = vsyncadd [#allocation15], %s107
      %s109 = sshll.u32 [#allocation14], 4
      %s110 = int_to_ptr.vmem [resolvable:$true] %s109
      %115 = dma.hbm_to_vmem [thread:$0]  %s7, 8192, %s110, [#allocation15], 128, 128, 8
    $region33: #{tpu_custom_call.1} parent=1 // pred_fallthru
      _
    // Predicated region
    $region34: #{tpu_custom_call.1} parent=1 // pred_check
      _
    $region35: #{tpu_custom_call.1} parent=1 // pred_check_branch
      %117 = sbr.rel (0) target = $region37
    $region36: #{tpu_custom_call.1} parent=1 // pred_region
      %s119 = ssub.s32 32, 32
      %120 = vsyncadd [#allocation15], %s119
      %s122 = sshll.u32 [#allocation16], 4
      %s123 = int_to_ptr.vmem [resolvable:$true] %s122
      %125 = dma.hbm_to_vmem [thread:$0]  %s8, 32, %s123, [#allocation15]
    $region37: #{tpu_custom_call.1} parent=1 // pred_fallthru
      _
    // Predicated region
    $region38: #{tpu_custom_call.1} parent=1 // pred_check
      _
    $region39: #{tpu_custom_call.1} parent=1 // pred_check_branch
      %127 = sbr.rel (0) target = $region41
    $region40: #{tpu_custom_call.1} parent=1 // pred_region
      %s129 = ssub.s32 2048, 2048
      %130 = vsyncadd [#allocation18], %s129
      %s131 = sshll.u32 [#allocation17], 4
      %s132 = int_to_ptr.vmem [resolvable:$true] %s131
      %137 = dma.hbm_to_vmem [thread:$0]  %s9, 2048, %s132, [#allocation18], 64, 64, 4
    $region41: #{tpu_custom_call.1} parent=1 // pred_fallthru
      _
    // Predicated region
    $region42: #{tpu_custom_call.1} parent=1 // pred_check
      _
    $region43: #{tpu_custom_call.1} parent=1 // pred_check_branch
      %139 = sbr.rel (0) target = $region45
    $region44: #{tpu_custom_call.1} parent=1 // pred_region
      %s141 = ssub.s32 16, 16
      %142 = vsyncadd [#allocation18], %s141
      %s144 = sshll.u32 [#allocation19], 4
      %s145 = int_to_ptr.vmem [resolvable:$true] %s144
      %147 = dma.hbm_to_vmem [thread:$0]  %s10, 16, %s145, [#allocation18]
    $region45: #{tpu_custom_call.1} parent=1 // pred_fallthru
      _
    // Predicated region
    $region46: #{tpu_custom_call.1} parent=1 // pred_check
      _
    $region47: #{tpu_custom_call.1} parent=1 // pred_check_branch
      %149 = sbr.rel (0) target = $region49
    $region48: #{tpu_custom_call.1} parent=1 // pred_region
      %s151 = ssub.s32 8192, 8192
      %152 = vsyncadd [#allocation21], %s151
      %s153 = sshll.u32 [#allocation20], 4
      %s154 = int_to_ptr.vmem [resolvable:$true] %s153
      %159 = dma.hbm_to_vmem [thread:$0]  %s11, 8192, %s154, [#allocation21], 512, 512, 32
    $region49: #{tpu_custom_call.1} parent=1 // pred_fallthru
      _
    // Predicated region
    $region50: #{tpu_custom_call.1} parent=1 // pred_check
      _
    $region51: #{tpu_custom_call.1} parent=1 // pred_check_branch
      %161 = sbr.rel (0) target = $region53
    $region52: #{tpu_custom_call.1} parent=1 // pred_region
      %s163 = ssub.s32 128, 128
      %164 = vsyncadd [#allocation21], %s163
      %s166 = sshll.u32 [#allocation22], 4
      %s167 = int_to_ptr.vmem [resolvable:$true] %s166
      %169 = dma.hbm_to_vmem [thread:$0]  %s12, 128, %s167, [#allocation21]
    $region53: #{tpu_custom_call.1} parent=1 // pred_fallthru
      _
    // Predicated region
    $region54: #{tpu_custom_call.1} parent=1 // pred_check
      _
    $region55: #{tpu_custom_call.1} parent=1 // pred_check_branch
      %171 = sbr.rel (0) target = $region57
    $region56: #{tpu_custom_call.1} parent=1 // pred_region
      %172 = dma.done [#allocation3], 128
    $region57: #{tpu_custom_call.1} parent=1 // pred_fallthru
      _
    // Predicated region
    $region58: #{tpu_custom_call.1} parent=1 // pred_check
      _
    $region59: #{tpu_custom_call.1} parent=1 // pred_check_branch
      %174 = sbr.rel (0) target = $region61
    $region60: #{tpu_custom_call.1} parent=1 // pred_region
      %175 = dma.done [#allocation6], 8192
    $region61: #{tpu_custom_call.1} parent=1 // pred_fallthru
      _
    // Predicated region
    $region62: #{tpu_custom_call.1} parent=1 // pred_check
      _
    $region63: #{tpu_custom_call.1} parent=1 // pred_check_branch
      %177 = sbr.rel (0) target = $region65
    $region64: #{tpu_custom_call.1} parent=1 // pred_region
      %178 = dma.done [#allocation6], 128
    $region65: #{tpu_custom_call.1} parent=1 // pred_fallthru
      _
    // Predicated region
    $region66: #{tpu_custom_call.1} parent=1 // pred_check
      _
    $region67: #{tpu_custom_call.1} parent=1 // pred_check_branch
      %180 = sbr.rel (0) target = $region69
    $region68: #{tpu_custom_call.1} parent=1 // pred_region
      %181 = dma.done [#allocation9], 65536
    $region69: #{tpu_custom_call.1} parent=1 // pred_fallthru
      _
    // Predicated region
    $region70: #{tpu_custom_call.1} parent=1 // pred_check
      _
    $region71: #{tpu_custom_call.1} parent=1 // pred_check_branch
      %183 = sbr.rel (0) target = $region73
    $region72: #{tpu_custom_call.1} parent=1 // pred_region
      %184 = dma.done [#allocation9], 128
    $region73: #{tpu_custom_call.1} parent=1 // pred_fallthru
      _
    // Predicated region
    $region74: #{tpu_custom_call.1} parent=1 // pred_check
      _
    $region75: #{tpu_custom_call.1} parent=1 // pred_check_branch
      %186 = sbr.rel (0) target = $region77
    $region76: #{tpu_custom_call.1} parent=1 // pred_region
      %187 = dma.done [#allocation12], 32768
    $region77: #{tpu_custom_call.1} parent=1 // pred_fallthru
      _
    // Predicated region
    $region78: #{tpu_custom_call.1} parent=1 // pred_check
      _
    $region79: #{tpu_custom_call.1} parent=1 // pred_check_branch
      %189 = sbr.rel (0) target = $region81
    $region80: #{tpu_custom_call.1} parent=1 // pred_region
      %190 = dma.done [#allocation12], 64
    $region81: #{tpu_custom_call.1} parent=1 // pred_fallthru
      _
    // Predicated region
    $region82: #{tpu_custom_call.1} parent=1 // pred_check
      _
    $region83: #{tpu_custom_call.1} parent=1 // pred_check_branch
      %192 = sbr.rel (0) target = $region85
    $region84: #{tpu_custom_call.1} parent=1 // pred_region
      %193 = dma.done [#allocation15], 8192
    $region85: #{tpu_custom_call.1} parent=1 // pred_fallthru
      _
    // Predicated region
    $region86: #{tpu_custom_call.1} parent=1 // pred_check
      _
    $region87: #{tpu_custom_call.1} parent=1 // pred_check_branch
      %195 = sbr.rel (0) target = $region89
    $region88: #{tpu_custom_call.1} parent=1 // pred_region
      %196 = dma.done [#allocation15], 32
    $region89: #{tpu_custom_call.1} parent=1 // pred_fallthru
      _
    // Predicated region
    $region90: #{tpu_custom_call.1} parent=1 // pred_check
      _
    $region91: #{tpu_custom_call.1} parent=1 // pred_check_branch
      %198 = sbr.rel (0) target = $region93
    $region92: #{tpu_custom_call.1} parent=1 // pred_region
      %199 = dma.done [#allocation18], 2048
    $region93: #{tpu_custom_call.1} parent=1 // pred_fallthru
      _
    // Predicated region
    $region94: #{tpu_custom_call.1} parent=1 // pred_check
      _
    $region95: #{tpu_custom_call.1} parent=1 // pred_check_branch
      %201 = sbr.rel (0) target = $region97
    $region96: #{tpu_custom_call.1} parent=1 // pred_region
      %202 = dma.done [#allocation18], 16
    $region97: #{tpu_custom_call.1} parent=1 // pred_fallthru
      _
    // Predicated region
    $region98: #{tpu_custom_call.1} parent=1 // pred_check
      _
    $region99: #{tpu_custom_call.1} parent=1 // pred_check_branch
      %204 = sbr.rel (0) target = $region101
    $region100: #{tpu_custom_call.1} parent=1 // pred_region
      %205 = dma.done [#allocation21], 8192
    $region101: #{tpu_custom_call.1} parent=1 // pred_fallthru
      _
    // Predicated region
    $region102: #{tpu_custom_call.1} parent=1 // pred_check
      _
    $region103: #{tpu_custom_call.1} parent=1 // pred_check_branch
      %207 = sbr.rel (0) target = $region105
    $region104: #{tpu_custom_call.1} parent=1 // pred_region
      %208 = dma.done [#allocation21], 128
    $region105: #{tpu_custom_call.1} parent=1 // pred_fallthru
      _
    %v210 = vld [vmem:[#allocation2] sm:$0xf]
    %v211 = vld [vmem:[#allocation2 + $0x4] sm:$0xf]
    %v212 = vld [vmem:[#allocation5] sm:$0xff]
    %v213 = vld [vmem:[#allocation5 + $0x8] sm:$0xff]
    %v214 = vld [vmem:[#allocation5 + $0x10] sm:$0xff]
    %v215 = vld [vmem:[#allocation5 + $0x18] sm:$0xff]
    %v216 = vld [vmem:[#allocation5 + $0x20] sm:$0xff]
    %v217 = vld [vmem:[#allocation5 + $0x28] sm:$0xff]
    %v218 = vld [vmem:[#allocation5 + $0x30] sm:$0xff]
    %v219 = vld [vmem:[#allocation5 + $0x38] sm:$0xff]
    %v220 = vld [vmem:[#allocation5 + $0x40] sm:$0xff]
    %v221 = vld [vmem:[#allocation5 + $0x48] sm:$0xff]
    %v222 = vld [vmem:[#allocation5 + $0x50] sm:$0xff]
    %v223 = vld [vmem:[#allocation5 + $0x58] sm:$0xff]
    %v224 = vld [vmem:[#allocation5 + $0x60] sm:$0xff]
    %v225 = vld [vmem:[#allocation5 + $0x68] sm:$0xff]
    %v226 = vld [vmem:[#allocation5 + $0x70] sm:$0xff]
    %v227 = vld [vmem:[#allocation5 + $0x78] sm:$0xff]
    %v228 = vld [vmem:[#allocation5 + $0x80] sm:$0xff]
    %v229 = vld [vmem:[#allocation5 + $0x88] sm:$0xff]
    %v230 = vld [vmem:[#allocation5 + $0x90] sm:$0xff]
    %v231 = vld [vmem:[#allocation5 + $0x98] sm:$0xff]
    %v232 = vld [vmem:[#allocation5 + $0xa0] sm:$0xff]
    %v233 = vld [vmem:[#allocation5 + $0xa8] sm:$0xff]
    %v234 = vld [vmem:[#allocation5 + $0xb0] sm:$0xff]
    %v235 = vld [vmem:[#allocation5 + $0xb8] sm:$0xff]
    %v236 = vld [vmem:[#allocation5 + $0xc0] sm:$0xff]
    %v237 = vld [vmem:[#allocation5 + $0xc8] sm:$0xff]
    %v238 = vld [vmem:[#allocation5 + $0xd0] sm:$0xff]
    %v239 = vld [vmem:[#allocation5 + $0xd8] sm:$0xff]
    %v240 = vld [vmem:[#allocation5 + $0xe0] sm:$0xff]
    %v241 = vld [vmem:[#allocation5 + $0xe8] sm:$0xff]
    %v242 = vld [vmem:[#allocation5 + $0xf0] sm:$0xff]
    %v243 = vld [vmem:[#allocation5 + $0xf8] sm:$0xff]
    %v244 = vld [vmem:[#allocation5 + $0x100] sm:$0xff]
    %v245 = vld [vmem:[#allocation5 + $0x108] sm:$0xff]
    %v246 = vld [vmem:[#allocation5 + $0x110] sm:$0xff]
    %v247 = vld [vmem:[#allocation5 + $0x118] sm:$0xff]
    %v248 = vld [vmem:[#allocation5 + $0x120] sm:$0xff]
    %v249 = vld [vmem:[#allocation5 + $0x128] sm:$0xff]
    %v250 = vld [vmem:[#allocation5 + $0x130] sm:$0xff]
    %v251 = vld [vmem:[#allocation5 + $0x138] sm:$0xff]
    %v252 = vld [vmem:[#allocation5 + $0x140] sm:$0xff]
    %v253 = vld [vmem:[#allocation5 + $0x148] sm:$0xff]
    %v254 = vld [vmem:[#allocation5 + $0x150] sm:$0xff]
    %v255 = vld [vmem:[#allocation5 + $0x158] sm:$0xff]
    %v256 = vld [vmem:[#allocation5 + $0x160] sm:$0xff]
    %v257 = vld [vmem:[#allocation5 + $0x168] sm:$0xff]
    %v258 = vld [vmem:[#allocation5 + $0x170] sm:$0xff]
    %v259 = vld [vmem:[#allocation5 + $0x178] sm:$0xff]
    %v260 = vld [vmem:[#allocation5 + $0x180] sm:$0xff]
    %v261 = vld [vmem:[#allocation5 + $0x188] sm:$0xff]
    %v262 = vld [vmem:[#allocation5 + $0x190] sm:$0xff]
    %v263 = vld [vmem:[#allocation5 + $0x198] sm:$0xff]
    %v264 = vld [vmem:[#allocation5 + $0x1a0] sm:$0xff]
    %v265 = vld [vmem:[#allocation5 + $0x1a8] sm:$0xff]
    %v266 = vld [vmem:[#allocation5 + $0x1b0] sm:$0xff]
    %v267 = vld [vmem:[#allocation5 + $0x1b8] sm:$0xff]
    %v268 = vld [vmem:[#allocation5 + $0x1c0] sm:$0xff]
    %v269 = vld [vmem:[#allocation5 + $0x1c8] sm:$0xff]
    %v270 = vld [vmem:[#allocation5 + $0x1d0] sm:$0xff]
    %v271 = vld [vmem:[#allocation5 + $0x1d8] sm:$0xff]
    %v272 = vld [vmem:[#allocation5 + $0x1e0] sm:$0xff]
    %v273 = vld [vmem:[#allocation5 + $0x1e8] sm:$0xff]
    %v274 = vld [vmem:[#allocation5 + $0x1f0] sm:$0xff]
    %v275 = vld [vmem:[#allocation5 + $0x1f8] sm:$0xff]
    %v276 = vld [vmem:[#allocation7] sm:$0xff]
    %v278 = vlaneseq
    %v279 = vshrl.u32 %v278, 7
    %v280 = vsub.s32 0, %v279
    %v281 = vrot.slane %v276, %v280
    %v282 = vlaneseq
    %v283 = vshrl.u32 %v282, 7
    %v284 = vsub.s32 1, %v283
    %v285 = vrot.slane %v276, %v284
    %v286 = vlaneseq
    %v287 = vshrl.u32 %v286, 7
    %v288 = vsub.s32 2, %v287
    %v289 = vrot.slane %v276, %v288
    %v290 = vlaneseq
    %v291 = vshrl.u32 %v290, 7
    %v292 = vsub.s32 3, %v291
    %v293 = vrot.slane %v276, %v292
    %v294 = vlaneseq
    %v295 = vshrl.u32 %v294, 7
    %v296 = vsub.s32 4, %v295
    %v297 = vrot.slane %v276, %v296
    %v298 = vlaneseq
    %v299 = vshrl.u32 %v298, 7
    %v300 = vsub.s32 5, %v299
    %v301 = vrot.slane %v276, %v300
    %v302 = vlaneseq
    %v303 = vshrl.u32 %v302, 7
    %v304 = vsub.s32 6, %v303
    %v305 = vrot.slane %v276, %v304
    %v306 = vlaneseq
    %v307 = vshrl.u32 %v306, 7
    %v308 = vsub.s32 7, %v307
    %v309 = vrot.slane %v276, %v308
    %v320 = vunpack.c.l.b16 %v210
    %v321 = vunpack.c.l.b16 %v211
    %v322 = vpack.c.b16 %v321, %v320
    %v388 = vunpack.c.l.b16 %v212
    %v389 = vunpack.c.h.b16 %v212
    %v390 = vunpack.c.l.b16 %v213
    %v391 = vunpack.c.h.b16 %v213
    %v392 = vunpack.c.l.b16 %v214
    %v393 = vunpack.c.h.b16 %v214
    %v394 = vunpack.c.l.b16 %v215
    %v395 = vunpack.c.h.b16 %v215
    %v396 = vunpack.c.l.b16 %v216
    %v397 = vunpack.c.h.b16 %v216
    %v398 = vunpack.c.l.b16 %v217
    %v399 = vunpack.c.h.b16 %v217
    %v400 = vunpack.c.l.b16 %v218
    %v401 = vunpack.c.h.b16 %v218
    %v402 = vunpack.c.l.b16 %v219
    %v403 = vunpack.c.h.b16 %v219
    %v404 = vunpack.c.l.b16 %v220
    %v405 = vunpack.c.h.b16 %v220
    %v406 = vunpack.c.l.b16 %v221
    %v407 = vunpack.c.h.b16 %v221
    %v408 = vunpack.c.l.b16 %v222
    %v409 = vunpack.c.h.b16 %v222
    %v410 = vunpack.c.l.b16 %v223
    %v411 = vunpack.c.h.b16 %v223
    %v412 = vunpack.c.l.b16 %v224
    %v413 = vunpack.c.h.b16 %v224
    %v414 = vunpack.c.l.b16 %v225
    %v415 = vunpack.c.h.b16 %v225
    %v416 = vunpack.c.l.b16 %v226
    %v417 = vunpack.c.h.b16 %v226
    %v418 = vunpack.c.l.b16 %v227
    %v419 = vunpack.c.h.b16 %v227
    %v420 = vunpack.c.l.b16 %v228
    %v421 = vunpack.c.h.b16 %v228
    %v422 = vunpack.c.l.b16 %v229
    %v423 = vunpack.c.h.b16 %v229
    %v424 = vunpack.c.l.b16 %v230
    %v425 = vunpack.c.h.b16 %v230
    %v426 = vunpack.c.l.b16 %v231
    %v427 = vunpack.c.h.b16 %v231
    %v428 = vunpack.c.l.b16 %v232
    %v429 = vunpack.c.h.b16 %v232
    %v430 = vunpack.c.l.b16 %v233
    %v431 = vunpack.c.h.b16 %v233
    %v432 = vunpack.c.l.b16 %v234
    %v433 = vunpack.c.h.b16 %v234
    %v434 = vunpack.c.l.b16 %v235
    %v435 = vunpack.c.h.b16 %v235
    %v436 = vunpack.c.l.b16 %v236
    %v437 = vunpack.c.h.b16 %v236
    %v438 = vunpack.c.l.b16 %v237
    %v439 = vunpack.c.h.b16 %v237
    %v440 = vunpack.c.l.b16 %v238
    %v441 = vunpack.c.h.b16 %v238
    %v442 = vunpack.c.l.b16 %v239
    %v443 = vunpack.c.h.b16 %v239
    %v444 = vunpack.c.l.b16 %v240
    %v445 = vunpack.c.h.b16 %v240
    %v446 = vunpack.c.l.b16 %v241
    %v447 = vunpack.c.h.b16 %v241
    %v448 = vunpack.c.l.b16 %v242
    %v449 = vunpack.c.h.b16 %v242
    %v450 = vunpack.c.l.b16 %v243
    %v451 = vunpack.c.h.b16 %v243
    %v452 = vunpack.c.l.b16 %v244
    %v453 = vunpack.c.h.b16 %v244
    %v454 = vunpack.c.l.b16 %v245
    %v455 = vunpack.c.h.b16 %v245
    %v456 = vunpack.c.l.b16 %v246
    %v457 = vunpack.c.h.b16 %v246
    %v458 = vunpack.c.l.b16 %v247
    %v459 = vunpack.c.h.b16 %v247
    %v460 = vunpack.c.l.b16 %v248
    %v461 = vunpack.c.h.b16 %v248
    %v462 = vunpack.c.l.b16 %v249
    %v463 = vunpack.c.h.b16 %v249
    %v464 = vunpack.c.l.b16 %v250
    %v465 = vunpack.c.h.b16 %v250
    %v466 = vunpack.c.l.b16 %v251
    %v467 = vunpack.c.h.b16 %v251
    %v468 = vunpack.c.l.b16 %v252
    %v469 = vunpack.c.h.b16 %v252
    %v470 = vunpack.c.l.b16 %v253
    %v471 = vunpack.c.h.b16 %v253
    %v472 = vunpack.c.l.b16 %v254
    %v473 = vunpack.c.h.b16 %v254
    %v474 = vunpack.c.l.b16 %v255
    %v475 = vunpack.c.h.b16 %v255
    %v476 = vunpack.c.l.b16 %v256
    %v477 = vunpack.c.h.b16 %v256
    %v478 = vunpack.c.l.b16 %v257
    %v479 = vunpack.c.h.b16 %v257
    %v480 = vunpack.c.l.b16 %v258
    %v481 = vunpack.c.h.b16 %v258
    %v482 = vunpack.c.l.b16 %v259
    %v483 = vunpack.c.h.b16 %v259
    %v484 = vunpack.c.l.b16 %v260
    %v485 = vunpack.c.h.b16 %v260
    %v486 = vunpack.c.l.b16 %v261
    %v487 = vunpack.c.h.b16 %v261
    %v488 = vunpack.c.l.b16 %v262
    %v489 = vunpack.c.h.b16 %v262
    %v490 = vunpack.c.l.b16 %v263
    %v491 = vunpack.c.h.b16 %v263
    %v492 = vunpack.c.l.b16 %v264
    %v493 = vunpack.c.h.b16 %v264
    %v494 = vunpack.c.l.b16 %v265
    %v495 = vunpack.c.h.b16 %v265
    %v496 = vunpack.c.l.b16 %v266
    %v497 = vunpack.c.h.b16 %v266
    %v498 = vunpack.c.l.b16 %v267
    %v499 = vunpack.c.h.b16 %v267
    %v500 = vunpack.c.l.b16 %v268
    %v501 = vunpack.c.h.b16 %v268
    %v502 = vunpack.c.l.b16 %v269
    %v503 = vunpack.c.h.b16 %v269
    %v504 = vunpack.c.l.b16 %v270
    %v505 = vunpack.c.h.b16 %v270
    %v506 = vunpack.c.l.b16 %v271
    %v507 = vunpack.c.h.b16 %v271
    %v508 = vunpack.c.l.b16 %v272
    %v509 = vunpack.c.h.b16 %v272
    %v510 = vunpack.c.l.b16 %v273
    %v511 = vunpack.c.h.b16 %v273
    %v512 = vunpack.c.l.b16 %v274
    %v513 = vunpack.c.h.b16 %v274
    %v514 = vunpack.c.l.b16 %v275
    %v515 = vunpack.c.h.b16 %v275
    %v516 = vpack.c.b16 %v396, %v388
    %v517 = vpack.c.b16 %v397, %v389
    %v518 = vpack.c.b16 %v398, %v390
    %v519 = vpack.c.b16 %v399, %v391
    %v520 = vpack.c.b16 %v400, %v392
    %v521 = vpack.c.b16 %v401, %v393
    %v522 = vpack.c.b16 %v402, %v394
    %v523 = vpack.c.b16 %v403, %v395
    %v524 = vpack.c.b16 %v412, %v404
    %v525 = vpack.c.b16 %v413, %v405
    %v526 = vpack.c.b16 %v414, %v406
    %v527 = vpack.c.b16 %v415, %v407
    %v528 = vpack.c.b16 %v416, %v408
    %v529 = vpack.c.b16 %v417, %v409
    %v530 = vpack.c.b16 %v418, %v410
    %v531 = vpack.c.b16 %v419, %v411
    %v532 = vpack.c.b16 %v428, %v420
    %v533 = vpack.c.b16 %v429, %v421
    %v534 = vpack.c.b16 %v430, %v422
    %v535 = vpack.c.b16 %v431, %v423
    %v536 = vpack.c.b16 %v432, %v424
    %v537 = vpack.c.b16 %v433, %v425
    %v538 = vpack.c.b16 %v434, %v426
    %v539 = vpack.c.b16 %v435, %v427
    %v540 = vpack.c.b16 %v444, %v436
    %v541 = vpack.c.b16 %v445, %v437
    %v542 = vpack.c.b16 %v446, %v438
    %v543 = vpack.c.b16 %v447, %v439
    %v544 = vpack.c.b16 %v448, %v440
    %v545 = vpack.c.b16 %v449, %v441
    %v546 = vpack.c.b16 %v450, %v442
    %v547 = vpack.c.b16 %v451, %v443
    %v548 = vpack.c.b16 %v460, %v452
    %v549 = vpack.c.b16 %v461, %v453
    %v550 = vpack.c.b16 %v462, %v454
    %v551 = vpack.c.b16 %v463, %v455
    %v552 = vpack.c.b16 %v464, %v456
    %v553 = vpack.c.b16 %v465, %v457
    %v554 = vpack.c.b16 %v466, %v458
    %v555 = vpack.c.b16 %v467, %v459
    %v556 = vpack.c.b16 %v476, %v468
    %v557 = vpack.c.b16 %v477, %v469
    %v558 = vpack.c.b16 %v478, %v470
    %v559 = vpack.c.b16 %v479, %v471
    %v560 = vpack.c.b16 %v480, %v472
    %v561 = vpack.c.b16 %v481, %v473
    %v562 = vpack.c.b16 %v482, %v474
    %v563 = vpack.c.b16 %v483, %v475
    %v564 = vpack.c.b16 %v492, %v484
    %v565 = vpack.c.b16 %v493, %v485
    %v566 = vpack.c.b16 %v494, %v486
    %v567 = vpack.c.b16 %v495, %v487
    %v568 = vpack.c.b16 %v496, %v488
    %v569 = vpack.c.b16 %v497, %v489
    %v570 = vpack.c.b16 %v498, %v490
    %v571 = vpack.c.b16 %v499, %v491
    %v572 = vpack.c.b16 %v508, %v500
    %v573 = vpack.c.b16 %v509, %v501
    %v574 = vpack.c.b16 %v510, %v502
    %v575 = vpack.c.b16 %v511, %v503
    %v576 = vpack.c.b16 %v512, %v504
    %v577 = vpack.c.b16 %v513, %v505
    %v578 = vpack.c.b16 %v514, %v506
    %v579 = vpack.c.b16 %v515, %v507
    %644 = vmatprep.subr.bf16.mxu0 %v517
    %645 = vmatpush1.bf16.msra.mxu0 %v516
    %646 = vmatprep.subr.bf16.mxu0 %v525
    %647 = vmatpush1.bf16.msra.mxu0 %v524
    %648 = vmatprep.subr.bf16.mxu0 %v533
    %649 = vmatpush1.bf16.msra.mxu0 %v532
    %650 = vmatprep.subr.bf16.mxu0 %v541
    %651 = vmatpush1.bf16.msra.mxu0 %v540
    %652 = vmatprep.subr.bf16.mxu0 %v549
    %653 = vmatpush1.bf16.msra.mxu0 %v548
    %654 = vmatprep.subr.bf16.mxu0 %v557
    %655 = vmatpush1.bf16.msra.mxu0 %v556
    %656 = vmatprep.subr.bf16.mxu0 %v565
    %657 = vmatpush1.bf16.msra.mxu0 %v564
    %658 = vmatprep.subr.bf16.mxu0 %v573
    %659 = vmatpush1.bf16.msra.mxu0 %v572
    %660 = vmatprep.subr.bf16.mxu0 0
    %661 = vmatpush1.bf16.msra.mxu0 0
    %662 = vmatprep.subr.bf16.mxu0 0
    %663 = vmatpush1.bf16.msra.mxu0 0
    %664 = vmatprep.subr.bf16.mxu0 0
    %665 = vmatpush1.bf16.msra.mxu0 0
    %666 = vmatprep.subr.bf16.mxu0 0
    %667 = vmatpush1.bf16.msra.mxu0 0
    %668 = vmatprep.subr.bf16.mxu0 0
    %669 = vmatpush1.bf16.msra.mxu0 0
    %670 = vmatprep.subr.bf16.mxu0 0
    %671 = vmatpush1.bf16.msra.mxu0 0
    %672 = vmatprep.subr.bf16.mxu0 0
    %673 = vmatpush1.bf16.msra.mxu0 0
    %674 = vmatprep.subr.bf16.mxu0 0
    %675 = vmatpush1.bf16.msra.mxu0 0
    %676 = vmatprep.mubr.bf16.mxu0 0
    %677 = vmatmul.mubr.bf16.gmra.mrb[0].mxu0 %v322
    %v678 = vpop.f32.mrb[0].mxu0
    %v679 = vadd.f32 %v281, %v678
    %v680 = vpop.f32.mrb[0].mxu0
    %v681 = vadd.f32 %v285, %v680
    %v682 = vpop.f32.mrb[0].mxu0
    %v683 = vadd.f32 %v281, %v682
    %v684 = vpop.f32.mrb[0].mxu0
    %v685 = vadd.f32 %v285, %v684
    %686 = vdwg.mxu0
    %687 = vmatprep.subr.bf16.mxu0 %v519
    %688 = vmatpush1.bf16.msra.mxu0 %v518
    %689 = vmatprep.subr.bf16.mxu0 %v527
    %690 = vmatpush1.bf16.msra.mxu0 %v526
    %691 = vmatprep.subr.bf16.mxu0 %v535
    %692 = vmatpush1.bf16.msra.mxu0 %v534
    %693 = vmatprep.subr.bf16.mxu0 %v543
    %694 = vmatpush1.bf16.msra.mxu0 %v542
    %695 = vmatprep.subr.bf16.mxu0 %v551
    %696 = vmatpush1.bf16.msra.mxu0 %v550
    %697 = vmatprep.subr.bf16.mxu0 %v559
    %698 = vmatpush1.bf16.msra.mxu0 %v558
    %699 = vmatprep.subr.bf16.mxu0 %v567
    %700 = vmatpush1.bf16.msra.mxu0 %v566
    %701 = vmatprep.subr.bf16.mxu0 %v575
    %702 = vmatpush1.bf16.msra.mxu0 %v574
    %703 = vmatprep.subr.bf16.mxu0 0
    %704 = vmatpush1.bf16.msra.mxu0 0
    %705 = vmatprep.subr.bf16.mxu0 0
    %706 = vmatpush1.bf16.msra.mxu0 0
    %707 = vmatprep.subr.bf16.mxu0 0
    %708 = vmatpush1.bf16.msra.mxu0 0
    %709 = vmatprep.subr.bf16.mxu0 0
    %710 = vmatpush1.bf16.msra.mxu0 0
    %711 = vmatprep.subr.bf16.mxu0 0
    %712 = vmatpush1.bf16.msra.mxu0 0
    %713 = vmatprep.subr.bf16.mxu0 0
    %714 = vmatpush1.bf16.msra.mxu0 0
    %715 = vmatprep.subr.bf16.mxu0 0
    %716 = vmatpush1.bf16.msra.mxu0 0
    %717 = vmatprep.subr.bf16.mxu0 0
    %718 = vmatpush1.bf16.msra.mxu0 0
    %719 = vmatprep.mubr.bf16.mxu0 0
    %720 = vmatmul.mubr.bf16.gmra.mrb[0].mxu0 %v322
    %v721 = vpop.f32.mrb[0].mxu0
    %v722 = vadd.f32 %v289, %v721
    %v723 = vpop.f32.mrb[0].mxu0
    %v724 = vadd.f32 %v293, %v723
    %v725 = vpop.f32.mrb[0].mxu0
    %v726 = vadd.f32 %v289, %v725
    %v727 = vpop.f32.mrb[0].mxu0
    %v728 = vadd.f32 %v293, %v727
    %729 = vdwg.mxu0
    %730 = vmatprep.subr.bf16.mxu0 %v521
    %731 = vmatpush1.bf16.msra.mxu0 %v520
    %732 = vmatprep.subr.bf16.mxu0 %v529
    %733 = vmatpush1.bf16.msra.mxu0 %v528
    %734 = vmatprep.subr.bf16.mxu0 %v537
    %735 = vmatpush1.bf16.msra.mxu0 %v536
    %736 = vmatprep.subr.bf16.mxu0 %v545
    %737 = vmatpush1.bf16.msra.mxu0 %v544
    %738 = vmatprep.subr.bf16.mxu0 %v553
    %739 = vmatpush1.bf16.msra.mxu0 %v552
    %740 = vmatprep.subr.bf16.mxu0 %v561
    %741 = vmatpush1.bf16.msra.mxu0 %v560
    %742 = vmatprep.subr.bf16.mxu0 %v569
    %743 = vmatpush1.bf16.msra.mxu0 %v568
    %744 = vmatprep.subr.bf16.mxu0 %v577
    %745 = vmatpush1.bf16.msra.mxu0 %v576
    %746 = vmatprep.subr.bf16.mxu0 0
    %747 = vmatpush1.bf16.msra.mxu0 0
    %748 = vmatprep.subr.bf16.mxu0 0
    %749 = vmatpush1.bf16.msra.mxu0 0
    %750 = vmatprep.subr.bf16.mxu0 0
    %751 = vmatpush1.bf16.msra.mxu0 0
    %752 = vmatprep.subr.bf16.mxu0 0
    %753 = vmatpush1.bf16.msra.mxu0 0
    %754 = vmatprep.subr.bf16.mxu0 0
    %755 = vmatpush1.bf16.msra.mxu0 0
    %756 = vmatprep.subr.bf16.mxu0 0
    %757 = vmatpush1.bf16.msra.mxu0 0
    %758 = vmatprep.subr.bf16.mxu0 0
    %759 = vmatpush1.bf16.msra.mxu0 0
    %760 = vmatprep.subr.bf16.mxu0 0
    %761 = vmatpush1.bf16.msra.mxu0 0
    %762 = vmatprep.mubr.bf16.mxu0 0
    %763 = vmatmul.mubr.bf16.gmra.mrb[0].mxu0 %v322
    %v764 = vpop.f32.mrb[0].mxu0
    %v765 = vadd.f32 %v297, %v764
    %v766 = vpop.f32.mrb[0].mxu0
    %v767 = vadd.f32 %v301, %v766
    %v768 = vpop.f32.mrb[0].mxu0
    %v769 = vadd.f32 %v297, %v768
    %v770 = vpop.f32.mrb[0].mxu0
    %v771 = vadd.f32 %v301, %v770
    %772 = vdwg.mxu0
    %773 = vmatprep.subr.bf16.mxu0 %v523
    %774 = vmatpush1.bf16.msra.mxu0 %v522
    %775 = vmatprep.subr.bf16.mxu0 %v531
    %776 = vmatpush1.bf16.msra.mxu0 %v530
    %777 = vmatprep.subr.bf16.mxu0 %v539
    %778 = vmatpush1.bf16.msra.mxu0 %v538
    %779 = vmatprep.subr.bf16.mxu0 %v547
    %780 = vmatpush1.bf16.msra.mxu0 %v546
    %781 = vmatprep.subr.bf16.mxu0 %v555
    %782 = vmatpush1.bf16.msra.mxu0 %v554
    %783 = vmatprep.subr.bf16.mxu0 %v563
    %784 = vmatpush1.bf16.msra.mxu0 %v562
    %785 = vmatprep.subr.bf16.mxu0 %v571
    %786 = vmatpush1.bf16.msra.mxu0 %v570
    %787 = vmatprep.subr.bf16.mxu0 %v579
    %788 = vmatpush1.bf16.msra.mxu0 %v578
    %789 = vmatprep.subr.bf16.mxu0 0
    %790 = vmatpush1.bf16.msra.mxu0 0
    %791 = vmatprep.subr.bf16.mxu0 0
    %792 = vmatpush1.bf16.msra.mxu0 0
    %793 = vmatprep.subr.bf16.mxu0 0
    %794 = vmatpush1.bf16.msra.mxu0 0
    %795 = vmatprep.subr.bf16.mxu0 0
    %796 = vmatpush1.bf16.msra.mxu0 0
    %797 = vmatprep.subr.bf16.mxu0 0
    %798 = vmatpush1.bf16.msra.mxu0 0
    %799 = vmatprep.subr.bf16.mxu0 0
    %800 = vmatpush1.bf16.msra.mxu0 0
    %801 = vmatprep.subr.bf16.mxu0 0
    %802 = vmatpush1.bf16.msra.mxu0 0
    %803 = vmatprep.subr.bf16.mxu0 0
    %804 = vmatpush1.bf16.msra.mxu0 0
    %805 = vmatprep.mubr.bf16.mxu0 0
    %806 = vmatmul.mubr.bf16.gmra.mrb[0].mxu0 %v322
    %v807 = vpop.f32.mrb[0].mxu0
    %v808 = vadd.f32 %v305, %v807
    %v809 = vpop.f32.mrb[0].mxu0
    %v810 = vadd.f32 %v309, %v809
    %v811 = vpop.f32.mrb[0].mxu0
    %v812 = vadd.f32 %v305, %v811
    %v813 = vpop.f32.mrb[0].mxu0
    %v814 = vadd.f32 %v309, %v813
    %815 = vdwg.mxu0
    %v816 = vmax.f32 %v679, 0.0
    %v817 = vmax.f32 %v681, 0.0
    %v818 = vmax.f32 %v722, 0.0
    %v819 = vmax.f32 %v724, 0.0
    %v820 = vmax.f32 %v765, 0.0
    %v821 = vmax.f32 %v767, 0.0
    %v822 = vmax.f32 %v808, 0.0
    %v823 = vmax.f32 %v810, 0.0
    %v824 = vmax.f32 %v683, 0.0
    %v825 = vmax.f32 %v685, 0.0
    %v826 = vmax.f32 %v726, 0.0
    %v827 = vmax.f32 %v728, 0.0
    %v828 = vmax.f32 %v769, 0.0
    %v829 = vmax.f32 %v771, 0.0
    %v830 = vmax.f32 %v812, 0.0
    %v831 = vmax.f32 %v814, 0.0
    %v832 = vpack.c.bf16 %v824, %v816
    %v833 = vpack.c.bf16 %v825, %v817
    %v834 = vpack.c.bf16 %v826, %v818
    %v835 = vpack.c.bf16 %v827, %v819
    %v836 = vpack.c.bf16 %v828, %v820
    %v837 = vpack.c.bf16 %v829, %v821
    %v838 = vpack.c.bf16 %v830, %v822
    %v839 = vpack.c.bf16 %v831, %v823
    %v840 = vld [vmem:[#allocation8] sm:$0xff]
    %v841 = vld [vmem:[#allocation8 + $0x8] sm:$0xff]
    %v842 = vld [vmem:[#allocation8 + $0x10] sm:$0xff]
    %v843 = vld [vmem:[#allocation8 + $0x18] sm:$0xff]
    %v844 = vld [vmem:[#allocation8 + $0x20] sm:$0xff]
    %v845 = vld [vmem:[#allocation8 + $0x28] sm:$0xff]
    %v846 = vld [vmem:[#allocation8 + $0x30] sm:$0xff]
    %v847 = vld [vmem:[#allocation8 + $0x38] sm:$0xff]
    %v848 = vld [vmem:[#allocation8 + $0x40] sm:$0xff]
    %v849 = vld [vmem:[#allocation8 + $0x48] sm:$0xff]
    %v850 = vld [vmem:[#allocation8 + $0x50] sm:$0xff]
    %v851 = vld [vmem:[#allocation8 + $0x58] sm:$0xff]
    %v852 = vld [vmem:[#allocation8 + $0x60] sm:$0xff]
    %v853 = vld [vmem:[#allocation8 + $0x68] sm:$0xff]
    %v854 = vld [vmem:[#allocation8 + $0x70] sm:$0xff]
    %v855 = vld [vmem:[#allocation8 + $0x78] sm:$0xff]
    %v856 = vld [vmem:[#allocation8 + $0x80] sm:$0xff]
    %v857 = vld [vmem:[#allocation8 + $0x88] sm:$0xff]
    %v858 = vld [vmem:[#allocation8 + $0x90] sm:$0xff]
    %v859 = vld [vmem:[#allocation8 + $0x98] sm:$0xff]
    %v860 = vld [vmem:[#allocation8 + $0xa0] sm:$0xff]
    %v861 = vld [vmem:[#allocation8 + $0xa8] sm:$0xff]
    %v862 = vld [vmem:[#allocation8 + $0xb0] sm:$0xff]
    %v863 = vld [vmem:[#allocation8 + $0xb8] sm:$0xff]
    %v864 = vld [vmem:[#allocation8 + $0xc0] sm:$0xff]
    %v865 = vld [vmem:[#allocation8 + $0xc8] sm:$0xff]
    %v866 = vld [vmem:[#allocation8 + $0xd0] sm:$0xff]
    %v867 = vld [vmem:[#allocation8 + $0xd8] sm:$0xff]
    %v868 = vld [vmem:[#allocation8 + $0xe0] sm:$0xff]
    %v869 = vld [vmem:[#allocation8 + $0xe8] sm:$0xff]
    %v870 = vld [vmem:[#allocation8 + $0xf0] sm:$0xff]
    %v871 = vld [vmem:[#allocation8 + $0xf8] sm:$0xff]
    %v872 = vld [vmem:[#allocation8 + $0x100] sm:$0xff]
    %v873 = vld [vmem:[#allocation8 + $0x108] sm:$0xff]
    %v874 = vld [vmem:[#allocation8 + $0x110] sm:$0xff]
    %v875 = vld [vmem:[#allocation8 + $0x118] sm:$0xff]
    %v876 = vld [vmem:[#allocation8 + $0x120] sm:$0xff]
    %v877 = vld [vmem:[#allocation8 + $0x128] sm:$0xff]
    %v878 = vld [vmem:[#allocation8 + $0x130] sm:$0xff]
    %v879 = vld [vmem:[#allocation8 + $0x138] sm:$0xff]
    %v880 = vld [vmem:[#allocation8 + $0x140] sm:$0xff]
    %v881 = vld [vmem:[#allocation8 + $0x148] sm:$0xff]
    %v882 = vld [vmem:[#allocation8 + $0x150] sm:$0xff]
    %v883 = vld [vmem:[#allocation8 + $0x158] sm:$0xff]
    %v884 = vld [vmem:[#allocation8 + $0x160] sm:$0xff]
    %v885 = vld [vmem:[#allocation8 + $0x168] sm:$0xff]
    %v886 = vld [vmem:[#allocation8 + $0x170] sm:$0xff]
    %v887 = vld [vmem:[#allocation8 + $0x178] sm:$0xff]
    %v888 = vld [vmem:[#allocation8 + $0x180] sm:$0xff]
    %v889 = vld [vmem:[#allocation8 + $0x188] sm:$0xff]
    %v890 = vld [vmem:[#allocation8 + $0x190] sm:$0xff]
    %v891 = vld [vmem:[#allocation8 + $0x198] sm:$0xff]
    %v892 = vld [vmem:[#allocation8 + $0x1a0] sm:$0xff]
    %v893 = vld [vmem:[#allocation8 + $0x1a8] sm:$0xff]
    %v894 = vld [vmem:[#allocation8 + $0x1b0] sm:$0xff]
    %v895 = vld [vmem:[#allocation8 + $0x1b8] sm:$0xff]
    %v896 = vld [vmem:[#allocation8 + $0x1c0] sm:$0xff]
    %v897 = vld [vmem:[#allocation8 + $0x1c8] sm:$0xff]
    %v898 = vld [vmem:[#allocation8 + $0x1d0] sm:$0xff]
    %v899 = vld [vmem:[#allocation8 + $0x1d8] sm:$0xff]
    %v900 = vld [vmem:[#allocation8 + $0x1e0] sm:$0xff]
    %v901 = vld [vmem:[#allocation8 + $0x1e8] sm:$0xff]
    %v902 = vld [vmem:[#allocation8 + $0x1f0] sm:$0xff]
    %v903 = vld [vmem:[#allocation8 + $0x1f8] sm:$0xff]
    %v904 = vld [vmem:[#allocation8 + $0x200] sm:$0xff]
    %v905 = vld [vmem:[#allocation8 + $0x208] sm:$0xff]
    %v906 = vld [vmem:[#allocation8 + $0x210] sm:$0xff]
    %v907 = vld [vmem:[#allocation8 + $0x218] sm:$0xff]
    %v908 = vld [vmem:[#allocation8 + $0x220] sm:$0xff]
    %v909 = vld [vmem:[#allocation8 + $0x228] sm:$0xff]
    %v910 = vld [vmem:[#allocation8 + $0x230] sm:$0xff]
    %v911 = vld [vmem:[#allocation8 + $0x238] sm:$0xff]
    %v912 = vld [vmem:[#allocation8 + $0x240] sm:$0xff]
    %v913 = vld [vmem:[#allocation8 + $0x248] sm:$0xff]
    %v914 = vld [vmem:[#allocation8 + $0x250] sm:$0xff]
    %v915 = vld [vmem:[#allocation8 + $0x258] sm:$0xff]
    %v916 = vld [vmem:[#allocation8 + $0x260] sm:$0xff]
    %v917 = vld [vmem:[#allocation8 + $0x268] sm:$0xff]
    %v918 = vld [vmem:[#allocation8 + $0x270] sm:$0xff]
    %v919 = vld [vmem:[#allocation8 + $0x278] sm:$0xff]
    %v920 = vld [vmem:[#allocation8 + $0x280] sm:$0xff]
    %v921 = vld [vmem:[#allocation8 + $0x288] sm:$0xff]
    %v922 = vld [vmem:[#allocation8 + $0x290] sm:$0xff]
    %v923 = vld [vmem:[#allocation8 + $0x298] sm:$0xff]
    %v924 = vld [vmem:[#allocation8 + $0x2a0] sm:$0xff]
    %v925 = vld [vmem:[#allocation8 + $0x2a8] sm:$0xff]
    %v926 = vld [vmem:[#allocation8 + $0x2b0] sm:$0xff]
    %v927 = vld [vmem:[#allocation8 + $0x2b8] sm:$0xff]
    %v928 = vld [vmem:[#allocation8 + $0x2c0] sm:$0xff]
    %v929 = vld [vmem:[#allocation8 + $0x2c8] sm:$0xff]
    %v930 = vld [vmem:[#allocation8 + $0x2d0] sm:$0xff]
    %v931 = vld [vmem:[#allocation8 + $0x2d8] sm:$0xff]
    %v932 = vld [vmem:[#allocation8 + $0x2e0] sm:$0xff]
    %v933 = vld [vmem:[#allocation8 + $0x2e8] sm:$0xff]
    %v934 = vld [vmem:[#allocation8 + $0x2f0] sm:$0xff]
    %v935 = vld [vmem:[#allocation8 + $0x2f8] sm:$0xff]
    %v936 = vld [vmem:[#allocation8 + $0x300] sm:$0xff]
    %v937 = vld [vmem:[#allocation8 + $0x308] sm:$0xff]
    %v938 = vld [vmem:[#allocation8 + $0x310] sm:$0xff]
    %v939 = vld [vmem:[#allocation8 + $0x318] sm:$0xff]
    %v940 = vld [vmem:[#allocation8 + $0x320] sm:$0xff]
    %v941 = vld [vmem:[#allocation8 + $0x328] sm:$0xff]
    %v942 = vld [vmem:[#allocation8 + $0x330] sm:$0xff]
    %v943 = vld [vmem:[#allocation8 + $0x338] sm:$0xff]
    %v944 = vld [vmem:[#allocation8 + $0x340] sm:$0xff]
    %v945 = vld [vmem:[#allocation8 + $0x348] sm:$0xff]
    %v946 = vld [vmem:[#allocation8 + $0x350] sm:$0xff]
    %v947 = vld [vmem:[#allocation8 + $0x358] sm:$0xff]
    %v948 = vld [vmem:[#allocation8 + $0x360] sm:$0xff]
    %v949 = vld [vmem:[#allocation8 + $0x368] sm:$0xff]
    %v950 = vld [vmem:[#allocation8 + $0x370] sm:$0xff]
    %v951 = vld [vmem:[#allocation8 + $0x378] sm:$0xff]
    %v952 = vld [vmem:[#allocation8 + $0x380] sm:$0xff]
    %v953 = vld [vmem:[#allocation8 + $0x388] sm:$0xff]
    %v954 = vld [vmem:[#allocation8 + $0x390] sm:$0xff]
    %v955 = vld [vmem:[#allocation8 + $0x398] sm:$0xff]
    %v956 = vld [vmem:[#allocation8 + $0x3a0] sm:$0xff]
    %v957 = vld [vmem:[#allocation8 + $0x3a8] sm:$0xff]
    %v958 = vld [vmem:[#allocation8 + $0x3b0] sm:$0xff]
    %v959 = vld [vmem:[#allocation8 + $0x3b8] sm:$0xff]
    %v960 = vld [vmem:[#allocation8 + $0x3c0] sm:$0xff]
    %v961 = vld [vmem:[#allocation8 + $0x3c8] sm:$0xff]
    %v962 = vld [vmem:[#allocation8 + $0x3d0] sm:$0xff]
    %v963 = vld [vmem:[#allocation8 + $0x3d8] sm:$0xff]
    %v964 = vld [vmem:[#allocation8 + $0x3e0] sm:$0xff]
    %v965 = vld [vmem:[#allocation8 + $0x3e8] sm:$0xff]
    %v966 = vld [vmem:[#allocation8 + $0x3f0] sm:$0xff]
    %v967 = vld [vmem:[#allocation8 + $0x3f8] sm:$0xff]
    %v968 = vld [vmem:[#allocation8 + $0x400] sm:$0xff]
    %v969 = vld [vmem:[#allocation8 + $0x408] sm:$0xff]
    %v970 = vld [vmem:[#allocation8 + $0x410] sm:$0xff]
    %v971 = vld [vmem:[#allocation8 + $0x418] sm:$0xff]
    %v972 = vld [vmem:[#allocation8 + $0x420] sm:$0xff]
    %v973 = vld [vmem:[#allocation8 + $0x428] sm:$0xff]
    %v974 = vld [vmem:[#allocation8 + $0x430] sm:$0xff]
    %v975 = vld [vmem:[#allocation8 + $0x438] sm:$0xff]
    %v976 = vld [vmem:[#allocation8 + $0x440] sm:$0xff]
    %v977 = vld [vmem:[#allocation8 + $0x448] sm:$0xff]
    %v978 = vld [vmem:[#allocation8 + $0x450] sm:$0xff]
    %v979 = vld [vmem:[#allocation8 + $0x458] sm:$0xff]
    %v980 = vld [vmem:[#allocation8 + $0x460] sm:$0xff]
    %v981 = vld [vmem:[#allocation8 + $0x468] sm:$0xff]
    %v982 = vld [vmem:[#allocation8 + $0x470] sm:$0xff]
    %v983 = vld [vmem:[#allocation8 + $0x478] sm:$0xff]
    %v984 = vld [vmem:[#allocation8 + $0x480] sm:$0xff]
    %v985 = vld [vmem:[#allocation8 + $0x488] sm:$0xff]
    %v986 = vld [vmem:[#allocation8 + $0x490] sm:$0xff]
    %v987 = vld [vmem:[#allocation8 + $0x498] sm:$0xff]
    %v988 = vld [vmem:[#allocation8 + $0x4a0] sm:$0xff]
    %v989 = vld [vmem:[#allocation8 + $0x4a8] sm:$0xff]
    %v990 = vld [vmem:[#allocation8 + $0x4b0] sm:$0xff]
    %v991 = vld [vmem:[#allocation8 + $0x4b8] sm:$0xff]
    %v992 = vld [vmem:[#allocation8 + $0x4c0] sm:$0xff]
    %v993 = vld [vmem:[#allocation8 + $0x4c8] sm:$0xff]
    %v994 = vld [vmem:[#allocation8 + $0x4d0] sm:$0xff]
    %v995 = vld [vmem:[#allocation8 + $0x4d8] sm:$0xff]
    %v996 = vld [vmem:[#allocation8 + $0x4e0] sm:$0xff]
    %v997 = vld [vmem:[#allocation8 + $0x4e8] sm:$0xff]
    %v998 = vld [vmem:[#allocation8 + $0x4f0] sm:$0xff]
    %v999 = vld [vmem:[#allocation8 + $0x4f8] sm:$0xff]
    %v1000 = vld [vmem:[#allocation8 + $0x500] sm:$0xff]
    %v1001 = vld [vmem:[#allocation8 + $0x508] sm:$0xff]
    %v1002 = vld [vmem:[#allocation8 + $0x510] sm:$0xff]
    %v1003 = vld [vmem:[#allocation8 + $0x518] sm:$0xff]
    %v1004 = vld [vmem:[#allocation8 + $0x520] sm:$0xff]
    %v1005 = vld [vmem:[#allocation8 + $0x528] sm:$0xff]
    %v1006 = vld [vmem:[#allocation8 + $0x530] sm:$0xff]
    %v1007 = vld [vmem:[#allocation8 + $0x538] sm:$0xff]
    %v1008 = vld [vmem:[#allocation8 + $0x540] sm:$0xff]
    %v1009 = vld [vmem:[#allocation8 + $0x548] sm:$0xff]
    %v1010 = vld [vmem:[#allocation8 + $0x550] sm:$0xff]
    %v1011 = vld [vmem:[#allocation8 + $0x558] sm:$0xff]
    %v1012 = vld [vmem:[#allocation8 + $0x560] sm:$0xff]
    %v1013 = vld [vmem:[#allocation8 + $0x568] sm:$0xff]
    %v1014 = vld [vmem:[#allocation8 + $0x570] sm:$0xff]
    %v1015 = vld [vmem:[#allocation8 + $0x578] sm:$0xff]
    %v1016 = vld [vmem:[#allocation8 + $0x580] sm:$0xff]
    %v1017 = vld [vmem:[#allocation8 + $0x588] sm:$0xff]
    %v1018 = vld [vmem:[#allocation8 + $0x590] sm:$0xff]
    %v1019 = vld [vmem:[#allocation8 + $0x598] sm:$0xff]
    %v1020 = vld [vmem:[#allocation8 + $0x5a0] sm:$0xff]
    %v1021 = vld [vmem:[#allocation8 + $0x5a8] sm:$0xff]
    %v1022 = vld [vmem:[#allocation8 + $0x5b0] sm:$0xff]
    %v1023 = vld [vmem:[#allocation8 + $0x5b8] sm:$0xff]
    %v1024 = vld [vmem:[#allocation8 + $0x5c0] sm:$0xff]
    %v1025 = vld [vmem:[#allocation8 + $0x5c8] sm:$0xff]
    %v1026 = vld [vmem:[#allocation8 + $0x5d0] sm:$0xff]
    %v1027 = vld [vmem:[#allocation8 + $0x5d8] sm:$0xff]
    %v1028 = vld [vmem:[#allocation8 + $0x5e0] sm:$0xff]
    %v1029 = vld [vmem:[#allocation8 + $0x5e8] sm:$0xff]
    %v1030 = vld [vmem:[#allocation8 + $0x5f0] sm:$0xff]
    %v1031 = vld [vmem:[#allocation8 + $0x5f8] sm:$0xff]
    %v1032 = vld [vmem:[#allocation8 + $0x600] sm:$0xff]
    %v1033 = vld [vmem:[#allocation8 + $0x608] sm:$0xff]
    %v1034 = vld [vmem:[#allocation8 + $0x610] sm:$0xff]
    %v1035 = vld [vmem:[#allocation8 + $0x618] sm:$0xff]
    %v1036 = vld [vmem:[#allocation8 + $0x620] sm:$0xff]
    %v1037 = vld [vmem:[#allocation8 + $0x628] sm:$0xff]
    %v1038 = vld [vmem:[#allocation8 + $0x630] sm:$0xff]
    %v1039 = vld [vmem:[#allocation8 + $0x638] sm:$0xff]
    %v1040 = vld [vmem:[#allocation8 + $0x640] sm:$0xff]
    %v1041 = vld [vmem:[#allocation8 + $0x648] sm:$0xff]
    %v1042 = vld [vmem:[#allocation8 + $0x650] sm:$0xff]
    %v1043 = vld [vmem:[#allocation8 + $0x658] sm:$0xff]
    %v1044 = vld [vmem:[#allocation8 + $0x660] sm:$0xff]
    %v1045 = vld [vmem:[#allocation8 + $0x668] sm:$0xff]
    %v1046 = vld [vmem:[#allocation8 + $0x670] sm:$0xff]
    %v1047 = vld [vmem:[#allocation8 + $0x678] sm:$0xff]
    %v1048 = vld [vmem:[#allocation8 + $0x680] sm:$0xff]
    %v1049 = vld [vmem:[#allocation8 + $0x688] sm:$0xff]
    %v1050 = vld [vmem:[#allocation8 + $0x690] sm:$0xff]
    %v1051 = vld [vmem:[#allocation8 + $0x698] sm:$0xff]
    %v1052 = vld [vmem:[#allocation8 + $0x6a0] sm:$0xff]
    %v1053 = vld [vmem:[#allocation8 + $0x6a8] sm:$0xff]
    %v1054 = vld [vmem:[#allocation8 + $0x6b0] sm:$0xff]
    %v1055 = vld [vmem:[#allocation8 + $0x6b8] sm:$0xff]
    %v1056 = vld [vmem:[#allocation8 + $0x6c0] sm:$0xff]
    %v1057 = vld [vmem:[#allocation8 + $0x6c8] sm:$0xff]
    %v1058 = vld [vmem:[#allocation8 + $0x6d0] sm:$0xff]
    %v1059 = vld [vmem:[#allocation8 + $0x6d8] sm:$0xff]
    %v1060 = vld [vmem:[#allocation8 + $0x6e0] sm:$0xff]
    %v1061 = vld [vmem:[#allocation8 + $0x6e8] sm:$0xff]
    %v1062 = vld [vmem:[#allocation8 + $0x6f0] sm:$0xff]
    %v1063 = vld [vmem:[#allocation8 + $0x6f8] sm:$0xff]
    %v1064 = vld [vmem:[#allocation8 + $0x700] sm:$0xff]
    %v1065 = vld [vmem:[#allocation8 + $0x708] sm:$0xff]
    %v1066 = vld [vmem:[#allocation8 + $0x710] sm:$0xff]
    %v1067 = vld [vmem:[#allocation8 + $0x718] sm:$0xff]
    %v1068 = vld [vmem:[#allocation8 + $0x720] sm:$0xff]
    %v1069 = vld [vmem:[#allocation8 + $0x728] sm:$0xff]
    %v1070 = vld [vmem:[#allocation8 + $0x730] sm:$0xff]
    %v1071 = vld [vmem:[#allocation8 + $0x738] sm:$0xff]
    %v1072 = vld [vmem:[#allocation8 + $0x740] sm:$0xff]
    %v1073 = vld [vmem:[#allocation8 + $0x748] sm:$0xff]
    %v1074 = vld [vmem:[#allocation8 + $0x750] sm:$0xff]
    %v1075 = vld [vmem:[#allocation8 + $0x758] sm:$0xff]
    %v1076 = vld [vmem:[#allocation8 + $0x760] sm:$0xff]
    %v1077 = vld [vmem:[#allocation8 + $0x768] sm:$0xff]
    %v1078 = vld [vmem:[#allocation8 + $0x770] sm:$0xff]
    %v1079 = vld [vmem:[#allocation8 + $0x778] sm:$0xff]
    %v1080 = vld [vmem:[#allocation8 + $0x780] sm:$0xff]
    %v1081 = vld [vmem:[#allocation8 + $0x788] sm:$0xff]
    %v1082 = vld [vmem:[#allocation8 + $0x790] sm:$0xff]
    %v1083 = vld [vmem:[#allocation8 + $0x798] sm:$0xff]
    %v1084 = vld [vmem:[#allocation8 + $0x7a0] sm:$0xff]
    %v1085 = vld [vmem:[#allocation8 + $0x7a8] sm:$0xff]
    %v1086 = vld [vmem:[#allocation8 + $0x7b0] sm:$0xff]
    %v1087 = vld [vmem:[#allocation8 + $0x7b8] sm:$0xff]
    %v1088 = vld [vmem:[#allocation8 + $0x7c0] sm:$0xff]
    %v1089 = vld [vmem:[#allocation8 + $0x7c8] sm:$0xff]
    %v1090 = vld [vmem:[#allocation8 + $0x7d0] sm:$0xff]
    %v1091 = vld [vmem:[#allocation8 + $0x7d8] sm:$0xff]
    %v1092 = vld [vmem:[#allocation8 + $0x7e0] sm:$0xff]
    %v1093 = vld [vmem:[#allocation8 + $0x7e8] sm:$0xff]
    %v1094 = vld [vmem:[#allocation8 + $0x7f0] sm:$0xff]
    %v1095 = vld [vmem:[#allocation8 + $0x7f8] sm:$0xff]
    %v1096 = vld [vmem:[#allocation8 + $0x800] sm:$0xff]
    %v1097 = vld [vmem:[#allocation8 + $0x808] sm:$0xff]
    %v1098 = vld [vmem:[#allocation8 + $0x810] sm:$0xff]
    %v1099 = vld [vmem:[#allocation8 + $0x818] sm:$0xff]
    %v1100 = vld [vmem:[#allocation8 + $0x820] sm:$0xff]
    %v1101 = vld [vmem:[#allocation8 + $0x828] sm:$0xff]
    %v1102 = vld [vmem:[#allocation8 + $0x830] sm:$0xff]
    %v1103 = vld [vmem:[#allocation8 + $0x838] sm:$0xff]
    %v1104 = vld [vmem:[#allocation8 + $0x840] sm:$0xff]
    %v1105 = vld [vmem:[#allocation8 + $0x848] sm:$0xff]
    %v1106 = vld [vmem:[#allocation8 + $0x850] sm:$0xff]
    %v1107 = vld [vmem:[#allocation8 + $0x858] sm:$0xff]
    %v1108 = vld [vmem:[#allocation8 + $0x860] sm:$0xff]
    %v1109 = vld [vmem:[#allocation8 + $0x868] sm:$0xff]
    %v1110 = vld [vmem:[#allocation8 + $0x870] sm:$0xff]
    %v1111 = vld [vmem:[#allocation8 + $0x878] sm:$0xff]
    %v1112 = vld [vmem:[#allocation8 + $0x880] sm:$0xff]
    %v1113 = vld [vmem:[#allocation8 + $0x888] sm:$0xff]
    %v1114 = vld [vmem:[#allocation8 + $0x890] sm:$0xff]
    %v1115 = vld [vmem:[#allocation8 + $0x898] sm:$0xff]
    %v1116 = vld [vmem:[#allocation8 + $0x8a0] sm:$0xff]
    %v1117 = vld [vmem:[#allocation8 + $0x8a8] sm:$0xff]
    %v1118 = vld [vmem:[#allocation8 + $0x8b0] sm:$0xff]
    %v1119 = vld [vmem:[#allocation8 + $0x8b8] sm:$0xff]
    %v1120 = vld [vmem:[#allocation8 + $0x8c0] sm:$0xff]
    %v1121 = vld [vmem:[#allocation8 + $0x8c8] sm:$0xff]
    %v1122 = vld [vmem:[#allocation8 + $0x8d0] sm:$0xff]
    %v1123 = vld [vmem:[#allocation8 + $0x8d8] sm:$0xff]
    %v1124 = vld [vmem:[#allocation8 + $0x8e0] sm:$0xff]
    %v1125 = vld [vmem:[#allocation8 + $0x8e8] sm:$0xff]
    %v1126 = vld [vmem:[#allocation8 + $0x8f0] sm:$0xff]
    %v1127 = vld [vmem:[#allocation8 + $0x8f8] sm:$0xff]
    %v1128 = vld [vmem:[#allocation8 + $0x900] sm:$0xff]
    %v1129 = vld [vmem:[#allocation8 + $0x908] sm:$0xff]
    %v1130 = vld [vmem:[#allocation8 + $0x910] sm:$0xff]
    %v1131 = vld [vmem:[#allocation8 + $0x918] sm:$0xff]
    %v1132 = vld [vmem:[#allocation8 + $0x920] sm:$0xff]
    %v1133 = vld [vmem:[#allocation8 + $0x928] sm:$0xff]
    %v1134 = vld [vmem:[#allocation8 + $0x930] sm:$0xff]
    %v1135 = vld [vmem:[#allocation8 + $0x938] sm:$0xff]
    %v1136 = vld [vmem:[#allocation8 + $0x940] sm:$0xff]
    %v1137 = vld [vmem:[#allocation8 + $0x948] sm:$0xff]
    %v1138 = vld [vmem:[#allocation8 + $0x950] sm:$0xff]
    %v1139 = vld [vmem:[#allocation8 + $0x958] sm:$0xff]
    %v1140 = vld [vmem:[#allocation8 + $0x960] sm:$0xff]
    %v1141 = vld [vmem:[#allocation8 + $0x968] sm:$0xff]
    %v1142 = vld [vmem:[#allocation8 + $0x970] sm:$0xff]
    %v1143 = vld [vmem:[#allocation8 + $0x978] sm:$0xff]
    %v1144 = vld [vmem:[#allocation8 + $0x980] sm:$0xff]
    %v1145 = vld [vmem:[#allocation8 + $0x988] sm:$0xff]
    %v1146 = vld [vmem:[#allocation8 + $0x990] sm:$0xff]
    %v1147 = vld [vmem:[#allocation8 + $0x998] sm:$0xff]
    %v1148 = vld [vmem:[#allocation8 + $0x9a0] sm:$0xff]
    %v1149 = vld [vmem:[#allocation8 + $0x9a8] sm:$0xff]
    %v1150 = vld [vmem:[#allocation8 + $0x9b0] sm:$0xff]
    %v1151 = vld [vmem:[#allocation8 + $0x9b8] sm:$0xff]
    %v1152 = vld [vmem:[#allocation8 + $0x9c0] sm:$0xff]
    %v1153 = vld [vmem:[#allocation8 + $0x9c8] sm:$0xff]
    %v1154 = vld [vmem:[#allocation8 + $0x9d0] sm:$0xff]
    %v1155 = vld [vmem:[#allocation8 + $0x9d8] sm:$0xff]
    %v1156 = vld [vmem:[#allocation8 + $0x9e0] sm:$0xff]
    %v1157 = vld [vmem:[#allocation8 + $0x9e8] sm:$0xff]
    %v1158 = vld [vmem:[#allocation8 + $0x9f0] sm:$0xff]
    %v1159 = vld [vmem:[#allocation8 + $0x9f8] sm:$0xff]
    %v1160 = vld [vmem:[#allocation8 + $0xa00] sm:$0xff]
    %v1161 = vld [vmem:[#allocation8 + $0xa08] sm:$0xff]
    %v1162 = vld [vmem:[#allocation8 + $0xa10] sm:$0xff]
    %v1163 = vld [vmem:[#allocation8 + $0xa18] sm:$0xff]
    %v1164 = vld [vmem:[#allocation8 + $0xa20] sm:$0xff]
    %v1165 = vld [vmem:[#allocation8 + $0xa28] sm:$0xff]
    %v1166 = vld [vmem:[#allocation8 + $0xa30] sm:$0xff]
    %v1167 = vld [vmem:[#allocation8 + $0xa38] sm:$0xff]
    %v1168 = vld [vmem:[#allocation8 + $0xa40] sm:$0xff]
    %v1169 = vld [vmem:[#allocation8 + $0xa48] sm:$0xff]
    %v1170 = vld [vmem:[#allocation8 + $0xa50] sm:$0xff]
    %v1171 = vld [vmem:[#allocation8 + $0xa58] sm:$0xff]
    %v1172 = vld [vmem:[#allocation8 + $0xa60] sm:$0xff]
    %v1173 = vld [vmem:[#allocation8 + $0xa68] sm:$0xff]
    %v1174 = vld [vmem:[#allocation8 + $0xa70] sm:$0xff]
    %v1175 = vld [vmem:[#allocation8 + $0xa78] sm:$0xff]
    %v1176 = vld [vmem:[#allocation8 + $0xa80] sm:$0xff]
    %v1177 = vld [vmem:[#allocation8 + $0xa88] sm:$0xff]
    %v1178 = vld [vmem:[#allocation8 + $0xa90] sm:$0xff]
    %v1179 = vld [vmem:[#allocation8 + $0xa98] sm:$0xff]
    %v1180 = vld [vmem:[#allocation8 + $0xaa0] sm:$0xff]
    %v1181 = vld [vmem:[#allocation8 + $0xaa8] sm:$0xff]
    %v1182 = vld [vmem:[#allocation8 + $0xab0] sm:$0xff]
    %v1183 = vld [vmem:[#allocation8 + $0xab8] sm:$0xff]
    %v1184 = vld [vmem:[#allocation8 + $0xac0] sm:$0xff]
    %v1185 = vld [vmem:[#allocation8 + $0xac8] sm:$0xff]
    %v1186 = vld [vmem:[#allocation8 + $0xad0] sm:$0xff]
    %v1187 = vld [vmem:[#allocation8 + $0xad8] sm:$0xff]
    %v1188 = vld [vmem:[#allocation8 + $0xae0] sm:$0xff]
    %v1189 = vld [vmem:[#allocation8 + $0xae8] sm:$0xff]
    %v1190 = vld [vmem:[#allocation8 + $0xaf0] sm:$0xff]
    %v1191 = vld [vmem:[#allocation8 + $0xaf8] sm:$0xff]
    %v1192 = vld [vmem:[#allocation8 + $0xb00] sm:$0xff]
    %v1193 = vld [vmem:[#allocation8 + $0xb08] sm:$0xff]
    %v1194 = vld [vmem:[#allocation8 + $0xb10] sm:$0xff]
    %v1195 = vld [vmem:[#allocation8 + $0xb18] sm:$0xff]
    %v1196 = vld [vmem:[#allocation8 + $0xb20] sm:$0xff]
    %v1197 = vld [vmem:[#allocation8 + $0xb28] sm:$0xff]
    %v1198 = vld [vmem:[#allocation8 + $0xb30] sm:$0xff]
    %v1199 = vld [vmem:[#allocation8 + $0xb38] sm:$0xff]
    %v1200 = vld [vmem:[#allocation8 + $0xb40] sm:$0xff]
    %v1201 = vld [vmem:[#allocation8 + $0xb48] sm:$0xff]
    %v1202 = vld [vmem:[#allocation8 + $0xb50] sm:$0xff]
    %v1203 = vld [vmem:[#allocation8 + $0xb58] sm:$0xff]
    %v1204 = vld [vmem:[#allocation8 + $0xb60] sm:$0xff]
    %v1205 = vld [vmem:[#allocation8 + $0xb68] sm:$0xff]
    %v1206 = vld [vmem:[#allocation8 + $0xb70] sm:$0xff]
    %v1207 = vld [vmem:[#allocation8 + $0xb78] sm:$0xff]
    %v1208 = vld [vmem:[#allocation8 + $0xb80] sm:$0xff]
    %v1209 = vld [vmem:[#allocation8 + $0xb88] sm:$0xff]
    %v1210 = vld [vmem:[#allocation8 + $0xb90] sm:$0xff]
    %v1211 = vld [vmem:[#allocation8 + $0xb98] sm:$0xff]
    %v1212 = vld [vmem:[#allocation8 + $0xba0] sm:$0xff]
    %v1213 = vld [vmem:[#allocation8 + $0xba8] sm:$0xff]
    %v1214 = vld [vmem:[#allocation8 + $0xbb0] sm:$0xff]
    %v1215 = vld [vmem:[#allocation8 + $0xbb8] sm:$0xff]
    %v1216 = vld [vmem:[#allocation8 + $0xbc0] sm:$0xff]
    %v1217 = vld [vmem:[#allocation8 + $0xbc8] sm:$0xff]
    %v1218 = vld [vmem:[#allocation8 + $0xbd0] sm:$0xff]
    %v1219 = vld [vmem:[#allocation8 + $0xbd8] sm:$0xff]
    %v1220 = vld [vmem:[#allocation8 + $0xbe0] sm:$0xff]
    %v1221 = vld [vmem:[#allocation8 + $0xbe8] sm:$0xff]
    %v1222 = vld [vmem:[#allocation8 + $0xbf0] sm:$0xff]
    %v1223 = vld [vmem:[#allocation8 + $0xbf8] sm:$0xff]
    %v1224 = vld [vmem:[#allocation8 + $0xc00] sm:$0xff]
    %v1225 = vld [vmem:[#allocation8 + $0xc08] sm:$0xff]
    %v1226 = vld [vmem:[#allocation8 + $0xc10] sm:$0xff]
    %v1227 = vld [vmem:[#allocation8 + $0xc18] sm:$0xff]
    %v1228 = vld [vmem:[#allocation8 + $0xc20] sm:$0xff]
    %v1229 = vld [vmem:[#allocation8 + $0xc28] sm:$0xff]
    %v1230 = vld [vmem:[#allocation8 + $0xc30] sm:$0xff]
    %v1231 = vld [vmem:[#allocation8 + $0xc38] sm:$0xff]
    %v1232 = vld [vmem:[#allocation8 + $0xc40] sm:$0xff]
    %v1233 = vld [vmem:[#allocation8 + $0xc48] sm:$0xff]
    %v1234 = vld [vmem:[#allocation8 + $0xc50] sm:$0xff]
    %v1235 = vld [vmem:[#allocation8 + $0xc58] sm:$0xff]
    %v1236 = vld [vmem:[#allocation8 + $0xc60] sm:$0xff]
    %v1237 = vld [vmem:[#allocation8 + $0xc68] sm:$0xff]
    %v1238 = vld [vmem:[#allocation8 + $0xc70] sm:$0xff]
    %v1239 = vld [vmem:[#allocation8 + $0xc78] sm:$0xff]
    %v1240 = vld [vmem:[#allocation8 + $0xc80] sm:$0xff]
    %v1241 = vld [vmem:[#allocation8 + $0xc88] sm:$0xff]
    %v1242 = vld [vmem:[#allocation8 + $0xc90] sm:$0xff]
    %v1243 = vld [vmem:[#allocation8 + $0xc98] sm:$0xff]
    %v1244 = vld [vmem:[#allocation8 + $0xca0] sm:$0xff]
    %v1245 = vld [vmem:[#allocation8 + $0xca8] sm:$0xff]
    %v1246 = vld [vmem:[#allocation8 + $0xcb0] sm:$0xff]
    %v1247 = vld [vmem:[#allocation8 + $0xcb8] sm:$0xff]
    %v1248 = vld [vmem:[#allocation8 + $0xcc0] sm:$0xff]
    %v1249 = vld [vmem:[#allocation8 + $0xcc8] sm:$0xff]
    %v1250 = vld [vmem:[#allocation8 + $0xcd0] sm:$0xff]
    %v1251 = vld [vmem:[#allocation8 + $0xcd8] sm:$0xff]
    %v1252 = vld [vmem:[#allocation8 + $0xce0] sm:$0xff]
    %v1253 = vld [vmem:[#allocation8 + $0xce8] sm:$0xff]
    %v1254 = vld [vmem:[#allocation8 + $0xcf0] sm:$0xff]
    %v1255 = vld [vmem:[#allocation8 + $0xcf8] sm:$0xff]
    %v1256 = vld [vmem:[#allocation8 + $0xd00] sm:$0xff]
    %v1257 = vld [vmem:[#allocation8 + $0xd08] sm:$0xff]
    %v1258 = vld [vmem:[#allocation8 + $0xd10] sm:$0xff]
    %v1259 = vld [vmem:[#allocation8 + $0xd18] sm:$0xff]
    %v1260 = vld [vmem:[#allocation8 + $0xd20] sm:$0xff]
    %v1261 = vld [vmem:[#allocation8 + $0xd28] sm:$0xff]
    %v1262 = vld [vmem:[#allocation8 + $0xd30] sm:$0xff]
    %v1263 = vld [vmem:[#allocation8 + $0xd38] sm:$0xff]
    %v1264 = vld [vmem:[#allocation8 + $0xd40] sm:$0xff]
    %v1265 = vld [vmem:[#allocation8 + $0xd48] sm:$0xff]
    %v1266 = vld [vmem:[#allocation8 + $0xd50] sm:$0xff]
    %v1267 = vld [vmem:[#allocation8 + $0xd58] sm:$0xff]
    %v1268 = vld [vmem:[#allocation8 + $0xd60] sm:$0xff]
    %v1269 = vld [vmem:[#allocation8 + $0xd68] sm:$0xff]
    %v1270 = vld [vmem:[#allocation8 + $0xd70] sm:$0xff]
    %v1271 = vld [vmem:[#allocation8 + $0xd78] sm:$0xff]
    %v1272 = vld [vmem:[#allocation8 + $0xd80] sm:$0xff]
    %v1273 = vld [vmem:[#allocation8 + $0xd88] sm:$0xff]
    %v1274 = vld [vmem:[#allocation8 + $0xd90] sm:$0xff]
    %v1275 = vld [vmem:[#allocation8 + $0xd98] sm:$0xff]
    %v1276 = vld [vmem:[#allocation8 + $0xda0] sm:$0xff]
    %v1277 = vld [vmem:[#allocation8 + $0xda8] sm:$0xff]
    %v1278 = vld [vmem:[#allocation8 + $0xdb0] sm:$0xff]
    %v1279 = vld [vmem:[#allocation8 + $0xdb8] sm:$0xff]
    %v1280 = vld [vmem:[#allocation8 + $0xdc0] sm:$0xff]
    %v1281 = vld [vmem:[#allocation8 + $0xdc8] sm:$0xff]
    %v1282 = vld [vmem:[#allocation8 + $0xdd0] sm:$0xff]
    %v1283 = vld [vmem:[#allocation8 + $0xdd8] sm:$0xff]
    %v1284 = vld [vmem:[#allocation8 + $0xde0] sm:$0xff]
    %v1285 = vld [vmem:[#allocation8 + $0xde8] sm:$0xff]
    %v1286 = vld [vmem:[#allocation8 + $0xdf0] sm:$0xff]
    %v1287 = vld [vmem:[#allocation8 + $0xdf8] sm:$0xff]
    %v1288 = vld [vmem:[#allocation8 + $0xe00] sm:$0xff]
    %v1289 = vld [vmem:[#allocation8 + $0xe08] sm:$0xff]
    %v1290 = vld [vmem:[#allocation8 + $0xe10] sm:$0xff]
    %v1291 = vld [vmem:[#allocation8 + $0xe18] sm:$0xff]
    %v1292 = vld [vmem:[#allocation8 + $0xe20] sm:$0xff]
    %v1293 = vld [vmem:[#allocation8 + $0xe28] sm:$0xff]
    %v1294 = vld [vmem:[#allocation8 + $0xe30] sm:$0xff]
    %v1295 = vld [vmem:[#allocation8 + $0xe38] sm:$0xff]
    %v1296 = vld [vmem:[#allocation8 + $0xe40] sm:$0xff]
    %v1297 = vld [vmem:[#allocation8 + $0xe48] sm:$0xff]
    %v1298 = vld [vmem:[#allocation8 + $0xe50] sm:$0xff]
    %v1299 = vld [vmem:[#allocation8 + $0xe58] sm:$0xff]
    %v1300 = vld [vmem:[#allocation8 + $0xe60] sm:$0xff]
    %v1301 = vld [vmem:[#allocation8 + $0xe68] sm:$0xff]
    %v1302 = vld [vmem:[#allocation8 + $0xe70] sm:$0xff]
    %v1303 = vld [vmem:[#allocation8 + $0xe78] sm:$0xff]
    %v1304 = vld [vmem:[#allocation8 + $0xe80] sm:$0xff]
    %v1305 = vld [vmem:[#allocation8 + $0xe88] sm:$0xff]
    %v1306 = vld [vmem:[#allocation8 + $0xe90] sm:$0xff]
    %v1307 = vld [vmem:[#allocation8 + $0xe98] sm:$0xff]
    %v1308 = vld [vmem:[#allocation8 + $0xea0] sm:$0xff]
    %v1309 = vld [vmem:[#allocation8 + $0xea8] sm:$0xff]
    %v1310 = vld [vmem:[#allocation8 + $0xeb0] sm:$0xff]
    %v1311 = vld [vmem:[#allocation8 + $0xeb8] sm:$0xff]
    %v1312 = vld [vmem:[#allocation8 + $0xec0] sm:$0xff]
    %v1313 = vld [vmem:[#allocation8 + $0xec8] sm:$0xff]
    %v1314 = vld [vmem:[#allocation8 + $0xed0] sm:$0xff]
    %v1315 = vld [vmem:[#allocation8 + $0xed8] sm:$0xff]
    %v1316 = vld [vmem:[#allocation8 + $0xee0] sm:$0xff]
    %v1317 = vld [vmem:[#allocation8 + $0xee8] sm:$0xff]
    %v1318 = vld [vmem:[#allocation8 + $0xef0] sm:$0xff]
    %v1319 = vld [vmem:[#allocation8 + $0xef8] sm:$0xff]
    %v1320 = vld [vmem:[#allocation8 + $0xf00] sm:$0xff]
    %v1321 = vld [vmem:[#allocation8 + $0xf08] sm:$0xff]
    %v1322 = vld [vmem:[#allocation8 + $0xf10] sm:$0xff]
    %v1323 = vld [vmem:[#allocation8 + $0xf18] sm:$0xff]
    %v1324 = vld [vmem:[#allocation8 + $0xf20] sm:$0xff]
    %v1325 = vld [vmem:[#allocation8 + $0xf28] sm:$0xff]
    %v1326 = vld [vmem:[#allocation8 + $0xf30] sm:$0xff]
    %v1327 = vld [vmem:[#allocation8 + $0xf38] sm:$0xff]
    %v1328 = vld [vmem:[#allocation8 + $0xf40] sm:$0xff]
    %v1329 = vld [vmem:[#allocation8 + $0xf48] sm:$0xff]
    %v1330 = vld [vmem:[#allocation8 + $0xf50] sm:$0xff]
    %v1331 = vld [vmem:[#allocation8 + $0xf58] sm:$0xff]
    %v1332 = vld [vmem:[#allocation8 + $0xf60] sm:$0xff]
    %v1333 = vld [vmem:[#allocation8 + $0xf68] sm:$0xff]
    %v1334 = vld [vmem:[#allocation8 + $0xf70] sm:$0xff]
    %v1335 = vld [vmem:[#allocation8 + $0xf78] sm:$0xff]
    %v1336 = vld [vmem:[#allocation8 + $0xf80] sm:$0xff]
    %v1337 = vld [vmem:[#allocation8 + $0xf88] sm:$0xff]
    %v1338 = vld [vmem:[#allocation8 + $0xf90] sm:$0xff]
    %v1339 = vld [vmem:[#allocation8 + $0xf98] sm:$0xff]
    %v1340 = vld [vmem:[#allocation8 + $0xfa0] sm:$0xff]
    %v1341 = vld [vmem:[#allocation8 + $0xfa8] sm:$0xff]
    %v1342 = vld [vmem:[#allocation8 + $0xfb0] sm:$0xff]
    %v1343 = vld [vmem:[#allocation8 + $0xfb8] sm:$0xff]
    %v1344 = vld [vmem:[#allocation8 + $0xfc0] sm:$0xff]
    %v1345 = vld [vmem:[#allocation8 + $0xfc8] sm:$0xff]
    %v1346 = vld [vmem:[#allocation8 + $0xfd0] sm:$0xff]
    %v1347 = vld [vmem:[#allocation8 + $0xfd8] sm:$0xff]
    %v1348 = vld [vmem:[#allocation8 + $0xfe0] sm:$0xff]
    %v1349 = vld [vmem:[#allocation8 + $0xfe8] sm:$0xff]
    %v1350 = vld [vmem:[#allocation8 + $0xff0] sm:$0xff]
    %v1351 = vld [vmem:[#allocation8 + $0xff8] sm:$0xff]
    %v1352 = vld [vmem:[#allocation10] sm:$0xff]
    %v1354 = vlaneseq
    %v1355 = vshrl.u32 %v1354, 7
    %v1356 = vsub.s32 0, %v1355
    %v1357 = vrot.slane %v1352, %v1356
    %v1358 = vlaneseq
    %v1359 = vshrl.u32 %v1358, 7
    %v1360 = vsub.s32 1, %v1359
    %v1361 = vrot.slane %v1352, %v1360
    %v1362 = vlaneseq
    %v1363 = vshrl.u32 %v1362, 7
    %v1364 = vsub.s32 2, %v1363
    %v1365 = vrot.slane %v1352, %v1364
    %v1366 = vlaneseq
    %v1367 = vshrl.u32 %v1366, 7
    %v1368 = vsub.s32 3, %v1367
    %v1369 = vrot.slane %v1352, %v1368
    %v1370 = vlaneseq
    %v1371 = vshrl.u32 %v1370, 7
    %v1372 = vsub.s32 4, %v1371
    %v1373 = vrot.slane %v1352, %v1372
    %v1374 = vlaneseq
    %v1375 = vshrl.u32 %v1374, 7
    %v1376 = vsub.s32 5, %v1375
    %v1377 = vrot.slane %v1352, %v1376
    %v1378 = vlaneseq
    %v1379 = vshrl.u32 %v1378, 7
    %v1380 = vsub.s32 6, %v1379
    %v1381 = vrot.slane %v1352, %v1380
    %v1382 = vlaneseq
    %v1383 = vshrl.u32 %v1382, 7
    %v1384 = vsub.s32 7, %v1383
    %v1385 = vrot.slane %v1352, %v1384
    %v1906 = vunpack.c.l.b16 %v840
    %v1907 = vunpack.c.h.b16 %v840
    %v1908 = vunpack.c.l.b16 %v841
    %v1909 = vunpack.c.h.b16 %v841
    %v1910 = vunpack.c.l.b16 %v842
    %v1911 = vunpack.c.h.b16 %v842
    %v1912 = vunpack.c.l.b16 %v843
    %v1913 = vunpack.c.h.b16 %v843
    %v1914 = vunpack.c.l.b16 %v844
    %v1915 = vunpack.c.h.b16 %v844
    %v1916 = vunpack.c.l.b16 %v845
    %v1917 = vunpack.c.h.b16 %v845
    %v1918 = vunpack.c.l.b16 %v846
    %v1919 = vunpack.c.h.b16 %v846
    %v1920 = vunpack.c.l.b16 %v847
    %v1921 = vunpack.c.h.b16 %v847
    %v1922 = vunpack.c.l.b16 %v848
    %v1923 = vunpack.c.h.b16 %v848
    %v1924 = vunpack.c.l.b16 %v849
    %v1925 = vunpack.c.h.b16 %v849
    %v1926 = vunpack.c.l.b16 %v850
    %v1927 = vunpack.c.h.b16 %v850
    %v1928 = vunpack.c.l.b16 %v851
    %v1929 = vunpack.c.h.b16 %v851
    %v1930 = vunpack.c.l.b16 %v852
    %v1931 = vunpack.c.h.b16 %v852
    %v1932 = vunpack.c.l.b16 %v853
    %v1933 = vunpack.c.h.b16 %v853
    %v1934 = vunpack.c.l.b16 %v854
    %v1935 = vunpack.c.h.b16 %v854
    %v1936 = vunpack.c.l.b16 %v855
    %v1937 = vunpack.c.h.b16 %v855
    %v1938 = vunpack.c.l.b16 %v856
    %v1939 = vunpack.c.h.b16 %v856
    %v1940 = vunpack.c.l.b16 %v857
    %v1941 = vunpack.c.h.b16 %v857
    %v1942 = vunpack.c.l.b16 %v858
    %v1943 = vunpack.c.h.b16 %v858
    %v1944 = vunpack.c.l.b16 %v859
    %v1945 = vunpack.c.h.b16 %v859
    %v1946 = vunpack.c.l.b16 %v860
    %v1947 = vunpack.c.h.b16 %v860
    %v1948 = vunpack.c.l.b16 %v861
    %v1949 = vunpack.c.h.b16 %v861
    %v1950 = vunpack.c.l.b16 %v862
    %v1951 = vunpack.c.h.b16 %v862
    %v1952 = vunpack.c.l.b16 %v863
    %v1953 = vunpack.c.h.b16 %v863
    %v1954 = vunpack.c.l.b16 %v864
    %v1955 = vunpack.c.h.b16 %v864
    %v1956 = vunpack.c.l.b16 %v865
    %v1957 = vunpack.c.h.b16 %v865
    %v1958 = vunpack.c.l.b16 %v866
    %v1959 = vunpack.c.h.b16 %v866
    %v1960 = vunpack.c.l.b16 %v867
    %v1961 = vunpack.c.h.b16 %v867
    %v1962 = vunpack.c.l.b16 %v868
    %v1963 = vunpack.c.h.b16 %v868
    %v1964 = vunpack.c.l.b16 %v869
    %v1965 = vunpack.c.h.b16 %v869
    %v1966 = vunpack.c.l.b16 %v870
    %v1967 = vunpack.c.h.b16 %v870
    %v1968 = vunpack.c.l.b16 %v871
    %v1969 = vunpack.c.h.b16 %v871
    %v1970 = vunpack.c.l.b16 %v872
    %v1971 = vunpack.c.h.b16 %v872
    %v1972 = vunpack.c.l.b16 %v873
    %v1973 = vunpack.c.h.b16 %v873
    %v1974 = vunpack.c.l.b16 %v874
    %v1975 = vunpack.c.h.b16 %v874
    %v1976 = vunpack.c.l.b16 %v875
    %v1977 = vunpack.c.h.b16 %v875
    %v1978 = vunpack.c.l.b16 %v876
    %v1979 = vunpack.c.h.b16 %v876
    %v1980 = vunpack.c.l.b16 %v877
    %v1981 = vunpack.c.h.b16 %v877
    %v1982 = vunpack.c.l.b16 %v878
    %v1983 = vunpack.c.h.b16 %v878
    %v1984 = vunpack.c.l.b16 %v879
    %v1985 = vunpack.c.h.b16 %v879
    %v1986 = vunpack.c.l.b16 %v880
    %v1987 = vunpack.c.h.b16 %v880
    %v1988 = vunpack.c.l.b16 %v881
    %v1989 = vunpack.c.h.b16 %v881
    %v1990 = vunpack.c.l.b16 %v882
    %v1991 = vunpack.c.h.b16 %v882
    %v1992 = vunpack.c.l.b16 %v883
    %v1993 = vunpack.c.h.b16 %v883
    %v1994 = vunpack.c.l.b16 %v884
    %v1995 = vunpack.c.h.b16 %v884
    %v1996 = vunpack.c.l.b16 %v885
    %v1997 = vunpack.c.h.b16 %v885
    %v1998 = vunpack.c.l.b16 %v886
    %v1999 = vunpack.c.h.b16 %v886
    %v2000 = vunpack.c.l.b16 %v887
    %v2001 = vunpack.c.h.b16 %v887
    %v2002 = vunpack.c.l.b16 %v888
    %v2003 = vunpack.c.h.b16 %v888
    %v2004 = vunpack.c.l.b16 %v889
    %v2005 = vunpack.c.h.b16 %v889
    %v2006 = vunpack.c.l.b16 %v890
    %v2007 = vunpack.c.h.b16 %v890
    %v2008 = vunpack.c.l.b16 %v891
    %v2009 = vunpack.c.h.b16 %v891
    %v2010 = vunpack.c.l.b16 %v892
    %v2011 = vunpack.c.h.b16 %v892
    %v2012 = vunpack.c.l.b16 %v893
    %v2013 = vunpack.c.h.b16 %v893
    %v2014 = vunpack.c.l.b16 %v894
    %v2015 = vunpack.c.h.b16 %v894
    %v2016 = vunpack.c.l.b16 %v895
    %v2017 = vunpack.c.h.b16 %v895
    %v2018 = vunpack.c.l.b16 %v896
    %v2019 = vunpack.c.h.b16 %v896
    %v2020 = vunpack.c.l.b16 %v897
    %v2021 = vunpack.c.h.b16 %v897
    %v2022 = vunpack.c.l.b16 %v898
    %v2023 = vunpack.c.h.b16 %v898
    %v2024 = vunpack.c.l.b16 %v899
    %v2025 = vunpack.c.h.b16 %v899
    %v2026 = vunpack.c.l.b16 %v900
    %v2027 = vunpack.c.h.b16 %v900
    %v2028 = vunpack.c.l.b16 %v901
    %v2029 = vunpack.c.h.b16 %v901
    %v2030 = vunpack.c.l.b16 %v902
    %v2031 = vunpack.c.h.b16 %v902
    %v2032 = vunpack.c.l.b16 %v903
    %v2033 = vunpack.c.h.b16 %v903
    %v2034 = vunpack.c.l.b16 %v904
    %v2035 = vunpack.c.h.b16 %v904
    %v2036 = vunpack.c.l.b16 %v905
    %v2037 = vunpack.c.h.b16 %v905
    %v2038 = vunpack.c.l.b16 %v906
    %v2039 = vunpack.c.h.b16 %v906
    %v2040 = vunpack.c.l.b16 %v907
    %v2041 = vunpack.c.h.b16 %v907
    %v2042 = vunpack.c.l.b16 %v908
    %v2043 = vunpack.c.h.b16 %v908
    %v2044 = vunpack.c.l.b16 %v909
    %v2045 = vunpack.c.h.b16 %v909
    %v2046 = vunpack.c.l.b16 %v910
    %v2047 = vunpack.c.h.b16 %v910
    %v2048 = vunpack.c.l.b16 %v911
    %v2049 = vunpack.c.h.b16 %v911
    %v2050 = vunpack.c.l.b16 %v912
    %v2051 = vunpack.c.h.b16 %v912
    %v2052 = vunpack.c.l.b16 %v913
    %v2053 = vunpack.c.h.b16 %v913
    %v2054 = vunpack.c.l.b16 %v914
    %v2055 = vunpack.c.h.b16 %v914
    %v2056 = vunpack.c.l.b16 %v915
    %v2057 = vunpack.c.h.b16 %v915
    %v2058 = vunpack.c.l.b16 %v916
    %v2059 = vunpack.c.h.b16 %v916
    %v2060 = vunpack.c.l.b16 %v917
    %v2061 = vunpack.c.h.b16 %v917
    %v2062 = vunpack.c.l.b16 %v918
    %v2063 = vunpack.c.h.b16 %v918
    %v2064 = vunpack.c.l.b16 %v919
    %v2065 = vunpack.c.h.b16 %v919
    %v2066 = vunpack.c.l.b16 %v920
    %v2067 = vunpack.c.h.b16 %v920
    %v2068 = vunpack.c.l.b16 %v921
    %v2069 = vunpack.c.h.b16 %v921
    %v2070 = vunpack.c.l.b16 %v922
    %v2071 = vunpack.c.h.b16 %v922
    %v2072 = vunpack.c.l.b16 %v923
    %v2073 = vunpack.c.h.b16 %v923
    %v2074 = vunpack.c.l.b16 %v924
    %v2075 = vunpack.c.h.b16 %v924
    %v2076 = vunpack.c.l.b16 %v925
    %v2077 = vunpack.c.h.b16 %v925
    %v2078 = vunpack.c.l.b16 %v926
    %v2079 = vunpack.c.h.b16 %v926
    %v2080 = vunpack.c.l.b16 %v927
    %v2081 = vunpack.c.h.b16 %v927
    %v2082 = vunpack.c.l.b16 %v928
    %v2083 = vunpack.c.h.b16 %v928
    %v2084 = vunpack.c.l.b16 %v929
    %v2085 = vunpack.c.h.b16 %v929
    %v2086 = vunpack.c.l.b16 %v930
    %v2087 = vunpack.c.h.b16 %v930
    %v2088 = vunpack.c.l.b16 %v931
    %v2089 = vunpack.c.h.b16 %v931
    %v2090 = vunpack.c.l.b16 %v932
    %v2091 = vunpack.c.h.b16 %v932
    %v2092 = vunpack.c.l.b16 %v933
    %v2093 = vunpack.c.h.b16 %v933
    %v2094 = vunpack.c.l.b16 %v934
    %v2095 = vunpack.c.h.b16 %v934
    %v2096 = vunpack.c.l.b16 %v935
    %v2097 = vunpack.c.h.b16 %v935
    %v2098 = vunpack.c.l.b16 %v936
    %v2099 = vunpack.c.h.b16 %v936
    %v2100 = vunpack.c.l.b16 %v937
    %v2101 = vunpack.c.h.b16 %v937
    %v2102 = vunpack.c.l.b16 %v938
    %v2103 = vunpack.c.h.b16 %v938
    %v2104 = vunpack.c.l.b16 %v939
    %v2105 = vunpack.c.h.b16 %v939
    %v2106 = vunpack.c.l.b16 %v940
    %v2107 = vunpack.c.h.b16 %v940
    %v2108 = vunpack.c.l.b16 %v941
    %v2109 = vunpack.c.h.b16 %v941
    %v2110 = vunpack.c.l.b16 %v942
    %v2111 = vunpack.c.h.b16 %v942
    %v2112 = vunpack.c.l.b16 %v943
    %v2113 = vunpack.c.h.b16 %v943
    %v2114 = vunpack.c.l.b16 %v944
    %v2115 = vunpack.c.h.b16 %v944
    %v2116 = vunpack.c.l.b16 %v945
    %v2117 = vunpack.c.h.b16 %v945
    %v2118 = vunpack.c.l.b16 %v946
    %v2119 = vunpack.c.h.b16 %v946
    %v2120 = vunpack.c.l.b16 %v947
    %v2121 = vunpack.c.h.b16 %v947
    %v2122 = vunpack.c.l.b16 %v948
    %v2123 = vunpack.c.h.b16 %v948
    %v2124 = vunpack.c.l.b16 %v949
    %v2125 = vunpack.c.h.b16 %v949
    %v2126 = vunpack.c.l.b16 %v950
    %v2127 = vunpack.c.h.b16 %v950
    %v2128 = vunpack.c.l.b16 %v951
    %v2129 = vunpack.c.h.b16 %v951
    %v2130 = vunpack.c.l.b16 %v952
    %v2131 = vunpack.c.h.b16 %v952
    %v2132 = vunpack.c.l.b16 %v953
    %v2133 = vunpack.c.h.b16 %v953
    %v2134 = vunpack.c.l.b16 %v954
    %v2135 = vunpack.c.h.b16 %v954
    %v2136 = vunpack.c.l.b16 %v955
    %v2137 = vunpack.c.h.b16 %v955
    %v2138 = vunpack.c.l.b16 %v956
    %v2139 = vunpack.c.h.b16 %v956
    %v2140 = vunpack.c.l.b16 %v957
    %v2141 = vunpack.c.h.b16 %v957
    %v2142 = vunpack.c.l.b16 %v958
    %v2143 = vunpack.c.h.b16 %v958
    %v2144 = vunpack.c.l.b16 %v959
    %v2145 = vunpack.c.h.b16 %v959
    %v2146 = vunpack.c.l.b16 %v960
    %v2147 = vunpack.c.h.b16 %v960
    %v2148 = vunpack.c.l.b16 %v961
    %v2149 = vunpack.c.h.b16 %v961
    %v2150 = vunpack.c.l.b16 %v962
    %v2151 = vunpack.c.h.b16 %v962
    %v2152 = vunpack.c.l.b16 %v963
    %v2153 = vunpack.c.h.b16 %v963
    %v2154 = vunpack.c.l.b16 %v964
    %v2155 = vunpack.c.h.b16 %v964
    %v2156 = vunpack.c.l.b16 %v965
    %v2157 = vunpack.c.h.b16 %v965
    %v2158 = vunpack.c.l.b16 %v966
    %v2159 = vunpack.c.h.b16 %v966
    %v2160 = vunpack.c.l.b16 %v967
    %v2161 = vunpack.c.h.b16 %v967
    %v2162 = vunpack.c.l.b16 %v968
    %v2163 = vunpack.c.h.b16 %v968
    %v2164 = vunpack.c.l.b16 %v969
    %v2165 = vunpack.c.h.b16 %v969
    %v2166 = vunpack.c.l.b16 %v970
    %v2167 = vunpack.c.h.b16 %v970
    %v2168 = vunpack.c.l.b16 %v971
    %v2169 = vunpack.c.h.b16 %v971
    %v2170 = vunpack.c.l.b16 %v972
    %v2171 = vunpack.c.h.b16 %v972
    %v2172 = vunpack.c.l.b16 %v973
    %v2173 = vunpack.c.h.b16 %v973
    %v2174 = vunpack.c.l.b16 %v974
    %v2175 = vunpack.c.h.b16 %v974
    %v2176 = vunpack.c.l.b16 %v975
    %v2177 = vunpack.c.h.b16 %v975
    %v2178 = vunpack.c.l.b16 %v976
    %v2179 = vunpack.c.h.b16 %v976
    %v2180 = vunpack.c.l.b16 %v977
    %v2181 = vunpack.c.h.b16 %v977
    %v2182 = vunpack.c.l.b16 %v978
    %v2183 = vunpack.c.h.b16 %v978
    %v2184 = vunpack.c.l.b16 %v979
    %v2185 = vunpack.c.h.b16 %v979
    %v2186 = vunpack.c.l.b16 %v980
    %v2187 = vunpack.c.h.b16 %v980
    %v2188 = vunpack.c.l.b16 %v981
    %v2189 = vunpack.c.h.b16 %v981
    %v2190 = vunpack.c.l.b16 %v982
    %v2191 = vunpack.c.h.b16 %v982
    %v2192 = vunpack.c.l.b16 %v983
    %v2193 = vunpack.c.h.b16 %v983
    %v2194 = vunpack.c.l.b16 %v984
    %v2195 = vunpack.c.h.b16 %v984
    %v2196 = vunpack.c.l.b16 %v985
    %v2197 = vunpack.c.h.b16 %v985
    %v2198 = vunpack.c.l.b16 %v986
    %v2199 = vunpack.c.h.b16 %v986
    %v2200 = vunpack.c.l.b16 %v987
    %v2201 = vunpack.c.h.b16 %v987
    %v2202 = vunpack.c.l.b16 %v988
    %v2203 = vunpack.c.h.b16 %v988
    %v2204 = vunpack.c.l.b16 %v989
    %v2205 = vunpack.c.h.b16 %v989
    %v2206 = vunpack.c.l.b16 %v990
    %v2207 = vunpack.c.h.b16 %v990
    %v2208 = vunpack.c.l.b16 %v991
    %v2209 = vunpack.c.h.b16 %v991
    %v2210 = vunpack.c.l.b16 %v992
    %v2211 = vunpack.c.h.b16 %v992
    %v2212 = vunpack.c.l.b16 %v993
    %v2213 = vunpack.c.h.b16 %v993
    %v2214 = vunpack.c.l.b16 %v994
    %v2215 = vunpack.c.h.b16 %v994
    %v2216 = vunpack.c.l.b16 %v995
    %v2217 = vunpack.c.h.b16 %v995
    %v2218 = vunpack.c.l.b16 %v996
    %v2219 = vunpack.c.h.b16 %v996
    %v2220 = vunpack.c.l.b16 %v997
    %v2221 = vunpack.c.h.b16 %v997
    %v2222 = vunpack.c.l.b16 %v998
    %v2223 = vunpack.c.h.b16 %v998
    %v2224 = vunpack.c.l.b16 %v999
    %v2225 = vunpack.c.h.b16 %v999
    %v2226 = vunpack.c.l.b16 %v1000
    %v2227 = vunpack.c.h.b16 %v1000
    %v2228 = vunpack.c.l.b16 %v1001
    %v2229 = vunpack.c.h.b16 %v1001
    %v2230 = vunpack.c.l.b16 %v1002
    %v2231 = vunpack.c.h.b16 %v1002
    %v2232 = vunpack.c.l.b16 %v1003
    %v2233 = vunpack.c.h.b16 %v1003
    %v2234 = vunpack.c.l.b16 %v1004
    %v2235 = vunpack.c.h.b16 %v1004
    %v2236 = vunpack.c.l.b16 %v1005
    %v2237 = vunpack.c.h.b16 %v1005
    %v2238 = vunpack.c.l.b16 %v1006
    %v2239 = vunpack.c.h.b16 %v1006
    %v2240 = vunpack.c.l.b16 %v1007
    %v2241 = vunpack.c.h.b16 %v1007
    %v2242 = vunpack.c.l.b16 %v1008
    %v2243 = vunpack.c.h.b16 %v1008
    %v2244 = vunpack.c.l.b16 %v1009
    %v2245 = vunpack.c.h.b16 %v1009
    %v2246 = vunpack.c.l.b16 %v1010
    %v2247 = vunpack.c.h.b16 %v1010
    %v2248 = vunpack.c.l.b16 %v1011
    %v2249 = vunpack.c.h.b16 %v1011
    %v2250 = vunpack.c.l.b16 %v1012
    %v2251 = vunpack.c.h.b16 %v1012
    %v2252 = vunpack.c.l.b16 %v1013
    %v2253 = vunpack.c.h.b16 %v1013
    %v2254 = vunpack.c.l.b16 %v1014
    %v2255 = vunpack.c.h.b16 %v1014
    %v2256 = vunpack.c.l.b16 %v1015
    %v2257 = vunpack.c.h.b16 %v1015
    %v2258 = vunpack.c.l.b16 %v1016
    %v2259 = vunpack.c.h.b16 %v1016
    %v2260 = vunpack.c.l.b16 %v1017
    %v2261 = vunpack.c.h.b16 %v1017
    %v2262 = vunpack.c.l.b16 %v1018
    %v2263 = vunpack.c.h.b16 %v1018
    %v2264 = vunpack.c.l.b16 %v1019
    %v2265 = vunpack.c.h.b16 %v1019
    %v2266 = vunpack.c.l.b16 %v1020
    %v2267 = vunpack.c.h.b16 %v1020
    %v2268 = vunpack.c.l.b16 %v1021
    %v2269 = vunpack.c.h.b16 %v1021
    %v2270 = vunpack.c.l.b16 %v1022
    %v2271 = vunpack.c.h.b16 %v1022
    %v2272 = vunpack.c.l.b16 %v1023
    %v2273 = vunpack.c.h.b16 %v1023
    %v2274 = vunpack.c.l.b16 %v1024
    %v2275 = vunpack.c.h.b16 %v1024
    %v2276 = vunpack.c.l.b16 %v1025
    %v2277 = vunpack.c.h.b16 %v1025
    %v2278 = vunpack.c.l.b16 %v1026
    %v2279 = vunpack.c.h.b16 %v1026
    %v2280 = vunpack.c.l.b16 %v1027
    %v2281 = vunpack.c.h.b16 %v1027
    %v2282 = vunpack.c.l.b16 %v1028
    %v2283 = vunpack.c.h.b16 %v1028
    %v2284 = vunpack.c.l.b16 %v1029
    %v2285 = vunpack.c.h.b16 %v1029
    %v2286 = vunpack.c.l.b16 %v1030
    %v2287 = vunpack.c.h.b16 %v1030
    %v2288 = vunpack.c.l.b16 %v1031
    %v2289 = vunpack.c.h.b16 %v1031
    %v2290 = vunpack.c.l.b16 %v1032
    %v2291 = vunpack.c.h.b16 %v1032
    %v2292 = vunpack.c.l.b16 %v1033
    %v2293 = vunpack.c.h.b16 %v1033
    %v2294 = vunpack.c.l.b16 %v1034
    %v2295 = vunpack.c.h.b16 %v1034
    %v2296 = vunpack.c.l.b16 %v1035
    %v2297 = vunpack.c.h.b16 %v1035
    %v2298 = vunpack.c.l.b16 %v1036
    %v2299 = vunpack.c.h.b16 %v1036
    %v2300 = vunpack.c.l.b16 %v1037
    %v2301 = vunpack.c.h.b16 %v1037
    %v2302 = vunpack.c.l.b16 %v1038
    %v2303 = vunpack.c.h.b16 %v1038
    %v2304 = vunpack.c.l.b16 %v1039
    %v2305 = vunpack.c.h.b16 %v1039
    %v2306 = vunpack.c.l.b16 %v1040
    %v2307 = vunpack.c.h.b16 %v1040
    %v2308 = vunpack.c.l.b16 %v1041
    %v2309 = vunpack.c.h.b16 %v1041
    %v2310 = vunpack.c.l.b16 %v1042
    %v2311 = vunpack.c.h.b16 %v1042
    %v2312 = vunpack.c.l.b16 %v1043
    %v2313 = vunpack.c.h.b16 %v1043
    %v2314 = vunpack.c.l.b16 %v1044
    %v2315 = vunpack.c.h.b16 %v1044
    %v2316 = vunpack.c.l.b16 %v1045
    %v2317 = vunpack.c.h.b16 %v1045
    %v2318 = vunpack.c.l.b16 %v1046
    %v2319 = vunpack.c.h.b16 %v1046
    %v2320 = vunpack.c.l.b16 %v1047
    %v2321 = vunpack.c.h.b16 %v1047
    %v2322 = vunpack.c.l.b16 %v1048
    %v2323 = vunpack.c.h.b16 %v1048
    %v2324 = vunpack.c.l.b16 %v1049
    %v2325 = vunpack.c.h.b16 %v1049
    %v2326 = vunpack.c.l.b16 %v1050
    %v2327 = vunpack.c.h.b16 %v1050
    %v2328 = vunpack.c.l.b16 %v1051
    %v2329 = vunpack.c.h.b16 %v1051
    %v2330 = vunpack.c.l.b16 %v1052
    %v2331 = vunpack.c.h.b16 %v1052
    %v2332 = vunpack.c.l.b16 %v1053
    %v2333 = vunpack.c.h.b16 %v1053
    %v2334 = vunpack.c.l.b16 %v1054
    %v2335 = vunpack.c.h.b16 %v1054
    %v2336 = vunpack.c.l.b16 %v1055
    %v2337 = vunpack.c.h.b16 %v1055
    %v2338 = vunpack.c.l.b16 %v1056
    %v2339 = vunpack.c.h.b16 %v1056
    %v2340 = vunpack.c.l.b16 %v1057
    %v2341 = vunpack.c.h.b16 %v1057
    %v2342 = vunpack.c.l.b16 %v1058
    %v2343 = vunpack.c.h.b16 %v1058
    %v2344 = vunpack.c.l.b16 %v1059
    %v2345 = vunpack.c.h.b16 %v1059
    %v2346 = vunpack.c.l.b16 %v1060
    %v2347 = vunpack.c.h.b16 %v1060
    %v2348 = vunpack.c.l.b16 %v1061
    %v2349 = vunpack.c.h.b16 %v1061
    %v2350 = vunpack.c.l.b16 %v1062
    %v2351 = vunpack.c.h.b16 %v1062
    %v2352 = vunpack.c.l.b16 %v1063
    %v2353 = vunpack.c.h.b16 %v1063
    %v2354 = vunpack.c.l.b16 %v1064
    %v2355 = vunpack.c.h.b16 %v1064
    %v2356 = vunpack.c.l.b16 %v1065
    %v2357 = vunpack.c.h.b16 %v1065
    %v2358 = vunpack.c.l.b16 %v1066
    %v2359 = vunpack.c.h.b16 %v1066
    %v2360 = vunpack.c.l.b16 %v1067
    %v2361 = vunpack.c.h.b16 %v1067
    %v2362 = vunpack.c.l.b16 %v1068
    %v2363 = vunpack.c.h.b16 %v1068
    %v2364 = vunpack.c.l.b16 %v1069
    %v2365 = vunpack.c.h.b16 %v1069
    %v2366 = vunpack.c.l.b16 %v1070
    %v2367 = vunpack.c.h.b16 %v1070
    %v2368 = vunpack.c.l.b16 %v1071
    %v2369 = vunpack.c.h.b16 %v1071
    %v2370 = vunpack.c.l.b16 %v1072
    %v2371 = vunpack.c.h.b16 %v1072
    %v2372 = vunpack.c.l.b16 %v1073
    %v2373 = vunpack.c.h.b16 %v1073
    %v2374 = vunpack.c.l.b16 %v1074
    %v2375 = vunpack.c.h.b16 %v1074
    %v2376 = vunpack.c.l.b16 %v1075
    %v2377 = vunpack.c.h.b16 %v1075
    %v2378 = vunpack.c.l.b16 %v1076
    %v2379 = vunpack.c.h.b16 %v1076
    %v2380 = vunpack.c.l.b16 %v1077
    %v2381 = vunpack.c.h.b16 %v1077
    %v2382 = vunpack.c.l.b16 %v1078
    %v2383 = vunpack.c.h.b16 %v1078
    %v2384 = vunpack.c.l.b16 %v1079
    %v2385 = vunpack.c.h.b16 %v1079
    %v2386 = vunpack.c.l.b16 %v1080
    %v2387 = vunpack.c.h.b16 %v1080
    %v2388 = vunpack.c.l.b16 %v1081
    %v2389 = vunpack.c.h.b16 %v1081
    %v2390 = vunpack.c.l.b16 %v1082
    %v2391 = vunpack.c.h.b16 %v1082
    %v2392 = vunpack.c.l.b16 %v1083
    %v2393 = vunpack.c.h.b16 %v1083
    %v2394 = vunpack.c.l.b16 %v1084
    %v2395 = vunpack.c.h.b16 %v1084
    %v2396 = vunpack.c.l.b16 %v1085
    %v2397 = vunpack.c.h.b16 %v1085
    %v2398 = vunpack.c.l.b16 %v1086
    %v2399 = vunpack.c.h.b16 %v1086
    %v2400 = vunpack.c.l.b16 %v1087
    %v2401 = vunpack.c.h.b16 %v1087
    %v2402 = vunpack.c.l.b16 %v1088
    %v2403 = vunpack.c.h.b16 %v1088
    %v2404 = vunpack.c.l.b16 %v1089
    %v2405 = vunpack.c.h.b16 %v1089
    %v2406 = vunpack.c.l.b16 %v1090
    %v2407 = vunpack.c.h.b16 %v1090
    %v2408 = vunpack.c.l.b16 %v1091
    %v2409 = vunpack.c.h.b16 %v1091
    %v2410 = vunpack.c.l.b16 %v1092
    %v2411 = vunpack.c.h.b16 %v1092
    %v2412 = vunpack.c.l.b16 %v1093
    %v2413 = vunpack.c.h.b16 %v1093
    %v2414 = vunpack.c.l.b16 %v1094
    %v2415 = vunpack.c.h.b16 %v1094
    %v2416 = vunpack.c.l.b16 %v1095
    %v2417 = vunpack.c.h.b16 %v1095
    %v2418 = vunpack.c.l.b16 %v1096
    %v2419 = vunpack.c.h.b16 %v1096
    %v2420 = vunpack.c.l.b16 %v1097
    %v2421 = vunpack.c.h.b16 %v1097
    %v2422 = vunpack.c.l.b16 %v1098
    %v2423 = vunpack.c.h.b16 %v1098
    %v2424 = vunpack.c.l.b16 %v1099
    %v2425 = vunpack.c.h.b16 %v1099
    %v2426 = vunpack.c.l.b16 %v1100
    %v2427 = vunpack.c.h.b16 %v1100
    %v2428 = vunpack.c.l.b16 %v1101
    %v2429 = vunpack.c.h.b16 %v1101
    %v2430 = vunpack.c.l.b16 %v1102
    %v2431 = vunpack.c.h.b16 %v1102
    %v2432 = vunpack.c.l.b16 %v1103
    %v2433 = vunpack.c.h.b16 %v1103
    %v2434 = vunpack.c.l.b16 %v1104
    %v2435 = vunpack.c.h.b16 %v1104
    %v2436 = vunpack.c.l.b16 %v1105
    %v2437 = vunpack.c.h.b16 %v1105
    %v2438 = vunpack.c.l.b16 %v1106
    %v2439 = vunpack.c.h.b16 %v1106
    %v2440 = vunpack.c.l.b16 %v1107
    %v2441 = vunpack.c.h.b16 %v1107
    %v2442 = vunpack.c.l.b16 %v1108
    %v2443 = vunpack.c.h.b16 %v1108
    %v2444 = vunpack.c.l.b16 %v1109
    %v2445 = vunpack.c.h.b16 %v1109
    %v2446 = vunpack.c.l.b16 %v1110
    %v2447 = vunpack.c.h.b16 %v1110
    %v2448 = vunpack.c.l.b16 %v1111
    %v2449 = vunpack.c.h.b16 %v1111
    %v2450 = vunpack.c.l.b16 %v1112
    %v2451 = vunpack.c.h.b16 %v1112
    %v2452 = vunpack.c.l.b16 %v1113
    %v2453 = vunpack.c.h.b16 %v1113
    %v2454 = vunpack.c.l.b16 %v1114
    %v2455 = vunpack.c.h.b16 %v1114
    %v2456 = vunpack.c.l.b16 %v1115
    %v2457 = vunpack.c.h.b16 %v1115
    %v2458 = vunpack.c.l.b16 %v1116
    %v2459 = vunpack.c.h.b16 %v1116
    %v2460 = vunpack.c.l.b16 %v1117
    %v2461 = vunpack.c.h.b16 %v1117
    %v2462 = vunpack.c.l.b16 %v1118
    %v2463 = vunpack.c.h.b16 %v1118
    %v2464 = vunpack.c.l.b16 %v1119
    %v2465 = vunpack.c.h.b16 %v1119
    %v2466 = vunpack.c.l.b16 %v1120
    %v2467 = vunpack.c.h.b16 %v1120
    %v2468 = vunpack.c.l.b16 %v1121
    %v2469 = vunpack.c.h.b16 %v1121
    %v2470 = vunpack.c.l.b16 %v1122
    %v2471 = vunpack.c.h.b16 %v1122
    %v2472 = vunpack.c.l.b16 %v1123
    %v2473 = vunpack.c.h.b16 %v1123
    %v2474 = vunpack.c.l.b16 %v1124
    %v2475 = vunpack.c.h.b16 %v1124
    %v2476 = vunpack.c.l.b16 %v1125
    %v2477 = vunpack.c.h.b16 %v1125
    %v2478 = vunpack.c.l.b16 %v1126
    %v2479 = vunpack.c.h.b16 %v1126
    %v2480 = vunpack.c.l.b16 %v1127
    %v2481 = vunpack.c.h.b16 %v1127
    %v2482 = vunpack.c.l.b16 %v1128
    %v2483 = vunpack.c.h.b16 %v1128
    %v2484 = vunpack.c.l.b16 %v1129
    %v2485 = vunpack.c.h.b16 %v1129
    %v2486 = vunpack.c.l.b16 %v1130
    %v2487 = vunpack.c.h.b16 %v1130
    %v2488 = vunpack.c.l.b16 %v1131
    %v2489 = vunpack.c.h.b16 %v1131
    %v2490 = vunpack.c.l.b16 %v1132
    %v2491 = vunpack.c.h.b16 %v1132
    %v2492 = vunpack.c.l.b16 %v1133
    %v2493 = vunpack.c.h.b16 %v1133
    %v2494 = vunpack.c.l.b16 %v1134
    %v2495 = vunpack.c.h.b16 %v1134
    %v2496 = vunpack.c.l.b16 %v1135
    %v2497 = vunpack.c.h.b16 %v1135
    %v2498 = vunpack.c.l.b16 %v1136
    %v2499 = vunpack.c.h.b16 %v1136
    %v2500 = vunpack.c.l.b16 %v1137
    %v2501 = vunpack.c.h.b16 %v1137
    %v2502 = vunpack.c.l.b16 %v1138
    %v2503 = vunpack.c.h.b16 %v1138
    %v2504 = vunpack.c.l.b16 %v1139
    %v2505 = vunpack.c.h.b16 %v1139
    %v2506 = vunpack.c.l.b16 %v1140
    %v2507 = vunpack.c.h.b16 %v1140
    %v2508 = vunpack.c.l.b16 %v1141
    %v2509 = vunpack.c.h.b16 %v1141
    %v2510 = vunpack.c.l.b16 %v1142
    %v2511 = vunpack.c.h.b16 %v1142
    %v2512 = vunpack.c.l.b16 %v1143
    %v2513 = vunpack.c.h.b16 %v1143
    %v2514 = vunpack.c.l.b16 %v1144
    %v2515 = vunpack.c.h.b16 %v1144
    %v2516 = vunpack.c.l.b16 %v1145
    %v2517 = vunpack.c.h.b16 %v1145
    %v2518 = vunpack.c.l.b16 %v1146
    %v2519 = vunpack.c.h.b16 %v1146
    %v2520 = vunpack.c.l.b16 %v1147
    %v2521 = vunpack.c.h.b16 %v1147
    %v2522 = vunpack.c.l.b16 %v1148
    %v2523 = vunpack.c.h.b16 %v1148
    %v2524 = vunpack.c.l.b16 %v1149
    %v2525 = vunpack.c.h.b16 %v1149
    %v2526 = vunpack.c.l.b16 %v1150
    %v2527 = vunpack.c.h.b16 %v1150
    %v2528 = vunpack.c.l.b16 %v1151
    %v2529 = vunpack.c.h.b16 %v1151
    %v2530 = vunpack.c.l.b16 %v1152
    %v2531 = vunpack.c.h.b16 %v1152
    %v2532 = vunpack.c.l.b16 %v1153
    %v2533 = vunpack.c.h.b16 %v1153
    %v2534 = vunpack.c.l.b16 %v1154
    %v2535 = vunpack.c.h.b16 %v1154
    %v2536 = vunpack.c.l.b16 %v1155
    %v2537 = vunpack.c.h.b16 %v1155
    %v2538 = vunpack.c.l.b16 %v1156
    %v2539 = vunpack.c.h.b16 %v1156
    %v2540 = vunpack.c.l.b16 %v1157
    %v2541 = vunpack.c.h.b16 %v1157
    %v2542 = vunpack.c.l.b16 %v1158
    %v2543 = vunpack.c.h.b16 %v1158
    %v2544 = vunpack.c.l.b16 %v1159
    %v2545 = vunpack.c.h.b16 %v1159
    %v2546 = vunpack.c.l.b16 %v1160
    %v2547 = vunpack.c.h.b16 %v1160
    %v2548 = vunpack.c.l.b16 %v1161
    %v2549 = vunpack.c.h.b16 %v1161
    %v2550 = vunpack.c.l.b16 %v1162
    %v2551 = vunpack.c.h.b16 %v1162
    %v2552 = vunpack.c.l.b16 %v1163
    %v2553 = vunpack.c.h.b16 %v1163
    %v2554 = vunpack.c.l.b16 %v1164
    %v2555 = vunpack.c.h.b16 %v1164
    %v2556 = vunpack.c.l.b16 %v1165
    %v2557 = vunpack.c.h.b16 %v1165
    %v2558 = vunpack.c.l.b16 %v1166
    %v2559 = vunpack.c.h.b16 %v1166
    %v2560 = vunpack.c.l.b16 %v1167
    %v2561 = vunpack.c.h.b16 %v1167
    %v2562 = vunpack.c.l.b16 %v1168
    %v2563 = vunpack.c.h.b16 %v1168
    %v2564 = vunpack.c.l.b16 %v1169
    %v2565 = vunpack.c.h.b16 %v1169
    %v2566 = vunpack.c.l.b16 %v1170
    %v2567 = vunpack.c.h.b16 %v1170
    %v2568 = vunpack.c.l.b16 %v1171
    %v2569 = vunpack.c.h.b16 %v1171
    %v2570 = vunpack.c.l.b16 %v1172
    %v2571 = vunpack.c.h.b16 %v1172
    %v2572 = vunpack.c.l.b16 %v1173
    %v2573 = vunpack.c.h.b16 %v1173
    %v2574 = vunpack.c.l.b16 %v1174
    %v2575 = vunpack.c.h.b16 %v1174
    %v2576 = vunpack.c.l.b16 %v1175
    %v2577 = vunpack.c.h.b16 %v1175
    %v2578 = vunpack.c.l.b16 %v1176
    %v2579 = vunpack.c.h.b16 %v1176
    %v2580 = vunpack.c.l.b16 %v1177
    %v2581 = vunpack.c.h.b16 %v1177
    %v2582 = vunpack.c.l.b16 %v1178
    %v2583 = vunpack.c.h.b16 %v1178
    %v2584 = vunpack.c.l.b16 %v1179
    %v2585 = vunpack.c.h.b16 %v1179
    %v2586 = vunpack.c.l.b16 %v1180
    %v2587 = vunpack.c.h.b16 %v1180
    %v2588 = vunpack.c.l.b16 %v1181
    %v2589 = vunpack.c.h.b16 %v1181
    %v2590 = vunpack.c.l.b16 %v1182
    %v2591 = vunpack.c.h.b16 %v1182
    %v2592 = vunpack.c.l.b16 %v1183
    %v2593 = vunpack.c.h.b16 %v1183
    %v2594 = vunpack.c.l.b16 %v1184
    %v2595 = vunpack.c.h.b16 %v1184
    %v2596 = vunpack.c.l.b16 %v1185
    %v2597 = vunpack.c.h.b16 %v1185
    %v2598 = vunpack.c.l.b16 %v1186
    %v2599 = vunpack.c.h.b16 %v1186
    %v2600 = vunpack.c.l.b16 %v1187
    %v2601 = vunpack.c.h.b16 %v1187
    %v2602 = vunpack.c.l.b16 %v1188
    %v2603 = vunpack.c.h.b16 %v1188
    %v2604 = vunpack.c.l.b16 %v1189
    %v2605 = vunpack.c.h.b16 %v1189
    %v2606 = vunpack.c.l.b16 %v1190
    %v2607 = vunpack.c.h.b16 %v1190
    %v2608 = vunpack.c.l.b16 %v1191
    %v2609 = vunpack.c.h.b16 %v1191
    %v2610 = vunpack.c.l.b16 %v1192
    %v2611 = vunpack.c.h.b16 %v1192
    %v2612 = vunpack.c.l.b16 %v1193
    %v2613 = vunpack.c.h.b16 %v1193
    %v2614 = vunpack.c.l.b16 %v1194
    %v2615 = vunpack.c.h.b16 %v1194
    %v2616 = vunpack.c.l.b16 %v1195
    %v2617 = vunpack.c.h.b16 %v1195
    %v2618 = vunpack.c.l.b16 %v1196
    %v2619 = vunpack.c.h.b16 %v1196
    %v2620 = vunpack.c.l.b16 %v1197
    %v2621 = vunpack.c.h.b16 %v1197
    %v2622 = vunpack.c.l.b16 %v1198
    %v2623 = vunpack.c.h.b16 %v1198
    %v2624 = vunpack.c.l.b16 %v1199
    %v2625 = vunpack.c.h.b16 %v1199
    %v2626 = vunpack.c.l.b16 %v1200
    %v2627 = vunpack.c.h.b16 %v1200
    %v2628 = vunpack.c.l.b16 %v1201
    %v2629 = vunpack.c.h.b16 %v1201
    %v2630 = vunpack.c.l.b16 %v1202
    %v2631 = vunpack.c.h.b16 %v1202
    %v2632 = vunpack.c.l.b16 %v1203
    %v2633 = vunpack.c.h.b16 %v1203
    %v2634 = vunpack.c.l.b16 %v1204
    %v2635 = vunpack.c.h.b16 %v1204
    %v2636 = vunpack.c.l.b16 %v1205
    %v2637 = vunpack.c.h.b16 %v1205
    %v2638 = vunpack.c.l.b16 %v1206
    %v2639 = vunpack.c.h.b16 %v1206
    %v2640 = vunpack.c.l.b16 %v1207
    %v2641 = vunpack.c.h.b16 %v1207
    %v2642 = vunpack.c.l.b16 %v1208
    %v2643 = vunpack.c.h.b16 %v1208
    %v2644 = vunpack.c.l.b16 %v1209
    %v2645 = vunpack.c.h.b16 %v1209
    %v2646 = vunpack.c.l.b16 %v1210
    %v2647 = vunpack.c.h.b16 %v1210
    %v2648 = vunpack.c.l.b16 %v1211
    %v2649 = vunpack.c.h.b16 %v1211
    %v2650 = vunpack.c.l.b16 %v1212
    %v2651 = vunpack.c.h.b16 %v1212
    %v2652 = vunpack.c.l.b16 %v1213
    %v2653 = vunpack.c.h.b16 %v1213
    %v2654 = vunpack.c.l.b16 %v1214
    %v2655 = vunpack.c.h.b16 %v1214
    %v2656 = vunpack.c.l.b16 %v1215
    %v2657 = vunpack.c.h.b16 %v1215
    %v2658 = vunpack.c.l.b16 %v1216
    %v2659 = vunpack.c.h.b16 %v1216
    %v2660 = vunpack.c.l.b16 %v1217
    %v2661 = vunpack.c.h.b16 %v1217
    %v2662 = vunpack.c.l.b16 %v1218
    %v2663 = vunpack.c.h.b16 %v1218
    %v2664 = vunpack.c.l.b16 %v1219
    %v2665 = vunpack.c.h.b16 %v1219
    %v2666 = vunpack.c.l.b16 %v1220
    %v2667 = vunpack.c.h.b16 %v1220
    %v2668 = vunpack.c.l.b16 %v1221
    %v2669 = vunpack.c.h.b16 %v1221
    %v2670 = vunpack.c.l.b16 %v1222
    %v2671 = vunpack.c.h.b16 %v1222
    %v2672 = vunpack.c.l.b16 %v1223
    %v2673 = vunpack.c.h.b16 %v1223
    %v2674 = vunpack.c.l.b16 %v1224
    %v2675 = vunpack.c.h.b16 %v1224
    %v2676 = vunpack.c.l.b16 %v1225
    %v2677 = vunpack.c.h.b16 %v1225
    %v2678 = vunpack.c.l.b16 %v1226
    %v2679 = vunpack.c.h.b16 %v1226
    %v2680 = vunpack.c.l.b16 %v1227
    %v2681 = vunpack.c.h.b16 %v1227
    %v2682 = vunpack.c.l.b16 %v1228
    %v2683 = vunpack.c.h.b16 %v1228
    %v2684 = vunpack.c.l.b16 %v1229
    %v2685 = vunpack.c.h.b16 %v1229
    %v2686 = vunpack.c.l.b16 %v1230
    %v2687 = vunpack.c.h.b16 %v1230
    %v2688 = vunpack.c.l.b16 %v1231
    %v2689 = vunpack.c.h.b16 %v1231
    %v2690 = vunpack.c.l.b16 %v1232
    %v2691 = vunpack.c.h.b16 %v1232
    %v2692 = vunpack.c.l.b16 %v1233
    %v2693 = vunpack.c.h.b16 %v1233
    %v2694 = vunpack.c.l.b16 %v1234
    %v2695 = vunpack.c.h.b16 %v1234
    %v2696 = vunpack.c.l.b16 %v1235
    %v2697 = vunpack.c.h.b16 %v1235
    %v2698 = vunpack.c.l.b16 %v1236
    %v2699 = vunpack.c.h.b16 %v1236
    %v2700 = vunpack.c.l.b16 %v1237
    %v2701 = vunpack.c.h.b16 %v1237
    %v2702 = vunpack.c.l.b16 %v1238
    %v2703 = vunpack.c.h.b16 %v1238
    %v2704 = vunpack.c.l.b16 %v1239
    %v2705 = vunpack.c.h.b16 %v1239
    %v2706 = vunpack.c.l.b16 %v1240
    %v2707 = vunpack.c.h.b16 %v1240
    %v2708 = vunpack.c.l.b16 %v1241
    %v2709 = vunpack.c.h.b16 %v1241
    %v2710 = vunpack.c.l.b16 %v1242
    %v2711 = vunpack.c.h.b16 %v1242
    %v2712 = vunpack.c.l.b16 %v1243
    %v2713 = vunpack.c.h.b16 %v1243
    %v2714 = vunpack.c.l.b16 %v1244
    %v2715 = vunpack.c.h.b16 %v1244
    %v2716 = vunpack.c.l.b16 %v1245
    %v2717 = vunpack.c.h.b16 %v1245
    %v2718 = vunpack.c.l.b16 %v1246
    %v2719 = vunpack.c.h.b16 %v1246
    %v2720 = vunpack.c.l.b16 %v1247
    %v2721 = vunpack.c.h.b16 %v1247
    %v2722 = vunpack.c.l.b16 %v1248
    %v2723 = vunpack.c.h.b16 %v1248
    %v2724 = vunpack.c.l.b16 %v1249
    %v2725 = vunpack.c.h.b16 %v1249
    %v2726 = vunpack.c.l.b16 %v1250
    %v2727 = vunpack.c.h.b16 %v1250
    %v2728 = vunpack.c.l.b16 %v1251
    %v2729 = vunpack.c.h.b16 %v1251
    %v2730 = vunpack.c.l.b16 %v1252
    %v2731 = vunpack.c.h.b16 %v1252
    %v2732 = vunpack.c.l.b16 %v1253
    %v2733 = vunpack.c.h.b16 %v1253
    %v2734 = vunpack.c.l.b16 %v1254
    %v2735 = vunpack.c.h.b16 %v1254
    %v2736 = vunpack.c.l.b16 %v1255
    %v2737 = vunpack.c.h.b16 %v1255
    %v2738 = vunpack.c.l.b16 %v1256
    %v2739 = vunpack.c.h.b16 %v1256
    %v2740 = vunpack.c.l.b16 %v1257
    %v2741 = vunpack.c.h.b16 %v1257
    %v2742 = vunpack.c.l.b16 %v1258
    %v2743 = vunpack.c.h.b16 %v1258
    %v2744 = vunpack.c.l.b16 %v1259
    %v2745 = vunpack.c.h.b16 %v1259
    %v2746 = vunpack.c.l.b16 %v1260
    %v2747 = vunpack.c.h.b16 %v1260
    %v2748 = vunpack.c.l.b16 %v1261
    %v2749 = vunpack.c.h.b16 %v1261
    %v2750 = vunpack.c.l.b16 %v1262
    %v2751 = vunpack.c.h.b16 %v1262
    %v2752 = vunpack.c.l.b16 %v1263
    %v2753 = vunpack.c.h.b16 %v1263
    %v2754 = vunpack.c.l.b16 %v1264
    %v2755 = vunpack.c.h.b16 %v1264
    %v2756 = vunpack.c.l.b16 %v1265
    %v2757 = vunpack.c.h.b16 %v1265
    %v2758 = vunpack.c.l.b16 %v1266
    %v2759 = vunpack.c.h.b16 %v1266
    %v2760 = vunpack.c.l.b16 %v1267
    %v2761 = vunpack.c.h.b16 %v1267
    %v2762 = vunpack.c.l.b16 %v1268
    %v2763 = vunpack.c.h.b16 %v1268
    %v2764 = vunpack.c.l.b16 %v1269
    %v2765 = vunpack.c.h.b16 %v1269
    %v2766 = vunpack.c.l.b16 %v1270
    %v2767 = vunpack.c.h.b16 %v1270
    %v2768 = vunpack.c.l.b16 %v1271
    %v2769 = vunpack.c.h.b16 %v1271
    %v2770 = vunpack.c.l.b16 %v1272
    %v2771 = vunpack.c.h.b16 %v1272
    %v2772 = vunpack.c.l.b16 %v1273
    %v2773 = vunpack.c.h.b16 %v1273
    %v2774 = vunpack.c.l.b16 %v1274
    %v2775 = vunpack.c.h.b16 %v1274
    %v2776 = vunpack.c.l.b16 %v1275
    %v2777 = vunpack.c.h.b16 %v1275
    %v2778 = vunpack.c.l.b16 %v1276
    %v2779 = vunpack.c.h.b16 %v1276
    %v2780 = vunpack.c.l.b16 %v1277
    %v2781 = vunpack.c.h.b16 %v1277
    %v2782 = vunpack.c.l.b16 %v1278
    %v2783 = vunpack.c.h.b16 %v1278
    %v2784 = vunpack.c.l.b16 %v1279
    %v2785 = vunpack.c.h.b16 %v1279
    %v2786 = vunpack.c.l.b16 %v1280
    %v2787 = vunpack.c.h.b16 %v1280
    %v2788 = vunpack.c.l.b16 %v1281
    %v2789 = vunpack.c.h.b16 %v1281
    %v2790 = vunpack.c.l.b16 %v1282
    %v2791 = vunpack.c.h.b16 %v1282
    %v2792 = vunpack.c.l.b16 %v1283
    %v2793 = vunpack.c.h.b16 %v1283
    %v2794 = vunpack.c.l.b16 %v1284
    %v2795 = vunpack.c.h.b16 %v1284
    %v2796 = vunpack.c.l.b16 %v1285
    %v2797 = vunpack.c.h.b16 %v1285
    %v2798 = vunpack.c.l.b16 %v1286
    %v2799 = vunpack.c.h.b16 %v1286
    %v2800 = vunpack.c.l.b16 %v1287
    %v2801 = vunpack.c.h.b16 %v1287
    %v2802 = vunpack.c.l.b16 %v1288
    %v2803 = vunpack.c.h.b16 %v1288
    %v2804 = vunpack.c.l.b16 %v1289
    %v2805 = vunpack.c.h.b16 %v1289
    %v2806 = vunpack.c.l.b16 %v1290
    %v2807 = vunpack.c.h.b16 %v1290
    %v2808 = vunpack.c.l.b16 %v1291
    %v2809 = vunpack.c.h.b16 %v1291
    %v2810 = vunpack.c.l.b16 %v1292
    %v2811 = vunpack.c.h.b16 %v1292
    %v2812 = vunpack.c.l.b16 %v1293
    %v2813 = vunpack.c.h.b16 %v1293
    %v2814 = vunpack.c.l.b16 %v1294
    %v2815 = vunpack.c.h.b16 %v1294
    %v2816 = vunpack.c.l.b16 %v1295
    %v2817 = vunpack.c.h.b16 %v1295
    %v2818 = vunpack.c.l.b16 %v1296
    %v2819 = vunpack.c.h.b16 %v1296
    %v2820 = vunpack.c.l.b16 %v1297
    %v2821 = vunpack.c.h.b16 %v1297
    %v2822 = vunpack.c.l.b16 %v1298
    %v2823 = vunpack.c.h.b16 %v1298
    %v2824 = vunpack.c.l.b16 %v1299
    %v2825 = vunpack.c.h.b16 %v1299
    %v2826 = vunpack.c.l.b16 %v1300
    %v2827 = vunpack.c.h.b16 %v1300
    %v2828 = vunpack.c.l.b16 %v1301
    %v2829 = vunpack.c.h.b16 %v1301
    %v2830 = vunpack.c.l.b16 %v1302
    %v2831 = vunpack.c.h.b16 %v1302
    %v2832 = vunpack.c.l.b16 %v1303
    %v2833 = vunpack.c.h.b16 %v1303
    %v2834 = vunpack.c.l.b16 %v1304
    %v2835 = vunpack.c.h.b16 %v1304
    %v2836 = vunpack.c.l.b16 %v1305
    %v2837 = vunpack.c.h.b16 %v1305
    %v2838 = vunpack.c.l.b16 %v1306
    %v2839 = vunpack.c.h.b16 %v1306
    %v2840 = vunpack.c.l.b16 %v1307
    %v2841 = vunpack.c.h.b16 %v1307
    %v2842 = vunpack.c.l.b16 %v1308
    %v2843 = vunpack.c.h.b16 %v1308
    %v2844 = vunpack.c.l.b16 %v1309
    %v2845 = vunpack.c.h.b16 %v1309
    %v2846 = vunpack.c.l.b16 %v1310
    %v2847 = vunpack.c.h.b16 %v1310
    %v2848 = vunpack.c.l.b16 %v1311
    %v2849 = vunpack.c.h.b16 %v1311
    %v2850 = vunpack.c.l.b16 %v1312
    %v2851 = vunpack.c.h.b16 %v1312
    %v2852 = vunpack.c.l.b16 %v1313
    %v2853 = vunpack.c.h.b16 %v1313
    %v2854 = vunpack.c.l.b16 %v1314
    %v2855 = vunpack.c.h.b16 %v1314
    %v2856 = vunpack.c.l.b16 %v1315
    %v2857 = vunpack.c.h.b16 %v1315
    %v2858 = vunpack.c.l.b16 %v1316
    %v2859 = vunpack.c.h.b16 %v1316
    %v2860 = vunpack.c.l.b16 %v1317
    %v2861 = vunpack.c.h.b16 %v1317
    %v2862 = vunpack.c.l.b16 %v1318
    %v2863 = vunpack.c.h.b16 %v1318
    %v2864 = vunpack.c.l.b16 %v1319
    %v2865 = vunpack.c.h.b16 %v1319
    %v2866 = vunpack.c.l.b16 %v1320
    %v2867 = vunpack.c.h.b16 %v1320
    %v2868 = vunpack.c.l.b16 %v1321
    %v2869 = vunpack.c.h.b16 %v1321
    %v2870 = vunpack.c.l.b16 %v1322
    %v2871 = vunpack.c.h.b16 %v1322
    %v2872 = vunpack.c.l.b16 %v1323
    %v2873 = vunpack.c.h.b16 %v1323
    %v2874 = vunpack.c.l.b16 %v1324
    %v2875 = vunpack.c.h.b16 %v1324
    %v2876 = vunpack.c.l.b16 %v1325
    %v2877 = vunpack.c.h.b16 %v1325
    %v2878 = vunpack.c.l.b16 %v1326
    %v2879 = vunpack.c.h.b16 %v1326
    %v2880 = vunpack.c.l.b16 %v1327
    %v2881 = vunpack.c.h.b16 %v1327
    %v2882 = vunpack.c.l.b16 %v1328
    %v2883 = vunpack.c.h.b16 %v1328
    %v2884 = vunpack.c.l.b16 %v1329
    %v2885 = vunpack.c.h.b16 %v1329
    %v2886 = vunpack.c.l.b16 %v1330
    %v2887 = vunpack.c.h.b16 %v1330
    %v2888 = vunpack.c.l.b16 %v1331
    %v2889 = vunpack.c.h.b16 %v1331
    %v2890 = vunpack.c.l.b16 %v1332
    %v2891 = vunpack.c.h.b16 %v1332
    %v2892 = vunpack.c.l.b16 %v1333
    %v2893 = vunpack.c.h.b16 %v1333
    %v2894 = vunpack.c.l.b16 %v1334
    %v2895 = vunpack.c.h.b16 %v1334
    %v2896 = vunpack.c.l.b16 %v1335
    %v2897 = vunpack.c.h.b16 %v1335
    %v2898 = vunpack.c.l.b16 %v1336
    %v2899 = vunpack.c.h.b16 %v1336
    %v2900 = vunpack.c.l.b16 %v1337
    %v2901 = vunpack.c.h.b16 %v1337
    %v2902 = vunpack.c.l.b16 %v1338
    %v2903 = vunpack.c.h.b16 %v1338
    %v2904 = vunpack.c.l.b16 %v1339
    %v2905 = vunpack.c.h.b16 %v1339
    %v2906 = vunpack.c.l.b16 %v1340
    %v2907 = vunpack.c.h.b16 %v1340
    %v2908 = vunpack.c.l.b16 %v1341
    %v2909 = vunpack.c.h.b16 %v1341
    %v2910 = vunpack.c.l.b16 %v1342
    %v2911 = vunpack.c.h.b16 %v1342
    %v2912 = vunpack.c.l.b16 %v1343
    %v2913 = vunpack.c.h.b16 %v1343
    %v2914 = vunpack.c.l.b16 %v1344
    %v2915 = vunpack.c.h.b16 %v1344
    %v2916 = vunpack.c.l.b16 %v1345
    %v2917 = vunpack.c.h.b16 %v1345
    %v2918 = vunpack.c.l.b16 %v1346
    %v2919 = vunpack.c.h.b16 %v1346
    %v2920 = vunpack.c.l.b16 %v1347
    %v2921 = vunpack.c.h.b16 %v1347
    %v2922 = vunpack.c.l.b16 %v1348
    %v2923 = vunpack.c.h.b16 %v1348
    %v2924 = vunpack.c.l.b16 %v1349
    %v2925 = vunpack.c.h.b16 %v1349
    %v2926 = vunpack.c.l.b16 %v1350
    %v2927 = vunpack.c.h.b16 %v1350
    %v2928 = vunpack.c.l.b16 %v1351
    %v2929 = vunpack.c.h.b16 %v1351
    %v2930 = vpack.c.b16 %v1914, %v1906
    %v2931 = vpack.c.b16 %v1915, %v1907
    %v2932 = vpack.c.b16 %v1916, %v1908
    %v2933 = vpack.c.b16 %v1917, %v1909
    %v2934 = vpack.c.b16 %v1918, %v1910
    %v2935 = vpack.c.b16 %v1919, %v1911
    %v2936 = vpack.c.b16 %v1920, %v1912
    %v2937 = vpack.c.b16 %v1921, %v1913
    %v2938 = vpack.c.b16 %v1930, %v1922
    %v2939 = vpack.c.b16 %v1931, %v1923
    %v2940 = vpack.c.b16 %v1932, %v1924
    %v2941 = vpack.c.b16 %v1933, %v1925
    %v2942 = vpack.c.b16 %v1934, %v1926
    %v2943 = vpack.c.b16 %v1935, %v1927
    %v2944 = vpack.c.b16 %v1936, %v1928
    %v2945 = vpack.c.b16 %v1937, %v1929
    %v2946 = vpack.c.b16 %v1946, %v1938
    %v2947 = vpack.c.b16 %v1947, %v1939
    %v2948 = vpack.c.b16 %v1948, %v1940
    %v2949 = vpack.c.b16 %v1949, %v1941
    %v2950 = vpack.c.b16 %v1950, %v1942
    %v2951 = vpack.c.b16 %v1951, %v1943
    %v2952 = vpack.c.b16 %v1952, %v1944
    %v2953 = vpack.c.b16 %v1953, %v1945
    %v2954 = vpack.c.b16 %v1962, %v1954
    %v2955 = vpack.c.b16 %v1963, %v1955
    %v2956 = vpack.c.b16 %v1964, %v1956
    %v2957 = vpack.c.b16 %v1965, %v1957
    %v2958 = vpack.c.b16 %v1966, %v1958
    %v2959 = vpack.c.b16 %v1967, %v1959
    %v2960 = vpack.c.b16 %v1968, %v1960
    %v2961 = vpack.c.b16 %v1969, %v1961
    %v2962 = vpack.c.b16 %v1978, %v1970
    %v2963 = vpack.c.b16 %v1979, %v1971
    %v2964 = vpack.c.b16 %v1980, %v1972
    %v2965 = vpack.c.b16 %v1981, %v1973
    %v2966 = vpack.c.b16 %v1982, %v1974
    %v2967 = vpack.c.b16 %v1983, %v1975
    %v2968 = vpack.c.b16 %v1984, %v1976
    %v2969 = vpack.c.b16 %v1985, %v1977
    %v2970 = vpack.c.b16 %v1994, %v1986
    %v2971 = vpack.c.b16 %v1995, %v1987
    %v2972 = vpack.c.b16 %v1996, %v1988
    %v2973 = vpack.c.b16 %v1997, %v1989
    %v2974 = vpack.c.b16 %v1998, %v1990
    %v2975 = vpack.c.b16 %v1999, %v1991
    %v2976 = vpack.c.b16 %v2000, %v1992
    %v2977 = vpack.c.b16 %v2001, %v1993
    %v2978 = vpack.c.b16 %v2010, %v2002
    %v2979 = vpack.c.b16 %v2011, %v2003
    %v2980 = vpack.c.b16 %v2012, %v2004
    %v2981 = vpack.c.b16 %v2013, %v2005
    %v2982 = vpack.c.b16 %v2014, %v2006
    %v2983 = vpack.c.b16 %v2015, %v2007
    %v2984 = vpack.c.b16 %v2016, %v2008
    %v2985 = vpack.c.b16 %v2017, %v2009
    %v2986 = vpack.c.b16 %v2026, %v2018
    %v2987 = vpack.c.b16 %v2027, %v2019
    %v2988 = vpack.c.b16 %v2028, %v2020
    %v2989 = vpack.c.b16 %v2029, %v2021
    %v2990 = vpack.c.b16 %v2030, %v2022
    %v2991 = vpack.c.b16 %v2031, %v2023
    %v2992 = vpack.c.b16 %v2032, %v2024
    %v2993 = vpack.c.b16 %v2033, %v2025
    %v2994 = vpack.c.b16 %v2042, %v2034
    %v2995 = vpack.c.b16 %v2043, %v2035
    %v2996 = vpack.c.b16 %v2044, %v2036
    %v2997 = vpack.c.b16 %v2045, %v2037
    %v2998 = vpack.c.b16 %v2046, %v2038
    %v2999 = vpack.c.b16 %v2047, %v2039
    %v3000 = vpack.c.b16 %v2048, %v2040
    %v3001 = vpack.c.b16 %v2049, %v2041
    %v3002 = vpack.c.b16 %v2058, %v2050
    %v3003 = vpack.c.b16 %v2059, %v2051
    %v3004 = vpack.c.b16 %v2060, %v2052
    %v3005 = vpack.c.b16 %v2061, %v2053
    %v3006 = vpack.c.b16 %v2062, %v2054
    %v3007 = vpack.c.b16 %v2063, %v2055
    %v3008 = vpack.c.b16 %v2064, %v2056
    %v3009 = vpack.c.b16 %v2065, %v2057
    %v3010 = vpack.c.b16 %v2074, %v2066
    %v3011 = vpack.c.b16 %v2075, %v2067
    %v3012 = vpack.c.b16 %v2076, %v2068
    %v3013 = vpack.c.b16 %v2077, %v2069
    %v3014 = vpack.c.b16 %v2078, %v2070
    %v3015 = vpack.c.b16 %v2079, %v2071
    %v3016 = vpack.c.b16 %v2080, %v2072
    %v3017 = vpack.c.b16 %v2081, %v2073
    %v3018 = vpack.c.b16 %v2090, %v2082
    %v3019 = vpack.c.b16 %v2091, %v2083
    %v3020 = vpack.c.b16 %v2092, %v2084
    %v3021 = vpack.c.b16 %v2093, %v2085
    %v3022 = vpack.c.b16 %v2094, %v2086
    %v3023 = vpack.c.b16 %v2095, %v2087
    %v3024 = vpack.c.b16 %v2096, %v2088
    %v3025 = vpack.c.b16 %v2097, %v2089
    %v3026 = vpack.c.b16 %v2106, %v2098
    %v3027 = vpack.c.b16 %v2107, %v2099
    %v3028 = vpack.c.b16 %v2108, %v2100
    %v3029 = vpack.c.b16 %v2109, %v2101
    %v3030 = vpack.c.b16 %v2110, %v2102
    %v3031 = vpack.c.b16 %v2111, %v2103
    %v3032 = vpack.c.b16 %v2112, %v2104
    %v3033 = vpack.c.b16 %v2113, %v2105
    %v3034 = vpack.c.b16 %v2122, %v2114
    %v3035 = vpack.c.b16 %v2123, %v2115
    %v3036 = vpack.c.b16 %v2124, %v2116
    %v3037 = vpack.c.b16 %v2125, %v2117
    %v3038 = vpack.c.b16 %v2126, %v2118
    %v3039 = vpack.c.b16 %v2127, %v2119
    %v3040 = vpack.c.b16 %v2128, %v2120
    %v3041 = vpack.c.b16 %v2129, %v2121
    %v3042 = vpack.c.b16 %v2138, %v2130
    %v3043 = vpack.c.b16 %v2139, %v2131
    %v3044 = vpack.c.b16 %v2140, %v2132
    %v3045 = vpack.c.b16 %v2141, %v2133
    %v3046 = vpack.c.b16 %v2142, %v2134
    %v3047 = vpack.c.b16 %v2143, %v2135
    %v3048 = vpack.c.b16 %v2144, %v2136
    %v3049 = vpack.c.b16 %v2145, %v2137
    %v3050 = vpack.c.b16 %v2154, %v2146
    %v3051 = vpack.c.b16 %v2155, %v2147
    %v3052 = vpack.c.b16 %v2156, %v2148
    %v3053 = vpack.c.b16 %v2157, %v2149
    %v3054 = vpack.c.b16 %v2158, %v2150
    %v3055 = vpack.c.b16 %v2159, %v2151
    %v3056 = vpack.c.b16 %v2160, %v2152
    %v3057 = vpack.c.b16 %v2161, %v2153
    %v3058 = vpack.c.b16 %v2170, %v2162
    %v3059 = vpack.c.b16 %v2171, %v2163
    %v3060 = vpack.c.b16 %v2172, %v2164
    %v3061 = vpack.c.b16 %v2173, %v2165
    %v3062 = vpack.c.b16 %v2174, %v2166
    %v3063 = vpack.c.b16 %v2175, %v2167
    %v3064 = vpack.c.b16 %v2176, %v2168
    %v3065 = vpack.c.b16 %v2177, %v2169
    %v3066 = vpack.c.b16 %v2186, %v2178
    %v3067 = vpack.c.b16 %v2187, %v2179
    %v3068 = vpack.c.b16 %v2188, %v2180
    %v3069 = vpack.c.b16 %v2189, %v2181
    %v3070 = vpack.c.b16 %v2190, %v2182
    %v3071 = vpack.c.b16 %v2191, %v2183
    %v3072 = vpack.c.b16 %v2192, %v2184
    %v3073 = vpack.c.b16 %v2193, %v2185
    %v3074 = vpack.c.b16 %v2202, %v2194
    %v3075 = vpack.c.b16 %v2203, %v2195
    %v3076 = vpack.c.b16 %v2204, %v2196
    %v3077 = vpack.c.b16 %v2205, %v2197
    %v3078 = vpack.c.b16 %v2206, %v2198
    %v3079 = vpack.c.b16 %v2207, %v2199
    %v3080 = vpack.c.b16 %v2208, %v2200
    %v3081 = vpack.c.b16 %v2209, %v2201
    %v3082 = vpack.c.b16 %v2218, %v2210
    %v3083 = vpack.c.b16 %v2219, %v2211
    %v3084 = vpack.c.b16 %v2220, %v2212
    %v3085 = vpack.c.b16 %v2221, %v2213
    %v3086 = vpack.c.b16 %v2222, %v2214
    %v3087 = vpack.c.b16 %v2223, %v2215
    %v3088 = vpack.c.b16 %v2224, %v2216
    %v3089 = vpack.c.b16 %v2225, %v2217
    %v3090 = vpack.c.b16 %v2234, %v2226
    %v3091 = vpack.c.b16 %v2235, %v2227
    %v3092 = vpack.c.b16 %v2236, %v2228
    %v3093 = vpack.c.b16 %v2237, %v2229
    %v3094 = vpack.c.b16 %v2238, %v2230
    %v3095 = vpack.c.b16 %v2239, %v2231
    %v3096 = vpack.c.b16 %v2240, %v2232
    %v3097 = vpack.c.b16 %v2241, %v2233
    %v3098 = vpack.c.b16 %v2250, %v2242
    %v3099 = vpack.c.b16 %v2251, %v2243
    %v3100 = vpack.c.b16 %v2252, %v2244
    %v3101 = vpack.c.b16 %v2253, %v2245
    %v3102 = vpack.c.b16 %v2254, %v2246
    %v3103 = vpack.c.b16 %v2255, %v2247
    %v3104 = vpack.c.b16 %v2256, %v2248
    %v3105 = vpack.c.b16 %v2257, %v2249
    %v3106 = vpack.c.b16 %v2266, %v2258
    %v3107 = vpack.c.b16 %v2267, %v2259
    %v3108 = vpack.c.b16 %v2268, %v2260
    %v3109 = vpack.c.b16 %v2269, %v2261
    %v3110 = vpack.c.b16 %v2270, %v2262
    %v3111 = vpack.c.b16 %v2271, %v2263
    %v3112 = vpack.c.b16 %v2272, %v2264
    %v3113 = vpack.c.b16 %v2273, %v2265
    %v3114 = vpack.c.b16 %v2282, %v2274
    %v3115 = vpack.c.b16 %v2283, %v2275
    %v3116 = vpack.c.b16 %v2284, %v2276
    %v3117 = vpack.c.b16 %v2285, %v2277
    %v3118 = vpack.c.b16 %v2286, %v2278
    %v3119 = vpack.c.b16 %v2287, %v2279
    %v3120 = vpack.c.b16 %v2288, %v2280
    %v3121 = vpack.c.b16 %v2289, %v2281
    %v3122 = vpack.c.b16 %v2298, %v2290
    %v3123 = vpack.c.b16 %v2299, %v2291
    %v3124 = vpack.c.b16 %v2300, %v2292
    %v3125 = vpack.c.b16 %v2301, %v2293
    %v3126 = vpack.c.b16 %v2302, %v2294
    %v3127 = vpack.c.b16 %v2303, %v2295
    %v3128 = vpack.c.b16 %v2304, %v2296
    %v3129 = vpack.c.b16 %v2305, %v2297
    %v3130 = vpack.c.b16 %v2314, %v2306
    %v3131 = vpack.c.b16 %v2315, %v2307
    %v3132 = vpack.c.b16 %v2316, %v2308
    %v3133 = vpack.c.b16 %v2317, %v2309
    %v3134 = vpack.c.b16 %v2318, %v2310
    %v3135 = vpack.c.b16 %v2319, %v2311
    %v3136 = vpack.c.b16 %v2320, %v2312
    %v3137 = vpack.c.b16 %v2321, %v2313
    %v3138 = vpack.c.b16 %v2330, %v2322
    %v3139 = vpack.c.b16 %v2331, %v2323
    %v3140 = vpack.c.b16 %v2332, %v2324
    %v3141 = vpack.c.b16 %v2333, %v2325
    %v3142 = vpack.c.b16 %v2334, %v2326
    %v3143 = vpack.c.b16 %v2335, %v2327
    %v3144 = vpack.c.b16 %v2336, %v2328
    %v3145 = vpack.c.b16 %v2337, %v2329
    %v3146 = vpack.c.b16 %v2346, %v2338
    %v3147 = vpack.c.b16 %v2347, %v2339
    %v3148 = vpack.c.b16 %v2348, %v2340
    %v3149 = vpack.c.b16 %v2349, %v2341
    %v3150 = vpack.c.b16 %v2350, %v2342
    %v3151 = vpack.c.b16 %v2351, %v2343
    %v3152 = vpack.c.b16 %v2352, %v2344
    %v3153 = vpack.c.b16 %v2353, %v2345
    %v3154 = vpack.c.b16 %v2362, %v2354
    %v3155 = vpack.c.b16 %v2363, %v2355
    %v3156 = vpack.c.b16 %v2364, %v2356
    %v3157 = vpack.c.b16 %v2365, %v2357
    %v3158 = vpack.c.b16 %v2366, %v2358
    %v3159 = vpack.c.b16 %v2367, %v2359
    %v3160 = vpack.c.b16 %v2368, %v2360
    %v3161 = vpack.c.b16 %v2369, %v2361
    %v3162 = vpack.c.b16 %v2378, %v2370
    %v3163 = vpack.c.b16 %v2379, %v2371
    %v3164 = vpack.c.b16 %v2380, %v2372
    %v3165 = vpack.c.b16 %v2381, %v2373
    %v3166 = vpack.c.b16 %v2382, %v2374
    %v3167 = vpack.c.b16 %v2383, %v2375
    %v3168 = vpack.c.b16 %v2384, %v2376
    %v3169 = vpack.c.b16 %v2385, %v2377
    %v3170 = vpack.c.b16 %v2394, %v2386
    %v3171 = vpack.c.b16 %v2395, %v2387
    %v3172 = vpack.c.b16 %v2396, %v2388
    %v3173 = vpack.c.b16 %v2397, %v2389
    %v3174 = vpack.c.b16 %v2398, %v2390
    %v3175 = vpack.c.b16 %v2399, %v2391
    %v3176 = vpack.c.b16 %v2400, %v2392
    %v3177 = vpack.c.b16 %v2401, %v2393
    %v3178 = vpack.c.b16 %v2410, %v2402
    %v3179 = vpack.c.b16 %v2411, %v2403
    %v3180 = vpack.c.b16 %v2412, %v2404
    %v3181 = vpack.c.b16 %v2413, %v2405
    %v3182 = vpack.c.b16 %v2414, %v2406
    %v3183 = vpack.c.b16 %v2415, %v2407
    %v3184 = vpack.c.b16 %v2416, %v2408
    %v3185 = vpack.c.b16 %v2417, %v2409
    %v3186 = vpack.c.b16 %v2426, %v2418
    %v3187 = vpack.c.b16 %v2427, %v2419
    %v3188 = vpack.c.b16 %v2428, %v2420
    %v3189 = vpack.c.b16 %v2429, %v2421
    %v3190 = vpack.c.b16 %v2430, %v2422
    %v3191 = vpack.c.b16 %v2431, %v2423
    %v3192 = vpack.c.b16 %v2432, %v2424
    %v3193 = vpack.c.b16 %v2433, %v2425
    %v3194 = vpack.c.b16 %v2442, %v2434
    %v3195 = vpack.c.b16 %v2443, %v2435
    %v3196 = vpack.c.b16 %v2444, %v2436
    %v3197 = vpack.c.b16 %v2445, %v2437
    %v3198 = vpack.c.b16 %v2446, %v2438
    %v3199 = vpack.c.b16 %v2447, %v2439
    %v3200 = vpack.c.b16 %v2448, %v2440
    %v3201 = vpack.c.b16 %v2449, %v2441
    %v3202 = vpack.c.b16 %v2458, %v2450
    %v3203 = vpack.c.b16 %v2459, %v2451
    %v3204 = vpack.c.b16 %v2460, %v2452
    %v3205 = vpack.c.b16 %v2461, %v2453
    %v3206 = vpack.c.b16 %v2462, %v2454
    %v3207 = vpack.c.b16 %v2463, %v2455
    %v3208 = vpack.c.b16 %v2464, %v2456
    %v3209 = vpack.c.b16 %v2465, %v2457
    %v3210 = vpack.c.b16 %v2474, %v2466
    %v3211 = vpack.c.b16 %v2475, %v2467
    %v3212 = vpack.c.b16 %v2476, %v2468
    %v3213 = vpack.c.b16 %v2477, %v2469
    %v3214 = vpack.c.b16 %v2478, %v2470
    %v3215 = vpack.c.b16 %v2479, %v2471
    %v3216 = vpack.c.b16 %v2480, %v2472
    %v3217 = vpack.c.b16 %v2481, %v2473
    %v3218 = vpack.c.b16 %v2490, %v2482
    %v3219 = vpack.c.b16 %v2491, %v2483
    %v3220 = vpack.c.b16 %v2492, %v2484
    %v3221 = vpack.c.b16 %v2493, %v2485
    %v3222 = vpack.c.b16 %v2494, %v2486
    %v3223 = vpack.c.b16 %v2495, %v2487
    %v3224 = vpack.c.b16 %v2496, %v2488
    %v3225 = vpack.c.b16 %v2497, %v2489
    %v3226 = vpack.c.b16 %v2506, %v2498
    %v3227 = vpack.c.b16 %v2507, %v2499
    %v3228 = vpack.c.b16 %v2508, %v2500
    %v3229 = vpack.c.b16 %v2509, %v2501
    %v3230 = vpack.c.b16 %v2510, %v2502
    %v3231 = vpack.c.b16 %v2511, %v2503
    %v3232 = vpack.c.b16 %v2512, %v2504
    %v3233 = vpack.c.b16 %v2513, %v2505
    %v3234 = vpack.c.b16 %v2522, %v2514
    %v3235 = vpack.c.b16 %v2523, %v2515
    %v3236 = vpack.c.b16 %v2524, %v2516
    %v3237 = vpack.c.b16 %v2525, %v2517
    %v3238 = vpack.c.b16 %v2526, %v2518
    %v3239 = vpack.c.b16 %v2527, %v2519
    %v3240 = vpack.c.b16 %v2528, %v2520
    %v3241 = vpack.c.b16 %v2529, %v2521
    %v3242 = vpack.c.b16 %v2538, %v2530
    %v3243 = vpack.c.b16 %v2539, %v2531
    %v3244 = vpack.c.b16 %v2540, %v2532
    %v3245 = vpack.c.b16 %v2541, %v2533
    %v3246 = vpack.c.b16 %v2542, %v2534
    %v3247 = vpack.c.b16 %v2543, %v2535
    %v3248 = vpack.c.b16 %v2544, %v2536
    %v3249 = vpack.c.b16 %v2545, %v2537
    %v3250 = vpack.c.b16 %v2554, %v2546
    %v3251 = vpack.c.b16 %v2555, %v2547
    %v3252 = vpack.c.b16 %v2556, %v2548
    %v3253 = vpack.c.b16 %v2557, %v2549
    %v3254 = vpack.c.b16 %v2558, %v2550
    %v3255 = vpack.c.b16 %v2559, %v2551
    %v3256 = vpack.c.b16 %v2560, %v2552
    %v3257 = vpack.c.b16 %v2561, %v2553
    %v3258 = vpack.c.b16 %v2570, %v2562
    %v3259 = vpack.c.b16 %v2571, %v2563
    %v3260 = vpack.c.b16 %v2572, %v2564
    %v3261 = vpack.c.b16 %v2573, %v2565
    %v3262 = vpack.c.b16 %v2574, %v2566
    %v3263 = vpack.c.b16 %v2575, %v2567
    %v3264 = vpack.c.b16 %v2576, %v2568
    %v3265 = vpack.c.b16 %v2577, %v2569
    %v3266 = vpack.c.b16 %v2586, %v2578
    %v3267 = vpack.c.b16 %v2587, %v2579
    %v3268 = vpack.c.b16 %v2588, %v2580
    %v3269 = vpack.c.b16 %v2589, %v2581
    %v3270 = vpack.c.b16 %v2590, %v2582
    %v3271 = vpack.c.b16 %v2591, %v2583
    %v3272 = vpack.c.b16 %v2592, %v2584
    %v3273 = vpack.c.b16 %v2593, %v2585
    %v3274 = vpack.c.b16 %v2602, %v2594
    %v3275 = vpack.c.b16 %v2603, %v2595
    %v3276 = vpack.c.b16 %v2604, %v2596
    %v3277 = vpack.c.b16 %v2605, %v2597
    %v3278 = vpack.c.b16 %v2606, %v2598
    %v3279 = vpack.c.b16 %v2607, %v2599
    %v3280 = vpack.c.b16 %v2608, %v2600
    %v3281 = vpack.c.b16 %v2609, %v2601
    %v3282 = vpack.c.b16 %v2618, %v2610
    %v3283 = vpack.c.b16 %v2619, %v2611
    %v3284 = vpack.c.b16 %v2620, %v2612
    %v3285 = vpack.c.b16 %v2621, %v2613
    %v3286 = vpack.c.b16 %v2622, %v2614
    %v3287 = vpack.c.b16 %v2623, %v2615
    %v3288 = vpack.c.b16 %v2624, %v2616
    %v3289 = vpack.c.b16 %v2625, %v2617
    %v3290 = vpack.c.b16 %v2634, %v2626
    %v3291 = vpack.c.b16 %v2635, %v2627
    %v3292 = vpack.c.b16 %v2636, %v2628
    %v3293 = vpack.c.b16 %v2637, %v2629
    %v3294 = vpack.c.b16 %v2638, %v2630
    %v3295 = vpack.c.b16 %v2639, %v2631
    %v3296 = vpack.c.b16 %v2640, %v2632
    %v3297 = vpack.c.b16 %v2641, %v2633
    %v3298 = vpack.c.b16 %v2650, %v2642
    %v3299 = vpack.c.b16 %v2651, %v2643
    %v3300 = vpack.c.b16 %v2652, %v2644
    %v3301 = vpack.c.b16 %v2653, %v2645
    %v3302 = vpack.c.b16 %v2654, %v2646
    %v3303 = vpack.c.b16 %v2655, %v2647
    %v3304 = vpack.c.b16 %v2656, %v2648
    %v3305 = vpack.c.b16 %v2657, %v2649
    %v3306 = vpack.c.b16 %v2666, %v2658
    %v3307 = vpack.c.b16 %v2667, %v2659
    %v3308 = vpack.c.b16 %v2668, %v2660
    %v3309 = vpack.c.b16 %v2669, %v2661
    %v3310 = vpack.c.b16 %v2670, %v2662
    %v3311 = vpack.c.b16 %v2671, %v2663
    %v3312 = vpack.c.b16 %v2672, %v2664
    %v3313 = vpack.c.b16 %v2673, %v2665
    %v3314 = vpack.c.b16 %v2682, %v2674
    %v3315 = vpack.c.b16 %v2683, %v2675
    %v3316 = vpack.c.b16 %v2684, %v2676
    %v3317 = vpack.c.b16 %v2685, %v2677
    %v3318 = vpack.c.b16 %v2686, %v2678
    %v3319 = vpack.c.b16 %v2687, %v2679
    %v3320 = vpack.c.b16 %v2688, %v2680
    %v3321 = vpack.c.b16 %v2689, %v2681
    %v3322 = vpack.c.b16 %v2698, %v2690
    %v3323 = vpack.c.b16 %v2699, %v2691
    %v3324 = vpack.c.b16 %v2700, %v2692
    %v3325 = vpack.c.b16 %v2701, %v2693
    %v3326 = vpack.c.b16 %v2702, %v2694
    %v3327 = vpack.c.b16 %v2703, %v2695
    %v3328 = vpack.c.b16 %v2704, %v2696
    %v3329 = vpack.c.b16 %v2705, %v2697
    %v3330 = vpack.c.b16 %v2714, %v2706
    %v3331 = vpack.c.b16 %v2715, %v2707
    %v3332 = vpack.c.b16 %v2716, %v2708
    %v3333 = vpack.c.b16 %v2717, %v2709
    %v3334 = vpack.c.b16 %v2718, %v2710
    %v3335 = vpack.c.b16 %v2719, %v2711
    %v3336 = vpack.c.b16 %v2720, %v2712
    %v3337 = vpack.c.b16 %v2721, %v2713
    %v3338 = vpack.c.b16 %v2730, %v2722
    %v3339 = vpack.c.b16 %v2731, %v2723
    %v3340 = vpack.c.b16 %v2732, %v2724
    %v3341 = vpack.c.b16 %v2733, %v2725
    %v3342 = vpack.c.b16 %v2734, %v2726
    %v3343 = vpack.c.b16 %v2735, %v2727
    %v3344 = vpack.c.b16 %v2736, %v2728
    %v3345 = vpack.c.b16 %v2737, %v2729
    %v3346 = vpack.c.b16 %v2746, %v2738
    %v3347 = vpack.c.b16 %v2747, %v2739
    %v3348 = vpack.c.b16 %v2748, %v2740
    %v3349 = vpack.c.b16 %v2749, %v2741
    %v3350 = vpack.c.b16 %v2750, %v2742
    %v3351 = vpack.c.b16 %v2751, %v2743
    %v3352 = vpack.c.b16 %v2752, %v2744
    %v3353 = vpack.c.b16 %v2753, %v2745
    %v3354 = vpack.c.b16 %v2762, %v2754
    %v3355 = vpack.c.b16 %v2763, %v2755
    %v3356 = vpack.c.b16 %v2764, %v2756
    %v3357 = vpack.c.b16 %v2765, %v2757
    %v3358 = vpack.c.b16 %v2766, %v2758
    %v3359 = vpack.c.b16 %v2767, %v2759
    %v3360 = vpack.c.b16 %v2768, %v2760
    %v3361 = vpack.c.b16 %v2769, %v2761
    %v3362 = vpack.c.b16 %v2778, %v2770
    %v3363 = vpack.c.b16 %v2779, %v2771
    %v3364 = vpack.c.b16 %v2780, %v2772
    %v3365 = vpack.c.b16 %v2781, %v2773
    %v3366 = vpack.c.b16 %v2782, %v2774
    %v3367 = vpack.c.b16 %v2783, %v2775
    %v3368 = vpack.c.b16 %v2784, %v2776
    %v3369 = vpack.c.b16 %v2785, %v2777
    %v3370 = vpack.c.b16 %v2794, %v2786
    %v3371 = vpack.c.b16 %v2795, %v2787
    %v3372 = vpack.c.b16 %v2796, %v2788
    %v3373 = vpack.c.b16 %v2797, %v2789
    %v3374 = vpack.c.b16 %v2798, %v2790
    %v3375 = vpack.c.b16 %v2799, %v2791
    %v3376 = vpack.c.b16 %v2800, %v2792
    %v3377 = vpack.c.b16 %v2801, %v2793
    %v3378 = vpack.c.b16 %v2810, %v2802
    %v3379 = vpack.c.b16 %v2811, %v2803
    %v3380 = vpack.c.b16 %v2812, %v2804
    %v3381 = vpack.c.b16 %v2813, %v2805
    %v3382 = vpack.c.b16 %v2814, %v2806
    %v3383 = vpack.c.b16 %v2815, %v2807
    %v3384 = vpack.c.b16 %v2816, %v2808
    %v3385 = vpack.c.b16 %v2817, %v2809
    %v3386 = vpack.c.b16 %v2826, %v2818
    %v3387 = vpack.c.b16 %v2827, %v2819
    %v3388 = vpack.c.b16 %v2828, %v2820
    %v3389 = vpack.c.b16 %v2829, %v2821
    %v3390 = vpack.c.b16 %v2830, %v2822
    %v3391 = vpack.c.b16 %v2831, %v2823
    %v3392 = vpack.c.b16 %v2832, %v2824
    %v3393 = vpack.c.b16 %v2833, %v2825
    %v3394 = vpack.c.b16 %v2842, %v2834
    %v3395 = vpack.c.b16 %v2843, %v2835
    %v3396 = vpack.c.b16 %v2844, %v2836
    %v3397 = vpack.c.b16 %v2845, %v2837
    %v3398 = vpack.c.b16 %v2846, %v2838
    %v3399 = vpack.c.b16 %v2847, %v2839
    %v3400 = vpack.c.b16 %v2848, %v2840
    %v3401 = vpack.c.b16 %v2849, %v2841
    %v3402 = vpack.c.b16 %v2858, %v2850
    %v3403 = vpack.c.b16 %v2859, %v2851
    %v3404 = vpack.c.b16 %v2860, %v2852
    %v3405 = vpack.c.b16 %v2861, %v2853
    %v3406 = vpack.c.b16 %v2862, %v2854
    %v3407 = vpack.c.b16 %v2863, %v2855
    %v3408 = vpack.c.b16 %v2864, %v2856
    %v3409 = vpack.c.b16 %v2865, %v2857
    %v3410 = vpack.c.b16 %v2874, %v2866
    %v3411 = vpack.c.b16 %v2875, %v2867
    %v3412 = vpack.c.b16 %v2876, %v2868
    %v3413 = vpack.c.b16 %v2877, %v2869
    %v3414 = vpack.c.b16 %v2878, %v2870
    %v3415 = vpack.c.b16 %v2879, %v2871
    %v3416 = vpack.c.b16 %v2880, %v2872
    %v3417 = vpack.c.b16 %v2881, %v2873
    %v3418 = vpack.c.b16 %v2890, %v2882
    %v3419 = vpack.c.b16 %v2891, %v2883
    %v3420 = vpack.c.b16 %v2892, %v2884
    %v3421 = vpack.c.b16 %v2893, %v2885
    %v3422 = vpack.c.b16 %v2894, %v2886
    %v3423 = vpack.c.b16 %v2895, %v2887
    %v3424 = vpack.c.b16 %v2896, %v2888
    %v3425 = vpack.c.b16 %v2897, %v2889
    %v3426 = vpack.c.b16 %v2906, %v2898
    %v3427 = vpack.c.b16 %v2907, %v2899
    %v3428 = vpack.c.b16 %v2908, %v2900
    %v3429 = vpack.c.b16 %v2909, %v2901
    %v3430 = vpack.c.b16 %v2910, %v2902
    %v3431 = vpack.c.b16 %v2911, %v2903
    %v3432 = vpack.c.b16 %v2912, %v2904
    %v3433 = vpack.c.b16 %v2913, %v2905
    %v3434 = vpack.c.b16 %v2922, %v2914
    %v3435 = vpack.c.b16 %v2923, %v2915
    %v3436 = vpack.c.b16 %v2924, %v2916
    %v3437 = vpack.c.b16 %v2925, %v2917
    %v3438 = vpack.c.b16 %v2926, %v2918
    %v3439 = vpack.c.b16 %v2927, %v2919
    %v3440 = vpack.c.b16 %v2928, %v2920
    %v3441 = vpack.c.b16 %v2929, %v2921
    %3954 = vmatprep.subr.bf16.mxu0 %v2931
    %3955 = vmatpush1.bf16.msra.mxu0 %v2930
    %3956 = vmatprep.subr.bf16.mxu0 %v2939
    %3957 = vmatpush1.bf16.msra.mxu0 %v2938
    %3958 = vmatprep.subr.bf16.mxu0 %v2947
    %3959 = vmatpush1.bf16.msra.mxu0 %v2946
    %3960 = vmatprep.subr.bf16.mxu0 %v2955
    %3961 = vmatpush1.bf16.msra.mxu0 %v2954
    %3962 = vmatprep.subr.bf16.mxu0 %v2963
    %3963 = vmatpush1.bf16.msra.mxu0 %v2962
    %3964 = vmatprep.subr.bf16.mxu0 %v2971
    %3965 = vmatpush1.bf16.msra.mxu0 %v2970
    %3966 = vmatprep.subr.bf16.mxu0 %v2979
    %3967 = vmatpush1.bf16.msra.mxu0 %v2978
    %3968 = vmatprep.subr.bf16.mxu0 %v2987
    %3969 = vmatpush1.bf16.msra.mxu0 %v2986
    %3970 = vmatprep.subr.bf16.mxu0 %v2995
    %3971 = vmatpush1.bf16.msra.mxu0 %v2994
    %3972 = vmatprep.subr.bf16.mxu0 %v3003
    %3973 = vmatpush1.bf16.msra.mxu0 %v3002
    %3974 = vmatprep.subr.bf16.mxu0 %v3011
    %3975 = vmatpush1.bf16.msra.mxu0 %v3010
    %3976 = vmatprep.subr.bf16.mxu0 %v3019
    %3977 = vmatpush1.bf16.msra.mxu0 %v3018
    %3978 = vmatprep.subr.bf16.mxu0 %v3027
    %3979 = vmatpush1.bf16.msra.mxu0 %v3026
    %3980 = vmatprep.subr.bf16.mxu0 %v3035
    %3981 = vmatpush1.bf16.msra.mxu0 %v3034
    %3982 = vmatprep.subr.bf16.mxu0 %v3043
    %3983 = vmatpush1.bf16.msra.mxu0 %v3042
    %3984 = vmatprep.subr.bf16.mxu0 %v3051
    %3985 = vmatpush1.bf16.msra.mxu0 %v3050
    %3986 = vmatprep.mubr.bf16.mxu0 %v833
    %3987 = vmatmul.mubr.bf16.gmra.mrb[0].mxu0 %v832
    %v3988 = vpop.f32.mrb[0].mxu0
    %v3989 = vadd.f32 %v1357, %v3988
    %v3990 = vpop.f32.mrb[0].mxu0
    %v3991 = vadd.f32 %v1361, %v3990
    %v3992 = vpop.f32.mrb[0].mxu0
    %v3993 = vadd.f32 %v1357, %v3992
    %v3994 = vpop.f32.mrb[0].mxu0
    %v3995 = vadd.f32 %v1361, %v3994
    %3996 = vdwg.mxu0
    %3997 = vmatprep.subr.bf16.mxu0 %v3059
    %3998 = vmatpush1.bf16.msra.mxu0 %v3058
    %3999 = vmatprep.subr.bf16.mxu0 %v3067
    %4000 = vmatpush1.bf16.msra.mxu0 %v3066
    %4001 = vmatprep.subr.bf16.mxu0 %v3075
    %4002 = vmatpush1.bf16.msra.mxu0 %v3074
    %4003 = vmatprep.subr.bf16.mxu0 %v3083
    %4004 = vmatpush1.bf16.msra.mxu0 %v3082
    %4005 = vmatprep.subr.bf16.mxu0 %v3091
    %4006 = vmatpush1.bf16.msra.mxu0 %v3090
    %4007 = vmatprep.subr.bf16.mxu0 %v3099
    %4008 = vmatpush1.bf16.msra.mxu0 %v3098
    %4009 = vmatprep.subr.bf16.mxu0 %v3107
    %4010 = vmatpush1.bf16.msra.mxu0 %v3106
    %4011 = vmatprep.subr.bf16.mxu0 %v3115
    %4012 = vmatpush1.bf16.msra.mxu0 %v3114
    %4013 = vmatprep.subr.bf16.mxu0 %v3123
    %4014 = vmatpush1.bf16.msra.mxu0 %v3122
    %4015 = vmatprep.subr.bf16.mxu0 %v3131
    %4016 = vmatpush1.bf16.msra.mxu0 %v3130
    %4017 = vmatprep.subr.bf16.mxu0 %v3139
    %4018 = vmatpush1.bf16.msra.mxu0 %v3138
    %4019 = vmatprep.subr.bf16.mxu0 %v3147
    %4020 = vmatpush1.bf16.msra.mxu0 %v3146
    %4021 = vmatprep.subr.bf16.mxu0 %v3155
    %4022 = vmatpush1.bf16.msra.mxu0 %v3154
    %4023 = vmatprep.subr.bf16.mxu0 %v3163
    %4024 = vmatpush1.bf16.msra.mxu0 %v3162
    %4025 = vmatprep.subr.bf16.mxu0 %v3171
    %4026 = vmatpush1.bf16.msra.mxu0 %v3170
    %4027 = vmatprep.subr.bf16.mxu0 %v3179
    %4028 = vmatpush1.bf16.msra.mxu0 %v3178
    %4029 = vmatprep.mubr.bf16.mxu0 %v835
    %4030 = vmatmul.mubr.bf16.gmra.mrb[0].mxu0 %v834
    %v4031 = vpop.f32.mrb[0].mxu0
    %v4032 = vadd.f32 %v3989, %v4031
    %v4033 = vpop.f32.mrb[0].mxu0
    %v4034 = vadd.f32 %v3991, %v4033
    %v4035 = vpop.f32.mrb[0].mxu0
    %v4036 = vadd.f32 %v3993, %v4035
    %v4037 = vpop.f32.mrb[0].mxu0
    %v4038 = vadd.f32 %v3995, %v4037
    %4039 = vdwg.mxu0
    %4040 = vmatprep.subr.bf16.mxu0 %v3187
    %4041 = vmatpush1.bf16.msra.mxu0 %v3186
    %4042 = vmatprep.subr.bf16.mxu0 %v3195
    %4043 = vmatpush1.bf16.msra.mxu0 %v3194
    %4044 = vmatprep.subr.bf16.mxu0 %v3203
    %4045 = vmatpush1.bf16.msra.mxu0 %v3202
    %4046 = vmatprep.subr.bf16.mxu0 %v3211
    %4047 = vmatpush1.bf16.msra.mxu0 %v3210
    %4048 = vmatprep.subr.bf16.mxu0 %v3219
    %4049 = vmatpush1.bf16.msra.mxu0 %v3218
    %4050 = vmatprep.subr.bf16.mxu0 %v3227
    %4051 = vmatpush1.bf16.msra.mxu0 %v3226
    %4052 = vmatprep.subr.bf16.mxu0 %v3235
    %4053 = vmatpush1.bf16.msra.mxu0 %v3234
    %4054 = vmatprep.subr.bf16.mxu0 %v3243
    %4055 = vmatpush1.bf16.msra.mxu0 %v3242
    %4056 = vmatprep.subr.bf16.mxu0 %v3251
    %4057 = vmatpush1.bf16.msra.mxu0 %v3250
    %4058 = vmatprep.subr.bf16.mxu0 %v3259
    %4059 = vmatpush1.bf16.msra.mxu0 %v3258
    %4060 = vmatprep.subr.bf16.mxu0 %v3267
    %4061 = vmatpush1.bf16.msra.mxu0 %v3266
    %4062 = vmatprep.subr.bf16.mxu0 %v3275
    %4063 = vmatpush1.bf16.msra.mxu0 %v3274
    %4064 = vmatprep.subr.bf16.mxu0 %v3283
    %4065 = vmatpush1.bf16.msra.mxu0 %v3282
    %4066 = vmatprep.subr.bf16.mxu0 %v3291
    %4067 = vmatpush1.bf16.msra.mxu0 %v3290
    %4068 = vmatprep.subr.bf16.mxu0 %v3299
    %4069 = vmatpush1.bf16.msra.mxu0 %v3298
    %4070 = vmatprep.subr.bf16.mxu0 %v3307
    %4071 = vmatpush1.bf16.msra.mxu0 %v3306
    %4072 = vmatprep.mubr.bf16.mxu0 %v837
    %4073 = vmatmul.mubr.bf16.gmra.mrb[0].mxu0 %v836
    %v4074 = vpop.f32.mrb[0].mxu0
    %v4075 = vadd.f32 %v4032, %v4074
    %v4076 = vpop.f32.mrb[0].mxu0
    %v4077 = vadd.f32 %v4034, %v4076
    %v4078 = vpop.f32.mrb[0].mxu0
    %v4079 = vadd.f32 %v4036, %v4078
    %v4080 = vpop.f32.mrb[0].mxu0
    %v4081 = vadd.f32 %v4038, %v4080
    %4082 = vdwg.mxu0
    %4083 = vmatprep.subr.bf16.mxu0 %v3315
    %4084 = vmatpush1.bf16.msra.mxu0 %v3314
    %4085 = vmatprep.subr.bf16.mxu0 %v3323
    %4086 = vmatpush1.bf16.msra.mxu0 %v3322
    %4087 = vmatprep.subr.bf16.mxu0 %v3331
    %4088 = vmatpush1.bf16.msra.mxu0 %v3330
    %4089 = vmatprep.subr.bf16.mxu0 %v3339
    %4090 = vmatpush1.bf16.msra.mxu0 %v3338
    %4091 = vmatprep.subr.bf16.mxu0 %v3347
    %4092 = vmatpush1.bf16.msra.mxu0 %v3346
    %4093 = vmatprep.subr.bf16.mxu0 %v3355
    %4094 = vmatpush1.bf16.msra.mxu0 %v3354
    %4095 = vmatprep.subr.bf16.mxu0 %v3363
    %4096 = vmatpush1.bf16.msra.mxu0 %v3362
    %4097 = vmatprep.subr.bf16.mxu0 %v3371
    %4098 = vmatpush1.bf16.msra.mxu0 %v3370
    %4099 = vmatprep.subr.bf16.mxu0 %v3379
    %4100 = vmatpush1.bf16.msra.mxu0 %v3378
    %4101 = vmatprep.subr.bf16.mxu0 %v3387
    %4102 = vmatpush1.bf16.msra.mxu0 %v3386
    %4103 = vmatprep.subr.bf16.mxu0 %v3395
    %4104 = vmatpush1.bf16.msra.mxu0 %v3394
    %4105 = vmatprep.subr.bf16.mxu0 %v3403
    %4106 = vmatpush1.bf16.msra.mxu0 %v3402
    %4107 = vmatprep.subr.bf16.mxu0 %v3411
    %4108 = vmatpush1.bf16.msra.mxu0 %v3410
    %4109 = vmatprep.subr.bf16.mxu0 %v3419
    %4110 = vmatpush1.bf16.msra.mxu0 %v3418
    %4111 = vmatprep.subr.bf16.mxu0 %v3427
    %4112 = vmatpush1.bf16.msra.mxu0 %v3426
    %4113 = vmatprep.subr.bf16.mxu0 %v3435
    %4114 = vmatpush1.bf16.msra.mxu0 %v3434
    %4115 = vmatprep.mubr.bf16.mxu0 %v839
    %4116 = vmatmul.mubr.bf16.gmra.mrb[0].mxu0 %v838
    %v4117 = vpop.f32.mrb[0].mxu0
    %v4118 = vadd.f32 %v4075, %v4117
    %v4119 = vpop.f32.mrb[0].mxu0
    %v4120 = vadd.f32 %v4077, %v4119
    %v4121 = vpop.f32.mrb[0].mxu0
    %v4122 = vadd.f32 %v4079, %v4121
    %v4123 = vpop.f32.mrb[0].mxu0
    %v4124 = vadd.f32 %v4081, %v4123
    %4125 = vdwg.mxu0
    %4126 = vmatprep.subr.bf16.mxu0 %v2933
    %4127 = vmatpush1.bf16.msra.mxu0 %v2932
    %4128 = vmatprep.subr.bf16.mxu0 %v2941
    %4129 = vmatpush1.bf16.msra.mxu0 %v2940
    %4130 = vmatprep.subr.bf16.mxu0 %v2949
    %4131 = vmatpush1.bf16.msra.mxu0 %v2948
    %4132 = vmatprep.subr.bf16.mxu0 %v2957
    %4133 = vmatpush1.bf16.msra.mxu0 %v2956
    %4134 = vmatprep.subr.bf16.mxu0 %v2965
    %4135 = vmatpush1.bf16.msra.mxu0 %v2964
    %4136 = vmatprep.subr.bf16.mxu0 %v2973
    %4137 = vmatpush1.bf16.msra.mxu0 %v2972
    %4138 = vmatprep.subr.bf16.mxu0 %v2981
    %4139 = vmatpush1.bf16.msra.mxu0 %v2980
    %4140 = vmatprep.subr.bf16.mxu0 %v2989
    %4141 = vmatpush1.bf16.msra.mxu0 %v2988
    %4142 = vmatprep.subr.bf16.mxu0 %v2997
    %4143 = vmatpush1.bf16.msra.mxu0 %v2996
    %4144 = vmatprep.subr.bf16.mxu0 %v3005
    %4145 = vmatpush1.bf16.msra.mxu0 %v3004
    %4146 = vmatprep.subr.bf16.mxu0 %v3013
    %4147 = vmatpush1.bf16.msra.mxu0 %v3012
    %4148 = vmatprep.subr.bf16.mxu0 %v3021
    %4149 = vmatpush1.bf16.msra.mxu0 %v3020
    %4150 = vmatprep.subr.bf16.mxu0 %v3029
    %4151 = vmatpush1.bf16.msra.mxu0 %v3028
    %4152 = vmatprep.subr.bf16.mxu0 %v3037
    %4153 = vmatpush1.bf16.msra.mxu0 %v3036
    %4154 = vmatprep.subr.bf16.mxu0 %v3045
    %4155 = vmatpush1.bf16.msra.mxu0 %v3044
    %4156 = vmatprep.subr.bf16.mxu0 %v3053
    %4157 = vmatpush1.bf16.msra.mxu0 %v3052
    %4158 = vmatprep.mubr.bf16.mxu0 %v833
    %4159 = vmatmul.mubr.bf16.gmra.mrb[0].mxu0 %v832
    %v4160 = vpop.f32.mrb[0].mxu0
    %v4161 = vadd.f32 %v1365, %v4160
    %v4162 = vpop.f32.mrb[0].mxu0
    %v4163 = vadd.f32 %v1369, %v4162
    %v4164 = vpop.f32.mrb[0].mxu0
    %v4165 = vadd.f32 %v1365, %v4164
    %v4166 = vpop.f32.mrb[0].mxu0
    %v4167 = vadd.f32 %v1369, %v4166
    %4168 = vdwg.mxu0
    %4169 = vmatprep.subr.bf16.mxu0 %v3061
    %4170 = vmatpush1.bf16.msra.mxu0 %v3060
    %4171 = vmatprep.subr.bf16.mxu0 %v3069
    %4172 = vmatpush1.bf16.msra.mxu0 %v3068
    %4173 = vmatprep.subr.bf16.mxu0 %v3077
    %4174 = vmatpush1.bf16.msra.mxu0 %v3076
    %4175 = vmatprep.subr.bf16.mxu0 %v3085
    %4176 = vmatpush1.bf16.msra.mxu0 %v3084
    %4177 = vmatprep.subr.bf16.mxu0 %v3093
    %4178 = vmatpush1.bf16.msra.mxu0 %v3092
    %4179 = vmatprep.subr.bf16.mxu0 %v3101
    %4180 = vmatpush1.bf16.msra.mxu0 %v3100
    %4181 = vmatprep.subr.bf16.mxu0 %v3109
    %4182 = vmatpush1.bf16.msra.mxu0 %v3108
    %4183 = vmatprep.subr.bf16.mxu0 %v3117
    %4184 = vmatpush1.bf16.msra.mxu0 %v3116
    %4185 = vmatprep.subr.bf16.mxu0 %v3125
    %4186 = vmatpush1.bf16.msra.mxu0 %v3124
    %4187 = vmatprep.subr.bf16.mxu0 %v3133
    %4188 = vmatpush1.bf16.msra.mxu0 %v3132
    %4189 = vmatprep.subr.bf16.mxu0 %v3141
    %4190 = vmatpush1.bf16.msra.mxu0 %v3140
    %4191 = vmatprep.subr.bf16.mxu0 %v3149
    %4192 = vmatpush1.bf16.msra.mxu0 %v3148
    %4193 = vmatprep.subr.bf16.mxu0 %v3157
    %4194 = vmatpush1.bf16.msra.mxu0 %v3156
    %4195 = vmatprep.subr.bf16.mxu0 %v3165
    %4196 = vmatpush1.bf16.msra.mxu0 %v3164
    %4197 = vmatprep.subr.bf16.mxu0 %v3173
    %4198 = vmatpush1.bf16.msra.mxu0 %v3172
    %4199 = vmatprep.subr.bf16.mxu0 %v3181
    %4200 = vmatpush1.bf16.msra.mxu0 %v3180
    %4201 = vmatprep.mubr.bf16.mxu0 %v835
    %4202 = vmatmul.mubr.bf16.gmra.mrb[0].mxu0 %v834
    %v4203 = vpop.f32.mrb[0].mxu0
    %v4204 = vadd.f32 %v4161, %v4203
    %v4205 = vpop.f32.mrb[0].mxu0
    %v4206 = vadd.f32 %v4163, %v4205
    %v4207 = vpop.f32.mrb[0].mxu0
    %v4208 = vadd.f32 %v4165, %v4207
    %v4209 = vpop.f32.mrb[0].mxu0
    %v4210 = vadd.f32 %v4167, %v4209
    %4211 = vdwg.mxu0
    %4212 = vmatprep.subr.bf16.mxu0 %v3189
    %4213 = vmatpush1.bf16.msra.mxu0 %v3188
    %4214 = vmatprep.subr.bf16.mxu0 %v3197
    %4215 = vmatpush1.bf16.msra.mxu0 %v3196
    %4216 = vmatprep.subr.bf16.mxu0 %v3205
    %4217 = vmatpush1.bf16.msra.mxu0 %v3204
    %4218 = vmatprep.subr.bf16.mxu0 %v3213
    %4219 = vmatpush1.bf16.msra.mxu0 %v3212
    %4220 = vmatprep.subr.bf16.mxu0 %v3221
    %4221 = vmatpush1.bf16.msra.mxu0 %v3220
    %4222 = vmatprep.subr.bf16.mxu0 %v3229
    %4223 = vmatpush1.bf16.msra.mxu0 %v3228
    %4224 = vmatprep.subr.bf16.mxu0 %v3237
    %4225 = vmatpush1.bf16.msra.mxu0 %v3236
    %4226 = vmatprep.subr.bf16.mxu0 %v3245
    %4227 = vmatpush1.bf16.msra.mxu0 %v3244
    %4228 = vmatprep.subr.bf16.mxu0 %v3253
    %4229 = vmatpush1.bf16.msra.mxu0 %v3252
    %4230 = vmatprep.subr.bf16.mxu0 %v3261
    %4231 = vmatpush1.bf16.msra.mxu0 %v3260
    %4232 = vmatprep.subr.bf16.mxu0 %v3269
    %4233 = vmatpush1.bf16.msra.mxu0 %v3268
    %4234 = vmatprep.subr.bf16.mxu0 %v3277
    %4235 = vmatpush1.bf16.msra.mxu0 %v3276
    %4236 = vmatprep.subr.bf16.mxu0 %v3285
    %4237 = vmatpush1.bf16.msra.mxu0 %v3284
    %4238 = vmatprep.subr.bf16.mxu0 %v3293
    %4239 = vmatpush1.bf16.msra.mxu0 %v3292
    %4240 = vmatprep.subr.bf16.mxu0 %v3301
    %4241 = vmatpush1.bf16.msra.mxu0 %v3300
    %4242 = vmatprep.subr.bf16.mxu0 %v3309
    %4243 = vmatpush1.bf16.msra.mxu0 %v3308
    %4244 = vmatprep.mubr.bf16.mxu0 %v837
    %4245 = vmatmul.mubr.bf16.gmra.mrb[0].mxu0 %v836
    %v4246 = vpop.f32.mrb[0].mxu0
    %v4247 = vadd.f32 %v4204, %v4246
    %v4248 = vpop.f32.mrb[0].mxu0
    %v4249 = vadd.f32 %v4206, %v4248
    %v4250 = vpop.f32.mrb[0].mxu0
    %v4251 = vadd.f32 %v4208, %v4250
    %v4252 = vpop.f32.mrb[0].mxu0
    %v4253 = vadd.f32 %v4210, %v4252
    %4254 = vdwg.mxu0
    %4255 = vmatprep.subr.bf16.mxu0 %v3317
    %4256 = vmatpush1.bf16.msra.mxu0 %v3316
    %4257 = vmatprep.subr.bf16.mxu0 %v3325
    %4258 = vmatpush1.bf16.msra.mxu0 %v3324
    %4259 = vmatprep.subr.bf16.mxu0 %v3333
    %4260 = vmatpush1.bf16.msra.mxu0 %v3332
    %4261 = vmatprep.subr.bf16.mxu0 %v3341
    %4262 = vmatpush1.bf16.msra.mxu0 %v3340
    %4263 = vmatprep.subr.bf16.mxu0 %v3349
    %4264 = vmatpush1.bf16.msra.mxu0 %v3348
    %4265 = vmatprep.subr.bf16.mxu0 %v3357
    %4266 = vmatpush1.bf16.msra.mxu0 %v3356
    %4267 = vmatprep.subr.bf16.mxu0 %v3365
    %4268 = vmatpush1.bf16.msra.mxu0 %v3364
    %4269 = vmatprep.subr.bf16.mxu0 %v3373
    %4270 = vmatpush1.bf16.msra.mxu0 %v3372
    %4271 = vmatprep.subr.bf16.mxu0 %v3381
    %4272 = vmatpush1.bf16.msra.mxu0 %v3380
    %4273 = vmatprep.subr.bf16.mxu0 %v3389
    %4274 = vmatpush1.bf16.msra.mxu0 %v3388
    %4275 = vmatprep.subr.bf16.mxu0 %v3397
    %4276 = vmatpush1.bf16.msra.mxu0 %v3396
    %4277 = vmatprep.subr.bf16.mxu0 %v3405
    %4278 = vmatpush1.bf16.msra.mxu0 %v3404
    %4279 = vmatprep.subr.bf16.mxu0 %v3413
    %4280 = vmatpush1.bf16.msra.mxu0 %v3412
    %4281 = vmatprep.subr.bf16.mxu0 %v3421
    %4282 = vmatpush1.bf16.msra.mxu0 %v3420
    %4283 = vmatprep.subr.bf16.mxu0 %v3429
    %4284 = vmatpush1.bf16.msra.mxu0 %v3428
    %4285 = vmatprep.subr.bf16.mxu0 %v3437
    %4286 = vmatpush1.bf16.msra.mxu0 %v3436
    %4287 = vmatprep.mubr.bf16.mxu0 %v839
    %4288 = vmatmul.mubr.bf16.gmra.mrb[0].mxu0 %v838
    %v4289 = vpop.f32.mrb[0].mxu0
    %v4290 = vadd.f32 %v4247, %v4289
    %v4291 = vpop.f32.mrb[0].mxu0
    %v4292 = vadd.f32 %v4249, %v4291
    %v4293 = vpop.f32.mrb[0].mxu0
    %v4294 = vadd.f32 %v4251, %v4293
    %v4295 = vpop.f32.mrb[0].mxu0
    %v4296 = vadd.f32 %v4253, %v4295
    %4297 = vdwg.mxu0
    %4298 = vmatprep.subr.bf16.mxu0 %v2935
    %4299 = vmatpush1.bf16.msra.mxu0 %v2934
    %4300 = vmatprep.subr.bf16.mxu0 %v2943
    %4301 = vmatpush1.bf16.msra.mxu0 %v2942
    %4302 = vmatprep.subr.bf16.mxu0 %v2951
    %4303 = vmatpush1.bf16.msra.mxu0 %v2950
    %4304 = vmatprep.subr.bf16.mxu0 %v2959
    %4305 = vmatpush1.bf16.msra.mxu0 %v2958
    %4306 = vmatprep.subr.bf16.mxu0 %v2967
    %4307 = vmatpush1.bf16.msra.mxu0 %v2966
    %4308 = vmatprep.subr.bf16.mxu0 %v2975
    %4309 = vmatpush1.bf16.msra.mxu0 %v2974
    %4310 = vmatprep.subr.bf16.mxu0 %v2983
    %4311 = vmatpush1.bf16.msra.mxu0 %v2982
    %4312 = vmatprep.subr.bf16.mxu0 %v2991
    %4313 = vmatpush1.bf16.msra.mxu0 %v2990
    %4314 = vmatprep.subr.bf16.mxu0 %v2999
    %4315 = vmatpush1.bf16.msra.mxu0 %v2998
    %4316 = vmatprep.subr.bf16.mxu0 %v3007
    %4317 = vmatpush1.bf16.msra.mxu0 %v3006
    %4318 = vmatprep.subr.bf16.mxu0 %v3015
    %4319 = vmatpush1.bf16.msra.mxu0 %v3014
    %4320 = vmatprep.subr.bf16.mxu0 %v3023
    %4321 = vmatpush1.bf16.msra.mxu0 %v3022
    %4322 = vmatprep.subr.bf16.mxu0 %v3031
    %4323 = vmatpush1.bf16.msra.mxu0 %v3030
    %4324 = vmatprep.subr.bf16.mxu0 %v3039
    %4325 = vmatpush1.bf16.msra.mxu0 %v3038
    %4326 = vmatprep.subr.bf16.mxu0 %v3047
    %4327 = vmatpush1.bf16.msra.mxu0 %v3046
    %4328 = vmatprep.subr.bf16.mxu0 %v3055
    %4329 = vmatpush1.bf16.msra.mxu0 %v3054
    %4330 = vmatprep.mubr.bf16.mxu0 %v833
    %4331 = vmatmul.mubr.bf16.gmra.mrb[0].mxu0 %v832
    %v4332 = vpop.f32.mrb[0].mxu0
    %v4333 = vadd.f32 %v1373, %v4332
    %v4334 = vpop.f32.mrb[0].mxu0
    %v4335 = vadd.f32 %v1377, %v4334
    %v4336 = vpop.f32.mrb[0].mxu0
    %v4337 = vadd.f32 %v1373, %v4336
    %v4338 = vpop.f32.mrb[0].mxu0
    %v4339 = vadd.f32 %v1377, %v4338
    %4340 = vdwg.mxu0
    %4341 = vmatprep.subr.bf16.mxu0 %v3063
    %4342 = vmatpush1.bf16.msra.mxu0 %v3062
    %4343 = vmatprep.subr.bf16.mxu0 %v3071
    %4344 = vmatpush1.bf16.msra.mxu0 %v3070
    %4345 = vmatprep.subr.bf16.mxu0 %v3079
    %4346 = vmatpush1.bf16.msra.mxu0 %v3078
    %4347 = vmatprep.subr.bf16.mxu0 %v3087
    %4348 = vmatpush1.bf16.msra.mxu0 %v3086
    %4349 = vmatprep.subr.bf16.mxu0 %v3095
    %4350 = vmatpush1.bf16.msra.mxu0 %v3094
    %4351 = vmatprep.subr.bf16.mxu0 %v3103
    %4352 = vmatpush1.bf16.msra.mxu0 %v3102
    %4353 = vmatprep.subr.bf16.mxu0 %v3111
    %4354 = vmatpush1.bf16.msra.mxu0 %v3110
    %4355 = vmatprep.subr.bf16.mxu0 %v3119
    %4356 = vmatpush1.bf16.msra.mxu0 %v3118
    %4357 = vmatprep.subr.bf16.mxu0 %v3127
    %4358 = vmatpush1.bf16.msra.mxu0 %v3126
    %4359 = vmatprep.subr.bf16.mxu0 %v3135
    %4360 = vmatpush1.bf16.msra.mxu0 %v3134
    %4361 = vmatprep.subr.bf16.mxu0 %v3143
    %4362 = vmatpush1.bf16.msra.mxu0 %v3142
    %4363 = vmatprep.subr.bf16.mxu0 %v3151
    %4364 = vmatpush1.bf16.msra.mxu0 %v3150
    %4365 = vmatprep.subr.bf16.mxu0 %v3159
    %4366 = vmatpush1.bf16.msra.mxu0 %v3158
    %4367 = vmatprep.subr.bf16.mxu0 %v3167
    %4368 = vmatpush1.bf16.msra.mxu0 %v3166
    %4369 = vmatprep.subr.bf16.mxu0 %v3175
    %4370 = vmatpush1.bf16.msra.mxu0 %v3174
    %4371 = vmatprep.subr.bf16.mxu0 %v3183
    %4372 = vmatpush1.bf16.msra.mxu0 %v3182
    %4373 = vmatprep.mubr.bf16.mxu0 %v835
    %4374 = vmatmul.mubr.bf16.gmra.mrb[0].mxu0 %v834
    %v4375 = vpop.f32.mrb[0].mxu0
    %v4376 = vadd.f32 %v4333, %v4375
    %v4377 = vpop.f32.mrb[0].mxu0
    %v4378 = vadd.f32 %v4335, %v4377
    %v4379 = vpop.f32.mrb[0].mxu0
    %v4380 = vadd.f32 %v4337, %v4379
    %v4381 = vpop.f32.mrb[0].mxu0
    %v4382 = vadd.f32 %v4339, %v4381
    %4383 = vdwg.mxu0
    %4384 = vmatprep.subr.bf16.mxu0 %v3191
    %4385 = vmatpush1.bf16.msra.mxu0 %v3190
    %4386 = vmatprep.subr.bf16.mxu0 %v3199
    %4387 = vmatpush1.bf16.msra.mxu0 %v3198
    %4388 = vmatprep.subr.bf16.mxu0 %v3207
    %4389 = vmatpush1.bf16.msra.mxu0 %v3206
    %4390 = vmatprep.subr.bf16.mxu0 %v3215
    %4391 = vmatpush1.bf16.msra.mxu0 %v3214
    %4392 = vmatprep.subr.bf16.mxu0 %v3223
    %4393 = vmatpush1.bf16.msra.mxu0 %v3222
    %4394 = vmatprep.subr.bf16.mxu0 %v3231
    %4395 = vmatpush1.bf16.msra.mxu0 %v3230
    %4396 = vmatprep.subr.bf16.mxu0 %v3239
    %4397 = vmatpush1.bf16.msra.mxu0 %v3238
    %4398 = vmatprep.subr.bf16.mxu0 %v3247
    %4399 = vmatpush1.bf16.msra.mxu0 %v3246
    %4400 = vmatprep.subr.bf16.mxu0 %v3255
    %4401 = vmatpush1.bf16.msra.mxu0 %v3254
    %4402 = vmatprep.subr.bf16.mxu0 %v3263
    %4403 = vmatpush1.bf16.msra.mxu0 %v3262
    %4404 = vmatprep.subr.bf16.mxu0 %v3271
    %4405 = vmatpush1.bf16.msra.mxu0 %v3270
    %4406 = vmatprep.subr.bf16.mxu0 %v3279
    %4407 = vmatpush1.bf16.msra.mxu0 %v3278
    %4408 = vmatprep.subr.bf16.mxu0 %v3287
    %4409 = vmatpush1.bf16.msra.mxu0 %v3286
    %4410 = vmatprep.subr.bf16.mxu0 %v3295
    %4411 = vmatpush1.bf16.msra.mxu0 %v3294
    %4412 = vmatprep.subr.bf16.mxu0 %v3303
    %4413 = vmatpush1.bf16.msra.mxu0 %v3302
    %4414 = vmatprep.subr.bf16.mxu0 %v3311
    %4415 = vmatpush1.bf16.msra.mxu0 %v3310
    %4416 = vmatprep.mubr.bf16.mxu0 %v837
    %4417 = vmatmul.mubr.bf16.gmra.mrb[0].mxu0 %v836
    %v4418 = vpop.f32.mrb[0].mxu0
    %v4419 = vadd.f32 %v4376, %v4418
    %v4420 = vpop.f32.mrb[0].mxu0
    %v4421 = vadd.f32 %v4378, %v4420
    %v4422 = vpop.f32.mrb[0].mxu0
    %v4423 = vadd.f32 %v4380, %v4422
    %v4424 = vpop.f32.mrb[0].mxu0
    %v4425 = vadd.f32 %v4382, %v4424
    %4426 = vdwg.mxu0
    %4427 = vmatprep.subr.bf16.mxu0 %v3319
    %4428 = vmatpush1.bf16.msra.mxu0 %v3318
    %4429 = vmatprep.subr.bf16.mxu0 %v3327
    %4430 = vmatpush1.bf16.msra.mxu0 %v3326
    %4431 = vmatprep.subr.bf16.mxu0 %v3335
    %4432 = vmatpush1.bf16.msra.mxu0 %v3334
    %4433 = vmatprep.subr.bf16.mxu0 %v3343
    %4434 = vmatpush1.bf16.msra.mxu0 %v3342
    %4435 = vmatprep.subr.bf16.mxu0 %v3351
    %4436 = vmatpush1.bf16.msra.mxu0 %v3350
    %4437 = vmatprep.subr.bf16.mxu0 %v3359
    %4438 = vmatpush1.bf16.msra.mxu0 %v3358
    %4439 = vmatprep.subr.bf16.mxu0 %v3367
    %4440 = vmatpush1.bf16.msra.mxu0 %v3366
    %4441 = vmatprep.subr.bf16.mxu0 %v3375
    %4442 = vmatpush1.bf16.msra.mxu0 %v3374
    %4443 = vmatprep.subr.bf16.mxu0 %v3383
    %4444 = vmatpush1.bf16.msra.mxu0 %v3382
    %4445 = vmatprep.subr.bf16.mxu0 %v3391
    %4446 = vmatpush1.bf16.msra.mxu0 %v3390
    %4447 = vmatprep.subr.bf16.mxu0 %v3399
    %4448 = vmatpush1.bf16.msra.mxu0 %v3398
    %4449 = vmatprep.subr.bf16.mxu0 %v3407
    %4450 = vmatpush1.bf16.msra.mxu0 %v3406
    %4451 = vmatprep.subr.bf16.mxu0 %v3415
    %4452 = vmatpush1.bf16.msra.mxu0 %v3414
    %4453 = vmatprep.subr.bf16.mxu0 %v3423
    %4454 = vmatpush1.bf16.msra.mxu0 %v3422
    %4455 = vmatprep.subr.bf16.mxu0 %v3431
    %4456 = vmatpush1.bf16.msra.mxu0 %v3430
    %4457 = vmatprep.subr.bf16.mxu0 %v3439
    %4458 = vmatpush1.bf16.msra.mxu0 %v3438
    %4459 = vmatprep.mubr.bf16.mxu0 %v839
    %4460 = vmatmul.mubr.bf16.gmra.mrb[0].mxu0 %v838
    %v4461 = vpop.f32.mrb[0].mxu0
    %v4462 = vadd.f32 %v4419, %v4461
    %v4463 = vpop.f32.mrb[0].mxu0
    %v4464 = vadd.f32 %v4421, %v4463
    %v4465 = vpop.f32.mrb[0].mxu0
    %v4466 = vadd.f32 %v4423, %v4465
    %v4467 = vpop.f32.mrb[0].mxu0
    %v4468 = vadd.f32 %v4425, %v4467
    %4469 = vdwg.mxu0
    %4470 = vmatprep.subr.bf16.mxu0 %v2937
    %4471 = vmatpush1.bf16.msra.mxu0 %v2936
    %4472 = vmatprep.subr.bf16.mxu0 %v2945
    %4473 = vmatpush1.bf16.msra.mxu0 %v2944
    %4474 = vmatprep.subr.bf16.mxu0 %v2953
    %4475 = vmatpush1.bf16.msra.mxu0 %v2952
    %4476 = vmatprep.subr.bf16.mxu0 %v2961
    %4477 = vmatpush1.bf16.msra.mxu0 %v2960
    %4478 = vmatprep.subr.bf16.mxu0 %v2969
    %4479 = vmatpush1.bf16.msra.mxu0 %v2968
    %4480 = vmatprep.subr.bf16.mxu0 %v2977
    %4481 = vmatpush1.bf16.msra.mxu0 %v2976
    %4482 = vmatprep.subr.bf16.mxu0 %v2985
    %4483 = vmatpush1.bf16.msra.mxu0 %v2984
    %4484 = vmatprep.subr.bf16.mxu0 %v2993
    %4485 = vmatpush1.bf16.msra.mxu0 %v2992
    %4486 = vmatprep.subr.bf16.mxu0 %v3001
    %4487 = vmatpush1.bf16.msra.mxu0 %v3000
    %4488 = vmatprep.subr.bf16.mxu0 %v3009
    %4489 = vmatpush1.bf16.msra.mxu0 %v3008
    %4490 = vmatprep.subr.bf16.mxu0 %v3017
    %4491 = vmatpush1.bf16.msra.mxu0 %v3016
    %4492 = vmatprep.subr.bf16.mxu0 %v3025
    %4493 = vmatpush1.bf16.msra.mxu0 %v3024
    %4494 = vmatprep.subr.bf16.mxu0 %v3033
    %4495 = vmatpush1.bf16.msra.mxu0 %v3032
    %4496 = vmatprep.subr.bf16.mxu0 %v3041
    %4497 = vmatpush1.bf16.msra.mxu0 %v3040
    %4498 = vmatprep.subr.bf16.mxu0 %v3049
    %4499 = vmatpush1.bf16.msra.mxu0 %v3048
    %4500 = vmatprep.subr.bf16.mxu0 %v3057
    %4501 = vmatpush1.bf16.msra.mxu0 %v3056
    %4502 = vmatprep.mubr.bf16.mxu0 %v833
    %4503 = vmatmul.mubr.bf16.gmra.mrb[0].mxu0 %v832
    %v4504 = vpop.f32.mrb[0].mxu0
    %v4505 = vadd.f32 %v1381, %v4504
    %v4506 = vpop.f32.mrb[0].mxu0
    %v4507 = vadd.f32 %v1385, %v4506
    %v4508 = vpop.f32.mrb[0].mxu0
    %v4509 = vadd.f32 %v1381, %v4508
    %v4510 = vpop.f32.mrb[0].mxu0
    %v4511 = vadd.f32 %v1385, %v4510
    %4512 = vdwg.mxu0
    %4513 = vmatprep.subr.bf16.mxu0 %v3065
    %4514 = vmatpush1.bf16.msra.mxu0 %v3064
    %4515 = vmatprep.subr.bf16.mxu0 %v3073
    %4516 = vmatpush1.bf16.msra.mxu0 %v3072
    %4517 = vmatprep.subr.bf16.mxu0 %v3081
    %4518 = vmatpush1.bf16.msra.mxu0 %v3080
    %4519 = vmatprep.subr.bf16.mxu0 %v3089
    %4520 = vmatpush1.bf16.msra.mxu0 %v3088
    %4521 = vmatprep.subr.bf16.mxu0 %v3097
    %4522 = vmatpush1.bf16.msra.mxu0 %v3096
    %4523 = vmatprep.subr.bf16.mxu0 %v3105
    %4524 = vmatpush1.bf16.msra.mxu0 %v3104
    %4525 = vmatprep.subr.bf16.mxu0 %v3113
    %4526 = vmatpush1.bf16.msra.mxu0 %v3112
    %4527 = vmatprep.subr.bf16.mxu0 %v3121
    %4528 = vmatpush1.bf16.msra.mxu0 %v3120
    %4529 = vmatprep.subr.bf16.mxu0 %v3129
    %4530 = vmatpush1.bf16.msra.mxu0 %v3128
    %4531 = vmatprep.subr.bf16.mxu0 %v3137
    %4532 = vmatpush1.bf16.msra.mxu0 %v3136
    %4533 = vmatprep.subr.bf16.mxu0 %v3145
    %4534 = vmatpush1.bf16.msra.mxu0 %v3144
    %4535 = vmatprep.subr.bf16.mxu0 %v3153
    %4536 = vmatpush1.bf16.msra.mxu0 %v3152
    %4537 = vmatprep.subr.bf16.mxu0 %v3161
    %4538 = vmatpush1.bf16.msra.mxu0 %v3160
    %4539 = vmatprep.subr.bf16.mxu0 %v3169
    %4540 = vmatpush1.bf16.msra.mxu0 %v3168
    %4541 = vmatprep.subr.bf16.mxu0 %v3177
    %4542 = vmatpush1.bf16.msra.mxu0 %v3176
    %4543 = vmatprep.subr.bf16.mxu0 %v3185
    %4544 = vmatpush1.bf16.msra.mxu0 %v3184
    %4545 = vmatprep.mubr.bf16.mxu0 %v835
    %4546 = vmatmul.mubr.bf16.gmra.mrb[0].mxu0 %v834
    %v4547 = vpop.f32.mrb[0].mxu0
    %v4548 = vadd.f32 %v4505, %v4547
    %v4549 = vpop.f32.mrb[0].mxu0
    %v4550 = vadd.f32 %v4507, %v4549
    %v4551 = vpop.f32.mrb[0].mxu0
    %v4552 = vadd.f32 %v4509, %v4551
    %v4553 = vpop.f32.mrb[0].mxu0
    %v4554 = vadd.f32 %v4511, %v4553
    %4555 = vdwg.mxu0
    %4556 = vmatprep.subr.bf16.mxu0 %v3193
    %4557 = vmatpush1.bf16.msra.mxu0 %v3192
    %4558 = vmatprep.subr.bf16.mxu0 %v3201
    %4559 = vmatpush1.bf16.msra.mxu0 %v3200
    %4560 = vmatprep.subr.bf16.mxu0 %v3209
    %4561 = vmatpush1.bf16.msra.mxu0 %v3208
    %4562 = vmatprep.subr.bf16.mxu0 %v3217
    %4563 = vmatpush1.bf16.msra.mxu0 %v3216
    %4564 = vmatprep.subr.bf16.mxu0 %v3225
    %4565 = vmatpush1.bf16.msra.mxu0 %v3224
    %4566 = vmatprep.subr.bf16.mxu0 %v3233
    %4567 = vmatpush1.bf16.msra.mxu0 %v3232
    %4568 = vmatprep.subr.bf16.mxu0 %v3241
    %4569 = vmatpush1.bf16.msra.mxu0 %v3240
    %4570 = vmatprep.subr.bf16.mxu0 %v3249
    %4571 = vmatpush1.bf16.msra.mxu0 %v3248
    %4572 = vmatprep.subr.bf16.mxu0 %v3257
    %4573 = vmatpush1.bf16.msra.mxu0 %v3256
    %4574 = vmatprep.subr.bf16.mxu0 %v3265
    %4575 = vmatpush1.bf16.msra.mxu0 %v3264
    %4576 = vmatprep.subr.bf16.mxu0 %v3273
    %4577 = vmatpush1.bf16.msra.mxu0 %v3272
    %4578 = vmatprep.subr.bf16.mxu0 %v3281
    %4579 = vmatpush1.bf16.msra.mxu0 %v3280
    %4580 = vmatprep.subr.bf16.mxu0 %v3289
    %4581 = vmatpush1.bf16.msra.mxu0 %v3288
    %4582 = vmatprep.subr.bf16.mxu0 %v3297
    %4583 = vmatpush1.bf16.msra.mxu0 %v3296
    %4584 = vmatprep.subr.bf16.mxu0 %v3305
    %4585 = vmatpush1.bf16.msra.mxu0 %v3304
    %4586 = vmatprep.subr.bf16.mxu0 %v3313
    %4587 = vmatpush1.bf16.msra.mxu0 %v3312
    %4588 = vmatprep.mubr.bf16.mxu0 %v837
    %4589 = vmatmul.mubr.bf16.gmra.mrb[0].mxu0 %v836
    %v4590 = vpop.f32.mrb[0].mxu0
    %v4591 = vadd.f32 %v4548, %v4590
    %v4592 = vpop.f32.mrb[0].mxu0
    %v4593 = vadd.f32 %v4550, %v4592
    %v4594 = vpop.f32.mrb[0].mxu0
    %v4595 = vadd.f32 %v4552, %v4594
    %v4596 = vpop.f32.mrb[0].mxu0
    %v4597 = vadd.f32 %v4554, %v4596
    %4598 = vdwg.mxu0
    %4599 = vmatprep.subr.bf16.mxu0 %v3321
    %4600 = vmatpush1.bf16.msra.mxu0 %v3320
    %4601 = vmatprep.subr.bf16.mxu0 %v3329
    %4602 = vmatpush1.bf16.msra.mxu0 %v3328
    %4603 = vmatprep.subr.bf16.mxu0 %v3337
    %4604 = vmatpush1.bf16.msra.mxu0 %v3336
    %4605 = vmatprep.subr.bf16.mxu0 %v3345
    %4606 = vmatpush1.bf16.msra.mxu0 %v3344
    %4607 = vmatprep.subr.bf16.mxu0 %v3353
    %4608 = vmatpush1.bf16.msra.mxu0 %v3352
    %4609 = vmatprep.subr.bf16.mxu0 %v3361
    %4610 = vmatpush1.bf16.msra.mxu0 %v3360
    %4611 = vmatprep.subr.bf16.mxu0 %v3369
    %4612 = vmatpush1.bf16.msra.mxu0 %v3368
    %4613 = vmatprep.subr.bf16.mxu0 %v3377
    %4614 = vmatpush1.bf16.msra.mxu0 %v3376
    %4615 = vmatprep.subr.bf16.mxu0 %v3385
    %4616 = vmatpush1.bf16.msra.mxu0 %v3384
    %4617 = vmatprep.subr.bf16.mxu0 %v3393
    %4618 = vmatpush1.bf16.msra.mxu0 %v3392
    %4619 = vmatprep.subr.bf16.mxu0 %v3401
    %4620 = vmatpush1.bf16.msra.mxu0 %v3400
    %4621 = vmatprep.subr.bf16.mxu0 %v3409
    %4622 = vmatpush1.bf16.msra.mxu0 %v3408
    %4623 = vmatprep.subr.bf16.mxu0 %v3417
    %4624 = vmatpush1.bf16.msra.mxu0 %v3416
    %4625 = vmatprep.subr.bf16.mxu0 %v3425
    %4626 = vmatpush1.bf16.msra.mxu0 %v3424
    %4627 = vmatprep.subr.bf16.mxu0 %v3433
    %4628 = vmatpush1.bf16.msra.mxu0 %v3432
    %4629 = vmatprep.subr.bf16.mxu0 %v3441
    %4630 = vmatpush1.bf16.msra.mxu0 %v3440
    %4631 = vmatprep.mubr.bf16.mxu0 %v839
    %4632 = vmatmul.mubr.bf16.gmra.mrb[0].mxu0 %v838
    %v4633 = vpop.f32.mrb[0].mxu0
    %v4634 = vadd.f32 %v4591, %v4633
    %v4635 = vpop.f32.mrb[0].mxu0
    %v4636 = vadd.f32 %v4593, %v4635
    %v4637 = vpop.f32.mrb[0].mxu0
    %v4638 = vadd.f32 %v4595, %v4637
    %v4639 = vpop.f32.mrb[0].mxu0
    %v4640 = vadd.f32 %v4597, %v4639
    %4641 = vdwg.mxu0
    %v4642 = vmax.f32 %v4118, 0.0
    %v4643 = vmax.f32 %v4120, 0.0
    %v4644 = vmax.f32 %v4290, 0.0
    %v4645 = vmax.f32 %v4292, 0.0
    %v4646 = vmax.f32 %v4462, 0.0
    %v4647 = vmax.f32 %v4464, 0.0
    %v4648 = vmax.f32 %v4634, 0.0
    %v4649 = vmax.f32 %v4636, 0.0
    %v4650 = vmax.f32 %v4122, 0.0
    %v4651 = vmax.f32 %v4124, 0.0
    %v4652 = vmax.f32 %v4294, 0.0
    %v4653 = vmax.f32 %v4296, 0.0
    %v4654 = vmax.f32 %v4466, 0.0
    %v4655 = vmax.f32 %v4468, 0.0
    %v4656 = vmax.f32 %v4638, 0.0
    %v4657 = vmax.f32 %v4640, 0.0
    %v4658 = vpack.c.bf16 %v4650, %v4642
    %v4659 = vpack.c.bf16 %v4651, %v4643
    %v4660 = vpack.c.bf16 %v4652, %v4644
    %v4661 = vpack.c.bf16 %v4653, %v4645
    %v4662 = vpack.c.bf16 %v4654, %v4646
    %v4663 = vpack.c.bf16 %v4655, %v4647
    %v4664 = vpack.c.bf16 %v4656, %v4648
    %v4665 = vpack.c.bf16 %v4657, %v4649
    %v4666 = vld [vmem:[#allocation11] sm:$0xff]
    %v4667 = vld [vmem:[#allocation11 + $0x8] sm:$0xff]
    %v4668 = vld [vmem:[#allocation11 + $0x10] sm:$0xff]
    %v4669 = vld [vmem:[#allocation11 + $0x18] sm:$0xff]
    %v4670 = vld [vmem:[#allocation11 + $0x20] sm:$0xff]
    %v4671 = vld [vmem:[#allocation11 + $0x28] sm:$0xff]
    %v4672 = vld [vmem:[#allocation11 + $0x30] sm:$0xff]
    %v4673 = vld [vmem:[#allocation11 + $0x38] sm:$0xff]
    %v4674 = vld [vmem:[#allocation11 + $0x40] sm:$0xff]
    %v4675 = vld [vmem:[#allocation11 + $0x48] sm:$0xff]
    %v4676 = vld [vmem:[#allocation11 + $0x50] sm:$0xff]
    %v4677 = vld [vmem:[#allocation11 + $0x58] sm:$0xff]
    %v4678 = vld [vmem:[#allocation11 + $0x60] sm:$0xff]
    %v4679 = vld [vmem:[#allocation11 + $0x68] sm:$0xff]
    %v4680 = vld [vmem:[#allocation11 + $0x70] sm:$0xff]
    %v4681 = vld [vmem:[#allocation11 + $0x78] sm:$0xff]
    %v4682 = vld [vmem:[#allocation11 + $0x80] sm:$0xff]
    %v4683 = vld [vmem:[#allocation11 + $0x88] sm:$0xff]
    %v4684 = vld [vmem:[#allocation11 + $0x90] sm:$0xff]
    %v4685 = vld [vmem:[#allocation11 + $0x98] sm:$0xff]
    %v4686 = vld [vmem:[#allocation11 + $0xa0] sm:$0xff]
    %v4687 = vld [vmem:[#allocation11 + $0xa8] sm:$0xff]
    %v4688 = vld [vmem:[#allocation11 + $0xb0] sm:$0xff]
    %v4689 = vld [vmem:[#allocation11 + $0xb8] sm:$0xff]
    %v4690 = vld [vmem:[#allocation11 + $0xc0] sm:$0xff]
    %v4691 = vld [vmem:[#allocation11 + $0xc8] sm:$0xff]
    %v4692 = vld [vmem:[#allocation11 + $0xd0] sm:$0xff]
    %v4693 = vld [vmem:[#allocation11 + $0xd8] sm:$0xff]
    %v4694 = vld [vmem:[#allocation11 + $0xe0] sm:$0xff]
    %v4695 = vld [vmem:[#allocation11 + $0xe8] sm:$0xff]
    %v4696 = vld [vmem:[#allocation11 + $0xf0] sm:$0xff]
    %v4697 = vld [vmem:[#allocation11 + $0xf8] sm:$0xff]
    %v4698 = vld [vmem:[#allocation11 + $0x100] sm:$0xff]
    %v4699 = vld [vmem:[#allocation11 + $0x108] sm:$0xff]
    %v4700 = vld [vmem:[#allocation11 + $0x110] sm:$0xff]
    %v4701 = vld [vmem:[#allocation11 + $0x118] sm:$0xff]
    %v4702 = vld [vmem:[#allocation11 + $0x120] sm:$0xff]
    %v4703 = vld [vmem:[#allocation11 + $0x128] sm:$0xff]
    %v4704 = vld [vmem:[#allocation11 + $0x130] sm:$0xff]
    %v4705 = vld [vmem:[#allocation11 + $0x138] sm:$0xff]
    %v4706 = vld [vmem:[#allocation11 + $0x140] sm:$0xff]
    %v4707 = vld [vmem:[#allocation11 + $0x148] sm:$0xff]
    %v4708 = vld [vmem:[#allocation11 + $0x150] sm:$0xff]
    %v4709 = vld [vmem:[#allocation11 + $0x158] sm:$0xff]
    %v4710 = vld [vmem:[#allocation11 + $0x160] sm:$0xff]
    %v4711 = vld [vmem:[#allocation11 + $0x168] sm:$0xff]
    %v4712 = vld [vmem:[#allocation11 + $0x170] sm:$0xff]
    %v4713 = vld [vmem:[#allocation11 + $0x178] sm:$0xff]
    %v4714 = vld [vmem:[#allocation11 + $0x180] sm:$0xff]
    %v4715 = vld [vmem:[#allocation11 + $0x188] sm:$0xff]
    %v4716 = vld [vmem:[#allocation11 + $0x190] sm:$0xff]
    %v4717 = vld [vmem:[#allocation11 + $0x198] sm:$0xff]
    %v4718 = vld [vmem:[#allocation11 + $0x1a0] sm:$0xff]
    %v4719 = vld [vmem:[#allocation11 + $0x1a8] sm:$0xff]
    %v4720 = vld [vmem:[#allocation11 + $0x1b0] sm:$0xff]
    %v4721 = vld [vmem:[#allocation11 + $0x1b8] sm:$0xff]
    %v4722 = vld [vmem:[#allocation11 + $0x1c0] sm:$0xff]
    %v4723 = vld [vmem:[#allocation11 + $0x1c8] sm:$0xff]
    %v4724 = vld [vmem:[#allocation11 + $0x1d0] sm:$0xff]
    %v4725 = vld [vmem:[#allocation11 + $0x1d8] sm:$0xff]
    %v4726 = vld [vmem:[#allocation11 + $0x1e0] sm:$0xff]
    %v4727 = vld [vmem:[#allocation11 + $0x1e8] sm:$0xff]
    %v4728 = vld [vmem:[#allocation11 + $0x1f0] sm:$0xff]
    %v4729 = vld [vmem:[#allocation11 + $0x1f8] sm:$0xff]
    %v4730 = vld [vmem:[#allocation11 + $0x200] sm:$0xff]
    %v4731 = vld [vmem:[#allocation11 + $0x208] sm:$0xff]
    %v4732 = vld [vmem:[#allocation11 + $0x210] sm:$0xff]
    %v4733 = vld [vmem:[#allocation11 + $0x218] sm:$0xff]
    %v4734 = vld [vmem:[#allocation11 + $0x220] sm:$0xff]
    %v4735 = vld [vmem:[#allocation11 + $0x228] sm:$0xff]
    %v4736 = vld [vmem:[#allocation11 + $0x230] sm:$0xff]
    %v4737 = vld [vmem:[#allocation11 + $0x238] sm:$0xff]
    %v4738 = vld [vmem:[#allocation11 + $0x240] sm:$0xff]
    %v4739 = vld [vmem:[#allocation11 + $0x248] sm:$0xff]
    %v4740 = vld [vmem:[#allocation11 + $0x250] sm:$0xff]
    %v4741 = vld [vmem:[#allocation11 + $0x258] sm:$0xff]
    %v4742 = vld [vmem:[#allocation11 + $0x260] sm:$0xff]
    %v4743 = vld [vmem:[#allocation11 + $0x268] sm:$0xff]
    %v4744 = vld [vmem:[#allocation11 + $0x270] sm:$0xff]
    %v4745 = vld [vmem:[#allocation11 + $0x278] sm:$0xff]
    %v4746 = vld [vmem:[#allocation11 + $0x280] sm:$0xff]
    %v4747 = vld [vmem:[#allocation11 + $0x288] sm:$0xff]
    %v4748 = vld [vmem:[#allocation11 + $0x290] sm:$0xff]
    %v4749 = vld [vmem:[#allocation11 + $0x298] sm:$0xff]
    %v4750 = vld [vmem:[#allocation11 + $0x2a0] sm:$0xff]
    %v4751 = vld [vmem:[#allocation11 + $0x2a8] sm:$0xff]
    %v4752 = vld [vmem:[#allocation11 + $0x2b0] sm:$0xff]
    %v4753 = vld [vmem:[#allocation11 + $0x2b8] sm:$0xff]
    %v4754 = vld [vmem:[#allocation11 + $0x2c0] sm:$0xff]
    %v4755 = vld [vmem:[#allocation11 + $0x2c8] sm:$0xff]
    %v4756 = vld [vmem:[#allocation11 + $0x2d0] sm:$0xff]
    %v4757 = vld [vmem:[#allocation11 + $0x2d8] sm:$0xff]
    %v4758 = vld [vmem:[#allocation11 + $0x2e0] sm:$0xff]
    %v4759 = vld [vmem:[#allocation11 + $0x2e8] sm:$0xff]
    %v4760 = vld [vmem:[#allocation11 + $0x2f0] sm:$0xff]
    %v4761 = vld [vmem:[#allocation11 + $0x2f8] sm:$0xff]
    %v4762 = vld [vmem:[#allocation11 + $0x300] sm:$0xff]
    %v4763 = vld [vmem:[#allocation11 + $0x308] sm:$0xff]
    %v4764 = vld [vmem:[#allocation11 + $0x310] sm:$0xff]
    %v4765 = vld [vmem:[#allocation11 + $0x318] sm:$0xff]
    %v4766 = vld [vmem:[#allocation11 + $0x320] sm:$0xff]
    %v4767 = vld [vmem:[#allocation11 + $0x328] sm:$0xff]
    %v4768 = vld [vmem:[#allocation11 + $0x330] sm:$0xff]
    %v4769 = vld [vmem:[#allocation11 + $0x338] sm:$0xff]
    %v4770 = vld [vmem:[#allocation11 + $0x340] sm:$0xff]
    %v4771 = vld [vmem:[#allocation11 + $0x348] sm:$0xff]
    %v4772 = vld [vmem:[#allocation11 + $0x350] sm:$0xff]
    %v4773 = vld [vmem:[#allocation11 + $0x358] sm:$0xff]
    %v4774 = vld [vmem:[#allocation11 + $0x360] sm:$0xff]
    %v4775 = vld [vmem:[#allocation11 + $0x368] sm:$0xff]
    %v4776 = vld [vmem:[#allocation11 + $0x370] sm:$0xff]
    %v4777 = vld [vmem:[#allocation11 + $0x378] sm:$0xff]
    %v4778 = vld [vmem:[#allocation11 + $0x380] sm:$0xff]
    %v4779 = vld [vmem:[#allocation11 + $0x388] sm:$0xff]
    %v4780 = vld [vmem:[#allocation11 + $0x390] sm:$0xff]
    %v4781 = vld [vmem:[#allocation11 + $0x398] sm:$0xff]
    %v4782 = vld [vmem:[#allocation11 + $0x3a0] sm:$0xff]
    %v4783 = vld [vmem:[#allocation11 + $0x3a8] sm:$0xff]
    %v4784 = vld [vmem:[#allocation11 + $0x3b0] sm:$0xff]
    %v4785 = vld [vmem:[#allocation11 + $0x3b8] sm:$0xff]
    %v4786 = vld [vmem:[#allocation11 + $0x3c0] sm:$0xff]
    %v4787 = vld [vmem:[#allocation11 + $0x3c8] sm:$0xff]
    %v4788 = vld [vmem:[#allocation11 + $0x3d0] sm:$0xff]
    %v4789 = vld [vmem:[#allocation11 + $0x3d8] sm:$0xff]
    %v4790 = vld [vmem:[#allocation11 + $0x3e0] sm:$0xff]
    %v4791 = vld [vmem:[#allocation11 + $0x3e8] sm:$0xff]
    %v4792 = vld [vmem:[#allocation11 + $0x3f0] sm:$0xff]
    %v4793 = vld [vmem:[#allocation11 + $0x3f8] sm:$0xff]
    %v4794 = vld [vmem:[#allocation11 + $0x400] sm:$0xff]
    %v4795 = vld [vmem:[#allocation11 + $0x408] sm:$0xff]
    %v4796 = vld [vmem:[#allocation11 + $0x410] sm:$0xff]
    %v4797 = vld [vmem:[#allocation11 + $0x418] sm:$0xff]
    %v4798 = vld [vmem:[#allocation11 + $0x420] sm:$0xff]
    %v4799 = vld [vmem:[#allocation11 + $0x428] sm:$0xff]
    %v4800 = vld [vmem:[#allocation11 + $0x430] sm:$0xff]
    %v4801 = vld [vmem:[#allocation11 + $0x438] sm:$0xff]
    %v4802 = vld [vmem:[#allocation11 + $0x440] sm:$0xff]
    %v4803 = vld [vmem:[#allocation11 + $0x448] sm:$0xff]
    %v4804 = vld [vmem:[#allocation11 + $0x450] sm:$0xff]
    %v4805 = vld [vmem:[#allocation11 + $0x458] sm:$0xff]
    %v4806 = vld [vmem:[#allocation11 + $0x460] sm:$0xff]
    %v4807 = vld [vmem:[#allocation11 + $0x468] sm:$0xff]
    %v4808 = vld [vmem:[#allocation11 + $0x470] sm:$0xff]
    %v4809 = vld [vmem:[#allocation11 + $0x478] sm:$0xff]
    %v4810 = vld [vmem:[#allocation11 + $0x480] sm:$0xff]
    %v4811 = vld [vmem:[#allocation11 + $0x488] sm:$0xff]
    %v4812 = vld [vmem:[#allocation11 + $0x490] sm:$0xff]
    %v4813 = vld [vmem:[#allocation11 + $0x498] sm:$0xff]
    %v4814 = vld [vmem:[#allocation11 + $0x4a0] sm:$0xff]
    %v4815 = vld [vmem:[#allocation11 + $0x4a8] sm:$0xff]
    %v4816 = vld [vmem:[#allocation11 + $0x4b0] sm:$0xff]
    %v4817 = vld [vmem:[#allocation11 + $0x4b8] sm:$0xff]
    %v4818 = vld [vmem:[#allocation11 + $0x4c0] sm:$0xff]
    %v4819 = vld [vmem:[#allocation11 + $0x4c8] sm:$0xff]
    %v4820 = vld [vmem:[#allocation11 + $0x4d0] sm:$0xff]
    %v4821 = vld [vmem:[#allocation11 + $0x4d8] sm:$0xff]
    %v4822 = vld [vmem:[#allocation11 + $0x4e0] sm:$0xff]
    %v4823 = vld [vmem:[#allocation11 + $0x4e8] sm:$0xff]
    %v4824 = vld [vmem:[#allocation11 + $0x4f0] sm:$0xff]
    %v4825 = vld [vmem:[#allocation11 + $0x4f8] sm:$0xff]
    %v4826 = vld [vmem:[#allocation11 + $0x500] sm:$0xff]
    %v4827 = vld [vmem:[#allocation11 + $0x508] sm:$0xff]
    %v4828 = vld [vmem:[#allocation11 + $0x510] sm:$0xff]
    %v4829 = vld [vmem:[#allocation11 + $0x518] sm:$0xff]
    %v4830 = vld [vmem:[#allocation11 + $0x520] sm:$0xff]
    %v4831 = vld [vmem:[#allocation11 + $0x528] sm:$0xff]
    %v4832 = vld [vmem:[#allocation11 + $0x530] sm:$0xff]
    %v4833 = vld [vmem:[#allocation11 + $0x538] sm:$0xff]
    %v4834 = vld [vmem:[#allocation11 + $0x540] sm:$0xff]
    %v4835 = vld [vmem:[#allocation11 + $0x548] sm:$0xff]
    %v4836 = vld [vmem:[#allocation11 + $0x550] sm:$0xff]
    %v4837 = vld [vmem:[#allocation11 + $0x558] sm:$0xff]
    %v4838 = vld [vmem:[#allocation11 + $0x560] sm:$0xff]
    %v4839 = vld [vmem:[#allocation11 + $0x568] sm:$0xff]
    %v4840 = vld [vmem:[#allocation11 + $0x570] sm:$0xff]
    %v4841 = vld [vmem:[#allocation11 + $0x578] sm:$0xff]
    %v4842 = vld [vmem:[#allocation11 + $0x580] sm:$0xff]
    %v4843 = vld [vmem:[#allocation11 + $0x588] sm:$0xff]
    %v4844 = vld [vmem:[#allocation11 + $0x590] sm:$0xff]
    %v4845 = vld [vmem:[#allocation11 + $0x598] sm:$0xff]
    %v4846 = vld [vmem:[#allocation11 + $0x5a0] sm:$0xff]
    %v4847 = vld [vmem:[#allocation11 + $0x5a8] sm:$0xff]
    %v4848 = vld [vmem:[#allocation11 + $0x5b0] sm:$0xff]
    %v4849 = vld [vmem:[#allocation11 + $0x5b8] sm:$0xff]
    %v4850 = vld [vmem:[#allocation11 + $0x5c0] sm:$0xff]
    %v4851 = vld [vmem:[#allocation11 + $0x5c8] sm:$0xff]
    %v4852 = vld [vmem:[#allocation11 + $0x5d0] sm:$0xff]
    %v4853 = vld [vmem:[#allocation11 + $0x5d8] sm:$0xff]
    %v4854 = vld [vmem:[#allocation11 + $0x5e0] sm:$0xff]
    %v4855 = vld [vmem:[#allocation11 + $0x5e8] sm:$0xff]
    %v4856 = vld [vmem:[#allocation11 + $0x5f0] sm:$0xff]
    %v4857 = vld [vmem:[#allocation11 + $0x5f8] sm:$0xff]
    %v4858 = vld [vmem:[#allocation11 + $0x600] sm:$0xff]
    %v4859 = vld [vmem:[#allocation11 + $0x608] sm:$0xff]
    %v4860 = vld [vmem:[#allocation11 + $0x610] sm:$0xff]
    %v4861 = vld [vmem:[#allocation11 + $0x618] sm:$0xff]
    %v4862 = vld [vmem:[#allocation11 + $0x620] sm:$0xff]
    %v4863 = vld [vmem:[#allocation11 + $0x628] sm:$0xff]
    %v4864 = vld [vmem:[#allocation11 + $0x630] sm:$0xff]
    %v4865 = vld [vmem:[#allocation11 + $0x638] sm:$0xff]
    %v4866 = vld [vmem:[#allocation11 + $0x640] sm:$0xff]
    %v4867 = vld [vmem:[#allocation11 + $0x648] sm:$0xff]
    %v4868 = vld [vmem:[#allocation11 + $0x650] sm:$0xff]
    %v4869 = vld [vmem:[#allocation11 + $0x658] sm:$0xff]
    %v4870 = vld [vmem:[#allocation11 + $0x660] sm:$0xff]
    %v4871 = vld [vmem:[#allocation11 + $0x668] sm:$0xff]
    %v4872 = vld [vmem:[#allocation11 + $0x670] sm:$0xff]
    %v4873 = vld [vmem:[#allocation11 + $0x678] sm:$0xff]
    %v4874 = vld [vmem:[#allocation11 + $0x680] sm:$0xff]
    %v4875 = vld [vmem:[#allocation11 + $0x688] sm:$0xff]
    %v4876 = vld [vmem:[#allocation11 + $0x690] sm:$0xff]
    %v4877 = vld [vmem:[#allocation11 + $0x698] sm:$0xff]
    %v4878 = vld [vmem:[#allocation11 + $0x6a0] sm:$0xff]
    %v4879 = vld [vmem:[#allocation11 + $0x6a8] sm:$0xff]
    %v4880 = vld [vmem:[#allocation11 + $0x6b0] sm:$0xff]
    %v4881 = vld [vmem:[#allocation11 + $0x6b8] sm:$0xff]
    %v4882 = vld [vmem:[#allocation11 + $0x6c0] sm:$0xff]
    %v4883 = vld [vmem:[#allocation11 + $0x6c8] sm:$0xff]
    %v4884 = vld [vmem:[#allocation11 + $0x6d0] sm:$0xff]
    %v4885 = vld [vmem:[#allocation11 + $0x6d8] sm:$0xff]
    %v4886 = vld [vmem:[#allocation11 + $0x6e0] sm:$0xff]
    %v4887 = vld [vmem:[#allocation11 + $0x6e8] sm:$0xff]
    %v4888 = vld [vmem:[#allocation11 + $0x6f0] sm:$0xff]
    %v4889 = vld [vmem:[#allocation11 + $0x6f8] sm:$0xff]
    %v4890 = vld [vmem:[#allocation11 + $0x700] sm:$0xff]
    %v4891 = vld [vmem:[#allocation11 + $0x708] sm:$0xff]
    %v4892 = vld [vmem:[#allocation11 + $0x710] sm:$0xff]
    %v4893 = vld [vmem:[#allocation11 + $0x718] sm:$0xff]
    %v4894 = vld [vmem:[#allocation11 + $0x720] sm:$0xff]
    %v4895 = vld [vmem:[#allocation11 + $0x728] sm:$0xff]
    %v4896 = vld [vmem:[#allocation11 + $0x730] sm:$0xff]
    %v4897 = vld [vmem:[#allocation11 + $0x738] sm:$0xff]
    %v4898 = vld [vmem:[#allocation11 + $0x740] sm:$0xff]
    %v4899 = vld [vmem:[#allocation11 + $0x748] sm:$0xff]
    %v4900 = vld [vmem:[#allocation11 + $0x750] sm:$0xff]
    %v4901 = vld [vmem:[#allocation11 + $0x758] sm:$0xff]
    %v4902 = vld [vmem:[#allocation11 + $0x760] sm:$0xff]
    %v4903 = vld [vmem:[#allocation11 + $0x768] sm:$0xff]
    %v4904 = vld [vmem:[#allocation11 + $0x770] sm:$0xff]
    %v4905 = vld [vmem:[#allocation11 + $0x778] sm:$0xff]
    %v4906 = vld [vmem:[#allocation11 + $0x780] sm:$0xff]
    %v4907 = vld [vmem:[#allocation11 + $0x788] sm:$0xff]
    %v4908 = vld [vmem:[#allocation11 + $0x790] sm:$0xff]
    %v4909 = vld [vmem:[#allocation11 + $0x798] sm:$0xff]
    %v4910 = vld [vmem:[#allocation11 + $0x7a0] sm:$0xff]
    %v4911 = vld [vmem:[#allocation11 + $0x7a8] sm:$0xff]
    %v4912 = vld [vmem:[#allocation11 + $0x7b0] sm:$0xff]
    %v4913 = vld [vmem:[#allocation11 + $0x7b8] sm:$0xff]
    %v4914 = vld [vmem:[#allocation11 + $0x7c0] sm:$0xff]
    %v4915 = vld [vmem:[#allocation11 + $0x7c8] sm:$0xff]
    %v4916 = vld [vmem:[#allocation11 + $0x7d0] sm:$0xff]
    %v4917 = vld [vmem:[#allocation11 + $0x7d8] sm:$0xff]
    %v4918 = vld [vmem:[#allocation11 + $0x7e0] sm:$0xff]
    %v4919 = vld [vmem:[#allocation11 + $0x7e8] sm:$0xff]
    %v4920 = vld [vmem:[#allocation11 + $0x7f0] sm:$0xff]
    %v4921 = vld [vmem:[#allocation11 + $0x7f8] sm:$0xff]
    %v4922 = vld [vmem:[#allocation13] sm:$0xf]
    %v4924 = vlaneseq
    %v4925 = vshrl.u32 %v4924, 7
    %v4926 = vsub.s32 0, %v4925
    %v4927 = vrot.slane %v4922, %v4926
    %v4928 = vlaneseq
    %v4929 = vshrl.u32 %v4928, 7
    %v4930 = vsub.s32 1, %v4929
    %v4931 = vrot.slane %v4922, %v4930
    %v4932 = vlaneseq
    %v4933 = vshrl.u32 %v4932, 7
    %v4934 = vsub.s32 2, %v4933
    %v4935 = vrot.slane %v4922, %v4934
    %v4936 = vlaneseq
    %v4937 = vshrl.u32 %v4936, 7
    %v4938 = vsub.s32 3, %v4937
    %v4939 = vrot.slane %v4922, %v4938
    %v5200 = vunpack.c.l.b16 %v4666
    %v5201 = vunpack.c.h.b16 %v4666
    %v5202 = vunpack.c.l.b16 %v4667
    %v5203 = vunpack.c.h.b16 %v4667
    %v5204 = vunpack.c.l.b16 %v4668
    %v5205 = vunpack.c.h.b16 %v4668
    %v5206 = vunpack.c.l.b16 %v4669
    %v5207 = vunpack.c.h.b16 %v4669
    %v5208 = vunpack.c.l.b16 %v4670
    %v5209 = vunpack.c.h.b16 %v4670
    %v5210 = vunpack.c.l.b16 %v4671
    %v5211 = vunpack.c.h.b16 %v4671
    %v5212 = vunpack.c.l.b16 %v4672
    %v5213 = vunpack.c.h.b16 %v4672
    %v5214 = vunpack.c.l.b16 %v4673
    %v5215 = vunpack.c.h.b16 %v4673
    %v5216 = vunpack.c.l.b16 %v4674
    %v5217 = vunpack.c.h.b16 %v4674
    %v5218 = vunpack.c.l.b16 %v4675
    %v5219 = vunpack.c.h.b16 %v4675
    %v5220 = vunpack.c.l.b16 %v4676
    %v5221 = vunpack.c.h.b16 %v4676
    %v5222 = vunpack.c.l.b16 %v4677
    %v5223 = vunpack.c.h.b16 %v4677
    %v5224 = vunpack.c.l.b16 %v4678
    %v5225 = vunpack.c.h.b16 %v4678
    %v5226 = vunpack.c.l.b16 %v4679
    %v5227 = vunpack.c.h.b16 %v4679
    %v5228 = vunpack.c.l.b16 %v4680
    %v5229 = vunpack.c.h.b16 %v4680
    %v5230 = vunpack.c.l.b16 %v4681
    %v5231 = vunpack.c.h.b16 %v4681
    %v5232 = vunpack.c.l.b16 %v4682
    %v5233 = vunpack.c.h.b16 %v4682
    %v5234 = vunpack.c.l.b16 %v4683
    %v5235 = vunpack.c.h.b16 %v4683
    %v5236 = vunpack.c.l.b16 %v4684
    %v5237 = vunpack.c.h.b16 %v4684
    %v5238 = vunpack.c.l.b16 %v4685
    %v5239 = vunpack.c.h.b16 %v4685
    %v5240 = vunpack.c.l.b16 %v4686
    %v5241 = vunpack.c.h.b16 %v4686
    %v5242 = vunpack.c.l.b16 %v4687
    %v5243 = vunpack.c.h.b16 %v4687
    %v5244 = vunpack.c.l.b16 %v4688
    %v5245 = vunpack.c.h.b16 %v4688
    %v5246 = vunpack.c.l.b16 %v4689
    %v5247 = vunpack.c.h.b16 %v4689
    %v5248 = vunpack.c.l.b16 %v4690
    %v5249 = vunpack.c.h.b16 %v4690
    %v5250 = vunpack.c.l.b16 %v4691
    %v5251 = vunpack.c.h.b16 %v4691
    %v5252 = vunpack.c.l.b16 %v4692
    %v5253 = vunpack.c.h.b16 %v4692
    %v5254 = vunpack.c.l.b16 %v4693
    %v5255 = vunpack.c.h.b16 %v4693
    %v5256 = vunpack.c.l.b16 %v4694
    %v5257 = vunpack.c.h.b16 %v4694
    %v5258 = vunpack.c.l.b16 %v4695
    %v5259 = vunpack.c.h.b16 %v4695
    %v5260 = vunpack.c.l.b16 %v4696
    %v5261 = vunpack.c.h.b16 %v4696
    %v5262 = vunpack.c.l.b16 %v4697
    %v5263 = vunpack.c.h.b16 %v4697
    %v5264 = vunpack.c.l.b16 %v4698
    %v5265 = vunpack.c.h.b16 %v4698
    %v5266 = vunpack.c.l.b16 %v4699
    %v5267 = vunpack.c.h.b16 %v4699
    %v5268 = vunpack.c.l.b16 %v4700
    %v5269 = vunpack.c.h.b16 %v4700
    %v5270 = vunpack.c.l.b16 %v4701
    %v5271 = vunpack.c.h.b16 %v4701
    %v5272 = vunpack.c.l.b16 %v4702
    %v5273 = vunpack.c.h.b16 %v4702
    %v5274 = vunpack.c.l.b16 %v4703
    %v5275 = vunpack.c.h.b16 %v4703
    %v5276 = vunpack.c.l.b16 %v4704
    %v5277 = vunpack.c.h.b16 %v4704
    %v5278 = vunpack.c.l.b16 %v4705
    %v5279 = vunpack.c.h.b16 %v4705
    %v5280 = vunpack.c.l.b16 %v4706
    %v5281 = vunpack.c.h.b16 %v4706
    %v5282 = vunpack.c.l.b16 %v4707
    %v5283 = vunpack.c.h.b16 %v4707
    %v5284 = vunpack.c.l.b16 %v4708
    %v5285 = vunpack.c.h.b16 %v4708
    %v5286 = vunpack.c.l.b16 %v4709
    %v5287 = vunpack.c.h.b16 %v4709
    %v5288 = vunpack.c.l.b16 %v4710
    %v5289 = vunpack.c.h.b16 %v4710
    %v5290 = vunpack.c.l.b16 %v4711
    %v5291 = vunpack.c.h.b16 %v4711
    %v5292 = vunpack.c.l.b16 %v4712
    %v5293 = vunpack.c.h.b16 %v4712
    %v5294 = vunpack.c.l.b16 %v4713
    %v5295 = vunpack.c.h.b16 %v4713
    %v5296 = vunpack.c.l.b16 %v4714
    %v5297 = vunpack.c.h.b16 %v4714
    %v5298 = vunpack.c.l.b16 %v4715
    %v5299 = vunpack.c.h.b16 %v4715
    %v5300 = vunpack.c.l.b16 %v4716
    %v5301 = vunpack.c.h.b16 %v4716
    %v5302 = vunpack.c.l.b16 %v4717
    %v5303 = vunpack.c.h.b16 %v4717
    %v5304 = vunpack.c.l.b16 %v4718
    %v5305 = vunpack.c.h.b16 %v4718
    %v5306 = vunpack.c.l.b16 %v4719
    %v5307 = vunpack.c.h.b16 %v4719
    %v5308 = vunpack.c.l.b16 %v4720
    %v5309 = vunpack.c.h.b16 %v4720
    %v5310 = vunpack.c.l.b16 %v4721
    %v5311 = vunpack.c.h.b16 %v4721
    %v5312 = vunpack.c.l.b16 %v4722
    %v5313 = vunpack.c.h.b16 %v4722
    %v5314 = vunpack.c.l.b16 %v4723
    %v5315 = vunpack.c.h.b16 %v4723
    %v5316 = vunpack.c.l.b16 %v4724
    %v5317 = vunpack.c.h.b16 %v4724
    %v5318 = vunpack.c.l.b16 %v4725
    %v5319 = vunpack.c.h.b16 %v4725
    %v5320 = vunpack.c.l.b16 %v4726
    %v5321 = vunpack.c.h.b16 %v4726
    %v5322 = vunpack.c.l.b16 %v4727
    %v5323 = vunpack.c.h.b16 %v4727
    %v5324 = vunpack.c.l.b16 %v4728
    %v5325 = vunpack.c.h.b16 %v4728
    %v5326 = vunpack.c.l.b16 %v4729
    %v5327 = vunpack.c.h.b16 %v4729
    %v5328 = vunpack.c.l.b16 %v4730
    %v5329 = vunpack.c.h.b16 %v4730
    %v5330 = vunpack.c.l.b16 %v4731
    %v5331 = vunpack.c.h.b16 %v4731
    %v5332 = vunpack.c.l.b16 %v4732
    %v5333 = vunpack.c.h.b16 %v4732
    %v5334 = vunpack.c.l.b16 %v4733
    %v5335 = vunpack.c.h.b16 %v4733
    %v5336 = vunpack.c.l.b16 %v4734
    %v5337 = vunpack.c.h.b16 %v4734
    %v5338 = vunpack.c.l.b16 %v4735
    %v5339 = vunpack.c.h.b16 %v4735
    %v5340 = vunpack.c.l.b16 %v4736
    %v5341 = vunpack.c.h.b16 %v4736
    %v5342 = vunpack.c.l.b16 %v4737
    %v5343 = vunpack.c.h.b16 %v4737
    %v5344 = vunpack.c.l.b16 %v4738
    %v5345 = vunpack.c.h.b16 %v4738
    %v5346 = vunpack.c.l.b16 %v4739
    %v5347 = vunpack.c.h.b16 %v4739
    %v5348 = vunpack.c.l.b16 %v4740
    %v5349 = vunpack.c.h.b16 %v4740
    %v5350 = vunpack.c.l.b16 %v4741
    %v5351 = vunpack.c.h.b16 %v4741
    %v5352 = vunpack.c.l.b16 %v4742
    %v5353 = vunpack.c.h.b16 %v4742
    %v5354 = vunpack.c.l.b16 %v4743
    %v5355 = vunpack.c.h.b16 %v4743
    %v5356 = vunpack.c.l.b16 %v4744
    %v5357 = vunpack.c.h.b16 %v4744
    %v5358 = vunpack.c.l.b16 %v4745
    %v5359 = vunpack.c.h.b16 %v4745
    %v5360 = vunpack.c.l.b16 %v4746
    %v5361 = vunpack.c.h.b16 %v4746
    %v5362 = vunpack.c.l.b16 %v4747
    %v5363 = vunpack.c.h.b16 %v4747
    %v5364 = vunpack.c.l.b16 %v4748
    %v5365 = vunpack.c.h.b16 %v4748
    %v5366 = vunpack.c.l.b16 %v4749
    %v5367 = vunpack.c.h.b16 %v4749
    %v5368 = vunpack.c.l.b16 %v4750
    %v5369 = vunpack.c.h.b16 %v4750
    %v5370 = vunpack.c.l.b16 %v4751
    %v5371 = vunpack.c.h.b16 %v4751
    %v5372 = vunpack.c.l.b16 %v4752
    %v5373 = vunpack.c.h.b16 %v4752
    %v5374 = vunpack.c.l.b16 %v4753
    %v5375 = vunpack.c.h.b16 %v4753
    %v5376 = vunpack.c.l.b16 %v4754
    %v5377 = vunpack.c.h.b16 %v4754
    %v5378 = vunpack.c.l.b16 %v4755
    %v5379 = vunpack.c.h.b16 %v4755
    %v5380 = vunpack.c.l.b16 %v4756
    %v5381 = vunpack.c.h.b16 %v4756
    %v5382 = vunpack.c.l.b16 %v4757
    %v5383 = vunpack.c.h.b16 %v4757
    %v5384 = vunpack.c.l.b16 %v4758
    %v5385 = vunpack.c.h.b16 %v4758
    %v5386 = vunpack.c.l.b16 %v4759
    %v5387 = vunpack.c.h.b16 %v4759
    %v5388 = vunpack.c.l.b16 %v4760
    %v5389 = vunpack.c.h.b16 %v4760
    %v5390 = vunpack.c.l.b16 %v4761
    %v5391 = vunpack.c.h.b16 %v4761
    %v5392 = vunpack.c.l.b16 %v4762
    %v5393 = vunpack.c.h.b16 %v4762
    %v5394 = vunpack.c.l.b16 %v4763
    %v5395 = vunpack.c.h.b16 %v4763
    %v5396 = vunpack.c.l.b16 %v4764
    %v5397 = vunpack.c.h.b16 %v4764
    %v5398 = vunpack.c.l.b16 %v4765
    %v5399 = vunpack.c.h.b16 %v4765
    %v5400 = vunpack.c.l.b16 %v4766
    %v5401 = vunpack.c.h.b16 %v4766
    %v5402 = vunpack.c.l.b16 %v4767
    %v5403 = vunpack.c.h.b16 %v4767
    %v5404 = vunpack.c.l.b16 %v4768
    %v5405 = vunpack.c.h.b16 %v4768
    %v5406 = vunpack.c.l.b16 %v4769
    %v5407 = vunpack.c.h.b16 %v4769
    %v5408 = vunpack.c.l.b16 %v4770
    %v5409 = vunpack.c.h.b16 %v4770
    %v5410 = vunpack.c.l.b16 %v4771
    %v5411 = vunpack.c.h.b16 %v4771
    %v5412 = vunpack.c.l.b16 %v4772
    %v5413 = vunpack.c.h.b16 %v4772
    %v5414 = vunpack.c.l.b16 %v4773
    %v5415 = vunpack.c.h.b16 %v4773
    %v5416 = vunpack.c.l.b16 %v4774
    %v5417 = vunpack.c.h.b16 %v4774
    %v5418 = vunpack.c.l.b16 %v4775
    %v5419 = vunpack.c.h.b16 %v4775
    %v5420 = vunpack.c.l.b16 %v4776
    %v5421 = vunpack.c.h.b16 %v4776
    %v5422 = vunpack.c.l.b16 %v4777
    %v5423 = vunpack.c.h.b16 %v4777
    %v5424 = vunpack.c.l.b16 %v4778
    %v5425 = vunpack.c.h.b16 %v4778
    %v5426 = vunpack.c.l.b16 %v4779
    %v5427 = vunpack.c.h.b16 %v4779
    %v5428 = vunpack.c.l.b16 %v4780
    %v5429 = vunpack.c.h.b16 %v4780
    %v5430 = vunpack.c.l.b16 %v4781
    %v5431 = vunpack.c.h.b16 %v4781
    %v5432 = vunpack.c.l.b16 %v4782
    %v5433 = vunpack.c.h.b16 %v4782
    %v5434 = vunpack.c.l.b16 %v4783
    %v5435 = vunpack.c.h.b16 %v4783
    %v5436 = vunpack.c.l.b16 %v4784
    %v5437 = vunpack.c.h.b16 %v4784
    %v5438 = vunpack.c.l.b16 %v4785
    %v5439 = vunpack.c.h.b16 %v4785
    %v5440 = vunpack.c.l.b16 %v4786
    %v5441 = vunpack.c.h.b16 %v4786
    %v5442 = vunpack.c.l.b16 %v4787
    %v5443 = vunpack.c.h.b16 %v4787
    %v5444 = vunpack.c.l.b16 %v4788
    %v5445 = vunpack.c.h.b16 %v4788
    %v5446 = vunpack.c.l.b16 %v4789
    %v5447 = vunpack.c.h.b16 %v4789
    %v5448 = vunpack.c.l.b16 %v4790
    %v5449 = vunpack.c.h.b16 %v4790
    %v5450 = vunpack.c.l.b16 %v4791
    %v5451 = vunpack.c.h.b16 %v4791
    %v5452 = vunpack.c.l.b16 %v4792
    %v5453 = vunpack.c.h.b16 %v4792
    %v5454 = vunpack.c.l.b16 %v4793
    %v5455 = vunpack.c.h.b16 %v4793
    %v5456 = vunpack.c.l.b16 %v4794
    %v5457 = vunpack.c.h.b16 %v4794
    %v5458 = vunpack.c.l.b16 %v4795
    %v5459 = vunpack.c.h.b16 %v4795
    %v5460 = vunpack.c.l.b16 %v4796
    %v5461 = vunpack.c.h.b16 %v4796
    %v5462 = vunpack.c.l.b16 %v4797
    %v5463 = vunpack.c.h.b16 %v4797
    %v5464 = vunpack.c.l.b16 %v4798
    %v5465 = vunpack.c.h.b16 %v4798
    %v5466 = vunpack.c.l.b16 %v4799
    %v5467 = vunpack.c.h.b16 %v4799
    %v5468 = vunpack.c.l.b16 %v4800
    %v5469 = vunpack.c.h.b16 %v4800
    %v5470 = vunpack.c.l.b16 %v4801
    %v5471 = vunpack.c.h.b16 %v4801
    %v5472 = vunpack.c.l.b16 %v4802
    %v5473 = vunpack.c.h.b16 %v4802
    %v5474 = vunpack.c.l.b16 %v4803
    %v5475 = vunpack.c.h.b16 %v4803
    %v5476 = vunpack.c.l.b16 %v4804
    %v5477 = vunpack.c.h.b16 %v4804
    %v5478 = vunpack.c.l.b16 %v4805
    %v5479 = vunpack.c.h.b16 %v4805
    %v5480 = vunpack.c.l.b16 %v4806
    %v5481 = vunpack.c.h.b16 %v4806
    %v5482 = vunpack.c.l.b16 %v4807
    %v5483 = vunpack.c.h.b16 %v4807
    %v5484 = vunpack.c.l.b16 %v4808
    %v5485 = vunpack.c.h.b16 %v4808
    %v5486 = vunpack.c.l.b16 %v4809
    %v5487 = vunpack.c.h.b16 %v4809
    %v5488 = vunpack.c.l.b16 %v4810
    %v5489 = vunpack.c.h.b16 %v4810
    %v5490 = vunpack.c.l.b16 %v4811
    %v5491 = vunpack.c.h.b16 %v4811
    %v5492 = vunpack.c.l.b16 %v4812
    %v5493 = vunpack.c.h.b16 %v4812
    %v5494 = vunpack.c.l.b16 %v4813
    %v5495 = vunpack.c.h.b16 %v4813
    %v5496 = vunpack.c.l.b16 %v4814
    %v5497 = vunpack.c.h.b16 %v4814
    %v5498 = vunpack.c.l.b16 %v4815
    %v5499 = vunpack.c.h.b16 %v4815
    %v5500 = vunpack.c.l.b16 %v4816
    %v5501 = vunpack.c.h.b16 %v4816
    %v5502 = vunpack.c.l.b16 %v4817
    %v5503 = vunpack.c.h.b16 %v4817
    %v5504 = vunpack.c.l.b16 %v4818
    %v5505 = vunpack.c.h.b16 %v4818
    %v5506 = vunpack.c.l.b16 %v4819
    %v5507 = vunpack.c.h.b16 %v4819
    %v5508 = vunpack.c.l.b16 %v4820
    %v5509 = vunpack.c.h.b16 %v4820
    %v5510 = vunpack.c.l.b16 %v4821
    %v5511 = vunpack.c.h.b16 %v4821
    %v5512 = vunpack.c.l.b16 %v4822
    %v5513 = vunpack.c.h.b16 %v4822
    %v5514 = vunpack.c.l.b16 %v4823
    %v5515 = vunpack.c.h.b16 %v4823
    %v5516 = vunpack.c.l.b16 %v4824
    %v5517 = vunpack.c.h.b16 %v4824
    %v5518 = vunpack.c.l.b16 %v4825
    %v5519 = vunpack.c.h.b16 %v4825
    %v5520 = vunpack.c.l.b16 %v4826
    %v5521 = vunpack.c.h.b16 %v4826
    %v5522 = vunpack.c.l.b16 %v4827
    %v5523 = vunpack.c.h.b16 %v4827
    %v5524 = vunpack.c.l.b16 %v4828
    %v5525 = vunpack.c.h.b16 %v4828
    %v5526 = vunpack.c.l.b16 %v4829
    %v5527 = vunpack.c.h.b16 %v4829
    %v5528 = vunpack.c.l.b16 %v4830
    %v5529 = vunpack.c.h.b16 %v4830
    %v5530 = vunpack.c.l.b16 %v4831
    %v5531 = vunpack.c.h.b16 %v4831
    %v5532 = vunpack.c.l.b16 %v4832
    %v5533 = vunpack.c.h.b16 %v4832
    %v5534 = vunpack.c.l.b16 %v4833
    %v5535 = vunpack.c.h.b16 %v4833
    %v5536 = vunpack.c.l.b16 %v4834
    %v5537 = vunpack.c.h.b16 %v4834
    %v5538 = vunpack.c.l.b16 %v4835
    %v5539 = vunpack.c.h.b16 %v4835
    %v5540 = vunpack.c.l.b16 %v4836
    %v5541 = vunpack.c.h.b16 %v4836
    %v5542 = vunpack.c.l.b16 %v4837
    %v5543 = vunpack.c.h.b16 %v4837
    %v5544 = vunpack.c.l.b16 %v4838
    %v5545 = vunpack.c.h.b16 %v4838
    %v5546 = vunpack.c.l.b16 %v4839
    %v5547 = vunpack.c.h.b16 %v4839
    %v5548 = vunpack.c.l.b16 %v4840
    %v5549 = vunpack.c.h.b16 %v4840
    %v5550 = vunpack.c.l.b16 %v4841
    %v5551 = vunpack.c.h.b16 %v4841
    %v5552 = vunpack.c.l.b16 %v4842
    %v5553 = vunpack.c.h.b16 %v4842
    %v5554 = vunpack.c.l.b16 %v4843
    %v5555 = vunpack.c.h.b16 %v4843
    %v5556 = vunpack.c.l.b16 %v4844
    %v5557 = vunpack.c.h.b16 %v4844
    %v5558 = vunpack.c.l.b16 %v4845
    %v5559 = vunpack.c.h.b16 %v4845
    %v5560 = vunpack.c.l.b16 %v4846
    %v5561 = vunpack.c.h.b16 %v4846
    %v5562 = vunpack.c.l.b16 %v4847
    %v5563 = vunpack.c.h.b16 %v4847
    %v5564 = vunpack.c.l.b16 %v4848
    %v5565 = vunpack.c.h.b16 %v4848
    %v5566 = vunpack.c.l.b16 %v4849
    %v5567 = vunpack.c.h.b16 %v4849
    %v5568 = vunpack.c.l.b16 %v4850
    %v5569 = vunpack.c.h.b16 %v4850
    %v5570 = vunpack.c.l.b16 %v4851
    %v5571 = vunpack.c.h.b16 %v4851
    %v5572 = vunpack.c.l.b16 %v4852
    %v5573 = vunpack.c.h.b16 %v4852
    %v5574 = vunpack.c.l.b16 %v4853
    %v5575 = vunpack.c.h.b16 %v4853
    %v5576 = vunpack.c.l.b16 %v4854
    %v5577 = vunpack.c.h.b16 %v4854
    %v5578 = vunpack.c.l.b16 %v4855
    %v5579 = vunpack.c.h.b16 %v4855
    %v5580 = vunpack.c.l.b16 %v4856
    %v5581 = vunpack.c.h.b16 %v4856
    %v5582 = vunpack.c.l.b16 %v4857
    %v5583 = vunpack.c.h.b16 %v4857
    %v5584 = vunpack.c.l.b16 %v4858
    %v5585 = vunpack.c.h.b16 %v4858
    %v5586 = vunpack.c.l.b16 %v4859
    %v5587 = vunpack.c.h.b16 %v4859
    %v5588 = vunpack.c.l.b16 %v4860
    %v5589 = vunpack.c.h.b16 %v4860
    %v5590 = vunpack.c.l.b16 %v4861
    %v5591 = vunpack.c.h.b16 %v4861
    %v5592 = vunpack.c.l.b16 %v4862
    %v5593 = vunpack.c.h.b16 %v4862
    %v5594 = vunpack.c.l.b16 %v4863
    %v5595 = vunpack.c.h.b16 %v4863
    %v5596 = vunpack.c.l.b16 %v4864
    %v5597 = vunpack.c.h.b16 %v4864
    %v5598 = vunpack.c.l.b16 %v4865
    %v5599 = vunpack.c.h.b16 %v4865
    %v5600 = vunpack.c.l.b16 %v4866
    %v5601 = vunpack.c.h.b16 %v4866
    %v5602 = vunpack.c.l.b16 %v4867
    %v5603 = vunpack.c.h.b16 %v4867
    %v5604 = vunpack.c.l.b16 %v4868
    %v5605 = vunpack.c.h.b16 %v4868
    %v5606 = vunpack.c.l.b16 %v4869
    %v5607 = vunpack.c.h.b16 %v4869
    %v5608 = vunpack.c.l.b16 %v4870
    %v5609 = vunpack.c.h.b16 %v4870
    %v5610 = vunpack.c.l.b16 %v4871
    %v5611 = vunpack.c.h.b16 %v4871
    %v5612 = vunpack.c.l.b16 %v4872
    %v5613 = vunpack.c.h.b16 %v4872
    %v5614 = vunpack.c.l.b16 %v4873
    %v5615 = vunpack.c.h.b16 %v4873
    %v5616 = vunpack.c.l.b16 %v4874
    %v5617 = vunpack.c.h.b16 %v4874
    %v5618 = vunpack.c.l.b16 %v4875
    %v5619 = vunpack.c.h.b16 %v4875
    %v5620 = vunpack.c.l.b16 %v4876
    %v5621 = vunpack.c.h.b16 %v4876
    %v5622 = vunpack.c.l.b16 %v4877
    %v5623 = vunpack.c.h.b16 %v4877
    %v5624 = vunpack.c.l.b16 %v4878
    %v5625 = vunpack.c.h.b16 %v4878
    %v5626 = vunpack.c.l.b16 %v4879
    %v5627 = vunpack.c.h.b16 %v4879
    %v5628 = vunpack.c.l.b16 %v4880
    %v5629 = vunpack.c.h.b16 %v4880
    %v5630 = vunpack.c.l.b16 %v4881
    %v5631 = vunpack.c.h.b16 %v4881
    %v5632 = vunpack.c.l.b16 %v4882
    %v5633 = vunpack.c.h.b16 %v4882
    %v5634 = vunpack.c.l.b16 %v4883
    %v5635 = vunpack.c.h.b16 %v4883
    %v5636 = vunpack.c.l.b16 %v4884
    %v5637 = vunpack.c.h.b16 %v4884
    %v5638 = vunpack.c.l.b16 %v4885
    %v5639 = vunpack.c.h.b16 %v4885
    %v5640 = vunpack.c.l.b16 %v4886
    %v5641 = vunpack.c.h.b16 %v4886
    %v5642 = vunpack.c.l.b16 %v4887
    %v5643 = vunpack.c.h.b16 %v4887
    %v5644 = vunpack.c.l.b16 %v4888
    %v5645 = vunpack.c.h.b16 %v4888
    %v5646 = vunpack.c.l.b16 %v4889
    %v5647 = vunpack.c.h.b16 %v4889
    %v5648 = vunpack.c.l.b16 %v4890
    %v5649 = vunpack.c.h.b16 %v4890
    %v5650 = vunpack.c.l.b16 %v4891
    %v5651 = vunpack.c.h.b16 %v4891
    %v5652 = vunpack.c.l.b16 %v4892
    %v5653 = vunpack.c.h.b16 %v4892
    %v5654 = vunpack.c.l.b16 %v4893
    %v5655 = vunpack.c.h.b16 %v4893
    %v5656 = vunpack.c.l.b16 %v4894
    %v5657 = vunpack.c.h.b16 %v4894
    %v5658 = vunpack.c.l.b16 %v4895
    %v5659 = vunpack.c.h.b16 %v4895
    %v5660 = vunpack.c.l.b16 %v4896
    %v5661 = vunpack.c.h.b16 %v4896
    %v5662 = vunpack.c.l.b16 %v4897
    %v5663 = vunpack.c.h.b16 %v4897
    %v5664 = vunpack.c.l.b16 %v4898
    %v5665 = vunpack.c.h.b16 %v4898
    %v5666 = vunpack.c.l.b16 %v4899
    %v5667 = vunpack.c.h.b16 %v4899
    %v5668 = vunpack.c.l.b16 %v4900
    %v5669 = vunpack.c.h.b16 %v4900
    %v5670 = vunpack.c.l.b16 %v4901
    %v5671 = vunpack.c.h.b16 %v4901
    %v5672 = vunpack.c.l.b16 %v4902
    %v5673 = vunpack.c.h.b16 %v4902
    %v5674 = vunpack.c.l.b16 %v4903
    %v5675 = vunpack.c.h.b16 %v4903
    %v5676 = vunpack.c.l.b16 %v4904
    %v5677 = vunpack.c.h.b16 %v4904
    %v5678 = vunpack.c.l.b16 %v4905
    %v5679 = vunpack.c.h.b16 %v4905
    %v5680 = vunpack.c.l.b16 %v4906
    %v5681 = vunpack.c.h.b16 %v4906
    %v5682 = vunpack.c.l.b16 %v4907
    %v5683 = vunpack.c.h.b16 %v4907
    %v5684 = vunpack.c.l.b16 %v4908
    %v5685 = vunpack.c.h.b16 %v4908
    %v5686 = vunpack.c.l.b16 %v4909
    %v5687 = vunpack.c.h.b16 %v4909
    %v5688 = vunpack.c.l.b16 %v4910
    %v5689 = vunpack.c.h.b16 %v4910
    %v5690 = vunpack.c.l.b16 %v4911
    %v5691 = vunpack.c.h.b16 %v4911
    %v5692 = vunpack.c.l.b16 %v4912
    %v5693 = vunpack.c.h.b16 %v4912
    %v5694 = vunpack.c.l.b16 %v4913
    %v5695 = vunpack.c.h.b16 %v4913
    %v5696 = vunpack.c.l.b16 %v4914
    %v5697 = vunpack.c.h.b16 %v4914
    %v5698 = vunpack.c.l.b16 %v4915
    %v5699 = vunpack.c.h.b16 %v4915
    %v5700 = vunpack.c.l.b16 %v4916
    %v5701 = vunpack.c.h.b16 %v4916
    %v5702 = vunpack.c.l.b16 %v4917
    %v5703 = vunpack.c.h.b16 %v4917
    %v5704 = vunpack.c.l.b16 %v4918
    %v5705 = vunpack.c.h.b16 %v4918
    %v5706 = vunpack.c.l.b16 %v4919
    %v5707 = vunpack.c.h.b16 %v4919
    %v5708 = vunpack.c.l.b16 %v4920
    %v5709 = vunpack.c.h.b16 %v4920
    %v5710 = vunpack.c.l.b16 %v4921
    %v5711 = vunpack.c.h.b16 %v4921
    %v5712 = vpack.c.b16 %v5204, %v5200
    %v5713 = vpack.c.b16 %v5205, %v5201
    %v5714 = vpack.c.b16 %v5206, %v5202
    %v5715 = vpack.c.b16 %v5207, %v5203
    %v5716 = vpack.c.b16 %v5212, %v5208
    %v5717 = vpack.c.b16 %v5213, %v5209
    %v5718 = vpack.c.b16 %v5214, %v5210
    %v5719 = vpack.c.b16 %v5215, %v5211
    %v5720 = vpack.c.b16 %v5220, %v5216
    %v5721 = vpack.c.b16 %v5221, %v5217
    %v5722 = vpack.c.b16 %v5222, %v5218
    %v5723 = vpack.c.b16 %v5223, %v5219
    %v5724 = vpack.c.b16 %v5228, %v5224
    %v5725 = vpack.c.b16 %v5229, %v5225
    %v5726 = vpack.c.b16 %v5230, %v5226
    %v5727 = vpack.c.b16 %v5231, %v5227
    %v5728 = vpack.c.b16 %v5236, %v5232
    %v5729 = vpack.c.b16 %v5237, %v5233
    %v5730 = vpack.c.b16 %v5238, %v5234
    %v5731 = vpack.c.b16 %v5239, %v5235
    %v5732 = vpack.c.b16 %v5244, %v5240
    %v5733 = vpack.c.b16 %v5245, %v5241
    %v5734 = vpack.c.b16 %v5246, %v5242
    %v5735 = vpack.c.b16 %v5247, %v5243
    %v5736 = vpack.c.b16 %v5252, %v5248
    %v5737 = vpack.c.b16 %v5253, %v5249
    %v5738 = vpack.c.b16 %v5254, %v5250
    %v5739 = vpack.c.b16 %v5255, %v5251
    %v5740 = vpack.c.b16 %v5260, %v5256
    %v5741 = vpack.c.b16 %v5261, %v5257
    %v5742 = vpack.c.b16 %v5262, %v5258
    %v5743 = vpack.c.b16 %v5263, %v5259
    %v5744 = vpack.c.b16 %v5268, %v5264
    %v5745 = vpack.c.b16 %v5269, %v5265
    %v5746 = vpack.c.b16 %v5270, %v5266
    %v5747 = vpack.c.b16 %v5271, %v5267
    %v5748 = vpack.c.b16 %v5276, %v5272
    %v5749 = vpack.c.b16 %v5277, %v5273
    %v5750 = vpack.c.b16 %v5278, %v5274
    %v5751 = vpack.c.b16 %v5279, %v5275
    %v5752 = vpack.c.b16 %v5284, %v5280
    %v5753 = vpack.c.b16 %v5285, %v5281
    %v5754 = vpack.c.b16 %v5286, %v5282
    %v5755 = vpack.c.b16 %v5287, %v5283
    %v5756 = vpack.c.b16 %v5292, %v5288
    %v5757 = vpack.c.b16 %v5293, %v5289
    %v5758 = vpack.c.b16 %v5294, %v5290
    %v5759 = vpack.c.b16 %v5295, %v5291
    %v5760 = vpack.c.b16 %v5300, %v5296
    %v5761 = vpack.c.b16 %v5301, %v5297
    %v5762 = vpack.c.b16 %v5302, %v5298
    %v5763 = vpack.c.b16 %v5303, %v5299
    %v5764 = vpack.c.b16 %v5308, %v5304
    %v5765 = vpack.c.b16 %v5309, %v5305
    %v5766 = vpack.c.b16 %v5310, %v5306
    %v5767 = vpack.c.b16 %v5311, %v5307
    %v5768 = vpack.c.b16 %v5316, %v5312
    %v5769 = vpack.c.b16 %v5317, %v5313
    %v5770 = vpack.c.b16 %v5318, %v5314
    %v5771 = vpack.c.b16 %v5319, %v5315
    %v5772 = vpack.c.b16 %v5324, %v5320
    %v5773 = vpack.c.b16 %v5325, %v5321
    %v5774 = vpack.c.b16 %v5326, %v5322
    %v5775 = vpack.c.b16 %v5327, %v5323
    %v5776 = vpack.c.b16 %v5332, %v5328
    %v5777 = vpack.c.b16 %v5333, %v5329
    %v5778 = vpack.c.b16 %v5334, %v5330
    %v5779 = vpack.c.b16 %v5335, %v5331
    %v5780 = vpack.c.b16 %v5340, %v5336
    %v5781 = vpack.c.b16 %v5341, %v5337
    %v5782 = vpack.c.b16 %v5342, %v5338
    %v5783 = vpack.c.b16 %v5343, %v5339
    %v5784 = vpack.c.b16 %v5348, %v5344
    %v5785 = vpack.c.b16 %v5349, %v5345
    %v5786 = vpack.c.b16 %v5350, %v5346
    %v5787 = vpack.c.b16 %v5351, %v5347
    %v5788 = vpack.c.b16 %v5356, %v5352
    %v5789 = vpack.c.b16 %v5357, %v5353
    %v5790 = vpack.c.b16 %v5358, %v5354
    %v5791 = vpack.c.b16 %v5359, %v5355
    %v5792 = vpack.c.b16 %v5364, %v5360
    %v5793 = vpack.c.b16 %v5365, %v5361
    %v5794 = vpack.c.b16 %v5366, %v5362
    %v5795 = vpack.c.b16 %v5367, %v5363
    %v5796 = vpack.c.b16 %v5372, %v5368
    %v5797 = vpack.c.b16 %v5373, %v5369
    %v5798 = vpack.c.b16 %v5374, %v5370
    %v5799 = vpack.c.b16 %v5375, %v5371
    %v5800 = vpack.c.b16 %v5380, %v5376
    %v5801 = vpack.c.b16 %v5381, %v5377
    %v5802 = vpack.c.b16 %v5382, %v5378
    %v5803 = vpack.c.b16 %v5383, %v5379
    %v5804 = vpack.c.b16 %v5388, %v5384
    %v5805 = vpack.c.b16 %v5389, %v5385
    %v5806 = vpack.c.b16 %v5390, %v5386
    %v5807 = vpack.c.b16 %v5391, %v5387
    %v5808 = vpack.c.b16 %v5396, %v5392
    %v5809 = vpack.c.b16 %v5397, %v5393
    %v5810 = vpack.c.b16 %v5398, %v5394
    %v5811 = vpack.c.b16 %v5399, %v5395
    %v5812 = vpack.c.b16 %v5404, %v5400
    %v5813 = vpack.c.b16 %v5405, %v5401
    %v5814 = vpack.c.b16 %v5406, %v5402
    %v5815 = vpack.c.b16 %v5407, %v5403
    %v5816 = vpack.c.b16 %v5412, %v5408
    %v5817 = vpack.c.b16 %v5413, %v5409
    %v5818 = vpack.c.b16 %v5414, %v5410
    %v5819 = vpack.c.b16 %v5415, %v5411
    %v5820 = vpack.c.b16 %v5420, %v5416
    %v5821 = vpack.c.b16 %v5421, %v5417
    %v5822 = vpack.c.b16 %v5422, %v5418
    %v5823 = vpack.c.b16 %v5423, %v5419
    %v5824 = vpack.c.b16 %v5428, %v5424
    %v5825 = vpack.c.b16 %v5429, %v5425
    %v5826 = vpack.c.b16 %v5430, %v5426
    %v5827 = vpack.c.b16 %v5431, %v5427
    %v5828 = vpack.c.b16 %v5436, %v5432
    %v5829 = vpack.c.b16 %v5437, %v5433
    %v5830 = vpack.c.b16 %v5438, %v5434
    %v5831 = vpack.c.b16 %v5439, %v5435
    %v5832 = vpack.c.b16 %v5444, %v5440
    %v5833 = vpack.c.b16 %v5445, %v5441
    %v5834 = vpack.c.b16 %v5446, %v5442
    %v5835 = vpack.c.b16 %v5447, %v5443
    %v5836 = vpack.c.b16 %v5452, %v5448
    %v5837 = vpack.c.b16 %v5453, %v5449
    %v5838 = vpack.c.b16 %v5454, %v5450
    %v5839 = vpack.c.b16 %v5455, %v5451
    %v5840 = vpack.c.b16 %v5460, %v5456
    %v5841 = vpack.c.b16 %v5461, %v5457
    %v5842 = vpack.c.b16 %v5462, %v5458
    %v5843 = vpack.c.b16 %v5463, %v5459
    %v5844 = vpack.c.b16 %v5468, %v5464
    %v5845 = vpack.c.b16 %v5469, %v5465
    %v5846 = vpack.c.b16 %v5470, %v5466
    %v5847 = vpack.c.b16 %v5471, %v5467
    %v5848 = vpack.c.b16 %v5476, %v5472
    %v5849 = vpack.c.b16 %v5477, %v5473
    %v5850 = vpack.c.b16 %v5478, %v5474
    %v5851 = vpack.c.b16 %v5479, %v5475
    %v5852 = vpack.c.b16 %v5484, %v5480
    %v5853 = vpack.c.b16 %v5485, %v5481
    %v5854 = vpack.c.b16 %v5486, %v5482
    %v5855 = vpack.c.b16 %v5487, %v5483
    %v5856 = vpack.c.b16 %v5492, %v5488
    %v5857 = vpack.c.b16 %v5493, %v5489
    %v5858 = vpack.c.b16 %v5494, %v5490
    %v5859 = vpack.c.b16 %v5495, %v5491
    %v5860 = vpack.c.b16 %v5500, %v5496
    %v5861 = vpack.c.b16 %v5501, %v5497
    %v5862 = vpack.c.b16 %v5502, %v5498
    %v5863 = vpack.c.b16 %v5503, %v5499
    %v5864 = vpack.c.b16 %v5508, %v5504
    %v5865 = vpack.c.b16 %v5509, %v5505
    %v5866 = vpack.c.b16 %v5510, %v5506
    %v5867 = vpack.c.b16 %v5511, %v5507
    %v5868 = vpack.c.b16 %v5516, %v5512
    %v5869 = vpack.c.b16 %v5517, %v5513
    %v5870 = vpack.c.b16 %v5518, %v5514
    %v5871 = vpack.c.b16 %v5519, %v5515
    %v5872 = vpack.c.b16 %v5524, %v5520
    %v5873 = vpack.c.b16 %v5525, %v5521
    %v5874 = vpack.c.b16 %v5526, %v5522
    %v5875 = vpack.c.b16 %v5527, %v5523
    %v5876 = vpack.c.b16 %v5532, %v5528
    %v5877 = vpack.c.b16 %v5533, %v5529
    %v5878 = vpack.c.b16 %v5534, %v5530
    %v5879 = vpack.c.b16 %v5535, %v5531
    %v5880 = vpack.c.b16 %v5540, %v5536
    %v5881 = vpack.c.b16 %v5541, %v5537
    %v5882 = vpack.c.b16 %v5542, %v5538
    %v5883 = vpack.c.b16 %v5543, %v5539
    %v5884 = vpack.c.b16 %v5548, %v5544
    %v5885 = vpack.c.b16 %v5549, %v5545
    %v5886 = vpack.c.b16 %v5550, %v5546
    %v5887 = vpack.c.b16 %v5551, %v5547
    %v5888 = vpack.c.b16 %v5556, %v5552
    %v5889 = vpack.c.b16 %v5557, %v5553
    %v5890 = vpack.c.b16 %v5558, %v5554
    %v5891 = vpack.c.b16 %v5559, %v5555
    %v5892 = vpack.c.b16 %v5564, %v5560
    %v5893 = vpack.c.b16 %v5565, %v5561
    %v5894 = vpack.c.b16 %v5566, %v5562
    %v5895 = vpack.c.b16 %v5567, %v5563
    %v5896 = vpack.c.b16 %v5572, %v5568
    %v5897 = vpack.c.b16 %v5573, %v5569
    %v5898 = vpack.c.b16 %v5574, %v5570
    %v5899 = vpack.c.b16 %v5575, %v5571
    %v5900 = vpack.c.b16 %v5580, %v5576
    %v5901 = vpack.c.b16 %v5581, %v5577
    %v5902 = vpack.c.b16 %v5582, %v5578
    %v5903 = vpack.c.b16 %v5583, %v5579
    %v5904 = vpack.c.b16 %v5588, %v5584
    %v5905 = vpack.c.b16 %v5589, %v5585
    %v5906 = vpack.c.b16 %v5590, %v5586
    %v5907 = vpack.c.b16 %v5591, %v5587
    %v5908 = vpack.c.b16 %v5596, %v5592
    %v5909 = vpack.c.b16 %v5597, %v5593
    %v5910 = vpack.c.b16 %v5598, %v5594
    %v5911 = vpack.c.b16 %v5599, %v5595
    %v5912 = vpack.c.b16 %v5604, %v5600
    %v5913 = vpack.c.b16 %v5605, %v5601
    %v5914 = vpack.c.b16 %v5606, %v5602
    %v5915 = vpack.c.b16 %v5607, %v5603
    %v5916 = vpack.c.b16 %v5612, %v5608
    %v5917 = vpack.c.b16 %v5613, %v5609
    %v5918 = vpack.c.b16 %v5614, %v5610
    %v5919 = vpack.c.b16 %v5615, %v5611
    %v5920 = vpack.c.b16 %v5620, %v5616
    %v5921 = vpack.c.b16 %v5621, %v5617
    %v5922 = vpack.c.b16 %v5622, %v5618
    %v5923 = vpack.c.b16 %v5623, %v5619
    %v5924 = vpack.c.b16 %v5628, %v5624
    %v5925 = vpack.c.b16 %v5629, %v5625
    %v5926 = vpack.c.b16 %v5630, %v5626
    %v5927 = vpack.c.b16 %v5631, %v5627
    %v5928 = vpack.c.b16 %v5636, %v5632
    %v5929 = vpack.c.b16 %v5637, %v5633
    %v5930 = vpack.c.b16 %v5638, %v5634
    %v5931 = vpack.c.b16 %v5639, %v5635
    %v5932 = vpack.c.b16 %v5644, %v5640
    %v5933 = vpack.c.b16 %v5645, %v5641
    %v5934 = vpack.c.b16 %v5646, %v5642
    %v5935 = vpack.c.b16 %v5647, %v5643
    %v5936 = vpack.c.b16 %v5652, %v5648
    %v5937 = vpack.c.b16 %v5653, %v5649
    %v5938 = vpack.c.b16 %v5654, %v5650
    %v5939 = vpack.c.b16 %v5655, %v5651
    %v5940 = vpack.c.b16 %v5660, %v5656
    %v5941 = vpack.c.b16 %v5661, %v5657
    %v5942 = vpack.c.b16 %v5662, %v5658
    %v5943 = vpack.c.b16 %v5663, %v5659
    %v5944 = vpack.c.b16 %v5668, %v5664
    %v5945 = vpack.c.b16 %v5669, %v5665
    %v5946 = vpack.c.b16 %v5670, %v5666
    %v5947 = vpack.c.b16 %v5671, %v5667
    %v5948 = vpack.c.b16 %v5676, %v5672
    %v5949 = vpack.c.b16 %v5677, %v5673
    %v5950 = vpack.c.b16 %v5678, %v5674
    %v5951 = vpack.c.b16 %v5679, %v5675
    %v5952 = vpack.c.b16 %v5684, %v5680
    %v5953 = vpack.c.b16 %v5685, %v5681
    %v5954 = vpack.c.b16 %v5686, %v5682
    %v5955 = vpack.c.b16 %v5687, %v5683
    %v5956 = vpack.c.b16 %v5692, %v5688
    %v5957 = vpack.c.b16 %v5693, %v5689
    %v5958 = vpack.c.b16 %v5694, %v5690
    %v5959 = vpack.c.b16 %v5695, %v5691
    %v5960 = vpack.c.b16 %v5700, %v5696
    %v5961 = vpack.c.b16 %v5701, %v5697
    %v5962 = vpack.c.b16 %v5702, %v5698
    %v5963 = vpack.c.b16 %v5703, %v5699
    %v5964 = vpack.c.b16 %v5708, %v5704
    %v5965 = vpack.c.b16 %v5709, %v5705
    %v5966 = vpack.c.b16 %v5710, %v5706
    %v5967 = vpack.c.b16 %v5711, %v5707
    %6224 = vmatprep.subr.bf16.mxu0 %v5713
    %6225 = vmatpush1.bf16.msra.mxu0 %v5712
    %6226 = vmatprep.subr.bf16.mxu0 %v5717
    %6227 = vmatpush1.bf16.msra.mxu0 %v5716
    %6228 = vmatprep.subr.bf16.mxu0 %v5721
    %6229 = vmatpush1.bf16.msra.mxu0 %v5720
    %6230 = vmatprep.subr.bf16.mxu0 %v5725
    %6231 = vmatpush1.bf16.msra.mxu0 %v5724
    %6232 = vmatprep.subr.bf16.mxu0 %v5729
    %6233 = vmatpush1.bf16.msra.mxu0 %v5728
    %6234 = vmatprep.subr.bf16.mxu0 %v5733
    %6235 = vmatpush1.bf16.msra.mxu0 %v5732
    %6236 = vmatprep.subr.bf16.mxu0 %v5737
    %6237 = vmatpush1.bf16.msra.mxu0 %v5736
    %6238 = vmatprep.subr.bf16.mxu0 %v5741
    %6239 = vmatpush1.bf16.msra.mxu0 %v5740
    %6240 = vmatprep.subr.bf16.mxu0 %v5745
    %6241 = vmatpush1.bf16.msra.mxu0 %v5744
    %6242 = vmatprep.subr.bf16.mxu0 %v5749
    %6243 = vmatpush1.bf16.msra.mxu0 %v5748
    %6244 = vmatprep.subr.bf16.mxu0 %v5753
    %6245 = vmatpush1.bf16.msra.mxu0 %v5752
    %6246 = vmatprep.subr.bf16.mxu0 %v5757
    %6247 = vmatpush1.bf16.msra.mxu0 %v5756
    %6248 = vmatprep.subr.bf16.mxu0 %v5761
    %6249 = vmatpush1.bf16.msra.mxu0 %v5760
    %6250 = vmatprep.subr.bf16.mxu0 %v5765
    %6251 = vmatpush1.bf16.msra.mxu0 %v5764
    %6252 = vmatprep.subr.bf16.mxu0 %v5769
    %6253 = vmatpush1.bf16.msra.mxu0 %v5768
    %6254 = vmatprep.subr.bf16.mxu0 %v5773
    %6255 = vmatpush1.bf16.msra.mxu0 %v5772
    %6256 = vmatprep.mubr.bf16.mxu0 %v4659
    %6257 = vmatmul.mubr.bf16.gmra.mrb[0].mxu0 %v4658
    %v6258 = vpop.f32.mrb[0].mxu0
    %v6259 = vadd.f32 %v4927, %v6258
    %v6260 = vpop.f32.mrb[0].mxu0
    %v6261 = vadd.f32 %v4931, %v6260
    %v6262 = vpop.f32.mrb[0].mxu0
    %v6263 = vadd.f32 %v4927, %v6262
    %v6264 = vpop.f32.mrb[0].mxu0
    %v6265 = vadd.f32 %v4931, %v6264
    %6266 = vdwg.mxu0
    %6267 = vmatprep.subr.bf16.mxu0 %v5777
    %6268 = vmatpush1.bf16.msra.mxu0 %v5776
    %6269 = vmatprep.subr.bf16.mxu0 %v5781
    %6270 = vmatpush1.bf16.msra.mxu0 %v5780
    %6271 = vmatprep.subr.bf16.mxu0 %v5785
    %6272 = vmatpush1.bf16.msra.mxu0 %v5784
    %6273 = vmatprep.subr.bf16.mxu0 %v5789
    %6274 = vmatpush1.bf16.msra.mxu0 %v5788
    %6275 = vmatprep.subr.bf16.mxu0 %v5793
    %6276 = vmatpush1.bf16.msra.mxu0 %v5792
    %6277 = vmatprep.subr.bf16.mxu0 %v5797
    %6278 = vmatpush1.bf16.msra.mxu0 %v5796
    %6279 = vmatprep.subr.bf16.mxu0 %v5801
    %6280 = vmatpush1.bf16.msra.mxu0 %v5800
    %6281 = vmatprep.subr.bf16.mxu0 %v5805
    %6282 = vmatpush1.bf16.msra.mxu0 %v5804
    %6283 = vmatprep.subr.bf16.mxu0 %v5809
    %6284 = vmatpush1.bf16.msra.mxu0 %v5808
    %6285 = vmatprep.subr.bf16.mxu0 %v5813
    %6286 = vmatpush1.bf16.msra.mxu0 %v5812
    %6287 = vmatprep.subr.bf16.mxu0 %v5817
    %6288 = vmatpush1.bf16.msra.mxu0 %v5816
    %6289 = vmatprep.subr.bf16.mxu0 %v5821
    %6290 = vmatpush1.bf16.msra.mxu0 %v5820
    %6291 = vmatprep.subr.bf16.mxu0 %v5825
    %6292 = vmatpush1.bf16.msra.mxu0 %v5824
    %6293 = vmatprep.subr.bf16.mxu0 %v5829
    %6294 = vmatpush1.bf16.msra.mxu0 %v5828
    %6295 = vmatprep.subr.bf16.mxu0 %v5833
    %6296 = vmatpush1.bf16.msra.mxu0 %v5832
    %6297 = vmatprep.subr.bf16.mxu0 %v5837
    %6298 = vmatpush1.bf16.msra.mxu0 %v5836
    %6299 = vmatprep.mubr.bf16.mxu0 %v4661
    %6300 = vmatmul.mubr.bf16.gmra.mrb[0].mxu0 %v4660
    %v6301 = vpop.f32.mrb[0].mxu0
    %v6302 = vadd.f32 %v6259, %v6301
    %v6303 = vpop.f32.mrb[0].mxu0
    %v6304 = vadd.f32 %v6261, %v6303
    %v6305 = vpop.f32.mrb[0].mxu0
    %v6306 = vadd.f32 %v6263, %v6305
    %v6307 = vpop.f32.mrb[0].mxu0
    %v6308 = vadd.f32 %v6265, %v6307
    %6309 = vdwg.mxu0
    %6310 = vmatprep.subr.bf16.mxu0 %v5841
    %6311 = vmatpush1.bf16.msra.mxu0 %v5840
    %6312 = vmatprep.subr.bf16.mxu0 %v5845
    %6313 = vmatpush1.bf16.msra.mxu0 %v5844
    %6314 = vmatprep.subr.bf16.mxu0 %v5849
    %6315 = vmatpush1.bf16.msra.mxu0 %v5848
    %6316 = vmatprep.subr.bf16.mxu0 %v5853
    %6317 = vmatpush1.bf16.msra.mxu0 %v5852
    %6318 = vmatprep.subr.bf16.mxu0 %v5857
    %6319 = vmatpush1.bf16.msra.mxu0 %v5856
    %6320 = vmatprep.subr.bf16.mxu0 %v5861
    %6321 = vmatpush1.bf16.msra.mxu0 %v5860
    %6322 = vmatprep.subr.bf16.mxu0 %v5865
    %6323 = vmatpush1.bf16.msra.mxu0 %v5864
    %6324 = vmatprep.subr.bf16.mxu0 %v5869
    %6325 = vmatpush1.bf16.msra.mxu0 %v5868
    %6326 = vmatprep.subr.bf16.mxu0 %v5873
    %6327 = vmatpush1.bf16.msra.mxu0 %v5872
    %6328 = vmatprep.subr.bf16.mxu0 %v5877
    %6329 = vmatpush1.bf16.msra.mxu0 %v5876
    %6330 = vmatprep.subr.bf16.mxu0 %v5881
    %6331 = vmatpush1.bf16.msra.mxu0 %v5880
    %6332 = vmatprep.subr.bf16.mxu0 %v5885
    %6333 = vmatpush1.bf16.msra.mxu0 %v5884
    %6334 = vmatprep.subr.bf16.mxu0 %v5889
    %6335 = vmatpush1.bf16.msra.mxu0 %v5888
    %6336 = vmatprep.subr.bf16.mxu0 %v5893
    %6337 = vmatpush1.bf16.msra.mxu0 %v5892
    %6338 = vmatprep.subr.bf16.mxu0 %v5897
    %6339 = vmatpush1.bf16.msra.mxu0 %v5896
    %6340 = vmatprep.subr.bf16.mxu0 %v5901
    %6341 = vmatpush1.bf16.msra.mxu0 %v5900
    %6342 = vmatprep.mubr.bf16.mxu0 %v4663
    %6343 = vmatmul.mubr.bf16.gmra.mrb[0].mxu0 %v4662
    %v6344 = vpop.f32.mrb[0].mxu0
    %v6345 = vadd.f32 %v6302, %v6344
    %v6346 = vpop.f32.mrb[0].mxu0
    %v6347 = vadd.f32 %v6304, %v6346
    %v6348 = vpop.f32.mrb[0].mxu0
    %v6349 = vadd.f32 %v6306, %v6348
    %v6350 = vpop.f32.mrb[0].mxu0
    %v6351 = vadd.f32 %v6308, %v6350
    %6352 = vdwg.mxu0
    %6353 = vmatprep.subr.bf16.mxu0 %v5905
    %6354 = vmatpush1.bf16.msra.mxu0 %v5904
    %6355 = vmatprep.subr.bf16.mxu0 %v5909
    %6356 = vmatpush1.bf16.msra.mxu0 %v5908
    %6357 = vmatprep.subr.bf16.mxu0 %v5913
    %6358 = vmatpush1.bf16.msra.mxu0 %v5912
    %6359 = vmatprep.subr.bf16.mxu0 %v5917
    %6360 = vmatpush1.bf16.msra.mxu0 %v5916
    %6361 = vmatprep.subr.bf16.mxu0 %v5921
    %6362 = vmatpush1.bf16.msra.mxu0 %v5920
    %6363 = vmatprep.subr.bf16.mxu0 %v5925
    %6364 = vmatpush1.bf16.msra.mxu0 %v5924
    %6365 = vmatprep.subr.bf16.mxu0 %v5929
    %6366 = vmatpush1.bf16.msra.mxu0 %v5928
    %6367 = vmatprep.subr.bf16.mxu0 %v5933
    %6368 = vmatpush1.bf16.msra.mxu0 %v5932
    %6369 = vmatprep.subr.bf16.mxu0 %v5937
    %6370 = vmatpush1.bf16.msra.mxu0 %v5936
    %6371 = vmatprep.subr.bf16.mxu0 %v5941
    %6372 = vmatpush1.bf16.msra.mxu0 %v5940
    %6373 = vmatprep.subr.bf16.mxu0 %v5945
    %6374 = vmatpush1.bf16.msra.mxu0 %v5944
    %6375 = vmatprep.subr.bf16.mxu0 %v5949
    %6376 = vmatpush1.bf16.msra.mxu0 %v5948
    %6377 = vmatprep.subr.bf16.mxu0 %v5953
    %6378 = vmatpush1.bf16.msra.mxu0 %v5952
    %6379 = vmatprep.subr.bf16.mxu0 %v5957
    %6380 = vmatpush1.bf16.msra.mxu0 %v5956
    %6381 = vmatprep.subr.bf16.mxu0 %v5961
    %6382 = vmatpush1.bf16.msra.mxu0 %v5960
    %6383 = vmatprep.subr.bf16.mxu0 %v5965
    %6384 = vmatpush1.bf16.msra.mxu0 %v5964
    %6385 = vmatprep.mubr.bf16.mxu0 %v4665
    %6386 = vmatmul.mubr.bf16.gmra.mrb[0].mxu0 %v4664
    %v6387 = vpop.f32.mrb[0].mxu0
    %v6388 = vadd.f32 %v6345, %v6387
    %v6389 = vpop.f32.mrb[0].mxu0
    %v6390 = vadd.f32 %v6347, %v6389
    %v6391 = vpop.f32.mrb[0].mxu0
    %v6392 = vadd.f32 %v6349, %v6391
    %v6393 = vpop.f32.mrb[0].mxu0
    %v6394 = vadd.f32 %v6351, %v6393
    %6395 = vdwg.mxu0
    %6396 = vmatprep.subr.bf16.mxu0 %v5715
    %6397 = vmatpush1.bf16.msra.mxu0 %v5714
    %6398 = vmatprep.subr.bf16.mxu0 %v5719
    %6399 = vmatpush1.bf16.msra.mxu0 %v5718
    %6400 = vmatprep.subr.bf16.mxu0 %v5723
    %6401 = vmatpush1.bf16.msra.mxu0 %v5722
    %6402 = vmatprep.subr.bf16.mxu0 %v5727
    %6403 = vmatpush1.bf16.msra.mxu0 %v5726
    %6404 = vmatprep.subr.bf16.mxu0 %v5731
    %6405 = vmatpush1.bf16.msra.mxu0 %v5730
    %6406 = vmatprep.subr.bf16.mxu0 %v5735
    %6407 = vmatpush1.bf16.msra.mxu0 %v5734
    %6408 = vmatprep.subr.bf16.mxu0 %v5739
    %6409 = vmatpush1.bf16.msra.mxu0 %v5738
    %6410 = vmatprep.subr.bf16.mxu0 %v5743
    %6411 = vmatpush1.bf16.msra.mxu0 %v5742
    %6412 = vmatprep.subr.bf16.mxu0 %v5747
    %6413 = vmatpush1.bf16.msra.mxu0 %v5746
    %6414 = vmatprep.subr.bf16.mxu0 %v5751
    %6415 = vmatpush1.bf16.msra.mxu0 %v5750
    %6416 = vmatprep.subr.bf16.mxu0 %v5755
    %6417 = vmatpush1.bf16.msra.mxu0 %v5754
    %6418 = vmatprep.subr.bf16.mxu0 %v5759
    %6419 = vmatpush1.bf16.msra.mxu0 %v5758
    %6420 = vmatprep.subr.bf16.mxu0 %v5763
    %6421 = vmatpush1.bf16.msra.mxu0 %v5762
    %6422 = vmatprep.subr.bf16.mxu0 %v5767
    %6423 = vmatpush1.bf16.msra.mxu0 %v5766
    %6424 = vmatprep.subr.bf16.mxu0 %v5771
    %6425 = vmatpush1.bf16.msra.mxu0 %v5770
    %6426 = vmatprep.subr.bf16.mxu0 %v5775
    %6427 = vmatpush1.bf16.msra.mxu0 %v5774
    %6428 = vmatprep.mubr.bf16.mxu0 %v4659
    %6429 = vmatmul.mubr.bf16.gmra.mrb[0].mxu0 %v4658
    %v6430 = vpop.f32.mrb[0].mxu0
    %v6431 = vadd.f32 %v4935, %v6430
    %v6432 = vpop.f32.mrb[0].mxu0
    %v6433 = vadd.f32 %v4939, %v6432
    %v6434 = vpop.f32.mrb[0].mxu0
    %v6435 = vadd.f32 %v4935, %v6434
    %v6436 = vpop.f32.mrb[0].mxu0
    %v6437 = vadd.f32 %v4939, %v6436
    %6438 = vdwg.mxu0
    %6439 = vmatprep.subr.bf16.mxu0 %v5779
    %6440 = vmatpush1.bf16.msra.mxu0 %v5778
    %6441 = vmatprep.subr.bf16.mxu0 %v5783
    %6442 = vmatpush1.bf16.msra.mxu0 %v5782
    %6443 = vmatprep.subr.bf16.mxu0 %v5787
    %6444 = vmatpush1.bf16.msra.mxu0 %v5786
    %6445 = vmatprep.subr.bf16.mxu0 %v5791
    %6446 = vmatpush1.bf16.msra.mxu0 %v5790
    %6447 = vmatprep.subr.bf16.mxu0 %v5795
    %6448 = vmatpush1.bf16.msra.mxu0 %v5794
    %6449 = vmatprep.subr.bf16.mxu0 %v5799
    %6450 = vmatpush1.bf16.msra.mxu0 %v5798
    %6451 = vmatprep.subr.bf16.mxu0 %v5803
    %6452 = vmatpush1.bf16.msra.mxu0 %v5802
    %6453 = vmatprep.subr.bf16.mxu0 %v5807
    %6454 = vmatpush1.bf16.msra.mxu0 %v5806
    %6455 = vmatprep.subr.bf16.mxu0 %v5811
    %6456 = vmatpush1.bf16.msra.mxu0 %v5810
    %6457 = vmatprep.subr.bf16.mxu0 %v5815
    %6458 = vmatpush1.bf16.msra.mxu0 %v5814
    %6459 = vmatprep.subr.bf16.mxu0 %v5819
    %6460 = vmatpush1.bf16.msra.mxu0 %v5818
    %6461 = vmatprep.subr.bf16.mxu0 %v5823
    %6462 = vmatpush1.bf16.msra.mxu0 %v5822
    %6463 = vmatprep.subr.bf16.mxu0 %v5827
    %6464 = vmatpush1.bf16.msra.mxu0 %v5826
    %6465 = vmatprep.subr.bf16.mxu0 %v5831
    %6466 = vmatpush1.bf16.msra.mxu0 %v5830
    %6467 = vmatprep.subr.bf16.mxu0 %v5835
    %6468 = vmatpush1.bf16.msra.mxu0 %v5834
    %6469 = vmatprep.subr.bf16.mxu0 %v5839
    %6470 = vmatpush1.bf16.msra.mxu0 %v5838
    %6471 = vmatprep.mubr.bf16.mxu0 %v4661
    %6472 = vmatmul.mubr.bf16.gmra.mrb[0].mxu0 %v4660
    %v6473 = vpop.f32.mrb[0].mxu0
    %v6474 = vadd.f32 %v6431, %v6473
    %v6475 = vpop.f32.mrb[0].mxu0
    %v6476 = vadd.f32 %v6433, %v6475
    %v6477 = vpop.f32.mrb[0].mxu0
    %v6478 = vadd.f32 %v6435, %v6477
    %v6479 = vpop.f32.mrb[0].mxu0
    %v6480 = vadd.f32 %v6437, %v6479
    %6481 = vdwg.mxu0
    %6482 = vmatprep.subr.bf16.mxu0 %v5843
    %6483 = vmatpush1.bf16.msra.mxu0 %v5842
    %6484 = vmatprep.subr.bf16.mxu0 %v5847
    %6485 = vmatpush1.bf16.msra.mxu0 %v5846
    %6486 = vmatprep.subr.bf16.mxu0 %v5851
    %6487 = vmatpush1.bf16.msra.mxu0 %v5850
    %6488 = vmatprep.subr.bf16.mxu0 %v5855
    %6489 = vmatpush1.bf16.msra.mxu0 %v5854
    %6490 = vmatprep.subr.bf16.mxu0 %v5859
    %6491 = vmatpush1.bf16.msra.mxu0 %v5858
    %6492 = vmatprep.subr.bf16.mxu0 %v5863
    %6493 = vmatpush1.bf16.msra.mxu0 %v5862
    %6494 = vmatprep.subr.bf16.mxu0 %v5867
    %6495 = vmatpush1.bf16.msra.mxu0 %v5866
    %6496 = vmatprep.subr.bf16.mxu0 %v5871
    %6497 = vmatpush1.bf16.msra.mxu0 %v5870
    %6498 = vmatprep.subr.bf16.mxu0 %v5875
    %6499 = vmatpush1.bf16.msra.mxu0 %v5874
    %6500 = vmatprep.subr.bf16.mxu0 %v5879
    %6501 = vmatpush1.bf16.msra.mxu0 %v5878
    %6502 = vmatprep.subr.bf16.mxu0 %v5883
    %6503 = vmatpush1.bf16.msra.mxu0 %v5882
    %6504 = vmatprep.subr.bf16.mxu0 %v5887
    %6505 = vmatpush1.bf16.msra.mxu0 %v5886
    %6506 = vmatprep.subr.bf16.mxu0 %v5891
    %6507 = vmatpush1.bf16.msra.mxu0 %v5890
    %6508 = vmatprep.subr.bf16.mxu0 %v5895
    %6509 = vmatpush1.bf16.msra.mxu0 %v5894
    %6510 = vmatprep.subr.bf16.mxu0 %v5899
    %6511 = vmatpush1.bf16.msra.mxu0 %v5898
    %6512 = vmatprep.subr.bf16.mxu0 %v5903
    %6513 = vmatpush1.bf16.msra.mxu0 %v5902
    %6514 = vmatprep.mubr.bf16.mxu0 %v4663
    %6515 = vmatmul.mubr.bf16.gmra.mrb[0].mxu0 %v4662
    %v6516 = vpop.f32.mrb[0].mxu0
    %v6517 = vadd.f32 %v6474, %v6516
    %v6518 = vpop.f32.mrb[0].mxu0
    %v6519 = vadd.f32 %v6476, %v6518
    %v6520 = vpop.f32.mrb[0].mxu0
    %v6521 = vadd.f32 %v6478, %v6520
    %v6522 = vpop.f32.mrb[0].mxu0
    %v6523 = vadd.f32 %v6480, %v6522
    %6524 = vdwg.mxu0
    %6525 = vmatprep.subr.bf16.mxu0 %v5907
    %6526 = vmatpush1.bf16.msra.mxu0 %v5906
    %6527 = vmatprep.subr.bf16.mxu0 %v5911
    %6528 = vmatpush1.bf16.msra.mxu0 %v5910
    %6529 = vmatprep.subr.bf16.mxu0 %v5915
    %6530 = vmatpush1.bf16.msra.mxu0 %v5914
    %6531 = vmatprep.subr.bf16.mxu0 %v5919
    %6532 = vmatpush1.bf16.msra.mxu0 %v5918
    %6533 = vmatprep.subr.bf16.mxu0 %v5923
    %6534 = vmatpush1.bf16.msra.mxu0 %v5922
    %6535 = vmatprep.subr.bf16.mxu0 %v5927
    %6536 = vmatpush1.bf16.msra.mxu0 %v5926
    %6537 = vmatprep.subr.bf16.mxu0 %v5931
    %6538 = vmatpush1.bf16.msra.mxu0 %v5930
    %6539 = vmatprep.subr.bf16.mxu0 %v5935
    %6540 = vmatpush1.bf16.msra.mxu0 %v5934
    %6541 = vmatprep.subr.bf16.mxu0 %v5939
    %6542 = vmatpush1.bf16.msra.mxu0 %v5938
    %6543 = vmatprep.subr.bf16.mxu0 %v5943
    %6544 = vmatpush1.bf16.msra.mxu0 %v5942
    %6545 = vmatprep.subr.bf16.mxu0 %v5947
    %6546 = vmatpush1.bf16.msra.mxu0 %v5946
    %6547 = vmatprep.subr.bf16.mxu0 %v5951
    %6548 = vmatpush1.bf16.msra.mxu0 %v5950
    %6549 = vmatprep.subr.bf16.mxu0 %v5955
    %6550 = vmatpush1.bf16.msra.mxu0 %v5954
    %6551 = vmatprep.subr.bf16.mxu0 %v5959
    %6552 = vmatpush1.bf16.msra.mxu0 %v5958
    %6553 = vmatprep.subr.bf16.mxu0 %v5963
    %6554 = vmatpush1.bf16.msra.mxu0 %v5962
    %6555 = vmatprep.subr.bf16.mxu0 %v5967
    %6556 = vmatpush1.bf16.msra.mxu0 %v5966
    %6557 = vmatprep.mubr.bf16.mxu0 %v4665
    %6558 = vmatmul.mubr.bf16.gmra.mrb[0].mxu0 %v4664
    %v6559 = vpop.f32.mrb[0].mxu0
    %v6560 = vadd.f32 %v6517, %v6559
    %v6561 = vpop.f32.mrb[0].mxu0
    %v6562 = vadd.f32 %v6519, %v6561
    %v6563 = vpop.f32.mrb[0].mxu0
    %v6564 = vadd.f32 %v6521, %v6563
    %v6565 = vpop.f32.mrb[0].mxu0
    %v6566 = vadd.f32 %v6523, %v6565
    %6567 = vdwg.mxu0
    %v6568 = vmax.f32 %v6388, 0.0
    %v6569 = vmax.f32 %v6390, 0.0
    %v6570 = vmax.f32 %v6560, 0.0
    %v6571 = vmax.f32 %v6562, 0.0
    %v6572 = vmax.f32 %v6392, 0.0
    %v6573 = vmax.f32 %v6394, 0.0
    %v6574 = vmax.f32 %v6564, 0.0
    %v6575 = vmax.f32 %v6566, 0.0
    %v6576 = vpack.c.bf16 %v6572, %v6568
    %v6577 = vpack.c.bf16 %v6573, %v6569
    %v6578 = vpack.c.bf16 %v6574, %v6570
    %v6579 = vpack.c.bf16 %v6575, %v6571
    %v6580 = vld [vmem:[#allocation14] sm:$0xff]
    %v6581 = vld [vmem:[#allocation14 + $0x8] sm:$0xff]
    %v6582 = vld [vmem:[#allocation14 + $0x10] sm:$0xff]
    %v6583 = vld [vmem:[#allocation14 + $0x18] sm:$0xff]
    %v6584 = vld [vmem:[#allocation14 + $0x20] sm:$0xff]
    %v6585 = vld [vmem:[#allocation14 + $0x28] sm:$0xff]
    %v6586 = vld [vmem:[#allocation14 + $0x30] sm:$0xff]
    %v6587 = vld [vmem:[#allocation14 + $0x38] sm:$0xff]
    %v6588 = vld [vmem:[#allocation14 + $0x40] sm:$0xff]
    %v6589 = vld [vmem:[#allocation14 + $0x48] sm:$0xff]
    %v6590 = vld [vmem:[#allocation14 + $0x50] sm:$0xff]
    %v6591 = vld [vmem:[#allocation14 + $0x58] sm:$0xff]
    %v6592 = vld [vmem:[#allocation14 + $0x60] sm:$0xff]
    %v6593 = vld [vmem:[#allocation14 + $0x68] sm:$0xff]
    %v6594 = vld [vmem:[#allocation14 + $0x70] sm:$0xff]
    %v6595 = vld [vmem:[#allocation14 + $0x78] sm:$0xff]
    %v6596 = vld [vmem:[#allocation14 + $0x80] sm:$0xff]
    %v6597 = vld [vmem:[#allocation14 + $0x88] sm:$0xff]
    %v6598 = vld [vmem:[#allocation14 + $0x90] sm:$0xff]
    %v6599 = vld [vmem:[#allocation14 + $0x98] sm:$0xff]
    %v6600 = vld [vmem:[#allocation14 + $0xa0] sm:$0xff]
    %v6601 = vld [vmem:[#allocation14 + $0xa8] sm:$0xff]
    %v6602 = vld [vmem:[#allocation14 + $0xb0] sm:$0xff]
    %v6603 = vld [vmem:[#allocation14 + $0xb8] sm:$0xff]
    %v6604 = vld [vmem:[#allocation14 + $0xc0] sm:$0xff]
    %v6605 = vld [vmem:[#allocation14 + $0xc8] sm:$0xff]
    %v6606 = vld [vmem:[#allocation14 + $0xd0] sm:$0xff]
    %v6607 = vld [vmem:[#allocation14 + $0xd8] sm:$0xff]
    %v6608 = vld [vmem:[#allocation14 + $0xe0] sm:$0xff]
    %v6609 = vld [vmem:[#allocation14 + $0xe8] sm:$0xff]
    %v6610 = vld [vmem:[#allocation14 + $0xf0] sm:$0xff]
    %v6611 = vld [vmem:[#allocation14 + $0xf8] sm:$0xff]
    %v6612 = vld [vmem:[#allocation14 + $0x100] sm:$0xff]
    %v6613 = vld [vmem:[#allocation14 + $0x108] sm:$0xff]
    %v6614 = vld [vmem:[#allocation14 + $0x110] sm:$0xff]
    %v6615 = vld [vmem:[#allocation14 + $0x118] sm:$0xff]
    %v6616 = vld [vmem:[#allocation14 + $0x120] sm:$0xff]
    %v6617 = vld [vmem:[#allocation14 + $0x128] sm:$0xff]
    %v6618 = vld [vmem:[#allocation14 + $0x130] sm:$0xff]
    %v6619 = vld [vmem:[#allocation14 + $0x138] sm:$0xff]
    %v6620 = vld [vmem:[#allocation14 + $0x140] sm:$0xff]
    %v6621 = vld [vmem:[#allocation14 + $0x148] sm:$0xff]
    %v6622 = vld [vmem:[#allocation14 + $0x150] sm:$0xff]
    %v6623 = vld [vmem:[#allocation14 + $0x158] sm:$0xff]
    %v6624 = vld [vmem:[#allocation14 + $0x160] sm:$0xff]
    %v6625 = vld [vmem:[#allocation14 + $0x168] sm:$0xff]
    %v6626 = vld [vmem:[#allocation14 + $0x170] sm:$0xff]
    %v6627 = vld [vmem:[#allocation14 + $0x178] sm:$0xff]
    %v6628 = vld [vmem:[#allocation14 + $0x180] sm:$0xff]
    %v6629 = vld [vmem:[#allocation14 + $0x188] sm:$0xff]
    %v6630 = vld [vmem:[#allocation14 + $0x190] sm:$0xff]
    %v6631 = vld [vmem:[#allocation14 + $0x198] sm:$0xff]
    %v6632 = vld [vmem:[#allocation14 + $0x1a0] sm:$0xff]
    %v6633 = vld [vmem:[#allocation14 + $0x1a8] sm:$0xff]
    %v6634 = vld [vmem:[#allocation14 + $0x1b0] sm:$0xff]
    %v6635 = vld [vmem:[#allocation14 + $0x1b8] sm:$0xff]
    %v6636 = vld [vmem:[#allocation14 + $0x1c0] sm:$0xff]
    %v6637 = vld [vmem:[#allocation14 + $0x1c8] sm:$0xff]
    %v6638 = vld [vmem:[#allocation14 + $0x1d0] sm:$0xff]
    %v6639 = vld [vmem:[#allocation14 + $0x1d8] sm:$0xff]
    %v6640 = vld [vmem:[#allocation14 + $0x1e0] sm:$0xff]
    %v6641 = vld [vmem:[#allocation14 + $0x1e8] sm:$0xff]
    %v6642 = vld [vmem:[#allocation14 + $0x1f0] sm:$0xff]
    %v6643 = vld [vmem:[#allocation14 + $0x1f8] sm:$0xff]
    %v6644 = vld [vmem:[#allocation16] sm:$0x3]
    %v6646 = vlaneseq
    %v6647 = vshrl.u32 %v6646, 7
    %v6648 = vsub.s32 0, %v6647
    %v6649 = vrot.slane %v6644, %v6648
    %v6650 = vlaneseq
    %v6651 = vshrl.u32 %v6650, 7
    %v6652 = vsub.s32 1, %v6651
    %v6653 = vrot.slane %v6644, %v6652
    %v6720 = vunpack.c.l.b16 %v6580
    %v6721 = vunpack.c.h.b16 %v6580
    %v6722 = vunpack.c.l.b16 %v6581
    %v6723 = vunpack.c.h.b16 %v6581
    %v6724 = vunpack.c.l.b16 %v6582
    %v6725 = vunpack.c.h.b16 %v6582
    %v6726 = vunpack.c.l.b16 %v6583
    %v6727 = vunpack.c.h.b16 %v6583
    %v6728 = vunpack.c.l.b16 %v6584
    %v6729 = vunpack.c.h.b16 %v6584
    %v6730 = vunpack.c.l.b16 %v6585
    %v6731 = vunpack.c.h.b16 %v6585
    %v6732 = vunpack.c.l.b16 %v6586
    %v6733 = vunpack.c.h.b16 %v6586
    %v6734 = vunpack.c.l.b16 %v6587
    %v6735 = vunpack.c.h.b16 %v6587
    %v6736 = vunpack.c.l.b16 %v6588
    %v6737 = vunpack.c.h.b16 %v6588
    %v6738 = vunpack.c.l.b16 %v6589
    %v6739 = vunpack.c.h.b16 %v6589
    %v6740 = vunpack.c.l.b16 %v6590
    %v6741 = vunpack.c.h.b16 %v6590
    %v6742 = vunpack.c.l.b16 %v6591
    %v6743 = vunpack.c.h.b16 %v6591
    %v6744 = vunpack.c.l.b16 %v6592
    %v6745 = vunpack.c.h.b16 %v6592
    %v6746 = vunpack.c.l.b16 %v6593
    %v6747 = vunpack.c.h.b16 %v6593
    %v6748 = vunpack.c.l.b16 %v6594
    %v6749 = vunpack.c.h.b16 %v6594
    %v6750 = vunpack.c.l.b16 %v6595
    %v6751 = vunpack.c.h.b16 %v6595
    %v6752 = vunpack.c.l.b16 %v6596
    %v6753 = vunpack.c.h.b16 %v6596
    %v6754 = vunpack.c.l.b16 %v6597
    %v6755 = vunpack.c.h.b16 %v6597
    %v6756 = vunpack.c.l.b16 %v6598
    %v6757 = vunpack.c.h.b16 %v6598
    %v6758 = vunpack.c.l.b16 %v6599
    %v6759 = vunpack.c.h.b16 %v6599
    %v6760 = vunpack.c.l.b16 %v6600
    %v6761 = vunpack.c.h.b16 %v6600
    %v6762 = vunpack.c.l.b16 %v6601
    %v6763 = vunpack.c.h.b16 %v6601
    %v6764 = vunpack.c.l.b16 %v6602
    %v6765 = vunpack.c.h.b16 %v6602
    %v6766 = vunpack.c.l.b16 %v6603
    %v6767 = vunpack.c.h.b16 %v6603
    %v6768 = vunpack.c.l.b16 %v6604
    %v6769 = vunpack.c.h.b16 %v6604
    %v6770 = vunpack.c.l.b16 %v6605
    %v6771 = vunpack.c.h.b16 %v6605
    %v6772 = vunpack.c.l.b16 %v6606
    %v6773 = vunpack.c.h.b16 %v6606
    %v6774 = vunpack.c.l.b16 %v6607
    %v6775 = vunpack.c.h.b16 %v6607
    %v6776 = vunpack.c.l.b16 %v6608
    %v6777 = vunpack.c.h.b16 %v6608
    %v6778 = vunpack.c.l.b16 %v6609
    %v6779 = vunpack.c.h.b16 %v6609
    %v6780 = vunpack.c.l.b16 %v6610
    %v6781 = vunpack.c.h.b16 %v6610
    %v6782 = vunpack.c.l.b16 %v6611
    %v6783 = vunpack.c.h.b16 %v6611
    %v6784 = vunpack.c.l.b16 %v6612
    %v6785 = vunpack.c.h.b16 %v6612
    %v6786 = vunpack.c.l.b16 %v6613
    %v6787 = vunpack.c.h.b16 %v6613
    %v6788 = vunpack.c.l.b16 %v6614
    %v6789 = vunpack.c.h.b16 %v6614
    %v6790 = vunpack.c.l.b16 %v6615
    %v6791 = vunpack.c.h.b16 %v6615
    %v6792 = vunpack.c.l.b16 %v6616
    %v6793 = vunpack.c.h.b16 %v6616
    %v6794 = vunpack.c.l.b16 %v6617
    %v6795 = vunpack.c.h.b16 %v6617
    %v6796 = vunpack.c.l.b16 %v6618
    %v6797 = vunpack.c.h.b16 %v6618
    %v6798 = vunpack.c.l.b16 %v6619
    %v6799 = vunpack.c.h.b16 %v6619
    %v6800 = vunpack.c.l.b16 %v6620
    %v6801 = vunpack.c.h.b16 %v6620
    %v6802 = vunpack.c.l.b16 %v6621
    %v6803 = vunpack.c.h.b16 %v6621
    %v6804 = vunpack.c.l.b16 %v6622
    %v6805 = vunpack.c.h.b16 %v6622
    %v6806 = vunpack.c.l.b16 %v6623
    %v6807 = vunpack.c.h.b16 %v6623
    %v6808 = vunpack.c.l.b16 %v6624
    %v6809 = vunpack.c.h.b16 %v6624
    %v6810 = vunpack.c.l.b16 %v6625
    %v6811 = vunpack.c.h.b16 %v6625
    %v6812 = vunpack.c.l.b16 %v6626
    %v6813 = vunpack.c.h.b16 %v6626
    %v6814 = vunpack.c.l.b16 %v6627
    %v6815 = vunpack.c.h.b16 %v6627
    %v6816 = vunpack.c.l.b16 %v6628
    %v6817 = vunpack.c.h.b16 %v6628
    %v6818 = vunpack.c.l.b16 %v6629
    %v6819 = vunpack.c.h.b16 %v6629
    %v6820 = vunpack.c.l.b16 %v6630
    %v6821 = vunpack.c.h.b16 %v6630
    %v6822 = vunpack.c.l.b16 %v6631
    %v6823 = vunpack.c.h.b16 %v6631
    %v6824 = vunpack.c.l.b16 %v6632
    %v6825 = vunpack.c.h.b16 %v6632
    %v6826 = vunpack.c.l.b16 %v6633
    %v6827 = vunpack.c.h.b16 %v6633
    %v6828 = vunpack.c.l.b16 %v6634
    %v6829 = vunpack.c.h.b16 %v6634
    %v6830 = vunpack.c.l.b16 %v6635
    %v6831 = vunpack.c.h.b16 %v6635
    %v6832 = vunpack.c.l.b16 %v6636
    %v6833 = vunpack.c.h.b16 %v6636
    %v6834 = vunpack.c.l.b16 %v6637
    %v6835 = vunpack.c.h.b16 %v6637
    %v6836 = vunpack.c.l.b16 %v6638
    %v6837 = vunpack.c.h.b16 %v6638
    %v6838 = vunpack.c.l.b16 %v6639
    %v6839 = vunpack.c.h.b16 %v6639
    %v6840 = vunpack.c.l.b16 %v6640
    %v6841 = vunpack.c.h.b16 %v6640
    %v6842 = vunpack.c.l.b16 %v6641
    %v6843 = vunpack.c.h.b16 %v6641
    %v6844 = vunpack.c.l.b16 %v6642
    %v6845 = vunpack.c.h.b16 %v6642
    %v6846 = vunpack.c.l.b16 %v6643
    %v6847 = vunpack.c.h.b16 %v6643
    %v6848 = vpack.c.b16 %v6722, %v6720
    %v6849 = vpack.c.b16 %v6723, %v6721
    %v6850 = vpack.c.b16 %v6726, %v6724
    %v6851 = vpack.c.b16 %v6727, %v6725
    %v6852 = vpack.c.b16 %v6730, %v6728
    %v6853 = vpack.c.b16 %v6731, %v6729
    %v6854 = vpack.c.b16 %v6734, %v6732
    %v6855 = vpack.c.b16 %v6735, %v6733
    %v6856 = vpack.c.b16 %v6738, %v6736
    %v6857 = vpack.c.b16 %v6739, %v6737
    %v6858 = vpack.c.b16 %v6742, %v6740
    %v6859 = vpack.c.b16 %v6743, %v6741
    %v6860 = vpack.c.b16 %v6746, %v6744
    %v6861 = vpack.c.b16 %v6747, %v6745
    %v6862 = vpack.c.b16 %v6750, %v6748
    %v6863 = vpack.c.b16 %v6751, %v6749
    %v6864 = vpack.c.b16 %v6754, %v6752
    %v6865 = vpack.c.b16 %v6755, %v6753
    %v6866 = vpack.c.b16 %v6758, %v6756
    %v6867 = vpack.c.b16 %v6759, %v6757
    %v6868 = vpack.c.b16 %v6762, %v6760
    %v6869 = vpack.c.b16 %v6763, %v6761
    %v6870 = vpack.c.b16 %v6766, %v6764
    %v6871 = vpack.c.b16 %v6767, %v6765
    %v6872 = vpack.c.b16 %v6770, %v6768
    %v6873 = vpack.c.b16 %v6771, %v6769
    %v6874 = vpack.c.b16 %v6774, %v6772
    %v6875 = vpack.c.b16 %v6775, %v6773
    %v6876 = vpack.c.b16 %v6778, %v6776
    %v6877 = vpack.c.b16 %v6779, %v6777
    %v6878 = vpack.c.b16 %v6782, %v6780
    %v6879 = vpack.c.b16 %v6783, %v6781
    %v6880 = vpack.c.b16 %v6786, %v6784
    %v6881 = vpack.c.b16 %v6787, %v6785
    %v6882 = vpack.c.b16 %v6790, %v6788
    %v6883 = vpack.c.b16 %v6791, %v6789
    %v6884 = vpack.c.b16 %v6794, %v6792
    %v6885 = vpack.c.b16 %v6795, %v6793
    %v6886 = vpack.c.b16 %v6798, %v6796
    %v6887 = vpack.c.b16 %v6799, %v6797
    %v6888 = vpack.c.b16 %v6802, %v6800
    %v6889 = vpack.c.b16 %v6803, %v6801
    %v6890 = vpack.c.b16 %v6806, %v6804
    %v6891 = vpack.c.b16 %v6807, %v6805
    %v6892 = vpack.c.b16 %v6810, %v6808
    %v6893 = vpack.c.b16 %v6811, %v6809
    %v6894 = vpack.c.b16 %v6814, %v6812
    %v6895 = vpack.c.b16 %v6815, %v6813
    %v6896 = vpack.c.b16 %v6818, %v6816
    %v6897 = vpack.c.b16 %v6819, %v6817
    %v6898 = vpack.c.b16 %v6822, %v6820
    %v6899 = vpack.c.b16 %v6823, %v6821
    %v6900 = vpack.c.b16 %v6826, %v6824
    %v6901 = vpack.c.b16 %v6827, %v6825
    %v6902 = vpack.c.b16 %v6830, %v6828
    %v6903 = vpack.c.b16 %v6831, %v6829
    %v6904 = vpack.c.b16 %v6834, %v6832
    %v6905 = vpack.c.b16 %v6835, %v6833
    %v6906 = vpack.c.b16 %v6838, %v6836
    %v6907 = vpack.c.b16 %v6839, %v6837
    %v6908 = vpack.c.b16 %v6842, %v6840
    %v6909 = vpack.c.b16 %v6843, %v6841
    %v6910 = vpack.c.b16 %v6846, %v6844
    %v6911 = vpack.c.b16 %v6847, %v6845
    %6976 = vmatprep.subr.bf16.mxu0 %v6849
    %6977 = vmatpush1.bf16.msra.mxu0 %v6848
    %6978 = vmatprep.subr.bf16.mxu0 %v6851
    %6979 = vmatpush1.bf16.msra.mxu0 %v6850
    %6980 = vmatprep.subr.bf16.mxu0 %v6853
    %6981 = vmatpush1.bf16.msra.mxu0 %v6852
    %6982 = vmatprep.subr.bf16.mxu0 %v6855
    %6983 = vmatpush1.bf16.msra.mxu0 %v6854
    %6984 = vmatprep.subr.bf16.mxu0 %v6857
    %6985 = vmatpush1.bf16.msra.mxu0 %v6856
    %6986 = vmatprep.subr.bf16.mxu0 %v6859
    %6987 = vmatpush1.bf16.msra.mxu0 %v6858
    %6988 = vmatprep.subr.bf16.mxu0 %v6861
    %6989 = vmatpush1.bf16.msra.mxu0 %v6860
    %6990 = vmatprep.subr.bf16.mxu0 %v6863
    %6991 = vmatpush1.bf16.msra.mxu0 %v6862
    %6992 = vmatprep.subr.bf16.mxu0 %v6865
    %6993 = vmatpush1.bf16.msra.mxu0 %v6864
    %6994 = vmatprep.subr.bf16.mxu0 %v6867
    %6995 = vmatpush1.bf16.msra.mxu0 %v6866
    %6996 = vmatprep.subr.bf16.mxu0 %v6869
    %6997 = vmatpush1.bf16.msra.mxu0 %v6868
    %6998 = vmatprep.subr.bf16.mxu0 %v6871
    %6999 = vmatpush1.bf16.msra.mxu0 %v6870
    %7000 = vmatprep.subr.bf16.mxu0 %v6873
    %7001 = vmatpush1.bf16.msra.mxu0 %v6872
    %7002 = vmatprep.subr.bf16.mxu0 %v6875
    %7003 = vmatpush1.bf16.msra.mxu0 %v6874
    %7004 = vmatprep.subr.bf16.mxu0 %v6877
    %7005 = vmatpush1.bf16.msra.mxu0 %v6876
    %7006 = vmatprep.subr.bf16.mxu0 %v6879
    %7007 = vmatpush1.bf16.msra.mxu0 %v6878
    %7008 = vmatprep.mubr.bf16.mxu0 %v6577
    %7009 = vmatmul.mubr.bf16.gmra.mrb[0].mxu0 %v6576
    %v7010 = vpop.f32.mrb[0].mxu0
    %v7011 = vadd.f32 %v6649, %v7010
    %v7012 = vpop.f32.mrb[0].mxu0
    %v7013 = vadd.f32 %v6653, %v7012
    %v7014 = vpop.f32.mrb[0].mxu0
    %v7015 = vadd.f32 %v6649, %v7014
    %v7016 = vpop.f32.mrb[0].mxu0
    %v7017 = vadd.f32 %v6653, %v7016
    %7018 = vdwg.mxu0
    %7019 = vmatprep.subr.bf16.mxu0 %v6881
    %7020 = vmatpush1.bf16.msra.mxu0 %v6880
    %7021 = vmatprep.subr.bf16.mxu0 %v6883
    %7022 = vmatpush1.bf16.msra.mxu0 %v6882
    %7023 = vmatprep.subr.bf16.mxu0 %v6885
    %7024 = vmatpush1.bf16.msra.mxu0 %v6884
    %7025 = vmatprep.subr.bf16.mxu0 %v6887
    %7026 = vmatpush1.bf16.msra.mxu0 %v6886
    %7027 = vmatprep.subr.bf16.mxu0 %v6889
    %7028 = vmatpush1.bf16.msra.mxu0 %v6888
    %7029 = vmatprep.subr.bf16.mxu0 %v6891
    %7030 = vmatpush1.bf16.msra.mxu0 %v6890
    %7031 = vmatprep.subr.bf16.mxu0 %v6893
    %7032 = vmatpush1.bf16.msra.mxu0 %v6892
    %7033 = vmatprep.subr.bf16.mxu0 %v6895
    %7034 = vmatpush1.bf16.msra.mxu0 %v6894
    %7035 = vmatprep.subr.bf16.mxu0 %v6897
    %7036 = vmatpush1.bf16.msra.mxu0 %v6896
    %7037 = vmatprep.subr.bf16.mxu0 %v6899
    %7038 = vmatpush1.bf16.msra.mxu0 %v6898
    %7039 = vmatprep.subr.bf16.mxu0 %v6901
    %7040 = vmatpush1.bf16.msra.mxu0 %v6900
    %7041 = vmatprep.subr.bf16.mxu0 %v6903
    %7042 = vmatpush1.bf16.msra.mxu0 %v6902
    %7043 = vmatprep.subr.bf16.mxu0 %v6905
    %7044 = vmatpush1.bf16.msra.mxu0 %v6904
    %7045 = vmatprep.subr.bf16.mxu0 %v6907
    %7046 = vmatpush1.bf16.msra.mxu0 %v6906
    %7047 = vmatprep.subr.bf16.mxu0 %v6909
    %7048 = vmatpush1.bf16.msra.mxu0 %v6908
    %7049 = vmatprep.subr.bf16.mxu0 %v6911
    %7050 = vmatpush1.bf16.msra.mxu0 %v6910
    %7051 = vmatprep.mubr.bf16.mxu0 %v6579
    %7052 = vmatmul.mubr.bf16.gmra.mrb[0].mxu0 %v6578
    %v7053 = vpop.f32.mrb[0].mxu0
    %v7054 = vadd.f32 %v7011, %v7053
    %v7055 = vpop.f32.mrb[0].mxu0
    %v7056 = vadd.f32 %v7013, %v7055
    %v7057 = vpop.f32.mrb[0].mxu0
    %v7058 = vadd.f32 %v7015, %v7057
    %v7059 = vpop.f32.mrb[0].mxu0
    %v7060 = vadd.f32 %v7017, %v7059
    %7061 = vdwg.mxu0
    %v7062 = vmax.f32 %v7054, 0.0
    %v7063 = vmax.f32 %v7056, 0.0
    %v7064 = vmax.f32 %v7058, 0.0
    %v7065 = vmax.f32 %v7060, 0.0
    %v7066 = vpack.c.bf16 %v7064, %v7062
    %v7067 = vpack.c.bf16 %v7065, %v7063
    %v7068 = vld [vmem:[#allocation17] sm:$0xf]
    %v7069 = vld [vmem:[#allocation17 + $0x4] sm:$0xf]
    %v7070 = vld [vmem:[#allocation17 + $0x8] sm:$0xf]
    %v7071 = vld [vmem:[#allocation17 + $0xc] sm:$0xf]
    %v7072 = vld [vmem:[#allocation17 + $0x10] sm:$0xf]
    %v7073 = vld [vmem:[#allocation17 + $0x14] sm:$0xf]
    %v7074 = vld [vmem:[#allocation17 + $0x18] sm:$0xf]
    %v7075 = vld [vmem:[#allocation17 + $0x1c] sm:$0xf]
    %v7076 = vld [vmem:[#allocation17 + $0x20] sm:$0xf]
    %v7077 = vld [vmem:[#allocation17 + $0x24] sm:$0xf]
    %v7078 = vld [vmem:[#allocation17 + $0x28] sm:$0xf]
    %v7079 = vld [vmem:[#allocation17 + $0x2c] sm:$0xf]
    %v7080 = vld [vmem:[#allocation17 + $0x30] sm:$0xf]
    %v7081 = vld [vmem:[#allocation17 + $0x34] sm:$0xf]
    %v7082 = vld [vmem:[#allocation17 + $0x38] sm:$0xf]
    %v7083 = vld [vmem:[#allocation17 + $0x3c] sm:$0xf]
    %v7084 = vld [vmem:[#allocation17 + $0x40] sm:$0xf]
    %v7085 = vld [vmem:[#allocation17 + $0x44] sm:$0xf]
    %v7086 = vld [vmem:[#allocation17 + $0x48] sm:$0xf]
    %v7087 = vld [vmem:[#allocation17 + $0x4c] sm:$0xf]
    %v7088 = vld [vmem:[#allocation17 + $0x50] sm:$0xf]
    %v7089 = vld [vmem:[#allocation17 + $0x54] sm:$0xf]
    %v7090 = vld [vmem:[#allocation17 + $0x58] sm:$0xf]
    %v7091 = vld [vmem:[#allocation17 + $0x5c] sm:$0xf]
    %v7092 = vld [vmem:[#allocation17 + $0x60] sm:$0xf]
    %v7093 = vld [vmem:[#allocation17 + $0x64] sm:$0xf]
    %v7094 = vld [vmem:[#allocation17 + $0x68] sm:$0xf]
    %v7095 = vld [vmem:[#allocation17 + $0x6c] sm:$0xf]
    %v7096 = vld [vmem:[#allocation17 + $0x70] sm:$0xf]
    %v7097 = vld [vmem:[#allocation17 + $0x74] sm:$0xf]
    %v7098 = vld [vmem:[#allocation17 + $0x78] sm:$0xf]
    %v7099 = vld [vmem:[#allocation17 + $0x7c] sm:$0xf]
    %v7100 = vld [vmem:[#allocation19] sm:$0x1]
    %v7102 = vlaneseq
    %v7103 = vshrl.u32 %v7102, 7
    %v7104 = vsub.s32 0, %v7103
    %v7105 = vrot.slane %v7100, %v7104
    %v7139 = vunpack.c.l.b16 %v7068
    %v7140 = vunpack.c.l.b16 %v7069
    %v7141 = vunpack.c.l.b16 %v7070
    %v7142 = vunpack.c.l.b16 %v7071
    %v7143 = vunpack.c.l.b16 %v7072
    %v7144 = vunpack.c.l.b16 %v7073
    %v7145 = vunpack.c.l.b16 %v7074
    %v7146 = vunpack.c.l.b16 %v7075
    %v7147 = vunpack.c.l.b16 %v7076
    %v7148 = vunpack.c.l.b16 %v7077
    %v7149 = vunpack.c.l.b16 %v7078
    %v7150 = vunpack.c.l.b16 %v7079
    %v7151 = vunpack.c.l.b16 %v7080
    %v7152 = vunpack.c.l.b16 %v7081
    %v7153 = vunpack.c.l.b16 %v7082
    %v7154 = vunpack.c.l.b16 %v7083
    %v7155 = vunpack.c.l.b16 %v7084
    %v7156 = vunpack.c.l.b16 %v7085
    %v7157 = vunpack.c.l.b16 %v7086
    %v7158 = vunpack.c.l.b16 %v7087
    %v7159 = vunpack.c.l.b16 %v7088
    %v7160 = vunpack.c.l.b16 %v7089
    %v7161 = vunpack.c.l.b16 %v7090
    %v7162 = vunpack.c.l.b16 %v7091
    %v7163 = vunpack.c.l.b16 %v7092
    %v7164 = vunpack.c.l.b16 %v7093
    %v7165 = vunpack.c.l.b16 %v7094
    %v7166 = vunpack.c.l.b16 %v7095
    %v7167 = vunpack.c.l.b16 %v7096
    %v7168 = vunpack.c.l.b16 %v7097
    %v7169 = vunpack.c.l.b16 %v7098
    %v7170 = vunpack.c.l.b16 %v7099
    %v7171 = vpack.c.b16 %v7140, %v7139
    %v7172 = vpack.c.b16 %v7142, %v7141
    %v7173 = vpack.c.b16 %v7144, %v7143
    %v7174 = vpack.c.b16 %v7146, %v7145
    %v7175 = vpack.c.b16 %v7148, %v7147
    %v7176 = vpack.c.b16 %v7150, %v7149
    %v7177 = vpack.c.b16 %v7152, %v7151
    %v7178 = vpack.c.b16 %v7154, %v7153
    %v7179 = vpack.c.b16 %v7156, %v7155
    %v7180 = vpack.c.b16 %v7158, %v7157
    %v7181 = vpack.c.b16 %v7160, %v7159
    %v7182 = vpack.c.b16 %v7162, %v7161
    %v7183 = vpack.c.b16 %v7164, %v7163
    %v7184 = vpack.c.b16 %v7166, %v7165
    %v7185 = vpack.c.b16 %v7168, %v7167
    %v7186 = vpack.c.b16 %v7170, %v7169
    %7203 = vmatprep.subr.bf16.mxu0 0
    %7204 = vmatpush1.bf16.msra.mxu0 %v7171
    %7205 = vmatprep.subr.bf16.mxu0 0
    %7206 = vmatpush1.bf16.msra.mxu0 %v7172
    %7207 = vmatprep.subr.bf16.mxu0 0
    %7208 = vmatpush1.bf16.msra.mxu0 %v7173
    %7209 = vmatprep.subr.bf16.mxu0 0
    %7210 = vmatpush1.bf16.msra.mxu0 %v7174
    %7211 = vmatprep.subr.bf16.mxu0 0
    %7212 = vmatpush1.bf16.msra.mxu0 %v7175
    %7213 = vmatprep.subr.bf16.mxu0 0
    %7214 = vmatpush1.bf16.msra.mxu0 %v7176
    %7215 = vmatprep.subr.bf16.mxu0 0
    %7216 = vmatpush1.bf16.msra.mxu0 %v7177
    %7217 = vmatprep.subr.bf16.mxu0 0
    %7218 = vmatpush1.bf16.msra.mxu0 %v7178
    %7219 = vmatprep.subr.bf16.mxu0 0
    %7220 = vmatpush1.bf16.msra.mxu0 %v7179
    %7221 = vmatprep.subr.bf16.mxu0 0
    %7222 = vmatpush1.bf16.msra.mxu0 %v7180
    %7223 = vmatprep.subr.bf16.mxu0 0
    %7224 = vmatpush1.bf16.msra.mxu0 %v7181
    %7225 = vmatprep.subr.bf16.mxu0 0
    %7226 = vmatpush1.bf16.msra.mxu0 %v7182
    %7227 = vmatprep.subr.bf16.mxu0 0
    %7228 = vmatpush1.bf16.msra.mxu0 %v7183
    %7229 = vmatprep.subr.bf16.mxu0 0
    %7230 = vmatpush1.bf16.msra.mxu0 %v7184
    %7231 = vmatprep.subr.bf16.mxu0 0
    %7232 = vmatpush1.bf16.msra.mxu0 %v7185
    %7233 = vmatprep.subr.bf16.mxu0 0
    %7234 = vmatpush1.bf16.msra.mxu0 %v7186
    %7235 = vmatprep.mubr.bf16.mxu0 %v7067
    %7236 = vmatmul.mubr.bf16.gmra.mrb[0].mxu0 %v7066
    %v7237 = vpop.f32.mrb[0].mxu0
    %v7238 = vadd.f32 %v7105, %v7237
    %v7239 = vpop.f32.mrb[0].mxu0
    %v7240 = vpop.f32.mrb[0].mxu0
    %v7241 = vadd.f32 %v7105, %v7240
    %v7242 = vpop.f32.mrb[0].mxu0
    %7243 = vdwg.mxu0
    %v7244 = vmax.f32 %v7238, 0.0
    %v7245 = vmax.f32 %v7241, 0.0
    %v7246 = vpack.c.bf16 %v7245, %v7244
    %v7247 = vld [vmem:[#allocation20] sm:$0xff]
    %v7248 = vld [vmem:[#allocation20 + $0x8] sm:$0xff]
    %v7249 = vld [vmem:[#allocation20 + $0x10] sm:$0xff]
    %v7250 = vld [vmem:[#allocation20 + $0x18] sm:$0xff]
    %v7251 = vld [vmem:[#allocation20 + $0x20] sm:$0xff]
    %v7252 = vld [vmem:[#allocation20 + $0x28] sm:$0xff]
    %v7253 = vld [vmem:[#allocation20 + $0x30] sm:$0xff]
    %v7254 = vld [vmem:[#allocation20 + $0x38] sm:$0xff]
    %v7255 = vld [vmem:[#allocation20 + $0x40] sm:$0xff]
    %v7256 = vld [vmem:[#allocation20 + $0x48] sm:$0xff]
    %v7257 = vld [vmem:[#allocation20 + $0x50] sm:$0xff]
    %v7258 = vld [vmem:[#allocation20 + $0x58] sm:$0xff]
    %v7259 = vld [vmem:[#allocation20 + $0x60] sm:$0xff]
    %v7260 = vld [vmem:[#allocation20 + $0x68] sm:$0xff]
    %v7261 = vld [vmem:[#allocation20 + $0x70] sm:$0xff]
    %v7262 = vld [vmem:[#allocation20 + $0x78] sm:$0xff]
    %v7263 = vld [vmem:[#allocation20 + $0x80] sm:$0xff]
    %v7264 = vld [vmem:[#allocation20 + $0x88] sm:$0xff]
    %v7265 = vld [vmem:[#allocation20 + $0x90] sm:$0xff]
    %v7266 = vld [vmem:[#allocation20 + $0x98] sm:$0xff]
    %v7267 = vld [vmem:[#allocation20 + $0xa0] sm:$0xff]
    %v7268 = vld [vmem:[#allocation20 + $0xa8] sm:$0xff]
    %v7269 = vld [vmem:[#allocation20 + $0xb0] sm:$0xff]
    %v7270 = vld [vmem:[#allocation20 + $0xb8] sm:$0xff]
    %v7271 = vld [vmem:[#allocation20 + $0xc0] sm:$0xff]
    %v7272 = vld [vmem:[#allocation20 + $0xc8] sm:$0xff]
    %v7273 = vld [vmem:[#allocation20 + $0xd0] sm:$0xff]
    %v7274 = vld [vmem:[#allocation20 + $0xd8] sm:$0xff]
    %v7275 = vld [vmem:[#allocation20 + $0xe0] sm:$0xff]
    %v7276 = vld [vmem:[#allocation20 + $0xe8] sm:$0xff]
    %v7277 = vld [vmem:[#allocation20 + $0xf0] sm:$0xff]
    %v7278 = vld [vmem:[#allocation20 + $0xf8] sm:$0xff]
    %v7279 = vld [vmem:[#allocation20 + $0x100] sm:$0xff]
    %v7280 = vld [vmem:[#allocation20 + $0x108] sm:$0xff]
    %v7281 = vld [vmem:[#allocation20 + $0x110] sm:$0xff]
    %v7282 = vld [vmem:[#allocation20 + $0x118] sm:$0xff]
    %v7283 = vld [vmem:[#allocation20 + $0x120] sm:$0xff]
    %v7284 = vld [vmem:[#allocation20 + $0x128] sm:$0xff]
    %v7285 = vld [vmem:[#allocation20 + $0x130] sm:$0xff]
    %v7286 = vld [vmem:[#allocation20 + $0x138] sm:$0xff]
    %v7287 = vld [vmem:[#allocation20 + $0x140] sm:$0xff]
    %v7288 = vld [vmem:[#allocation20 + $0x148] sm:$0xff]
    %v7289 = vld [vmem:[#allocation20 + $0x150] sm:$0xff]
    %v7290 = vld [vmem:[#allocation20 + $0x158] sm:$0xff]
    %v7291 = vld [vmem:[#allocation20 + $0x160] sm:$0xff]
    %v7292 = vld [vmem:[#allocation20 + $0x168] sm:$0xff]
    %v7293 = vld [vmem:[#allocation20 + $0x170] sm:$0xff]
    %v7294 = vld [vmem:[#allocation20 + $0x178] sm:$0xff]
    %v7295 = vld [vmem:[#allocation20 + $0x180] sm:$0xff]
    %v7296 = vld [vmem:[#allocation20 + $0x188] sm:$0xff]
    %v7297 = vld [vmem:[#allocation20 + $0x190] sm:$0xff]
    %v7298 = vld [vmem:[#allocation20 + $0x198] sm:$0xff]
    %v7299 = vld [vmem:[#allocation20 + $0x1a0] sm:$0xff]
    %v7300 = vld [vmem:[#allocation20 + $0x1a8] sm:$0xff]
    %v7301 = vld [vmem:[#allocation20 + $0x1b0] sm:$0xff]
    %v7302 = vld [vmem:[#allocation20 + $0x1b8] sm:$0xff]
    %v7303 = vld [vmem:[#allocation20 + $0x1c0] sm:$0xff]
    %v7304 = vld [vmem:[#allocation20 + $0x1c8] sm:$0xff]
    %v7305 = vld [vmem:[#allocation20 + $0x1d0] sm:$0xff]
    %v7306 = vld [vmem:[#allocation20 + $0x1d8] sm:$0xff]
    %v7307 = vld [vmem:[#allocation20 + $0x1e0] sm:$0xff]
    %v7308 = vld [vmem:[#allocation20 + $0x1e8] sm:$0xff]
    %v7309 = vld [vmem:[#allocation20 + $0x1f0] sm:$0xff]
    %v7310 = vld [vmem:[#allocation20 + $0x1f8] sm:$0xff]
    %v7311 = vld [vmem:[#allocation22] sm:$0xff]
    %v7313 = vlaneseq
    %v7314 = vshrl.u32 %v7313, 7
    %v7315 = vsub.s32 0, %v7314
    %v7316 = vrot.slane %v7311, %v7315
    %v7317 = vlaneseq
    %v7318 = vshrl.u32 %v7317, 7
    %v7319 = vsub.s32 1, %v7318
    %v7320 = vrot.slane %v7311, %v7319
    %v7321 = vlaneseq
    %v7322 = vshrl.u32 %v7321, 7
    %v7323 = vsub.s32 2, %v7322
    %v7324 = vrot.slane %v7311, %v7323
    %v7325 = vlaneseq
    %v7326 = vshrl.u32 %v7325, 7
    %v7327 = vsub.s32 3, %v7326
    %v7328 = vrot.slane %v7311, %v7327
    %v7329 = vlaneseq
    %v7330 = vshrl.u32 %v7329, 7
    %v7331 = vsub.s32 4, %v7330
    %v7332 = vrot.slane %v7311, %v7331
    %v7333 = vlaneseq
    %v7334 = vshrl.u32 %v7333, 7
    %v7335 = vsub.s32 5, %v7334
    %v7336 = vrot.slane %v7311, %v7335
    %v7337 = vlaneseq
    %v7338 = vshrl.u32 %v7337, 7
    %v7339 = vsub.s32 6, %v7338
    %v7340 = vrot.slane %v7311, %v7339
    %v7341 = vlaneseq
    %v7342 = vshrl.u32 %v7341, 7
    %v7343 = vsub.s32 7, %v7342
    %v7344 = vrot.slane %v7311, %v7343
    %v7417 = vunpack.c.l.b16 %v7247
    %v7418 = vunpack.c.h.b16 %v7247
    %v7419 = vunpack.c.l.b16 %v7248
    %v7420 = vunpack.c.h.b16 %v7248
    %v7421 = vunpack.c.l.b16 %v7249
    %v7422 = vunpack.c.h.b16 %v7249
    %v7423 = vunpack.c.l.b16 %v7250
    %v7424 = vunpack.c.h.b16 %v7250
    %v7425 = vunpack.c.l.b16 %v7251
    %v7426 = vunpack.c.h.b16 %v7251
    %v7427 = vunpack.c.l.b16 %v7252
    %v7428 = vunpack.c.h.b16 %v7252
    %v7429 = vunpack.c.l.b16 %v7253
    %v7430 = vunpack.c.h.b16 %v7253
    %v7431 = vunpack.c.l.b16 %v7254
    %v7432 = vunpack.c.h.b16 %v7254
    %v7433 = vunpack.c.l.b16 %v7255
    %v7434 = vunpack.c.h.b16 %v7255
    %v7435 = vunpack.c.l.b16 %v7256
    %v7436 = vunpack.c.h.b16 %v7256
    %v7437 = vunpack.c.l.b16 %v7257
    %v7438 = vunpack.c.h.b16 %v7257
    %v7439 = vunpack.c.l.b16 %v7258
    %v7440 = vunpack.c.h.b16 %v7258
    %v7441 = vunpack.c.l.b16 %v7259
    %v7442 = vunpack.c.h.b16 %v7259
    %v7443 = vunpack.c.l.b16 %v7260
    %v7444 = vunpack.c.h.b16 %v7260
    %v7445 = vunpack.c.l.b16 %v7261
    %v7446 = vunpack.c.h.b16 %v7261
    %v7447 = vunpack.c.l.b16 %v7262
    %v7448 = vunpack.c.h.b16 %v7262
    %v7449 = vunpack.c.l.b16 %v7263
    %v7450 = vunpack.c.h.b16 %v7263
    %v7451 = vunpack.c.l.b16 %v7264
    %v7452 = vunpack.c.h.b16 %v7264
    %v7453 = vunpack.c.l.b16 %v7265
    %v7454 = vunpack.c.h.b16 %v7265
    %v7455 = vunpack.c.l.b16 %v7266
    %v7456 = vunpack.c.h.b16 %v7266
    %v7457 = vunpack.c.l.b16 %v7267
    %v7458 = vunpack.c.h.b16 %v7267
    %v7459 = vunpack.c.l.b16 %v7268
    %v7460 = vunpack.c.h.b16 %v7268
    %v7461 = vunpack.c.l.b16 %v7269
    %v7462 = vunpack.c.h.b16 %v7269
    %v7463 = vunpack.c.l.b16 %v7270
    %v7464 = vunpack.c.h.b16 %v7270
    %v7465 = vunpack.c.l.b16 %v7271
    %v7466 = vunpack.c.h.b16 %v7271
    %v7467 = vunpack.c.l.b16 %v7272
    %v7468 = vunpack.c.h.b16 %v7272
    %v7469 = vunpack.c.l.b16 %v7273
    %v7470 = vunpack.c.h.b16 %v7273
    %v7471 = vunpack.c.l.b16 %v7274
    %v7472 = vunpack.c.h.b16 %v7274
    %v7473 = vunpack.c.l.b16 %v7275
    %v7474 = vunpack.c.h.b16 %v7275
    %v7475 = vunpack.c.l.b16 %v7276
    %v7476 = vunpack.c.h.b16 %v7276
    %v7477 = vunpack.c.l.b16 %v7277
    %v7478 = vunpack.c.h.b16 %v7277
    %v7479 = vunpack.c.l.b16 %v7278
    %v7480 = vunpack.c.h.b16 %v7278
    %v7481 = vunpack.c.l.b16 %v7279
    %v7482 = vunpack.c.h.b16 %v7279
    %v7483 = vunpack.c.l.b16 %v7280
    %v7484 = vunpack.c.h.b16 %v7280
    %v7485 = vunpack.c.l.b16 %v7281
    %v7486 = vunpack.c.h.b16 %v7281
    %v7487 = vunpack.c.l.b16 %v7282
    %v7488 = vunpack.c.h.b16 %v7282
    %v7489 = vunpack.c.l.b16 %v7283
    %v7490 = vunpack.c.h.b16 %v7283
    %v7491 = vunpack.c.l.b16 %v7284
    %v7492 = vunpack.c.h.b16 %v7284
    %v7493 = vunpack.c.l.b16 %v7285
    %v7494 = vunpack.c.h.b16 %v7285
    %v7495 = vunpack.c.l.b16 %v7286
    %v7496 = vunpack.c.h.b16 %v7286
    %v7497 = vunpack.c.l.b16 %v7287
    %v7498 = vunpack.c.h.b16 %v7287
    %v7499 = vunpack.c.l.b16 %v7288
    %v7500 = vunpack.c.h.b16 %v7288
    %v7501 = vunpack.c.l.b16 %v7289
    %v7502 = vunpack.c.h.b16 %v7289
    %v7503 = vunpack.c.l.b16 %v7290
    %v7504 = vunpack.c.h.b16 %v7290
    %v7505 = vunpack.c.l.b16 %v7291
    %v7506 = vunpack.c.h.b16 %v7291
    %v7507 = vunpack.c.l.b16 %v7292
    %v7508 = vunpack.c.h.b16 %v7292
    %v7509 = vunpack.c.l.b16 %v7293
    %v7510 = vunpack.c.h.b16 %v7293
    %v7511 = vunpack.c.l.b16 %v7294
    %v7512 = vunpack.c.h.b16 %v7294
    %v7513 = vunpack.c.l.b16 %v7295
    %v7514 = vunpack.c.h.b16 %v7295
    %v7515 = vunpack.c.l.b16 %v7296
    %v7516 = vunpack.c.h.b16 %v7296
    %v7517 = vunpack.c.l.b16 %v7297
    %v7518 = vunpack.c.h.b16 %v7297
    %v7519 = vunpack.c.l.b16 %v7298
    %v7520 = vunpack.c.h.b16 %v7298
    %v7521 = vunpack.c.l.b16 %v7299
    %v7522 = vunpack.c.h.b16 %v7299
    %v7523 = vunpack.c.l.b16 %v7300
    %v7524 = vunpack.c.h.b16 %v7300
    %v7525 = vunpack.c.l.b16 %v7301
    %v7526 = vunpack.c.h.b16 %v7301
    %v7527 = vunpack.c.l.b16 %v7302
    %v7528 = vunpack.c.h.b16 %v7302
    %v7529 = vunpack.c.l.b16 %v7303
    %v7530 = vunpack.c.h.b16 %v7303
    %v7531 = vunpack.c.l.b16 %v7304
    %v7532 = vunpack.c.h.b16 %v7304
    %v7533 = vunpack.c.l.b16 %v7305
    %v7534 = vunpack.c.h.b16 %v7305
    %v7535 = vunpack.c.l.b16 %v7306
    %v7536 = vunpack.c.h.b16 %v7306
    %v7537 = vunpack.c.l.b16 %v7307
    %v7538 = vunpack.c.h.b16 %v7307
    %v7539 = vunpack.c.l.b16 %v7308
    %v7540 = vunpack.c.h.b16 %v7308
    %v7541 = vunpack.c.l.b16 %v7309
    %v7542 = vunpack.c.h.b16 %v7309
    %v7543 = vunpack.c.l.b16 %v7310
    %v7544 = vunpack.c.h.b16 %v7310
    %v7545 = vpack.c.b16 %v7425, %v7417
    %v7546 = vpack.c.b16 %v7426, %v7418
    %v7547 = vpack.c.b16 %v7427, %v7419
    %v7548 = vpack.c.b16 %v7428, %v7420
    %v7549 = vpack.c.b16 %v7429, %v7421
    %v7550 = vpack.c.b16 %v7430, %v7422
    %v7551 = vpack.c.b16 %v7431, %v7423
    %v7552 = vpack.c.b16 %v7432, %v7424
    %v7553 = vpack.c.b16 %v7441, %v7433
    %v7554 = vpack.c.b16 %v7442, %v7434
    %v7555 = vpack.c.b16 %v7443, %v7435
    %v7556 = vpack.c.b16 %v7444, %v7436
    %v7557 = vpack.c.b16 %v7445, %v7437
    %v7558 = vpack.c.b16 %v7446, %v7438
    %v7559 = vpack.c.b16 %v7447, %v7439
    %v7560 = vpack.c.b16 %v7448, %v7440
    %v7561 = vpack.c.b16 %v7457, %v7449
    %v7562 = vpack.c.b16 %v7458, %v7450
    %v7563 = vpack.c.b16 %v7459, %v7451
    %v7564 = vpack.c.b16 %v7460, %v7452
    %v7565 = vpack.c.b16 %v7461, %v7453
    %v7566 = vpack.c.b16 %v7462, %v7454
    %v7567 = vpack.c.b16 %v7463, %v7455
    %v7568 = vpack.c.b16 %v7464, %v7456
    %v7569 = vpack.c.b16 %v7473, %v7465
    %v7570 = vpack.c.b16 %v7474, %v7466
    %v7571 = vpack.c.b16 %v7475, %v7467
    %v7572 = vpack.c.b16 %v7476, %v7468
    %v7573 = vpack.c.b16 %v7477, %v7469
    %v7574 = vpack.c.b16 %v7478, %v7470
    %v7575 = vpack.c.b16 %v7479, %v7471
    %v7576 = vpack.c.b16 %v7480, %v7472
    %v7577 = vpack.c.b16 %v7489, %v7481
    %v7578 = vpack.c.b16 %v7490, %v7482
    %v7579 = vpack.c.b16 %v7491, %v7483
    %v7580 = vpack.c.b16 %v7492, %v7484
    %v7581 = vpack.c.b16 %v7493, %v7485
    %v7582 = vpack.c.b16 %v7494, %v7486
    %v7583 = vpack.c.b16 %v7495, %v7487
    %v7584 = vpack.c.b16 %v7496, %v7488
    %v7585 = vpack.c.b16 %v7505, %v7497
    %v7586 = vpack.c.b16 %v7506, %v7498
    %v7587 = vpack.c.b16 %v7507, %v7499
    %v7588 = vpack.c.b16 %v7508, %v7500
    %v7589 = vpack.c.b16 %v7509, %v7501
    %v7590 = vpack.c.b16 %v7510, %v7502
    %v7591 = vpack.c.b16 %v7511, %v7503
    %v7592 = vpack.c.b16 %v7512, %v7504
    %v7593 = vpack.c.b16 %v7521, %v7513
    %v7594 = vpack.c.b16 %v7522, %v7514
    %v7595 = vpack.c.b16 %v7523, %v7515
    %v7596 = vpack.c.b16 %v7524, %v7516
    %v7597 = vpack.c.b16 %v7525, %v7517
    %v7598 = vpack.c.b16 %v7526, %v7518
    %v7599 = vpack.c.b16 %v7527, %v7519
    %v7600 = vpack.c.b16 %v7528, %v7520
    %v7601 = vpack.c.b16 %v7537, %v7529
    %v7602 = vpack.c.b16 %v7538, %v7530
    %v7603 = vpack.c.b16 %v7539, %v7531
    %v7604 = vpack.c.b16 %v7540, %v7532
    %v7605 = vpack.c.b16 %v7541, %v7533
    %v7606 = vpack.c.b16 %v7542, %v7534
    %v7607 = vpack.c.b16 %v7543, %v7535
    %v7608 = vpack.c.b16 %v7544, %v7536
    %7673 = vmatprep.subr.bf16.mxu0 %v7546
    %7674 = vmatpush1.bf16.msra.mxu0 %v7545
    %7675 = vmatprep.subr.bf16.mxu0 %v7554
    %7676 = vmatpush1.bf16.msra.mxu0 %v7553
    %7677 = vmatprep.subr.bf16.mxu0 %v7562
    %7678 = vmatpush1.bf16.msra.mxu0 %v7561
    %7679 = vmatprep.subr.bf16.mxu0 %v7570
    %7680 = vmatpush1.bf16.msra.mxu0 %v7569
    %7681 = vmatprep.subr.bf16.mxu0 %v7578
    %7682 = vmatpush1.bf16.msra.mxu0 %v7577
    %7683 = vmatprep.subr.bf16.mxu0 %v7586
    %7684 = vmatpush1.bf16.msra.mxu0 %v7585
    %7685 = vmatprep.subr.bf16.mxu0 %v7594
    %7686 = vmatpush1.bf16.msra.mxu0 %v7593
    %7687 = vmatprep.subr.bf16.mxu0 %v7602
    %7688 = vmatpush1.bf16.msra.mxu0 %v7601
    %7689 = vmatprep.subr.bf16.mxu0 0
    %7690 = vmatpush1.bf16.msra.mxu0 0
    %7691 = vmatprep.subr.bf16.mxu0 0
    %7692 = vmatpush1.bf16.msra.mxu0 0
    %7693 = vmatprep.subr.bf16.mxu0 0
    %7694 = vmatpush1.bf16.msra.mxu0 0
    %7695 = vmatprep.subr.bf16.mxu0 0
    %7696 = vmatpush1.bf16.msra.mxu0 0
    %7697 = vmatprep.subr.bf16.mxu0 0
    %7698 = vmatpush1.bf16.msra.mxu0 0
    %7699 = vmatprep.subr.bf16.mxu0 0
    %7700 = vmatpush1.bf16.msra.mxu0 0
    %7701 = vmatprep.subr.bf16.mxu0 0
    %7702 = vmatpush1.bf16.msra.mxu0 0
    %7703 = vmatprep.subr.bf16.mxu0 0
    %7704 = vmatpush1.bf16.msra.mxu0 0
    %7705 = vmatprep.mubr.bf16.mxu0 0
    %7706 = vmatmul.mubr.bf16.gmra.mrb[0].mxu0 %v7246
    %v7707 = vpop.f32.mrb[0].mxu0
    %v7708 = vadd.f32 %v7316, %v7707
    %v7709 = vpop.f32.mrb[0].mxu0
    %v7710 = vadd.f32 %v7320, %v7709
    %v7711 = vpop.f32.mrb[0].mxu0
    %v7712 = vadd.f32 %v7316, %v7711
    %v7713 = vpop.f32.mrb[0].mxu0
    %v7714 = vadd.f32 %v7320, %v7713
    %7715 = vdwg.mxu0
    %7716 = vmatprep.subr.bf16.mxu0 %v7548
    %7717 = vmatpush1.bf16.msra.mxu0 %v7547
    %7718 = vmatprep.subr.bf16.mxu0 %v7556
    %7719 = vmatpush1.bf16.msra.mxu0 %v7555
    %7720 = vmatprep.subr.bf16.mxu0 %v7564
    %7721 = vmatpush1.bf16.msra.mxu0 %v7563
    %7722 = vmatprep.subr.bf16.mxu0 %v7572
    %7723 = vmatpush1.bf16.msra.mxu0 %v7571
    %7724 = vmatprep.subr.bf16.mxu0 %v7580
    %7725 = vmatpush1.bf16.msra.mxu0 %v7579
    %7726 = vmatprep.subr.bf16.mxu0 %v7588
    %7727 = vmatpush1.bf16.msra.mxu0 %v7587
    %7728 = vmatprep.subr.bf16.mxu0 %v7596
    %7729 = vmatpush1.bf16.msra.mxu0 %v7595
    %7730 = vmatprep.subr.bf16.mxu0 %v7604
    %7731 = vmatpush1.bf16.msra.mxu0 %v7603
    %7732 = vmatprep.subr.bf16.mxu0 0
    %7733 = vmatpush1.bf16.msra.mxu0 0
    %7734 = vmatprep.subr.bf16.mxu0 0
    %7735 = vmatpush1.bf16.msra.mxu0 0
    %7736 = vmatprep.subr.bf16.mxu0 0
    %7737 = vmatpush1.bf16.msra.mxu0 0
    %7738 = vmatprep.subr.bf16.mxu0 0
    %7739 = vmatpush1.bf16.msra.mxu0 0
    %7740 = vmatprep.subr.bf16.mxu0 0
    %7741 = vmatpush1.bf16.msra.mxu0 0
    %7742 = vmatprep.subr.bf16.mxu0 0
    %7743 = vmatpush1.bf16.msra.mxu0 0
    %7744 = vmatprep.subr.bf16.mxu0 0
    %7745 = vmatpush1.bf16.msra.mxu0 0
    %7746 = vmatprep.subr.bf16.mxu0 0
    %7747 = vmatpush1.bf16.msra.mxu0 0
    %7748 = vmatprep.mubr.bf16.mxu0 0
    %7749 = vmatmul.mubr.bf16.gmra.mrb[0].mxu0 %v7246
    %v7750 = vpop.f32.mrb[0].mxu0
    %v7751 = vadd.f32 %v7324, %v7750
    %v7752 = vpop.f32.mrb[0].mxu0
    %v7753 = vadd.f32 %v7328, %v7752
    %v7754 = vpop.f32.mrb[0].mxu0
    %v7755 = vadd.f32 %v7324, %v7754
    %v7756 = vpop.f32.mrb[0].mxu0
    %v7757 = vadd.f32 %v7328, %v7756
    %7758 = vdwg.mxu0
    %7759 = vmatprep.subr.bf16.mxu0 %v7550
    %7760 = vmatpush1.bf16.msra.mxu0 %v7549
    %7761 = vmatprep.subr.bf16.mxu0 %v7558
    %7762 = vmatpush1.bf16.msra.mxu0 %v7557
    %7763 = vmatprep.subr.bf16.mxu0 %v7566
    %7764 = vmatpush1.bf16.msra.mxu0 %v7565
    %7765 = vmatprep.subr.bf16.mxu0 %v7574
    %7766 = vmatpush1.bf16.msra.mxu0 %v7573
    %7767 = vmatprep.subr.bf16.mxu0 %v7582
    %7768 = vmatpush1.bf16.msra.mxu0 %v7581
    %7769 = vmatprep.subr.bf16.mxu0 %v7590
    %7770 = vmatpush1.bf16.msra.mxu0 %v7589
    %7771 = vmatprep.subr.bf16.mxu0 %v7598
    %7772 = vmatpush1.bf16.msra.mxu0 %v7597
    %7773 = vmatprep.subr.bf16.mxu0 %v7606
    %7774 = vmatpush1.bf16.msra.mxu0 %v7605
    %7775 = vmatprep.subr.bf16.mxu0 0
    %7776 = vmatpush1.bf16.msra.mxu0 0
    %7777 = vmatprep.subr.bf16.mxu0 0
    %7778 = vmatpush1.bf16.msra.mxu0 0
    %7779 = vmatprep.subr.bf16.mxu0 0
    %7780 = vmatpush1.bf16.msra.mxu0 0
    %7781 = vmatprep.subr.bf16.mxu0 0
    %7782 = vmatpush1.bf16.msra.mxu0 0
    %7783 = vmatprep.subr.bf16.mxu0 0
    %7784 = vmatpush1.bf16.msra.mxu0 0
    %7785 = vmatprep.subr.bf16.mxu0 0
    %7786 = vmatpush1.bf16.msra.mxu0 0
    %7787 = vmatprep.subr.bf16.mxu0 0
    %7788 = vmatpush1.bf16.msra.mxu0 0
    %7789 = vmatprep.subr.bf16.mxu0 0
    %7790 = vmatpush1.bf16.msra.mxu0 0
    %7791 = vmatprep.mubr.bf16.mxu0 0
    %7792 = vmatmul.mubr.bf16.gmra.mrb[0].mxu0 %v7246
    %v7793 = vpop.f32.mrb[0].mxu0
    %v7794 = vadd.f32 %v7332, %v7793
    %v7795 = vpop.f32.mrb[0].mxu0
    %v7796 = vadd.f32 %v7336, %v7795
    %v7797 = vpop.f32.mrb[0].mxu0
    %v7798 = vadd.f32 %v7332, %v7797
    %v7799 = vpop.f32.mrb[0].mxu0
    %v7800 = vadd.f32 %v7336, %v7799
    %7801 = vdwg.mxu0
    %7802 = vmatprep.subr.bf16.mxu0 %v7552
    %7803 = vmatpush1.bf16.msra.mxu0 %v7551
    %7804 = vmatprep.subr.bf16.mxu0 %v7560
    %7805 = vmatpush1.bf16.msra.mxu0 %v7559
    %7806 = vmatprep.subr.bf16.mxu0 %v7568
    %7807 = vmatpush1.bf16.msra.mxu0 %v7567
    %7808 = vmatprep.subr.bf16.mxu0 %v7576
    %7809 = vmatpush1.bf16.msra.mxu0 %v7575
    %7810 = vmatprep.subr.bf16.mxu0 %v7584
    %7811 = vmatpush1.bf16.msra.mxu0 %v7583
    %7812 = vmatprep.subr.bf16.mxu0 %v7592
    %7813 = vmatpush1.bf16.msra.mxu0 %v7591
    %7814 = vmatprep.subr.bf16.mxu0 %v7600
    %7815 = vmatpush1.bf16.msra.mxu0 %v7599
    %7816 = vmatprep.subr.bf16.mxu0 %v7608
    %7817 = vmatpush1.bf16.msra.mxu0 %v7607
    %7818 = vmatprep.subr.bf16.mxu0 0
    %7819 = vmatpush1.bf16.msra.mxu0 0
    %7820 = vmatprep.subr.bf16.mxu0 0
    %7821 = vmatpush1.bf16.msra.mxu0 0
    %7822 = vmatprep.subr.bf16.mxu0 0
    %7823 = vmatpush1.bf16.msra.mxu0 0
    %7824 = vmatprep.subr.bf16.mxu0 0
    %7825 = vmatpush1.bf16.msra.mxu0 0
    %7826 = vmatprep.subr.bf16.mxu0 0
    %7827 = vmatpush1.bf16.msra.mxu0 0
    %7828 = vmatprep.subr.bf16.mxu0 0
    %7829 = vmatpush1.bf16.msra.mxu0 0
    %7830 = vmatprep.subr.bf16.mxu0 0
    %7831 = vmatpush1.bf16.msra.mxu0 0
    %7832 = vmatprep.subr.bf16.mxu0 0
    %7833 = vmatpush1.bf16.msra.mxu0 0
    %7834 = vmatprep.mubr.bf16.mxu0 0
    %7835 = vmatmul.mubr.bf16.gmra.mrb[0].mxu0 %v7246
    %v7836 = vpop.f32.mrb[0].mxu0
    %v7837 = vadd.f32 %v7340, %v7836
    %v7838 = vpop.f32.mrb[0].mxu0
    %v7839 = vadd.f32 %v7344, %v7838
    %v7840 = vpop.f32.mrb[0].mxu0
    %v7841 = vadd.f32 %v7340, %v7840
    %v7842 = vpop.f32.mrb[0].mxu0
    %v7843 = vadd.f32 %v7344, %v7842
    %7844 = vdwg.mxu0
    %v7845 = vmax.f32 %v7708, 0.0
    %v7846 = vmax.f32 %v7710, 0.0
    %v7847 = vmax.f32 %v7751, 0.0
    %v7848 = vmax.f32 %v7753, 0.0
    %v7849 = vmax.f32 %v7794, 0.0
    %v7850 = vmax.f32 %v7796, 0.0
    %v7851 = vmax.f32 %v7837, 0.0
    %v7852 = vmax.f32 %v7839, 0.0
    %v7853 = vmax.f32 %v7712, 0.0
    %v7854 = vmax.f32 %v7714, 0.0
    %v7855 = vmax.f32 %v7755, 0.0
    %v7856 = vmax.f32 %v7757, 0.0
    %v7857 = vmax.f32 %v7798, 0.0
    %v7858 = vmax.f32 %v7800, 0.0
    %v7859 = vmax.f32 %v7841, 0.0
    %v7860 = vmax.f32 %v7843, 0.0
    %v7861 = vpack.c.bf16 %v7853, %v7845
    %v7862 = vpack.c.bf16 %v7854, %v7846
    %v7863 = vpack.c.bf16 %v7855, %v7847
    %v7864 = vpack.c.bf16 %v7856, %v7848
    %v7865 = vpack.c.bf16 %v7857, %v7849
    %v7866 = vpack.c.bf16 %v7858, %v7850
    %v7867 = vpack.c.bf16 %v7859, %v7851
    %v7868 = vpack.c.bf16 %v7860, %v7852
    %v7877 = vunpack.c.l.b16 %v7861
    %v7878 = vunpack.c.l.b16 %v7862
    %v7879 = vunpack.c.l.b16 %v7863
    %v7880 = vunpack.c.l.b16 %v7864
    %v7881 = vunpack.c.l.b16 %v7865
    %v7882 = vunpack.c.l.b16 %v7866
    %v7883 = vunpack.c.l.b16 %v7867
    %v7884 = vunpack.c.l.b16 %v7868
    %v7885 = vunpack.c.h.b16 %v7861
    %v7886 = vunpack.c.h.b16 %v7862
    %v7887 = vunpack.c.h.b16 %v7863
    %v7888 = vunpack.c.h.b16 %v7864
    %v7889 = vunpack.c.h.b16 %v7865
    %v7890 = vunpack.c.h.b16 %v7866
    %v7891 = vunpack.c.h.b16 %v7867
    %v7892 = vunpack.c.h.b16 %v7868
    %v7893 = vpack.c.b16 %v7878, %v7877
    %v7894 = vpack.c.b16 %v7880, %v7879
    %v7895 = vpack.c.b16 %v7882, %v7881
    %v7896 = vpack.c.b16 %v7884, %v7883
    %v7897 = vpack.c.b16 %v7886, %v7885
    %v7898 = vpack.c.b16 %v7888, %v7887
    %v7899 = vpack.c.b16 %v7890, %v7889
    %v7900 = vpack.c.b16 %v7892, %v7891
    %7909 = vst [vmem:[#allocation23] sm:$0xff] %v7893
    %7910 = vst [vmem:[#allocation23 + $0x8] sm:$0xff] %v7894
    %7911 = vst [vmem:[#allocation23 + $0x10] sm:$0xff] %v7895
    %7912 = vst [vmem:[#allocation23 + $0x18] sm:$0xff] %v7896
    %7913 = vst [vmem:[#allocation23 + $0x20] sm:$0xff] %v7897
    %7914 = vst [vmem:[#allocation23 + $0x28] sm:$0xff] %v7898
    %7915 = vst [vmem:[#allocation23 + $0x30] sm:$0xff] %v7899
    %7916 = vst [vmem:[#allocation23 + $0x38] sm:$0xff] %v7900
    // Predicated region
    $region106: #{tpu_custom_call.1} parent=1 // pred_check
      _
    $region107: #{tpu_custom_call.1} parent=1 // pred_check_branch
      %7918 = sbr.rel (0) target = $region109
    $region108: #{tpu_custom_call.1} parent=1 // pred_region
      %s7920 = ssub.s32 1024, 1024
      %7921 = vsyncadd [#allocation4], %s7920
      %s7922 = sshll.u32 [#allocation23], 4
      %s7923 = int_to_ptr.vmem [resolvable:$true] %s7922
      %7928 = dma.vmem_to_hbm [thread:$0]  %s7923, 1024, %s13, [#allocation4], 512, 512, 32
    $region109: #{tpu_custom_call.1} parent=1 // pred_fallthru
      _
    // Predicated region
    $region110: #{tpu_custom_call.1} parent=1 // pred_check
      _
    $region111: #{tpu_custom_call.1} parent=1 // pred_check_branch
      %7930 = sbr.rel (0) target = $region113
    $region112: #{tpu_custom_call.1} parent=1 // pred_region
      %7931 = dma.done [#allocation4], 1024
    $region113: #{tpu_custom_call.1} parent=1 // pred_fallthru
      _
    %7932 = vsyncpa [#allocation3], 1
    %7933 = vsyncpa [#allocation6], 1
    %7934 = vsyncpa [#allocation9], 1
    %7935 = vsyncpa [#allocation12], 1
    %7936 = vsyncpa [#allocation15], 1
    %7937 = vsyncpa [#allocation18], 1
    %7938 = vsyncpa [#allocation21], 1
    %7939 = vsyncpa [#allocation4], 1

</llo_original>
